<compile_context>
chip_gen: v6e
topology: v6e:2x2x1
jax: 0.10.0
libtpu: 0.0.40
codegen_flags: <defaults>
</compile_context>

<pallas_src>
import jax
import jax.numpy as jnp
from jax.experimental import pallas as pl
from jax.experimental.pallas import tpu as pltpu

KH, KW = 3, 5
POOL_W = 3
C1, C2 = 32, 64
BN_EPS = 1e-5


def _feature_extractor_kernel(x_ref, w1_ref, w2_ref, p1_ref, p2_ref, o_ref):
    NB, H, W = x_ref.shape
    H1, W1 = H - KH + 1, W - KW + 1
    WP1 = W1 // POOL_W
    H2, W2 = H1 - KH + 1, WP1 - KW + 1
    WP2 = W2 // POOL_W

    # ---- stage 1: Conv2d(1,32,(3,5)) + BN + PReLU + MaxPool((1,3)) ----------
    # banded GEMM per kernel row, pooling = max over 3 pool phases.
    lhs1 = [x_ref[:, dh:dh + H1, :].reshape(NB * H1, W).astype(jnp.bfloat16)
            for dh in range(KH)]
    b1 = p1_ref[0:1, :]                       # (1, WP1*C1) bias (BN shift folded)
    a1 = p1_ref[1:2, :]                       # (1, WP1*C1) PReLU alpha
    pool1 = None
    for j in range(POOL_W):
        acc = jnp.dot(lhs1[0], w1_ref[j * KH],
                      preferred_element_type=jnp.float32)
        for dh in range(1, KH):
            acc = acc + jnp.dot(lhs1[dh], w1_ref[j * KH + dh],
                                preferred_element_type=jnp.float32)
        z = acc + b1
        z = jnp.where(z > 0, z, a1 * z)       # PReLU applied per phase, pre-max
        pool1 = z if pool1 is None else jnp.maximum(pool1, z)
    pool1 = pool1.reshape(NB, H1, WP1 * C1)   # rows=(n,h1), cols=(wp, c1)

    # ---- stage 2: Conv2d(32,64,(3,5)) + BN + PReLU + MaxPool((1,3)) ---------
    lhs2 = [pool1[:, dh:dh + H2, :].reshape(NB * H2, WP1 * C1).astype(jnp.bfloat16)
            for dh in range(KH)]
    b2 = p2_ref[0:1, :]
    a2 = p2_ref[1:2, :]
    out = None
    for j in range(POOL_W):
        acc = jnp.dot(lhs2[0], w2_ref[j * KH],
                      preferred_element_type=jnp.float32)
        for dh in range(1, KH):
            acc = acc + jnp.dot(lhs2[dh], w2_ref[j * KH + dh],
                                preferred_element_type=jnp.float32)
        z = acc + b2
        z = jnp.where(z > 0, z, a2 * z)
        out = z if out is None else jnp.maximum(out, z)

    o_ref[...] = out                          # (NB*H2, WP2*C2) single bulk store


def _pooled_banded_weight(w, in_width, out_width, pool, phase):
    """w: (KH, KW, Cin, Cout) conv weight (BN scale already folded).

    Returns B of shape (KH, in_width*Cin, out_width*Cout) such that for a
    channels-minor row x of length in_width*Cin,
      (x @ B[dh])[o*Cout + co] = sum_{dw,ci} x[(pool*o + phase + dw)*Cin + ci]
                                             * w[dh, dw, ci, co]
    i.e. one kernel-row of the conv evaluated at spatial column pool*o + phase.
    """
    kh, kw, cin, cout = w.shape
    p = jnp.arange(in_width)
    o = jnp.arange(out_width)
    dw = p[:, None] - (pool * o[None, :] + phase)             # (in_w, out_w)
    valid = (dw >= 0) & (dw < kw)
    g = w[:, jnp.clip(dw, 0, kw - 1), :, :]                   # (kh, in_w, out_w, cin, cout)
    g = jnp.where(valid[None, :, :, None, None], g, 0.0)
    g = jnp.transpose(g, (0, 1, 3, 2, 4))                     # (kh, in_w, cin, out_w, cout)
    return g.reshape(kh, in_width * cin, out_width * cout)


def _prepare_kernel_params(params, H, W):
    H1, W1 = H - KH + 1, W - KW + 1
    WP1 = W1 // POOL_W
    H2, W2 = H1 - KH + 1, WP1 - KW + 1
    WP2 = W2 // POOL_W

    def fold(gamma, beta, mean, var, conv_bias):
        s = gamma / jnp.sqrt(var + BN_EPS)          # BN scale
        b = beta + (conv_bias - mean) * s           # BN shift (incl. conv bias)
        return s, b

    s1, b1 = fold(params["bn1_gamma"], params["bn1_beta"],
                  params["bn1_mean"], params["bn1_var"], params["conv1_b"])
    s2, b2 = fold(params["bn2_gamma"], params["bn2_beta"],
                  params["bn2_mean"], params["bn2_var"], params["conv2_b"])

    # (Cout, Cin, KH, KW) -> (KH, KW, Cin, Cout) with BN scale folded in.
    w1 = jnp.transpose(params["conv1_w"], (2, 3, 1, 0)) * s1     # (KH,KW,1,C1)
    w2 = jnp.transpose(params["conv2_w"], (2, 3, 1, 0)) * s2     # (KH,KW,C1,C2)

    w1b = jnp.stack([_pooled_banded_weight(w1, W, WP1, POOL_W, j)
                     for j in range(POOL_W)])                    # (3, KH, W, WP1*C1)
    w1b = w1b.reshape(POOL_W * KH, W, WP1 * C1).astype(jnp.bfloat16)
    w2b = jnp.stack([_pooled_banded_weight(w2, WP1, WP2, POOL_W, j)
                     for j in range(POOL_W)])                    # (3, KH, WP1*C1, WP2*C2)
    w2b = w2b.reshape(POOL_W * KH, WP1 * C1, WP2 * C2).astype(jnp.bfloat16)

    # per-channel (bias, PReLU alpha), tiled to the flat (w, c) column layout.
    p1 = jnp.stack([jnp.tile(b1, WP1),
                    jnp.tile(params["prelu1_a"], WP1)]).astype(jnp.float32)
    p2 = jnp.stack([jnp.tile(b2, WP2),
                    jnp.tile(params["prelu2_a"], WP2)]).astype(jnp.float32)
    return w1b, w2b, p1, p2


def feature_extractor_forward(x_nchw, params, *, block_n=8):
    """Eval-mode forward of FeatureExtractor. x_nchw: (N, 1, H, W)."""
    N, C, H, W = x_nchw.shape
    assert C == 1, "FeatureExtractor expects a single input channel"
    H1, W1 = H - KH + 1, W - KW + 1
    WP1 = W1 // POOL_W
    H2, W2 = H1 - KH + 1, WP1 - KW + 1
    WP2 = W2 // POOL_W
    assert H1 >= 1 and W1 >= POOL_W and H2 >= 1 and W2 >= POOL_W

    w1b, w2b, p1, p2 = _prepare_kernel_params(params, H, W)

    # batch block per grid step (keep >=2 grid steps for realistic N on v7x).
    NB = max(1, min(block_n, N))
    if NB < N and NB % 8 != 0:          # keep the sublane-facing dim 8-aligned
        NB = max(8, (NB // 8) * 8)
    n_blocks = pl.cdiv(N, NB)
    n_pad = n_blocks * NB

    x = x_nchw[:, 0, :, :].astype(jnp.float32)                   # (N, H, W)
    if n_pad != N:
        x = jnp.pad(x, ((0, n_pad - N), (0, 0), (0, 0)))

    out = pl.pallas_call(
        _feature_extractor_kernel,
        out_shape=jax.ShapeDtypeStruct((n_pad * H2, WP2 * C2), jnp.float32),
        grid=(n_blocks,),
        in_specs=[
            pl.BlockSpec((NB, H, W), lambda i: (i, 0, 0)),
            pl.BlockSpec(w1b.shape, lambda i: (0, 0, 0)),
            pl.BlockSpec(w2b.shape, lambda i: (0, 0, 0)),
            pl.BlockSpec(p1.shape, lambda i: (0, 0)),
            pl.BlockSpec(p2.shape, lambda i: (0, 0)),
        ],
        out_specs=pl.BlockSpec((NB * H2, WP2 * C2), lambda i: (i, 0)),
        compiler_params=pltpu.CompilerParams(
            dimension_semantics=("parallel",)),
    )(x, w1b, w2b, p1, p2)

    out = out.reshape(n_pad, H2, WP2, C2)[:N]
    feat = jnp.transpose(out, (0, 3, 1, 2))                      # (N, 64, H2, WP2)
    # NOTE: torch .squeeze() also drops the batch/spatial dims when they are 1.
    return jnp.squeeze(feat)


def init_params(key):
    """PyTorch-equivalent init: kaiming_normal_ conv weights, zero conv biases,
    default BatchNorm (gamma=1, beta=0, running mean=0/var=1), PReLU alpha=0.25."""
    k1, k2 = jax.random.split(key)
    w1 = jax.random.normal(k1, (C1, 1, KH, KW), jnp.float32) * jnp.sqrt(
        2.0 / (1 * KH * KW))
    w2 = jax.random.normal(k2, (C2, C1, KH, KW), jnp.float32) * jnp.sqrt(
        2.0 / (C1 * KH * KW))
    return dict(
        conv1_w=w1, conv1_b=jnp.zeros((C1,), jnp.float32),
        conv2_w=w2, conv2_b=jnp.zeros((C2,), jnp.float32),
        bn1_gamma=jnp.ones((C1,), jnp.float32), bn1_beta=jnp.zeros((C1,), jnp.float32),
        bn1_mean=jnp.zeros((C1,), jnp.float32), bn1_var=jnp.ones((C1,), jnp.float32),
        bn2_gamma=jnp.ones((C2,), jnp.float32), bn2_beta=jnp.zeros((C2,), jnp.float32),
        bn2_mean=jnp.zeros((C2,), jnp.float32), bn2_var=jnp.ones((C2,), jnp.float32),
        prelu1_a=jnp.full((C1,), 0.25, jnp.float32),
        prelu2_a=jnp.full((C2,), 0.25, jnp.float32),
    )


if __name__ == "__main__":
    key = jax.random.PRNGKey(0)
    pkey, xkey = jax.random.split(key)
    params = init_params(pkey)

    # small raw-EMG-like input: batch=16, 1 channel, 8 electrodes, 49 time steps
    x = jax.random.normal(xkey, (16, 1, 8, 49), jnp.float32)

    fwd = jax.jit(feature_extractor_forward)
    feats = fwd(x, params)
    jax.block_until_ready(feats)
    assert feats.shape == (16, C2, 4, 3), feats.shape
    print("KERNEL_OK")
</pallas_src>

<mosaic_0001>
module attributes {stable_mosaic.version = 11 : i64} {
  func.func @_feature_extractor_kernel(%arg0: i32, %arg1: memref<8x8x49xf32, #tpu.memory_space<vmem>>, %arg2: memref<9x49x480xbf16, #tpu.memory_space<vmem>>, %arg3: memref<9x480x192xbf16, #tpu.memory_space<vmem>>, %arg4: memref<2x480xf32, #tpu.memory_space<vmem>>, %arg5: memref<2x192xf32, #tpu.memory_space<vmem>>, %arg6: memref<32x192xf32, #tpu.memory_space<vmem>>) attributes {dimension_semantics = [#tpu.dimension_semantics<parallel>], iteration_bounds = array<i64: 2>, scalar_prefetch = 0 : i64, scratch_operands = 0 : i64, tpu.core_type = #tpu.core_type<tc>, window_params = [{transform_indices = @transform_0, window_bounds = array<i64: 8, 8, 49>}, {pipeline_mode = #tpu.pipeline_mode<synchronous>, transform_indices = @transform_1, window_bounds = array<i64: 9, 49, 480>}, {pipeline_mode = #tpu.pipeline_mode<synchronous>, transform_indices = @transform_2, window_bounds = array<i64: 9, 480, 192>}, {pipeline_mode = #tpu.pipeline_mode<synchronous>, transform_indices = @transform_3, window_bounds = array<i64: 2, 480>}, {pipeline_mode = #tpu.pipeline_mode<synchronous>, transform_indices = @transform_4, window_bounds = array<i64: 2, 192>}, {transform_indices = @transform_5, window_bounds = array<i64: 32, 192>}]} {
    %c0 = arith.constant 0 : index
    %c0_0 = arith.constant 0 : index
    %c0_1 = arith.constant 0 : index
    %0 = vector.load %arg1[%c0, %c0_0, %c0_1] : memref<8x8x49xf32, #tpu.memory_space<vmem>>, vector<8x6x49xf32>
    %1 = vector.shape_cast %0 : vector<8x6x49xf32> to vector<48x49xf32>
    %2 = arith.truncf %1 : vector<48x49xf32> to vector<48x49xbf16>
    %c0_2 = arith.constant 0 : index
    %c1 = arith.constant 1 : index
    %c0_3 = arith.constant 0 : index
    %3 = vector.load %arg1[%c0_2, %c1, %c0_3] : memref<8x8x49xf32, #tpu.memory_space<vmem>>, vector<8x6x49xf32>
    %4 = vector.shape_cast %3 : vector<8x6x49xf32> to vector<48x49xf32>
    %5 = arith.truncf %4 : vector<48x49xf32> to vector<48x49xbf16>
    %c0_4 = arith.constant 0 : index
    %c2 = arith.constant 2 : index
    %c0_5 = arith.constant 0 : index
    %6 = vector.load %arg1[%c0_4, %c2, %c0_5] : memref<8x8x49xf32, #tpu.memory_space<vmem>>, vector<8x6x49xf32>
    %7 = vector.shape_cast %6 : vector<8x6x49xf32> to vector<48x49xf32>
    %8 = arith.truncf %7 : vector<48x49xf32> to vector<48x49xbf16>
    %c0_6 = arith.constant 0 : index
    %c0_7 = arith.constant 0 : index
    %9 = vector.load %arg4[%c0_6, %c0_7] : memref<2x480xf32, #tpu.memory_space<vmem>>, vector<1x480xf32>
    %c1_8 = arith.constant 1 : index
    %c0_9 = arith.constant 0 : index
    %10 = vector.load %arg4[%c1_8, %c0_9] : memref<2x480xf32, #tpu.memory_space<vmem>>, vector<1x480xf32>
    %c0_10 = arith.constant 0 : index
    %c0_11 = arith.constant 0 : index
    %c0_12 = arith.constant 0 : index
    %11 = vector.load %arg2[%c0_10, %c0_11, %c0_12] : memref<9x49x480xbf16, #tpu.memory_space<vmem>>, vector<1x49x480xbf16>
    %12 = vector.shape_cast %11 : vector<1x49x480xbf16> to vector<49x480xbf16>
    %cst = arith.constant dense<0.000000e+00> : vector<48x480xf32>
    %13 = tpu.matmul %2, %12, %cst {dimension_numbers = #tpu.dot_dimension_numbers<[1], [0], [0], [1], [0, 0, 1, 1], [], []>} : vector<48x49xbf16>, vector<49x480xbf16>, vector<48x480xf32> -> vector<48x480xf32>
    %c1_13 = arith.constant 1 : index
    %c0_14 = arith.constant 0 : index
    %c0_15 = arith.constant 0 : index
    %14 = vector.load %arg2[%c1_13, %c0_14, %c0_15] : memref<9x49x480xbf16, #tpu.memory_space<vmem>>, vector<1x49x480xbf16>
    %15 = vector.shape_cast %14 : vector<1x49x480xbf16> to vector<49x480xbf16>
    %cst_16 = arith.constant dense<0.000000e+00> : vector<48x480xf32>
    %16 = tpu.matmul %5, %15, %cst_16 {dimension_numbers = #tpu.dot_dimension_numbers<[1], [0], [0], [1], [0, 0, 1, 1], [], []>} : vector<48x49xbf16>, vector<49x480xbf16>, vector<48x480xf32> -> vector<48x480xf32>
    %17 = arith.addf %13, %16 : vector<48x480xf32>
    %c2_17 = arith.constant 2 : index
    %c0_18 = arith.constant 0 : index
    %c0_19 = arith.constant 0 : index
    %18 = vector.load %arg2[%c2_17, %c0_18, %c0_19] : memref<9x49x480xbf16, #tpu.memory_space<vmem>>, vector<1x49x480xbf16>
    %19 = vector.shape_cast %18 : vector<1x49x480xbf16> to vector<49x480xbf16>
    %cst_20 = arith.constant dense<0.000000e+00> : vector<48x480xf32>
    %20 = tpu.matmul %8, %19, %cst_20 {dimension_numbers = #tpu.dot_dimension_numbers<[1], [0], [0], [1], [0, 0, 1, 1], [], []>} : vector<48x49xbf16>, vector<49x480xbf16>, vector<48x480xf32> -> vector<48x480xf32>
    %21 = arith.addf %17, %20 : vector<48x480xf32>
    %22 = vector.broadcast %9 : vector<1x480xf32> to vector<48x480xf32>
    %23 = arith.addf %21, %22 : vector<48x480xf32>
    %cst_21 = arith.constant 0.000000e+00 : f32
    %24 = vector.broadcast %cst_21 : f32 to vector<48x480xf32>
    %25 = arith.cmpf ogt, %23, %24 : vector<48x480xf32>
    %26 = vector.broadcast %10 : vector<1x480xf32> to vector<48x480xf32>
    %27 = arith.mulf %26, %23 : vector<48x480xf32>
    %28 = arith.select %25, %23, %27 : vector<48x480xi1>, vector<48x480xf32>
    %c3 = arith.constant 3 : index
    %c0_22 = arith.constant 0 : index
    %c0_23 = arith.constant 0 : index
    %29 = vector.load %arg2[%c3, %c0_22, %c0_23] : memref<9x49x480xbf16, #tpu.memory_space<vmem>>, vector<1x49x480xbf16>
    %30 = vector.shape_cast %29 : vector<1x49x480xbf16> to vector<49x480xbf16>
    %cst_24 = arith.constant dense<0.000000e+00> : vector<48x480xf32>
    %31 = tpu.matmul %2, %30, %cst_24 {dimension_numbers = #tpu.dot_dimension_numbers<[1], [0], [0], [1], [0, 0, 1, 1], [], []>} : vector<48x49xbf16>, vector<49x480xbf16>, vector<48x480xf32> -> vector<48x480xf32>
    %c4 = arith.constant 4 : index
    %c0_25 = arith.constant 0 : index
    %c0_26 = arith.constant 0 : index
    %32 = vector.load %arg2[%c4, %c0_25, %c0_26] : memref<9x49x480xbf16, #tpu.memory_space<vmem>>, vector<1x49x480xbf16>
    %33 = vector.shape_cast %32 : vector<1x49x480xbf16> to vector<49x480xbf16>
    %cst_27 = arith.constant dense<0.000000e+00> : vector<48x480xf32>
    %34 = tpu.matmul %5, %33, %cst_27 {dimension_numbers = #tpu.dot_dimension_numbers<[1], [0], [0], [1], [0, 0, 1, 1], [], []>} : vector<48x49xbf16>, vector<49x480xbf16>, vector<48x480xf32> -> vector<48x480xf32>
    %35 = arith.addf %31, %34 : vector<48x480xf32>
    %c5 = arith.constant 5 : index
    %c0_28 = arith.constant 0 : index
    %c0_29 = arith.constant 0 : index
    %36 = vector.load %arg2[%c5, %c0_28, %c0_29] : memref<9x49x480xbf16, #tpu.memory_space<vmem>>, vector<1x49x480xbf16>
    %37 = vector.shape_cast %36 : vector<1x49x480xbf16> to vector<49x480xbf16>
    %cst_30 = arith.constant dense<0.000000e+00> : vector<48x480xf32>
    %38 = tpu.matmul %8, %37, %cst_30 {dimension_numbers = #tpu.dot_dimension_numbers<[1], [0], [0], [1], [0, 0, 1, 1], [], []>} : vector<48x49xbf16>, vector<49x480xbf16>, vector<48x480xf32> -> vector<48x480xf32>
    %39 = arith.addf %35, %38 : vector<48x480xf32>
    %40 = vector.broadcast %9 : vector<1x480xf32> to vector<48x480xf32>
    %41 = arith.addf %39, %40 : vector<48x480xf32>
    %cst_31 = arith.constant 0.000000e+00 : f32
    %42 = vector.broadcast %cst_31 : f32 to vector<48x480xf32>
    %43 = arith.cmpf ogt, %41, %42 : vector<48x480xf32>
    %44 = vector.broadcast %10 : vector<1x480xf32> to vector<48x480xf32>
    %45 = arith.mulf %44, %41 : vector<48x480xf32>
    %46 = arith.select %43, %41, %45 : vector<48x480xi1>, vector<48x480xf32>
    %47 = arith.maximumf %28, %46 : vector<48x480xf32>
    %c6 = arith.constant 6 : index
    %c0_32 = arith.constant 0 : index
    %c0_33 = arith.constant 0 : index
    %48 = vector.load %arg2[%c6, %c0_32, %c0_33] : memref<9x49x480xbf16, #tpu.memory_space<vmem>>, vector<1x49x480xbf16>
    %49 = vector.shape_cast %48 : vector<1x49x480xbf16> to vector<49x480xbf16>
    %cst_34 = arith.constant dense<0.000000e+00> : vector<48x480xf32>
    %50 = tpu.matmul %2, %49, %cst_34 {dimension_numbers = #tpu.dot_dimension_numbers<[1], [0], [0], [1], [0, 0, 1, 1], [], []>} : vector<48x49xbf16>, vector<49x480xbf16>, vector<48x480xf32> -> vector<48x480xf32>
    %c7 = arith.constant 7 : index
    %c0_35 = arith.constant 0 : index
    %c0_36 = arith.constant 0 : index
    %51 = vector.load %arg2[%c7, %c0_35, %c0_36] : memref<9x49x480xbf16, #tpu.memory_space<vmem>>, vector<1x49x480xbf16>
    %52 = vector.shape_cast %51 : vector<1x49x480xbf16> to vector<49x480xbf16>
    %cst_37 = arith.constant dense<0.000000e+00> : vector<48x480xf32>
    %53 = tpu.matmul %5, %52, %cst_37 {dimension_numbers = #tpu.dot_dimension_numbers<[1], [0], [0], [1], [0, 0, 1, 1], [], []>} : vector<48x49xbf16>, vector<49x480xbf16>, vector<48x480xf32> -> vector<48x480xf32>
    %54 = arith.addf %50, %53 : vector<48x480xf32>
    %c8 = arith.constant 8 : index
    %c0_38 = arith.constant 0 : index
    %c0_39 = arith.constant 0 : index
    %55 = vector.load %arg2[%c8, %c0_38, %c0_39] : memref<9x49x480xbf16, #tpu.memory_space<vmem>>, vector<1x49x480xbf16>
    %56 = vector.shape_cast %55 : vector<1x49x480xbf16> to vector<49x480xbf16>
    %cst_40 = arith.constant dense<0.000000e+00> : vector<48x480xf32>
    %57 = tpu.matmul %8, %56, %cst_40 {dimension_numbers = #tpu.dot_dimension_numbers<[1], [0], [0], [1], [0, 0, 1, 1], [], []>} : vector<48x49xbf16>, vector<49x480xbf16>, vector<48x480xf32> -> vector<48x480xf32>
    %58 = arith.addf %54, %57 : vector<48x480xf32>
    %59 = vector.broadcast %9 : vector<1x480xf32> to vector<48x480xf32>
    %60 = arith.addf %58, %59 : vector<48x480xf32>
    %cst_41 = arith.constant 0.000000e+00 : f32
    %61 = vector.broadcast %cst_41 : f32 to vector<48x480xf32>
    %62 = arith.cmpf ogt, %60, %61 : vector<48x480xf32>
    %63 = vector.broadcast %10 : vector<1x480xf32> to vector<48x480xf32>
    %64 = arith.mulf %63, %60 : vector<48x480xf32>
    %65 = arith.select %62, %60, %64 : vector<48x480xi1>, vector<48x480xf32>
    %66 = arith.maximumf %47, %65 : vector<48x480xf32>
    %67 = vector.shape_cast %66 : vector<48x480xf32> to vector<8x6x480xf32>
    %68 = vector.extract_strided_slice %67 {offsets = [0, 0, 0], sizes = [8, 4, 480], strides = [1, 1, 1]} : vector<8x6x480xf32> to vector<8x4x480xf32>
    %69 = vector.shape_cast %68 : vector<8x4x480xf32> to vector<32x480xf32>
    %70 = arith.truncf %69 : vector<32x480xf32> to vector<32x480xbf16>
    %71 = vector.extract_strided_slice %67 {offsets = [0, 1, 0], sizes = [8, 4, 480], strides = [1, 1, 1]} : vector<8x6x480xf32> to vector<8x4x480xf32>
    %72 = vector.shape_cast %71 : vector<8x4x480xf32> to vector<32x480xf32>
    %73 = arith.truncf %72 : vector<32x480xf32> to vector<32x480xbf16>
    %74 = vector.extract_strided_slice %67 {offsets = [0, 2, 0], sizes = [8, 4, 480], strides = [1, 1, 1]} : vector<8x6x480xf32> to vector<8x4x480xf32>
    %75 = vector.shape_cast %74 : vector<8x4x480xf32> to vector<32x480xf32>
    %76 = arith.truncf %75 : vector<32x480xf32> to vector<32x480xbf16>
    %c0_42 = arith.constant 0 : index
    %c0_43 = arith.constant 0 : index
    %77 = vector.load %arg5[%c0_42, %c0_43] : memref<2x192xf32, #tpu.memory_space<vmem>>, vector<1x192xf32>
    %c1_44 = arith.constant 1 : index
    %c0_45 = arith.constant 0 : index
    %78 = vector.load %arg5[%c1_44, %c0_45] : memref<2x192xf32, #tpu.memory_space<vmem>>, vector<1x192xf32>
    %c0_46 = arith.constant 0 : index
    %c0_47 = arith.constant 0 : index
    %c0_48 = arith.constant 0 : index
    %79 = vector.load %arg3[%c0_46, %c0_47, %c0_48] : memref<9x480x192xbf16, #tpu.memory_space<vmem>>, vector<1x480x192xbf16>
    %80 = vector.shape_cast %79 : vector<1x480x192xbf16> to vector<480x192xbf16>
    %cst_49 = arith.constant dense<0.000000e+00> : vector<32x192xf32>
    %81 = tpu.matmul %70, %80, %cst_49 {dimension_numbers = #tpu.dot_dimension_numbers<[1], [0], [0], [1], [0, 0, 1, 1], [], []>} : vector<32x480xbf16>, vector<480x192xbf16>, vector<32x192xf32> -> vector<32x192xf32>
    %c1_50 = arith.constant 1 : index
    %c0_51 = arith.constant 0 : index
    %c0_52 = arith.constant 0 : index
    %82 = vector.load %arg3[%c1_50, %c0_51, %c0_52] : memref<9x480x192xbf16, #tpu.memory_space<vmem>>, vector<1x480x192xbf16>
    %83 = vector.shape_cast %82 : vector<1x480x192xbf16> to vector<480x192xbf16>
    %cst_53 = arith.constant dense<0.000000e+00> : vector<32x192xf32>
    %84 = tpu.matmul %73, %83, %cst_53 {dimension_numbers = #tpu.dot_dimension_numbers<[1], [0], [0], [1], [0, 0, 1, 1], [], []>} : vector<32x480xbf16>, vector<480x192xbf16>, vector<32x192xf32> -> vector<32x192xf32>
    %85 = arith.addf %81, %84 : vector<32x192xf32>
    %c2_54 = arith.constant 2 : index
    %c0_55 = arith.constant 0 : index
    %c0_56 = arith.constant 0 : index
    %86 = vector.load %arg3[%c2_54, %c0_55, %c0_56] : memref<9x480x192xbf16, #tpu.memory_space<vmem>>, vector<1x480x192xbf16>
    %87 = vector.shape_cast %86 : vector<1x480x192xbf16> to vector<480x192xbf16>
    %cst_57 = arith.constant dense<0.000000e+00> : vector<32x192xf32>
    %88 = tpu.matmul %76, %87, %cst_57 {dimension_numbers = #tpu.dot_dimension_numbers<[1], [0], [0], [1], [0, 0, 1, 1], [], []>} : vector<32x480xbf16>, vector<480x192xbf16>, vector<32x192xf32> -> vector<32x192xf32>
    %89 = arith.addf %85, %88 : vector<32x192xf32>
    %90 = vector.broadcast %77 : vector<1x192xf32> to vector<32x192xf32>
    %91 = arith.addf %89, %90 : vector<32x192xf32>
    %cst_58 = arith.constant 0.000000e+00 : f32
    %92 = vector.broadcast %cst_58 : f32 to vector<32x192xf32>
    %93 = arith.cmpf ogt, %91, %92 : vector<32x192xf32>
    %94 = vector.broadcast %78 : vector<1x192xf32> to vector<32x192xf32>
    %95 = arith.mulf %94, %91 : vector<32x192xf32>
    %96 = arith.select %93, %91, %95 : vector<32x192xi1>, vector<32x192xf32>
    %c3_59 = arith.constant 3 : index
    %c0_60 = arith.constant 0 : index
    %c0_61 = arith.constant 0 : index
    %97 = vector.load %arg3[%c3_59, %c0_60, %c0_61] : memref<9x480x192xbf16, #tpu.memory_space<vmem>>, vector<1x480x192xbf16>
    %98 = vector.shape_cast %97 : vector<1x480x192xbf16> to vector<480x192xbf16>
    %cst_62 = arith.constant dense<0.000000e+00> : vector<32x192xf32>
    %99 = tpu.matmul %70, %98, %cst_62 {dimension_numbers = #tpu.dot_dimension_numbers<[1], [0], [0], [1], [0, 0, 1, 1], [], []>} : vector<32x480xbf16>, vector<480x192xbf16>, vector<32x192xf32> -> vector<32x192xf32>
    %c4_63 = arith.constant 4 : index
    %c0_64 = arith.constant 0 : index
    %c0_65 = arith.constant 0 : index
    %100 = vector.load %arg3[%c4_63, %c0_64, %c0_65] : memref<9x480x192xbf16, #tpu.memory_space<vmem>>, vector<1x480x192xbf16>
    %101 = vector.shape_cast %100 : vector<1x480x192xbf16> to vector<480x192xbf16>
    %cst_66 = arith.constant dense<0.000000e+00> : vector<32x192xf32>
    %102 = tpu.matmul %73, %101, %cst_66 {dimension_numbers = #tpu.dot_dimension_numbers<[1], [0], [0], [1], [0, 0, 1, 1], [], []>} : vector<32x480xbf16>, vector<480x192xbf16>, vector<32x192xf32> -> vector<32x192xf32>
    %103 = arith.addf %99, %102 : vector<32x192xf32>
    %c5_67 = arith.constant 5 : index
    %c0_68 = arith.constant 0 : index
    %c0_69 = arith.constant 0 : index
    %104 = vector.load %arg3[%c5_67, %c0_68, %c0_69] : memref<9x480x192xbf16, #tpu.memory_space<vmem>>, vector<1x480x192xbf16>
    %105 = vector.shape_cast %104 : vector<1x480x192xbf16> to vector<480x192xbf16>
    %cst_70 = arith.constant dense<0.000000e+00> : vector<32x192xf32>
    %106 = tpu.matmul %76, %105, %cst_70 {dimension_numbers = #tpu.dot_dimension_numbers<[1], [0], [0], [1], [0, 0, 1, 1], [], []>} : vector<32x480xbf16>, vector<480x192xbf16>, vector<32x192xf32> -> vector<32x192xf32>
    %107 = arith.addf %103, %106 : vector<32x192xf32>
    %108 = vector.broadcast %77 : vector<1x192xf32> to vector<32x192xf32>
    %109 = arith.addf %107, %108 : vector<32x192xf32>
    %cst_71 = arith.constant 0.000000e+00 : f32
    %110 = vector.broadcast %cst_71 : f32 to vector<32x192xf32>
    %111 = arith.cmpf ogt, %109, %110 : vector<32x192xf32>
    %112 = vector.broadcast %78 : vector<1x192xf32> to vector<32x192xf32>
    %113 = arith.mulf %112, %109 : vector<32x192xf32>
    %114 = arith.select %111, %109, %113 : vector<32x192xi1>, vector<32x192xf32>
    %115 = arith.maximumf %96, %114 : vector<32x192xf32>
    %c6_72 = arith.constant 6 : index
    %c0_73 = arith.constant 0 : index
    %c0_74 = arith.constant 0 : index
    %116 = vector.load %arg3[%c6_72, %c0_73, %c0_74] : memref<9x480x192xbf16, #tpu.memory_space<vmem>>, vector<1x480x192xbf16>
    %117 = vector.shape_cast %116 : vector<1x480x192xbf16> to vector<480x192xbf16>
    %cst_75 = arith.constant dense<0.000000e+00> : vector<32x192xf32>
    %118 = tpu.matmul %70, %117, %cst_75 {dimension_numbers = #tpu.dot_dimension_numbers<[1], [0], [0], [1], [0, 0, 1, 1], [], []>} : vector<32x480xbf16>, vector<480x192xbf16>, vector<32x192xf32> -> vector<32x192xf32>
    %c7_76 = arith.constant 7 : index
    %c0_77 = arith.constant 0 : index
    %c0_78 = arith.constant 0 : index
    %119 = vector.load %arg3[%c7_76, %c0_77, %c0_78] : memref<9x480x192xbf16, #tpu.memory_space<vmem>>, vector<1x480x192xbf16>
    %120 = vector.shape_cast %119 : vector<1x480x192xbf16> to vector<480x192xbf16>
    %cst_79 = arith.constant dense<0.000000e+00> : vector<32x192xf32>
    %121 = tpu.matmul %73, %120, %cst_79 {dimension_numbers = #tpu.dot_dimension_numbers<[1], [0], [0], [1], [0, 0, 1, 1], [], []>} : vector<32x480xbf16>, vector<480x192xbf16>, vector<32x192xf32> -> vector<32x192xf32>
    %122 = arith.addf %118, %121 : vector<32x192xf32>
    %c8_80 = arith.constant 8 : index
    %c0_81 = arith.constant 0 : index
    %c0_82 = arith.constant 0 : index
    %123 = vector.load %arg3[%c8_80, %c0_81, %c0_82] : memref<9x480x192xbf16, #tpu.memory_space<vmem>>, vector<1x480x192xbf16>
    %124 = vector.shape_cast %123 : vector<1x480x192xbf16> to vector<480x192xbf16>
    %cst_83 = arith.constant dense<0.000000e+00> : vector<32x192xf32>
    %125 = tpu.matmul %76, %124, %cst_83 {dimension_numbers = #tpu.dot_dimension_numbers<[1], [0], [0], [1], [0, 0, 1, 1], [], []>} : vector<32x480xbf16>, vector<480x192xbf16>, vector<32x192xf32> -> vector<32x192xf32>
    %126 = arith.addf %122, %125 : vector<32x192xf32>
    %127 = vector.broadcast %77 : vector<1x192xf32> to vector<32x192xf32>
    %128 = arith.addf %126, %127 : vector<32x192xf32>
    %cst_84 = arith.constant 0.000000e+00 : f32
    %129 = vector.broadcast %cst_84 : f32 to vector<32x192xf32>
    %130 = arith.cmpf ogt, %128, %129 : vector<32x192xf32>
    %131 = vector.broadcast %78 : vector<1x192xf32> to vector<32x192xf32>
    %132 = arith.mulf %131, %128 : vector<32x192xf32>
    %133 = arith.select %130, %128, %132 : vector<32x192xi1>, vector<32x192xf32>
    %134 = arith.maximumf %115, %133 : vector<32x192xf32>
    %c0_85 = arith.constant 0 : index
    %c0_86 = arith.constant 0 : index
    %135 = vector.load %arg6[%c0_85, %c0_86] : memref<32x192xf32, #tpu.memory_space<vmem>>, vector<32x192xf32>
    tpu.vector_store %arg6[%c0_85, %c0_86], %134 {strides = array<i32>} : memref<32x192xf32, #tpu.memory_space<vmem>>, vector<32x192xf32>,
    return
  }
  func.func @transform_0(%arg0: i32) -> (i32, i32, i32) {
    %c0_i32 = arith.constant 0 : i32
    %c0_i32_0 = arith.constant 0 : i32
    %c0_i32_1 = arith.constant 0 : i32
    return %arg0, %c0_i32, %c0_i32_0 : i32, i32, i32
  }
  func.func @transform_1(%arg0: i32) -> (i32, i32, i32) {
    %c0_i32 = arith.constant 0 : i32
    %c0_i32_0 = arith.constant 0 : i32
    %c0_i32_1 = arith.constant 0 : i32
    %c0_i32_2 = arith.constant 0 : i32
    return %c0_i32, %c0_i32_0, %c0_i32_1 : i32, i32, i32
  }
  func.func @transform_2(%arg0: i32) -> (i32, i32, i32) {
    %c0_i32 = arith.constant 0 : i32
    %c0_i32_0 = arith.constant 0 : i32
    %c0_i32_1 = arith.constant 0 : i32
    %c0_i32_2 = arith.constant 0 : i32
    return %c0_i32, %c0_i32_0, %c0_i32_1 : i32, i32, i32
  }
  func.func @transform_3(%arg0: i32) -> (i32, i32) {
    %c0_i32 = arith.constant 0 : i32
    %c0_i32_0 = arith.constant 0 : i32
    %c0_i32_1 = arith.constant 0 : i32
    return %c0_i32, %c0_i32_0 : i32, i32
  }
  func.func @transform_4(%arg0: i32) -> (i32, i32) {
    %c0_i32 = arith.constant 0 : i32
    %c0_i32_0 = arith.constant 0 : i32
    %c0_i32_1 = arith.constant 0 : i32
    return %c0_i32, %c0_i32_0 : i32, i32
  }
  func.func @transform_5(%arg0: i32) -> (i32, i32) {
    %c0_i32 = arith.constant 0 : i32
    %c0_i32_0 = arith.constant 0 : i32
    return %arg0, %c0_i32 : i32, i32
  }
}

</mosaic_0001>

<llo_original>
// kernel: tile.23
$region0: #{tile.23}
  #allocation0 [shape = 's32[1]{0}', space=sflag, size = 0x4, scoped, tag = 'scoped memory for tile.23']
  %s0 = inlined_call_operand.vmem [shape: f32[32], index: 0, kind: input, shape index: {}]
  %s1 = inlined_call_operand.vmem [shape: f32[15,32], index: 1, kind: output, shape index: {}]
  // Predicated region
  $region2: #{tile.23} parent=0 // pred_check
    _
  $region3: #{tile.23} parent=0 // pred_check_branch
    %3 = sbr.rel (0) target = $region5
  $region4: #{tile.23} parent=0 // pred_region
    _
  $region5: #{tile.23} parent=0 // pred_fallthru
    _
  %v4 = vld [vmem:[%s0] ss:$0 sm:$0xff]
  %5 = vst [vmem:[%s1] sm:$0xff] %v4
  %s6 = scalar_lea.vmem %s1, 8
  %7 = vst [vmem:[%s6] sm:$0xff] %v4

// kernel: tile.28
$region0: #{tile.28}
  %s0 = inlined_call_operand.vmem [shape: f32[15,32], index: 0, kind: input, shape index: {}]
  %s1 = inlined_call_operand.vmem [shape: f32[1,480], index: 1, kind: output, shape index: {}]
  $region1: #{tile.28} parent=0
    #allocation0 [shape = 'u8[16384]{0}', space=vmem, size = 0x4000, scoped, tag = 'scoped mem for output reshape']
    %v2 = vld [vmem:[%s0] ss:$4 sm:$0xf]
    %vm3 = vcmask 261120
    %4 = vst.msk [vmem:[#allocation0] ss:$8 sm:$0xf] %vm3, %v2
    %s5 = scalar_lea.vmem %s0, 3
    %v6 = vld [vmem:[%s5] ss:$4 sm:$0x7]
    %7 = vrot.lane.b32.xlu0 %v6, 96
    %v8 = vpop.permute.xlu0 %7
    %vm9 = vcmask 1048320
    %10 = vst.msk [vmem:[#allocation0] ss:$8 sm:$0x7] %vm9, %v8
    %s11 = scalar_lea.vmem %s0, 2
    %v12 = vld [vmem:[%s11] ss:$4 sm:$0xf]
    %13 = vrot.lane.b32.xlu0 %v12, 64
    %v14 = vpop.permute.xlu0 %13
    %vm15 = vcmask 785920
    %16 = vst.msk [vmem:[#allocation0] ss:$8 sm:$0xf] %vm15, %v14
    %s17 = scalar_lea.vmem %s0, 1
    %v18 = vld [vmem:[%s17] ss:$4 sm:$0xf]
    %19 = vrot.lane.b32.xlu0 %v18, 32
    %v20 = vpop.permute.xlu0 %19
    %vm21 = vcmask 523520
    %22 = vst.msk [vmem:[#allocation0] ss:$8 sm:$0xf] %vm21, %v20
    %s24 = sshll.u32 1, 1
    %s25 = ssub.s32 %s24, 1
    %v27 = vld [vmem:[#allocation0] sm:%s25]
    %s28 = sshll.u32 1, 1
    %s29 = ssub.s32 %s28, 1
    %30 = vst [vmem:[%s1] sm:%s29] %v27
    %s31 = scalar_lea.vmem [#allocation0], 8
    %v32 = vld [vmem:[%s31] sm:%s25]
    %s33 = sshll.u32 1, 1
    %s34 = ssub.s32 %s33, 1
    %s35 = scalar_lea.vmem %s1, 1
    %36 = vst [vmem:[%s35] sm:%s34] %v32
    %s37 = scalar_lea.vmem [#allocation0], 16
    %v38 = vld [vmem:[%s37] sm:%s25]
    %s39 = sshll.u32 1, 1
    %s40 = ssub.s32 %s39, 1
    %s41 = smul.addr 1, 2
    %s42 = scalar_lea.vmem %s1, %s41
    %43 = vst [vmem:[%s42] sm:%s40] %v38
    %s44 = scalar_lea.vmem [#allocation0], 24
    %v45 = vld [vmem:[%s44] sm:%s25]
    %s46 = sshll.u32 1, 1
    %s47 = ssub.s32 %s46, 1
    %s48 = smul.addr 1, 3
    %s49 = scalar_lea.vmem %s1, %s48
    %50 = vst [vmem:[%s49] sm:%s47] %v45

// kernel: tile.33
$region0: #{tile.33}
  #allocation0 [shape = 's32[1]{0}', space=sflag, size = 0x4, scoped, tag = 'scoped memory for tile.33']
  %s0 = inlined_call_operand.vmem [shape: f32[64], index: 0, kind: input, shape index: {}]
  %s1 = inlined_call_operand.vmem [shape: f32[3,64], index: 1, kind: output, shape index: {}]
  // Predicated region
  $region2: #{tile.33} parent=0 // pred_check
    _
  $region3: #{tile.33} parent=0 // pred_check_branch
    %3 = sbr.rel (0) target = $region5
  $region4: #{tile.33} parent=0 // pred_region
    _
  $region5: #{tile.33} parent=0 // pred_fallthru
    _
  %v4 = vld [vmem:[%s0] ss:$0 sm:$0xff]
  %5 = vst [vmem:[%s1] sm:$0xf] %v4

// kernel: tile.38
$region0: #{tile.38}
  %s0 = inlined_call_operand.vmem [shape: f32[3,64], index: 0, kind: input, shape index: {}]
  %s1 = inlined_call_operand.vmem [shape: f32[1,192], index: 1, kind: output, shape index: {}]
  $region1: #{tile.38} parent=0
    #allocation0 [shape = 'u8[8192]{0}', space=vmem, size = 0x2000, scoped, tag = 'scoped mem for output reshape']
    #allocation1 [shape = 'u8[4096]{0}', space=vmem, size = 0x1000, scoped, tag = 'scoped mem for input reshape']
    %s3 = sshll.u32 1, 4
    %s4 = ssub.s32 %s3, 1
    %v5 = vld [vmem:[%s0] sm:%s4]
    %6 = vst [vmem:[#allocation1] sm:%s4] %v5
    %s7 = smov 3
    %v8 = vld [vmem:[#allocation1] ss:$2 sm:%s7]
    %vm9 = vcmask 523264
    %10 = vst.msk [vmem:[#allocation0] ss:$8 sm:$0x3] %vm9, %v8
    %s11 = scalar_lea.vmem [#allocation1], 1
    %v12 = vld [vmem:[%s11] sm:$0x1]
    %13 = vrot.lane.b32.xlu0 %v12, 64
    %v14 = vpop.permute.xlu0 %13
    %vm15 = vcmask 1048064
    %16 = vst.msk [vmem:[#allocation0] sm:$0x1] %vm15, %v14
    %s18 = sshll.u32 1, 1
    %s19 = ssub.s32 %s18, 1
    %v21 = vld [vmem:[#allocation0] sm:%s19]
    %s22 = sshll.u32 1, 1
    %s23 = ssub.s32 %s22, 1
    %24 = vst [vmem:[%s1] sm:%s23] %v21
    %s25 = scalar_lea.vmem [#allocation0], 8
    %v26 = vld [vmem:[%s25] sm:%s19]
    %s27 = sshll.u32 1, 1
    %s28 = ssub.s32 %s27, 1
    %s29 = scalar_lea.vmem %s1, 1
    %30 = vst [vmem:[%s29] sm:%s28] %v26

// kernel: feature_extractor_forward.1
$region0: #{feature_extractor_forward.1}
  #allocation0 [shape = 'u32[]', space=smem, size = 0x4, offset = 0x4, fixed_abs, tag = 'smem constant byte address 0x4 - core index']
  #allocation1 [shape = 'u32[144,128]{1,0:T(1,128)}', space=vmem, size = 0x12000, scoped, tag = 'internal scratch']
  %s0 = inlined_call_operand.vmem [shape: f32[16,8,49], index: 0, kind: input, shape index: {}]
  %s1 = inlined_call_operand.vmem [shape: bf16[9,49,480], index: 1, kind: input, shape index: {}]
  %s2 = inlined_call_operand.vmem [shape: bf16[9,480,192], index: 2, kind: input, shape index: {}]
  %s3 = inlined_call_operand.vmem [shape: f32[2,480], index: 3, kind: input, shape index: {}]
  %s4 = inlined_call_operand.vmem [shape: f32[2,192], index: 4, kind: input, shape index: {}]
  %s5 = inlined_call_operand.vmem [shape: f32[64,192], index: 5, kind: output, shape index: {}]
  %s6 = sld [smem:[#allocation0]]
  $region53: #{feature_extractor_forward.1} parent=0
    _
  %s8 = ssub.s32 1, %s6
  %s9 = scalar_select 0, %s8, %s6
  loop: start=0, step=1, limit=4
  $region2: #{feature_extractor_forward.1} parent=0 // loop_pre_header
    _
  $region3: #{feature_extractor_forward.1} parent=0 // loop_header
    %s11 = sphi 0, %s15
    %p12 = scmp.ge.s32.totalorder %s11, 4
    %s21 = sphi 0, %s23
    %s24 = sphi 0, %s21
    %s25 = sphi 0, %s24
    %s41 = sphi 0, %s25
    %s45 = sphi 0, %s45
    %s47 = sphi 0, %s45
    %s48 = sphi 0, %s47
    %s62 = sphi 0, %s48
    %s66 = sphi 0, %s66
    %s68 = sphi 0, %s66
    %s69 = sphi 0, %s68
    %s83 = sphi 0, %s69
    %s87 = sphi 0, %s87
    %s89 = sphi 0, %s87
    %s90 = sphi 0, %s89
    %s104 = sphi 0, %s90
    %s108 = sphi 0, %s108
    %s110 = sphi 0, %s108
    %s111 = sphi 0, %s110
    %s125 = sphi 0, %s111
    %s131 = sphi 0, %s133
    %s134 = sphi 0, %s131
    %s135 = sphi 0, %s134
    %s151 = sphi 0, %s135
  $region4: #{feature_extractor_forward.1} parent=0 // loop_header_branch
    %14 = sbr.rel (%p12) target = $region8
  $region5: #{feature_extractor_forward.1} parent=0 // loop_body
    %s16 = ssub.s32 %s11, 1
    %s17 = ssub.s32 %s11, 2
    %s18 = sadd.s32 %s11, 1
    %s19 = ssub.s32 %s11, %s18
    %p20 = scmp.eq.s32.totalorder %s19, 0
    %s22 = sadd.s32 %s21, 1
    %s23 = scalar_select %p20, %s21, %s22
    %p26 = pneg %p20
    %p27 = scmp.eq.s32.totalorder %s11, 1
    %p28 = por %p26, %p27
    %p29 = scmp.ne.s32.totalorder %s21, %s24
    %p30 = scmp.eq.s32.totalorder %s11, 0
    %p31 = por %p29, %p30
    %p32 = scmp.ne.s32.totalorder %s21, %s24
    %p33 = scmp.eq.s32.totalorder %s16, 1
    %p34 = por %p32, %p33
    %p35 = scmp.ne.s32.totalorder %s24, %s25
    %p36 = scmp.eq.s32.totalorder %s16, 0
    %p37 = por %p35, %p36
    %p38 = scmp.ne.s32.totalorder %s24, %s25
    %p39 = scmp.eq.s32.totalorder %s17, 1
    %p40 = por %p38, %p39
    %p42 = scmp.ne.s32.totalorder %s25, %s41
    %p43 = scmp.eq.s32.totalorder %s17, 0
    %p44 = por %p42, %p43
    %s46 = sadd.s32 %s45, 1
    %p49 = scmp.eq.s32.totalorder %s11, 1
    %p50 = scmp.ne.s32.totalorder %s45, %s47
    %p51 = scmp.eq.s32.totalorder %s11, 0
    %p52 = por %p50, %p51
    %p53 = scmp.ne.s32.totalorder %s45, %s47
    %p54 = scmp.eq.s32.totalorder %s16, 1
    %p55 = por %p53, %p54
    %p56 = scmp.ne.s32.totalorder %s47, %s48
    %p57 = scmp.eq.s32.totalorder %s16, 0
    %p58 = por %p56, %p57
    %p59 = scmp.ne.s32.totalorder %s47, %s48
    %p60 = scmp.eq.s32.totalorder %s17, 1
    %p61 = por %p59, %p60
    %p63 = scmp.ne.s32.totalorder %s48, %s62
    %p64 = scmp.eq.s32.totalorder %s17, 0
    %p65 = por %p63, %p64
    %s67 = sadd.s32 %s66, 1
    %p70 = scmp.eq.s32.totalorder %s11, 1
    %p71 = scmp.ne.s32.totalorder %s66, %s68
    %p72 = scmp.eq.s32.totalorder %s11, 0
    %p73 = por %p71, %p72
    %p74 = scmp.ne.s32.totalorder %s66, %s68
    %p75 = scmp.eq.s32.totalorder %s16, 1
    %p76 = por %p74, %p75
    %p77 = scmp.ne.s32.totalorder %s68, %s69
    %p78 = scmp.eq.s32.totalorder %s16, 0
    %p79 = por %p77, %p78
    %p80 = scmp.ne.s32.totalorder %s68, %s69
    %p81 = scmp.eq.s32.totalorder %s17, 1
    %p82 = por %p80, %p81
    %p84 = scmp.ne.s32.totalorder %s69, %s83
    %p85 = scmp.eq.s32.totalorder %s17, 0
    %p86 = por %p84, %p85
    %s88 = sadd.s32 %s87, 1
    %p91 = scmp.eq.s32.totalorder %s11, 1
    %p92 = scmp.ne.s32.totalorder %s87, %s89
    %p93 = scmp.eq.s32.totalorder %s11, 0
    %p94 = por %p92, %p93
    %p95 = scmp.ne.s32.totalorder %s87, %s89
    %p96 = scmp.eq.s32.totalorder %s16, 1
    %p97 = por %p95, %p96
    %p98 = scmp.ne.s32.totalorder %s89, %s90
    %p99 = scmp.eq.s32.totalorder %s16, 0
    %p100 = por %p98, %p99
    %p101 = scmp.ne.s32.totalorder %s89, %s90
    %p102 = scmp.eq.s32.totalorder %s17, 1
    %p103 = por %p101, %p102
    %p105 = scmp.ne.s32.totalorder %s90, %s104
    %p106 = scmp.eq.s32.totalorder %s17, 0
    %p107 = por %p105, %p106
    %s109 = sadd.s32 %s108, 1
    %p112 = scmp.eq.s32.totalorder %s11, 1
    %p113 = scmp.ne.s32.totalorder %s108, %s110
    %p114 = scmp.eq.s32.totalorder %s11, 0
    %p115 = por %p113, %p114
    %p116 = scmp.ne.s32.totalorder %s108, %s110
    %p117 = scmp.eq.s32.totalorder %s16, 1
    %p118 = por %p116, %p117
    %p119 = scmp.ne.s32.totalorder %s110, %s111
    %p120 = scmp.eq.s32.totalorder %s16, 0
    %p121 = por %p119, %p120
    %p122 = scmp.ne.s32.totalorder %s110, %s111
    %p123 = scmp.eq.s32.totalorder %s17, 1
    %p124 = por %p122, %p123
    %p126 = scmp.ne.s32.totalorder %s111, %s125
    %p127 = scmp.eq.s32.totalorder %s17, 0
    %p128 = por %p126, %p127
    %s129 = ssub.s32 %s11, %s18
    %p130 = scmp.eq.s32.totalorder %s129, 0
    %s132 = sadd.s32 %s131, 1
    %s133 = scalar_select %p130, %s131, %s132
    %p136 = pneg %p130
    %p137 = scmp.eq.s32.totalorder %s11, 1
    %p138 = por %p136, %p137
    %p139 = scmp.ne.s32.totalorder %s131, %s134
    %p140 = scmp.eq.s32.totalorder %s11, 0
    %p141 = por %p139, %p140
    %p142 = scmp.ne.s32.totalorder %s131, %s134
    %p143 = scmp.eq.s32.totalorder %s16, 1
    %p144 = por %p142, %p143
    %p145 = scmp.ne.s32.totalorder %s134, %s135
    %p146 = scmp.eq.s32.totalorder %s16, 0
    %p147 = por %p145, %p146
    %p148 = scmp.ne.s32.totalorder %s134, %s135
    %p149 = scmp.eq.s32.totalorder %s17, 1
    %p150 = por %p148, %p149
    %p152 = scmp.ne.s32.totalorder %s135, %s151
    %p153 = scmp.eq.s32.totalorder %s17, 0
    %p154 = por %p152, %p153
    %p155 = scmp.le.s32.totalorder 1, %s11
    %p156 = scmp.lt.s32.totalorder %s11, 3
    %p157 = pnand %p155, %p156
    %p158 = pneg %p157
    // Predicated region
    $region9: #{feature_extractor_forward.1} parent=5 // pred_check
      _
    $region10: #{feature_extractor_forward.1} parent=5 // pred_check_branch
      %160 = sbr.rel (%p157) target = $region12
    $region11: #{feature_extractor_forward.1} parent=5 // pred_region
      %s161 = ssub.s32 %s11, 1
      // Predicated region
      $region13: #{feature_extractor_forward.1} parent=11 // pred_check
        %p162 = pneg %p58
      $region14: #{feature_extractor_forward.1} parent=11 // pred_check_branch
        %164 = sbr.rel (%p162) target = $region16
      $region15: #{feature_extractor_forward.1} parent=11 // pred_region
        _
      $region16: #{feature_extractor_forward.1} parent=11 // pred_fallthru
        _
      // Predicated region
      $region17: #{feature_extractor_forward.1} parent=11 // pred_check
        %p165 = pneg %p79
      $region18: #{feature_extractor_forward.1} parent=11 // pred_check_branch
        %167 = sbr.rel (%p165) target = $region20
      $region19: #{feature_extractor_forward.1} parent=11 // pred_region
        _
      $region20: #{feature_extractor_forward.1} parent=11 // pred_fallthru
        _
      // Predicated region
      $region21: #{feature_extractor_forward.1} parent=11 // pred_check
        %p168 = pneg %p100
      $region22: #{feature_extractor_forward.1} parent=11 // pred_check_branch
        %170 = sbr.rel (%p168) target = $region24
      $region23: #{feature_extractor_forward.1} parent=11 // pred_region
        _
      $region24: #{feature_extractor_forward.1} parent=11 // pred_fallthru
        _
      // Predicated region
      $region25: #{feature_extractor_forward.1} parent=11 // pred_check
        %p171 = pneg %p121
      $region26: #{feature_extractor_forward.1} parent=11 // pred_check_branch
        %173 = sbr.rel (%p171) target = $region28
      $region27: #{feature_extractor_forward.1} parent=11 // pred_region
        _
      $region28: #{feature_extractor_forward.1} parent=11 // pred_fallthru
        _
    $region12: #{feature_extractor_forward.1} parent=5 // pred_fallthru
      _
    %p174 = scmp.lt.s32.totalorder %s11, 2
    // Predicated region
    $region29: #{feature_extractor_forward.1} parent=5 // pred_check
      %p175 = pneg %p174
    $region30: #{feature_extractor_forward.1} parent=5 // pred_check_branch
      %177 = sbr.rel (%p175) target = $region32
    $region31: #{feature_extractor_forward.1} parent=5 // pred_region
      // Predicated region
      $region33: #{feature_extractor_forward.1} parent=31 // pred_check
        %p178 = pneg %p31
      $region34: #{feature_extractor_forward.1} parent=31 // pred_check_branch
        %180 = sbr.rel (%p178) target = $region36
      $region35: #{feature_extractor_forward.1} parent=31 // pred_region
        %s181 = smul.u32 8, %s11
        %p182 = scmp.lt.s32.totalorder %s181, 15
        %s183 = scalar_select %p182, %s181, 15
        %s184 = smul.addr %s183, 8
        %s185 = scalar_lea.vmem %s0, %s184
        %s186 = smul.u32 8, %s11
      $region36: #{feature_extractor_forward.1} parent=31 // pred_fallthru
        _
    $region32: #{feature_extractor_forward.1} parent=5 // pred_fallthru
      _
    %p187 = scmp.le.s32.totalorder 1, %s11
    %p188 = scmp.lt.s32.totalorder %s11, 3
    %p189 = pnand %p187, %p188
    %p190 = pneg %p189
    // Predicated region
    $region37: #{feature_extractor_forward.1} parent=5 // pred_check
      _
    $region38: #{feature_extractor_forward.1} parent=5 // pred_check_branch
      %192 = sbr.rel (%p189) target = $region40
    $region39: #{feature_extractor_forward.1} parent=5 // pred_region
      %s193 = ssub.s32 %s11, 1
      %s194 = smul.u32 8, %s16
      %p195 = scmp.lt.s32.totalorder %s194, 15
      %s196 = scalar_select %p195, %s194, 15
      %s197 = smul.addr %s196, 8
      %s198 = scalar_lea.vmem %s0, %s197
      %p199 = pneg %p37
      %p200 = pneg %p34
      %p201 = pneg %p58
      %p202 = pneg %p55
      %p203 = pneg %p79
      %p204 = pneg %p76
      %p205 = pneg %p100
      %p206 = pneg %p97
      %p207 = pneg %p121
      %p208 = pneg %p118
      %p209 = pneg %p147
      %p210 = pneg %p144
      %s211 = smul.u32 4, %s16
      %p212 = scmp.lt.s32.totalorder %s211, 7
      %s213 = scalar_select %p212, %s211, 7
      %s214 = smul.addr %s213, 2
      %s215 = smul.addr %s214, 8
      %s216 = scalar_lea.vmem %s5, %s215
      %s217 = smul.u32 8, %s16
      %p218 = scmp.lt.s32.totalorder %s217, 15
      %s219 = scalar_select %p218, %s217, 15
      %s220 = smul.addr %s219, 8
      %s221 = scalar_lea.vmem %s0, %s220
      %s222 = smul.u32 8, %s16
      %s223 = smul.u32 4, %s16
      %p224 = scmp.lt.s32.totalorder %s223, 7
      %s225 = scalar_select %p224, %s223, 7
      %s226 = smul.addr %s225, 2
      %s227 = smul.addr %s226, 8
      %s228 = scalar_lea.vmem %s5, %s227
      %s229 = smul.u32 4, %s16
      %v231 = vld [vmem:[%s221] sm:$0x3f]
      %v232 = vld [vmem:[%s221 + $0x8] sm:$0x3f]
      %v233 = vld [vmem:[%s221 + $0x10] sm:$0x3f]
      %v234 = vld [vmem:[%s221 + $0x18] sm:$0x3f]
      %v235 = vld [vmem:[%s221 + $0x20] sm:$0x3f]
      %v236 = vld [vmem:[%s221 + $0x28] sm:$0x3f]
      %v237 = vld [vmem:[%s221 + $0x30] sm:$0x3f]
      %v238 = vld [vmem:[%s221 + $0x38] sm:$0x3f]
      %v247 = vcombine.high %v231, %v231
      %v249 = vunpack.c.l.s4 1983009808
      %v250 = vunpack.c.0.s8 %v249
      %v251 = vlaneseq
      %v252 = vshrl.u32 %v251, 7
      %v253 = vsub.s32 %v250, %v252
      %v254 = vrot.slane %v231, %v253
      %v256 = vunpack.c.l.s4 1983009808
      %v257 = vunpack.c.0.s8 %v256
      %v258 = vlaneseq
      %v259 = vshrl.u32 %v258, 7
      %v260 = vsub.s32 %v257, %v259
      %v261 = vrot.slane %v247, %v260
      %v262 = vcombine.high %v254, %v254
      %v263 = vcombine.high %v232, %v232
      %v265 = vunpack.c.l.s4 1983009808
      %v266 = vunpack.c.0.s8 %v265
      %v267 = vlaneseq
      %v268 = vshrl.u32 %v267, 7
      %v269 = vsub.s32 %v266, %v268
      %v270 = vrot.slane %v232, %v269
      %v272 = vunpack.c.l.s4 1983009808
      %v273 = vunpack.c.0.s8 %v272
      %v274 = vlaneseq
      %v275 = vshrl.u32 %v274, 7
      %v276 = vsub.s32 %v273, %v275
      %v277 = vrot.slane %v263, %v276
      %v278 = vcombine.high %v270, %v270
      %v279 = vcombine.high %v233, %v233
      %v281 = vunpack.c.l.s4 1983009808
      %v282 = vunpack.c.0.s8 %v281
      %v283 = vlaneseq
      %v284 = vshrl.u32 %v283, 7
      %v285 = vsub.s32 %v282, %v284
      %v286 = vrot.slane %v233, %v285
      %v288 = vunpack.c.l.s4 1983009808
      %v289 = vunpack.c.0.s8 %v288
      %v290 = vlaneseq
      %v291 = vshrl.u32 %v290, 7
      %v292 = vsub.s32 %v289, %v291
      %v293 = vrot.slane %v279, %v292
      %v294 = vcombine.high %v286, %v286
      %v295 = vcombine.high %v234, %v234
      %v297 = vunpack.c.l.s4 1983009808
      %v298 = vunpack.c.0.s8 %v297
      %v299 = vlaneseq
      %v300 = vshrl.u32 %v299, 7
      %v301 = vsub.s32 %v298, %v300
      %v302 = vrot.slane %v234, %v301
      %v304 = vunpack.c.l.s4 1983009808
      %v305 = vunpack.c.0.s8 %v304
      %v306 = vlaneseq
      %v307 = vshrl.u32 %v306, 7
      %v308 = vsub.s32 %v305, %v307
      %v309 = vrot.slane %v295, %v308
      %v310 = vcombine.high %v302, %v302
      %v311 = vcombine.high %v235, %v235
      %v313 = vunpack.c.l.s4 1983009808
      %v314 = vunpack.c.0.s8 %v313
      %v315 = vlaneseq
      %v316 = vshrl.u32 %v315, 7
      %v317 = vsub.s32 %v314, %v316
      %v318 = vrot.slane %v235, %v317
      %v320 = vunpack.c.l.s4 1983009808
      %v321 = vunpack.c.0.s8 %v320
      %v322 = vlaneseq
      %v323 = vshrl.u32 %v322, 7
      %v324 = vsub.s32 %v321, %v323
      %v325 = vrot.slane %v311, %v324
      %v326 = vcombine.high %v318, %v318
      %v327 = vcombine.high %v236, %v236
      %v329 = vunpack.c.l.s4 1983009808
      %v330 = vunpack.c.0.s8 %v329
      %v331 = vlaneseq
      %v332 = vshrl.u32 %v331, 7
      %v333 = vsub.s32 %v330, %v332
      %v334 = vrot.slane %v236, %v333
      %v336 = vunpack.c.l.s4 1983009808
      %v337 = vunpack.c.0.s8 %v336
      %v338 = vlaneseq
      %v339 = vshrl.u32 %v338, 7
      %v340 = vsub.s32 %v337, %v339
      %v341 = vrot.slane %v327, %v340
      %v342 = vcombine.high %v334, %v334
      %v343 = vcombine.high %v237, %v237
      %v345 = vunpack.c.l.s4 1983009808
      %v346 = vunpack.c.0.s8 %v345
      %v347 = vlaneseq
      %v348 = vshrl.u32 %v347, 7
      %v349 = vsub.s32 %v346, %v348
      %v350 = vrot.slane %v237, %v349
      %v352 = vunpack.c.l.s4 1983009808
      %v353 = vunpack.c.0.s8 %v352
      %v354 = vlaneseq
      %v355 = vshrl.u32 %v354, 7
      %v356 = vsub.s32 %v353, %v355
      %v357 = vrot.slane %v343, %v356
      %v358 = vcombine.high %v350, %v350
      %v359 = vcombine.high %v238, %v238
      %v361 = vunpack.c.l.s4 1983009808
      %v362 = vunpack.c.0.s8 %v361
      %v363 = vlaneseq
      %v364 = vshrl.u32 %v363, 7
      %v365 = vsub.s32 %v362, %v364
      %v366 = vrot.slane %v238, %v365
      %v368 = vunpack.c.l.s4 1983009808
      %v369 = vunpack.c.0.s8 %v368
      %v370 = vlaneseq
      %v371 = vshrl.u32 %v370, 7
      %v372 = vsub.s32 %v369, %v371
      %v373 = vrot.slane %v359, %v372
      %v374 = vcombine.high %v366, %v366
      %v375 = vcombine.low %v254, %v262
      %v376 = vcombine.low %v261, %v270
      %v378 = vunpack.c.l.s4 1983009808
      %v379 = vunpack.c.0.s8 %v378
      %v380 = vlaneseq
      %v381 = vshrl.u32 %v380, 7
      %v382 = vsub.s32 %v379, %v381
      %v383 = vrot.slane %v375, %v382
      %v385 = vunpack.c.l.s4 1983009808
      %v386 = vunpack.c.0.s8 %v385
      %v387 = vlaneseq
      %v388 = vshrl.u32 %v387, 7
      %v389 = vsub.s32 %v386, %v388
      %v390 = vrot.slane %v376, %v389
      %v391 = vcombine.low %v383, %v390
      %v392 = vcombine.low %v278, %v277
      %v393 = vcombine.low %v286, %v294
      %v395 = vunpack.c.l.s4 1983009808
      %v396 = vunpack.c.0.s8 %v395
      %v397 = vlaneseq
      %v398 = vshrl.u32 %v397, 7
      %v399 = vsub.s32 %v396, %v398
      %v400 = vrot.slane %v392, %v399
      %v402 = vunpack.c.l.s4 1983009808
      %v403 = vunpack.c.0.s8 %v402
      %v404 = vlaneseq
      %v405 = vshrl.u32 %v404, 7
      %v406 = vsub.s32 %v403, %v405
      %v407 = vrot.slane %v393, %v406
      %v408 = vcombine.low %v400, %v407
      %v409 = vcombine.low %v293, %v302
      %v410 = vcombine.low %v310, %v309
      %v412 = vunpack.c.l.s4 1983009808
      %v413 = vunpack.c.0.s8 %v412
      %v414 = vlaneseq
      %v415 = vshrl.u32 %v414, 7
      %v416 = vsub.s32 %v413, %v415
      %v417 = vrot.slane %v409, %v416
      %v419 = vunpack.c.l.s4 1983009808
      %v420 = vunpack.c.0.s8 %v419
      %v421 = vlaneseq
      %v422 = vshrl.u32 %v421, 7
      %v423 = vsub.s32 %v420, %v422
      %v424 = vrot.slane %v410, %v423
      %v425 = vcombine.low %v417, %v424
      %v426 = vcombine.low %v318, %v326
      %v427 = vcombine.low %v325, %v334
      %v429 = vunpack.c.l.s4 1983009808
      %v430 = vunpack.c.0.s8 %v429
      %v431 = vlaneseq
      %v432 = vshrl.u32 %v431, 7
      %v433 = vsub.s32 %v430, %v432
      %v434 = vrot.slane %v426, %v433
      %v436 = vunpack.c.l.s4 1983009808
      %v437 = vunpack.c.0.s8 %v436
      %v438 = vlaneseq
      %v439 = vshrl.u32 %v438, 7
      %v440 = vsub.s32 %v437, %v439
      %v441 = vrot.slane %v427, %v440
      %v442 = vcombine.low %v434, %v441
      %v443 = vcombine.low %v342, %v341
      %v444 = vcombine.low %v350, %v358
      %v446 = vunpack.c.l.s4 1983009808
      %v447 = vunpack.c.0.s8 %v446
      %v448 = vlaneseq
      %v449 = vshrl.u32 %v448, 7
      %v450 = vsub.s32 %v447, %v449
      %v451 = vrot.slane %v443, %v450
      %v453 = vunpack.c.l.s4 1983009808
      %v454 = vunpack.c.0.s8 %v453
      %v455 = vlaneseq
      %v456 = vshrl.u32 %v455, 7
      %v457 = vsub.s32 %v454, %v456
      %v458 = vrot.slane %v444, %v457
      %v459 = vcombine.low %v451, %v458
      %v460 = vcombine.low %v357, %v366
      %v461 = vcombine.low %v374, %v373
      %v463 = vunpack.c.l.s4 1983009808
      %v464 = vunpack.c.0.s8 %v463
      %v465 = vlaneseq
      %v466 = vshrl.u32 %v465, 7
      %v467 = vsub.s32 %v464, %v466
      %v468 = vrot.slane %v460, %v467
      %v470 = vunpack.c.l.s4 1983009808
      %v471 = vunpack.c.0.s8 %v470
      %v472 = vlaneseq
      %v473 = vshrl.u32 %v472, 7
      %v474 = vsub.s32 %v471, %v473
      %v475 = vrot.slane %v461, %v474
      %v476 = vcombine.low %v468, %v475
      %v483 = vpack.c.bf16 %v408, %v391
      %v484 = vpack.c.bf16 %v442, %v425
      %v485 = vpack.c.bf16 %v476, %v459
      %v486 = vld [vmem:[%s221 + $0x1] sm:$0x3f]
      %v487 = vld [vmem:[%s221 + $0x9] sm:$0x3f]
      %v488 = vld [vmem:[%s221 + $0x11] sm:$0x3f]
      %v489 = vld [vmem:[%s221 + $0x19] sm:$0x3f]
      %v490 = vld [vmem:[%s221 + $0x21] sm:$0x3f]
      %v491 = vld [vmem:[%s221 + $0x29] sm:$0x3f]
      %v492 = vld [vmem:[%s221 + $0x31] sm:$0x3f]
      %v493 = vld [vmem:[%s221 + $0x39] sm:$0x3f]
      %v502 = vcombine.high %v486, %v486
      %v504 = vunpack.c.l.s4 1983009808
      %v505 = vunpack.c.0.s8 %v504
      %v506 = vlaneseq
      %v507 = vshrl.u32 %v506, 7
      %v508 = vsub.s32 %v505, %v507
      %v509 = vrot.slane %v486, %v508
      %v511 = vunpack.c.l.s4 1983009808
      %v512 = vunpack.c.0.s8 %v511
      %v513 = vlaneseq
      %v514 = vshrl.u32 %v513, 7
      %v515 = vsub.s32 %v512, %v514
      %v516 = vrot.slane %v502, %v515
      %v517 = vcombine.high %v509, %v509
      %v518 = vcombine.high %v487, %v487
      %v520 = vunpack.c.l.s4 1983009808
      %v521 = vunpack.c.0.s8 %v520
      %v522 = vlaneseq
      %v523 = vshrl.u32 %v522, 7
      %v524 = vsub.s32 %v521, %v523
      %v525 = vrot.slane %v487, %v524
      %v527 = vunpack.c.l.s4 1983009808
      %v528 = vunpack.c.0.s8 %v527
      %v529 = vlaneseq
      %v530 = vshrl.u32 %v529, 7
      %v531 = vsub.s32 %v528, %v530
      %v532 = vrot.slane %v518, %v531
      %v533 = vcombine.high %v525, %v525
      %v534 = vcombine.high %v488, %v488
      %v536 = vunpack.c.l.s4 1983009808
      %v537 = vunpack.c.0.s8 %v536
      %v538 = vlaneseq
      %v539 = vshrl.u32 %v538, 7
      %v540 = vsub.s32 %v537, %v539
      %v541 = vrot.slane %v488, %v540
      %v543 = vunpack.c.l.s4 1983009808
      %v544 = vunpack.c.0.s8 %v543
      %v545 = vlaneseq
      %v546 = vshrl.u32 %v545, 7
      %v547 = vsub.s32 %v544, %v546
      %v548 = vrot.slane %v534, %v547
      %v549 = vcombine.high %v541, %v541
      %v550 = vcombine.high %v489, %v489
      %v552 = vunpack.c.l.s4 1983009808
      %v553 = vunpack.c.0.s8 %v552
      %v554 = vlaneseq
      %v555 = vshrl.u32 %v554, 7
      %v556 = vsub.s32 %v553, %v555
      %v557 = vrot.slane %v489, %v556
      %v559 = vunpack.c.l.s4 1983009808
      %v560 = vunpack.c.0.s8 %v559
      %v561 = vlaneseq
      %v562 = vshrl.u32 %v561, 7
      %v563 = vsub.s32 %v560, %v562
      %v564 = vrot.slane %v550, %v563
      %v565 = vcombine.high %v557, %v557
      %v566 = vcombine.high %v490, %v490
      %v568 = vunpack.c.l.s4 1983009808
      %v569 = vunpack.c.0.s8 %v568
      %v570 = vlaneseq
      %v571 = vshrl.u32 %v570, 7
      %v572 = vsub.s32 %v569, %v571
      %v573 = vrot.slane %v490, %v572
      %v575 = vunpack.c.l.s4 1983009808
      %v576 = vunpack.c.0.s8 %v575
      %v577 = vlaneseq
      %v578 = vshrl.u32 %v577, 7
      %v579 = vsub.s32 %v576, %v578
      %v580 = vrot.slane %v566, %v579
      %v581 = vcombine.high %v573, %v573
      %v582 = vcombine.high %v491, %v491
      %v584 = vunpack.c.l.s4 1983009808
      %v585 = vunpack.c.0.s8 %v584
      %v586 = vlaneseq
      %v587 = vshrl.u32 %v586, 7
      %v588 = vsub.s32 %v585, %v587
      %v589 = vrot.slane %v491, %v588
      %v591 = vunpack.c.l.s4 1983009808
      %v592 = vunpack.c.0.s8 %v591
      %v593 = vlaneseq
      %v594 = vshrl.u32 %v593, 7
      %v595 = vsub.s32 %v592, %v594
      %v596 = vrot.slane %v582, %v595
      %v597 = vcombine.high %v589, %v589
      %v598 = vcombine.high %v492, %v492
      %v600 = vunpack.c.l.s4 1983009808
      %v601 = vunpack.c.0.s8 %v600
      %v602 = vlaneseq
      %v603 = vshrl.u32 %v602, 7
      %v604 = vsub.s32 %v601, %v603
      %v605 = vrot.slane %v492, %v604
      %v607 = vunpack.c.l.s4 1983009808
      %v608 = vunpack.c.0.s8 %v607
      %v609 = vlaneseq
      %v610 = vshrl.u32 %v609, 7
      %v611 = vsub.s32 %v608, %v610
      %v612 = vrot.slane %v598, %v611
      %v613 = vcombine.high %v605, %v605
      %v614 = vcombine.high %v493, %v493
      %v616 = vunpack.c.l.s4 1983009808
      %v617 = vunpack.c.0.s8 %v616
      %v618 = vlaneseq
      %v619 = vshrl.u32 %v618, 7
      %v620 = vsub.s32 %v617, %v619
      %v621 = vrot.slane %v493, %v620
      %v623 = vunpack.c.l.s4 1983009808
      %v624 = vunpack.c.0.s8 %v623
      %v625 = vlaneseq
      %v626 = vshrl.u32 %v625, 7
      %v627 = vsub.s32 %v624, %v626
      %v628 = vrot.slane %v614, %v627
      %v629 = vcombine.high %v621, %v621
      %v630 = vcombine.low %v509, %v517
      %v631 = vcombine.low %v516, %v525
      %v633 = vunpack.c.l.s4 1983009808
      %v634 = vunpack.c.0.s8 %v633
      %v635 = vlaneseq
      %v636 = vshrl.u32 %v635, 7
      %v637 = vsub.s32 %v634, %v636
      %v638 = vrot.slane %v630, %v637
      %v640 = vunpack.c.l.s4 1983009808
      %v641 = vunpack.c.0.s8 %v640
      %v642 = vlaneseq
      %v643 = vshrl.u32 %v642, 7
      %v644 = vsub.s32 %v641, %v643
      %v645 = vrot.slane %v631, %v644
      %v646 = vcombine.low %v638, %v645
      %v647 = vcombine.low %v533, %v532
      %v648 = vcombine.low %v541, %v549
      %v650 = vunpack.c.l.s4 1983009808
      %v651 = vunpack.c.0.s8 %v650
      %v652 = vlaneseq
      %v653 = vshrl.u32 %v652, 7
      %v654 = vsub.s32 %v651, %v653
      %v655 = vrot.slane %v647, %v654
      %v657 = vunpack.c.l.s4 1983009808
      %v658 = vunpack.c.0.s8 %v657
      %v659 = vlaneseq
      %v660 = vshrl.u32 %v659, 7
      %v661 = vsub.s32 %v658, %v660
      %v662 = vrot.slane %v648, %v661
      %v663 = vcombine.low %v655, %v662
      %v664 = vcombine.low %v548, %v557
      %v665 = vcombine.low %v565, %v564
      %v667 = vunpack.c.l.s4 1983009808
      %v668 = vunpack.c.0.s8 %v667
      %v669 = vlaneseq
      %v670 = vshrl.u32 %v669, 7
      %v671 = vsub.s32 %v668, %v670
      %v672 = vrot.slane %v664, %v671
      %v674 = vunpack.c.l.s4 1983009808
      %v675 = vunpack.c.0.s8 %v674
      %v676 = vlaneseq
      %v677 = vshrl.u32 %v676, 7
      %v678 = vsub.s32 %v675, %v677
      %v679 = vrot.slane %v665, %v678
      %v680 = vcombine.low %v672, %v679
      %v681 = vcombine.low %v573, %v581
      %v682 = vcombine.low %v580, %v589
      %v684 = vunpack.c.l.s4 1983009808
      %v685 = vunpack.c.0.s8 %v684
      %v686 = vlaneseq
      %v687 = vshrl.u32 %v686, 7
      %v688 = vsub.s32 %v685, %v687
      %v689 = vrot.slane %v681, %v688
      %v691 = vunpack.c.l.s4 1983009808
      %v692 = vunpack.c.0.s8 %v691
      %v693 = vlaneseq
      %v694 = vshrl.u32 %v693, 7
      %v695 = vsub.s32 %v692, %v694
      %v696 = vrot.slane %v682, %v695
      %v697 = vcombine.low %v689, %v696
      %v698 = vcombine.low %v597, %v596
      %v699 = vcombine.low %v605, %v613
      %v701 = vunpack.c.l.s4 1983009808
      %v702 = vunpack.c.0.s8 %v701
      %v703 = vlaneseq
      %v704 = vshrl.u32 %v703, 7
      %v705 = vsub.s32 %v702, %v704
      %v706 = vrot.slane %v698, %v705
      %v708 = vunpack.c.l.s4 1983009808
      %v709 = vunpack.c.0.s8 %v708
      %v710 = vlaneseq
      %v711 = vshrl.u32 %v710, 7
      %v712 = vsub.s32 %v709, %v711
      %v713 = vrot.slane %v699, %v712
      %v714 = vcombine.low %v706, %v713
      %v715 = vcombine.low %v612, %v621
      %v716 = vcombine.low %v629, %v628
      %v718 = vunpack.c.l.s4 1983009808
      %v719 = vunpack.c.0.s8 %v718
      %v720 = vlaneseq
      %v721 = vshrl.u32 %v720, 7
      %v722 = vsub.s32 %v719, %v721
      %v723 = vrot.slane %v715, %v722
      %v725 = vunpack.c.l.s4 1983009808
      %v726 = vunpack.c.0.s8 %v725
      %v727 = vlaneseq
      %v728 = vshrl.u32 %v727, 7
      %v729 = vsub.s32 %v726, %v728
      %v730 = vrot.slane %v716, %v729
      %v731 = vcombine.low %v723, %v730
      %v738 = vpack.c.bf16 %v663, %v646
      %v739 = vpack.c.bf16 %v697, %v680
      %v740 = vpack.c.bf16 %v731, %v714
      %v741 = vld [vmem:[%s221 + $0x2] sm:$0x3f]
      %v742 = vld [vmem:[%s221 + $0xa] sm:$0x3f]
      %v743 = vld [vmem:[%s221 + $0x12] sm:$0x3f]
      %v744 = vld [vmem:[%s221 + $0x1a] sm:$0x3f]
      %v745 = vld [vmem:[%s221 + $0x22] sm:$0x3f]
      %v746 = vld [vmem:[%s221 + $0x2a] sm:$0x3f]
      %v747 = vld [vmem:[%s221 + $0x32] sm:$0x3f]
      %v748 = vld [vmem:[%s221 + $0x3a] sm:$0x3f]
      %v757 = vcombine.high %v741, %v741
      %v759 = vunpack.c.l.s4 1983009808
      %v760 = vunpack.c.0.s8 %v759
      %v761 = vlaneseq
      %v762 = vshrl.u32 %v761, 7
      %v763 = vsub.s32 %v760, %v762
      %v764 = vrot.slane %v741, %v763
      %v766 = vunpack.c.l.s4 1983009808
      %v767 = vunpack.c.0.s8 %v766
      %v768 = vlaneseq
      %v769 = vshrl.u32 %v768, 7
      %v770 = vsub.s32 %v767, %v769
      %v771 = vrot.slane %v757, %v770
      %v772 = vcombine.high %v764, %v764
      %v773 = vcombine.high %v742, %v742
      %v775 = vunpack.c.l.s4 1983009808
      %v776 = vunpack.c.0.s8 %v775
      %v777 = vlaneseq
      %v778 = vshrl.u32 %v777, 7
      %v779 = vsub.s32 %v776, %v778
      %v780 = vrot.slane %v742, %v779
      %v782 = vunpack.c.l.s4 1983009808
      %v783 = vunpack.c.0.s8 %v782
      %v784 = vlaneseq
      %v785 = vshrl.u32 %v784, 7
      %v786 = vsub.s32 %v783, %v785
      %v787 = vrot.slane %v773, %v786
      %v788 = vcombine.high %v780, %v780
      %v789 = vcombine.high %v743, %v743
      %v791 = vunpack.c.l.s4 1983009808
      %v792 = vunpack.c.0.s8 %v791
      %v793 = vlaneseq
      %v794 = vshrl.u32 %v793, 7
      %v795 = vsub.s32 %v792, %v794
      %v796 = vrot.slane %v743, %v795
      %v798 = vunpack.c.l.s4 1983009808
      %v799 = vunpack.c.0.s8 %v798
      %v800 = vlaneseq
      %v801 = vshrl.u32 %v800, 7
      %v802 = vsub.s32 %v799, %v801
      %v803 = vrot.slane %v789, %v802
      %v804 = vcombine.high %v796, %v796
      %v805 = vcombine.high %v744, %v744
      %v807 = vunpack.c.l.s4 1983009808
      %v808 = vunpack.c.0.s8 %v807
      %v809 = vlaneseq
      %v810 = vshrl.u32 %v809, 7
      %v811 = vsub.s32 %v808, %v810
      %v812 = vrot.slane %v744, %v811
      %v814 = vunpack.c.l.s4 1983009808
      %v815 = vunpack.c.0.s8 %v814
      %v816 = vlaneseq
      %v817 = vshrl.u32 %v816, 7
      %v818 = vsub.s32 %v815, %v817
      %v819 = vrot.slane %v805, %v818
      %v820 = vcombine.high %v812, %v812
      %v821 = vcombine.high %v745, %v745
      %v823 = vunpack.c.l.s4 1983009808
      %v824 = vunpack.c.0.s8 %v823
      %v825 = vlaneseq
      %v826 = vshrl.u32 %v825, 7
      %v827 = vsub.s32 %v824, %v826
      %v828 = vrot.slane %v745, %v827
      %v830 = vunpack.c.l.s4 1983009808
      %v831 = vunpack.c.0.s8 %v830
      %v832 = vlaneseq
      %v833 = vshrl.u32 %v832, 7
      %v834 = vsub.s32 %v831, %v833
      %v835 = vrot.slane %v821, %v834
      %v836 = vcombine.high %v828, %v828
      %v837 = vcombine.high %v746, %v746
      %v839 = vunpack.c.l.s4 1983009808
      %v840 = vunpack.c.0.s8 %v839
      %v841 = vlaneseq
      %v842 = vshrl.u32 %v841, 7
      %v843 = vsub.s32 %v840, %v842
      %v844 = vrot.slane %v746, %v843
      %v846 = vunpack.c.l.s4 1983009808
      %v847 = vunpack.c.0.s8 %v846
      %v848 = vlaneseq
      %v849 = vshrl.u32 %v848, 7
      %v850 = vsub.s32 %v847, %v849
      %v851 = vrot.slane %v837, %v850
      %v852 = vcombine.high %v844, %v844
      %v853 = vcombine.high %v747, %v747
      %v855 = vunpack.c.l.s4 1983009808
      %v856 = vunpack.c.0.s8 %v855
      %v857 = vlaneseq
      %v858 = vshrl.u32 %v857, 7
      %v859 = vsub.s32 %v856, %v858
      %v860 = vrot.slane %v747, %v859
      %v862 = vunpack.c.l.s4 1983009808
      %v863 = vunpack.c.0.s8 %v862
      %v864 = vlaneseq
      %v865 = vshrl.u32 %v864, 7
      %v866 = vsub.s32 %v863, %v865
      %v867 = vrot.slane %v853, %v866
      %v868 = vcombine.high %v860, %v860
      %v869 = vcombine.high %v748, %v748
      %v871 = vunpack.c.l.s4 1983009808
      %v872 = vunpack.c.0.s8 %v871
      %v873 = vlaneseq
      %v874 = vshrl.u32 %v873, 7
      %v875 = vsub.s32 %v872, %v874
      %v876 = vrot.slane %v748, %v875
      %v878 = vunpack.c.l.s4 1983009808
      %v879 = vunpack.c.0.s8 %v878
      %v880 = vlaneseq
      %v881 = vshrl.u32 %v880, 7
      %v882 = vsub.s32 %v879, %v881
      %v883 = vrot.slane %v869, %v882
      %v884 = vcombine.high %v876, %v876
      %v885 = vcombine.low %v764, %v772
      %v886 = vcombine.low %v771, %v780
      %v888 = vunpack.c.l.s4 1983009808
      %v889 = vunpack.c.0.s8 %v888
      %v890 = vlaneseq
      %v891 = vshrl.u32 %v890, 7
      %v892 = vsub.s32 %v889, %v891
      %v893 = vrot.slane %v885, %v892
      %v895 = vunpack.c.l.s4 1983009808
      %v896 = vunpack.c.0.s8 %v895
      %v897 = vlaneseq
      %v898 = vshrl.u32 %v897, 7
      %v899 = vsub.s32 %v896, %v898
      %v900 = vrot.slane %v886, %v899
      %v901 = vcombine.low %v893, %v900
      %v902 = vcombine.low %v788, %v787
      %v903 = vcombine.low %v796, %v804
      %v905 = vunpack.c.l.s4 1983009808
      %v906 = vunpack.c.0.s8 %v905
      %v907 = vlaneseq
      %v908 = vshrl.u32 %v907, 7
      %v909 = vsub.s32 %v906, %v908
      %v910 = vrot.slane %v902, %v909
      %v912 = vunpack.c.l.s4 1983009808
      %v913 = vunpack.c.0.s8 %v912
      %v914 = vlaneseq
      %v915 = vshrl.u32 %v914, 7
      %v916 = vsub.s32 %v913, %v915
      %v917 = vrot.slane %v903, %v916
      %v918 = vcombine.low %v910, %v917
      %v919 = vcombine.low %v803, %v812
      %v920 = vcombine.low %v820, %v819
      %v922 = vunpack.c.l.s4 1983009808
      %v923 = vunpack.c.0.s8 %v922
      %v924 = vlaneseq
      %v925 = vshrl.u32 %v924, 7
      %v926 = vsub.s32 %v923, %v925
      %v927 = vrot.slane %v919, %v926
      %v929 = vunpack.c.l.s4 1983009808
      %v930 = vunpack.c.0.s8 %v929
      %v931 = vlaneseq
      %v932 = vshrl.u32 %v931, 7
      %v933 = vsub.s32 %v930, %v932
      %v934 = vrot.slane %v920, %v933
      %v935 = vcombine.low %v927, %v934
      %v936 = vcombine.low %v828, %v836
      %v937 = vcombine.low %v835, %v844
      %v939 = vunpack.c.l.s4 1983009808
      %v940 = vunpack.c.0.s8 %v939
      %v941 = vlaneseq
      %v942 = vshrl.u32 %v941, 7
      %v943 = vsub.s32 %v940, %v942
      %v944 = vrot.slane %v936, %v943
      %v946 = vunpack.c.l.s4 1983009808
      %v947 = vunpack.c.0.s8 %v946
      %v948 = vlaneseq
      %v949 = vshrl.u32 %v948, 7
      %v950 = vsub.s32 %v947, %v949
      %v951 = vrot.slane %v937, %v950
      %v952 = vcombine.low %v944, %v951
      %v953 = vcombine.low %v852, %v851
      %v954 = vcombine.low %v860, %v868
      %v956 = vunpack.c.l.s4 1983009808
      %v957 = vunpack.c.0.s8 %v956
      %v958 = vlaneseq
      %v959 = vshrl.u32 %v958, 7
      %v960 = vsub.s32 %v957, %v959
      %v961 = vrot.slane %v953, %v960
      %v963 = vunpack.c.l.s4 1983009808
      %v964 = vunpack.c.0.s8 %v963
      %v965 = vlaneseq
      %v966 = vshrl.u32 %v965, 7
      %v967 = vsub.s32 %v964, %v966
      %v968 = vrot.slane %v954, %v967
      %v969 = vcombine.low %v961, %v968
      %v970 = vcombine.low %v867, %v876
      %v971 = vcombine.low %v884, %v883
      %v973 = vunpack.c.l.s4 1983009808
      %v974 = vunpack.c.0.s8 %v973
      %v975 = vlaneseq
      %v976 = vshrl.u32 %v975, 7
      %v977 = vsub.s32 %v974, %v976
      %v978 = vrot.slane %v970, %v977
      %v980 = vunpack.c.l.s4 1983009808
      %v981 = vunpack.c.0.s8 %v980
      %v982 = vlaneseq
      %v983 = vshrl.u32 %v982, 7
      %v984 = vsub.s32 %v981, %v983
      %v985 = vrot.slane %v971, %v984
      %v986 = vcombine.low %v978, %v985
      %v993 = vpack.c.bf16 %v918, %v901
      %v994 = vpack.c.bf16 %v952, %v935
      %v995 = vpack.c.bf16 %v986, %v969
      %v996 = vld [vmem:[%s3] ss:$2 sm:$0xf]
      %s997 = scalar_lea.vmem %s3, 1
      %v998 = vld [vmem:[%s997] ss:$2 sm:$0xf]
      %v999 = vld [vmem:[%s1] sm:$0xff]
      %v1000 = vld [vmem:[%s1 + $0x8] sm:$0xff]
      %v1001 = vld [vmem:[%s1 + $0x10] sm:$0xff]
      %v1002 = vld [vmem:[%s1 + $0x18] sm:$0xff]
      %v1003 = vld [vmem:[%s1 + $0x20] sm:$0xff]
      %v1004 = vld [vmem:[%s1 + $0x28] sm:$0xff]
      %v1005 = vld [vmem:[%s1 + $0x30] sm:$0xff]
      %v1006 = vld [vmem:[%s1 + $0x38] sm:$0xff]
      %v1007 = vld [vmem:[%s1 + $0x40] sm:$0xff]
      %v1008 = vld [vmem:[%s1 + $0x48] sm:$0xff]
      %v1009 = vld [vmem:[%s1 + $0x50] sm:$0xff]
      %v1010 = vld [vmem:[%s1 + $0x58] sm:$0xff]
      %v1011 = vld [vmem:[%s1 + $0x60] sm:$0x11]
      %v1012 = vld [vmem:[%s1 + $0x68] sm:$0x11]
      %s1013 = scalar_lea.vmem %s1, 112
      %v1014 = vld [vmem:[%s1013] sm:$0xff]
      %v1015 = vld [vmem:[%s1013 + $0x8] sm:$0xff]
      %v1016 = vld [vmem:[%s1013 + $0x10] sm:$0xff]
      %v1017 = vld [vmem:[%s1013 + $0x18] sm:$0xff]
      %v1018 = vld [vmem:[%s1013 + $0x20] sm:$0xff]
      %v1019 = vld [vmem:[%s1013 + $0x28] sm:$0xff]
      %v1020 = vld [vmem:[%s1013 + $0x30] sm:$0xff]
      %v1021 = vld [vmem:[%s1013 + $0x38] sm:$0xff]
      %v1022 = vld [vmem:[%s1013 + $0x40] sm:$0xff]
      %v1023 = vld [vmem:[%s1013 + $0x48] sm:$0xff]
      %v1024 = vld [vmem:[%s1013 + $0x50] sm:$0xff]
      %v1025 = vld [vmem:[%s1013 + $0x58] sm:$0xff]
      %v1026 = vld [vmem:[%s1013 + $0x60] sm:$0x11]
      %v1027 = vld [vmem:[%s1013 + $0x68] sm:$0x11]
      %v1042 = vunpack.c.l.b16 %v1014
      %v1043 = vunpack.c.h.b16 %v1014
      %v1044 = vunpack.c.l.b16 %v1015
      %v1045 = vunpack.c.h.b16 %v1015
      %v1046 = vunpack.c.l.b16 %v1016
      %v1047 = vunpack.c.h.b16 %v1016
      %v1048 = vunpack.c.l.b16 %v1017
      %v1049 = vunpack.c.h.b16 %v1017
      %v1050 = vunpack.c.l.b16 %v1018
      %v1051 = vunpack.c.h.b16 %v1018
      %v1052 = vunpack.c.l.b16 %v1019
      %v1053 = vunpack.c.h.b16 %v1019
      %v1054 = vunpack.c.l.b16 %v1020
      %v1055 = vunpack.c.h.b16 %v1020
      %v1056 = vunpack.c.l.b16 %v1021
      %v1057 = vunpack.c.h.b16 %v1021
      %v1058 = vunpack.c.l.b16 %v1022
      %v1059 = vunpack.c.h.b16 %v1022
      %v1060 = vunpack.c.l.b16 %v1023
      %v1061 = vunpack.c.h.b16 %v1023
      %v1062 = vunpack.c.l.b16 %v1024
      %v1063 = vunpack.c.h.b16 %v1024
      %v1064 = vunpack.c.l.b16 %v1025
      %v1065 = vunpack.c.h.b16 %v1025
      %v1066 = vunpack.c.l.b16 %v1026
      %v1067 = vunpack.c.h.b16 %v1026
      %v1068 = vunpack.c.l.b16 %v1027
      %v1069 = vunpack.c.h.b16 %v1027
      %v1070 = vpack.c.b16 %v1046, %v1042
      %v1071 = vpack.c.b16 %v1047, %v1043
      %v1072 = vpack.c.b16 %v1048, %v1044
      %v1073 = vpack.c.b16 %v1049, %v1045
      %v1074 = vpack.c.b16 %v1054, %v1050
      %v1075 = vpack.c.b16 %v1055, %v1051
      %v1076 = vpack.c.b16 %v1056, %v1052
      %v1077 = vpack.c.b16 %v1057, %v1053
      %v1078 = vpack.c.b16 %v1062, %v1058
      %v1079 = vpack.c.b16 %v1063, %v1059
      %v1080 = vpack.c.b16 %v1064, %v1060
      %v1081 = vpack.c.b16 %v1065, %v1061
      %v1082 = vpack.c.b16 %v1066, %v1066
      %v1083 = vpack.c.b16 %v1067, %v1067
      %v1084 = vpack.c.b16 %v1068, %v1068
      %v1085 = vpack.c.b16 %v1069, %v1069
      %vm1098 = vcmask 400384
      %v1100 = vsel %vm1098, %v738, 0
      %v1103 = vsel %vm1098, %v739, 0
      %v1106 = vsel %vm1098, %v740, 0
      %vm1108 = vcmask 1040384
      %v1109 = vsel 0, 4294967295, 65535
      %v1110 = vsel %vm1108, %v1109, 0
      %v1112 = vand.u32 %v1082, %v1110
      %v1115 = vand.u32 %v1083, %v1110
      %v1118 = vand.u32 %v1084, %v1110
      %v1121 = vand.u32 %v1085, %v1110
      %1123 = vmatprep.subr.bf16.mxu0 0
      %1124 = vmatpush1.bf16.msra.mxu0 0
      %1125 = vmatprep.subr.bf16.mxu0 0
      %1126 = vmatpush1.bf16.msra.mxu0 0
      %1127 = vmatprep.subr.bf16.mxu0 0
      %1128 = vmatpush1.bf16.msra.mxu0 0
      %1129 = vmatprep.subr.bf16.mxu0 0
      %1130 = vmatpush1.bf16.msra.mxu0 0
      %1131 = vmatprep.subr.bf16.mxu0 %v1115
      %1132 = vmatpush1.bf16.msra.mxu0 %v1112
      %1133 = vmatprep.subr.bf16.mxu0 %v1079
      %1134 = vmatpush1.bf16.msra.mxu0 %v1078
      %1135 = vmatprep.subr.bf16.mxu0 %v1075
      %1136 = vmatpush1.bf16.msra.mxu0 %v1074
      %1137 = vmatprep.subr.bf16.mxu0 %v1071
      %1138 = vmatpush1.bf16.msra.mxu0 %v1070
      %1139 = vmatprep.subr.bf16.mxu0 0
      %1140 = vmatpush2.bf16.msra.mxu0 0
      %1141 = vmatprep.subr.bf16.mxu0 0
      %1142 = vmatpush2.bf16.msra.mxu0 0
      %1143 = vmatprep.subr.bf16.mxu0 0
      %1144 = vmatpush2.bf16.msra.mxu0 0
      %1145 = vmatprep.subr.bf16.mxu0 0
      %1146 = vmatpush2.bf16.msra.mxu0 0
      %1147 = vmatprep.subr.bf16.mxu0 0
      %1148 = vmatpush2.bf16.msra.mxu0 0
      %1149 = vmatprep.subr.bf16.mxu0 0
      %1150 = vmatpush2.bf16.msra.mxu0 0
      %1151 = vmatprep.subr.bf16.mxu0 0
      %1152 = vmatpush2.bf16.msra.mxu0 0
      %1153 = vmatprep.subr.bf16.mxu0 0
      %1154 = vmatpush2.bf16.msra.mxu0 0
      %1155 = vmatprep.mubr.bf16.mxu0 0
      %1156 = vmatmul.mubr.bf16.gmra.mxu0 %v1100
      %v1157 = vpop.f32.mrf.mxu0
      %v1158 = vadd.f32 0.0, %v1157
      %v1159 = vpop.f32.mrf.mxu0
      %v1160 = vadd.f32 0.0, %v1159
      %v1161 = vpop.f32.mrf.mxu0
      %v1162 = vadd.f32 0.0, %v1161
      %v1163 = vpop.f32.mrf.mxu0
      %v1164 = vadd.f32 0.0, %v1163
      %1165 = vmatprep.mubr.bf16.mxu0 0
      %1166 = vmatmul.mubr.bf16.gmra.mxu0 %v1103
      %v1167 = vpop.f32.mrf.mxu0
      %v1168 = vadd.f32 0.0, %v1167
      %v1169 = vpop.f32.mrf.mxu0
      %v1170 = vadd.f32 0.0, %v1169
      %v1171 = vpop.f32.mrf.mxu0
      %v1172 = vadd.f32 0.0, %v1171
      %v1173 = vpop.f32.mrf.mxu0
      %v1174 = vadd.f32 0.0, %v1173
      %1175 = vmatprep.mubr.bf16.mxu0 0
      %1176 = vmatmul.mubr.bf16.gmra.mxu0 %v1106
      %v1177 = vpop.f32.mrf.mxu0
      %v1178 = vadd.f32 0.0, %v1177
      %v1179 = vpop.f32.mrf.mxu0
      %v1180 = vadd.f32 0.0, %v1179
      %v1181 = vpop.f32.mrf.mxu0
      %v1182 = vadd.f32 0.0, %v1181
      %v1183 = vpop.f32.mrf.mxu0
      %v1184 = vadd.f32 0.0, %v1183
      %1185 = vdwg.mxu0
      %1186 = vmatprep.subr.bf16.mxu0 0
      %1187 = vmatpush1.bf16.msra.mxu0 0
      %1188 = vmatprep.subr.bf16.mxu0 0
      %1189 = vmatpush1.bf16.msra.mxu0 0
      %1190 = vmatprep.subr.bf16.mxu0 0
      %1191 = vmatpush1.bf16.msra.mxu0 0
      %1192 = vmatprep.subr.bf16.mxu0 0
      %1193 = vmatpush1.bf16.msra.mxu0 0
      %1194 = vmatprep.subr.bf16.mxu0 %v1121
      %1195 = vmatpush1.bf16.msra.mxu0 %v1118
      %1196 = vmatprep.subr.bf16.mxu0 %v1081
      %1197 = vmatpush1.bf16.msra.mxu0 %v1080
      %1198 = vmatprep.subr.bf16.mxu0 %v1077
      %1199 = vmatpush1.bf16.msra.mxu0 %v1076
      %1200 = vmatprep.subr.bf16.mxu0 %v1073
      %1201 = vmatpush1.bf16.msra.mxu0 %v1072
      %1202 = vmatprep.subr.bf16.mxu0 0
      %1203 = vmatpush2.bf16.msra.mxu0 0
      %1204 = vmatprep.subr.bf16.mxu0 0
      %1205 = vmatpush2.bf16.msra.mxu0 0
      %1206 = vmatprep.subr.bf16.mxu0 0
      %1207 = vmatpush2.bf16.msra.mxu0 0
      %1208 = vmatprep.subr.bf16.mxu0 0
      %1209 = vmatpush2.bf16.msra.mxu0 0
      %1210 = vmatprep.subr.bf16.mxu0 0
      %1211 = vmatpush2.bf16.msra.mxu0 0
      %1212 = vmatprep.subr.bf16.mxu0 0
      %1213 = vmatpush2.bf16.msra.mxu0 0
      %1214 = vmatprep.subr.bf16.mxu0 0
      %1215 = vmatpush2.bf16.msra.mxu0 0
      %1216 = vmatprep.subr.bf16.mxu0 0
      %1217 = vmatpush2.bf16.msra.mxu0 0
      %1218 = vmatprep.mubr.bf16.mxu0 0
      %1219 = vmatmul.mubr.bf16.gmra.mxu0 %v1100
      %v1220 = vpop.f32.mrf.mxu0
      %v1221 = vadd.f32 0.0, %v1220
      %v1222 = vpop.f32.mrf.mxu0
      %v1223 = vadd.f32 0.0, %v1222
      %v1224 = vpop.f32.mrf.mxu0
      %v1225 = vadd.f32 0.0, %v1224
      %v1226 = vpop.f32.mrf.mxu0
      %v1227 = vadd.f32 0.0, %v1226
      %1228 = vmatprep.mubr.bf16.mxu0 0
      %1229 = vmatmul.mubr.bf16.gmra.mxu0 %v1103
      %v1230 = vpop.f32.mrf.mxu0
      %v1231 = vadd.f32 0.0, %v1230
      %v1232 = vpop.f32.mrf.mxu0
      %v1233 = vadd.f32 0.0, %v1232
      %v1234 = vpop.f32.mrf.mxu0
      %v1235 = vadd.f32 0.0, %v1234
      %v1236 = vpop.f32.mrf.mxu0
      %v1237 = vadd.f32 0.0, %v1236
      %1238 = vmatprep.mubr.bf16.mxu0 0
      %1239 = vmatmul.mubr.bf16.gmra.mxu0 %v1106
      %v1240 = vpop.f32.mrf.mxu0
      %v1241 = vadd.f32 0.0, %v1240
      %v1242 = vpop.f32.mrf.mxu0
      %v1243 = vadd.f32 0.0, %v1242
      %v1244 = vpop.f32.mrf.mxu0
      %v1245 = vadd.f32 0.0, %v1244
      %v1246 = vpop.f32.mrf.mxu0
      %v1247 = vadd.f32 0.0, %v1246
      %1248 = vdwg.mxu0
      %v1263 = vunpack.c.l.b16 %v999
      %v1264 = vunpack.c.h.b16 %v999
      %v1265 = vunpack.c.l.b16 %v1000
      %v1266 = vunpack.c.h.b16 %v1000
      %v1267 = vunpack.c.l.b16 %v1001
      %v1268 = vunpack.c.h.b16 %v1001
      %v1269 = vunpack.c.l.b16 %v1002
      %v1270 = vunpack.c.h.b16 %v1002
      %v1271 = vunpack.c.l.b16 %v1003
      %v1272 = vunpack.c.h.b16 %v1003
      %v1273 = vunpack.c.l.b16 %v1004
      %v1274 = vunpack.c.h.b16 %v1004
      %v1275 = vunpack.c.l.b16 %v1005
      %v1276 = vunpack.c.h.b16 %v1005
      %v1277 = vunpack.c.l.b16 %v1006
      %v1278 = vunpack.c.h.b16 %v1006
      %v1279 = vunpack.c.l.b16 %v1007
      %v1280 = vunpack.c.h.b16 %v1007
      %v1281 = vunpack.c.l.b16 %v1008
      %v1282 = vunpack.c.h.b16 %v1008
      %v1283 = vunpack.c.l.b16 %v1009
      %v1284 = vunpack.c.h.b16 %v1009
      %v1285 = vunpack.c.l.b16 %v1010
      %v1286 = vunpack.c.h.b16 %v1010
      %v1287 = vunpack.c.l.b16 %v1011
      %v1288 = vunpack.c.h.b16 %v1011
      %v1289 = vunpack.c.l.b16 %v1012
      %v1290 = vunpack.c.h.b16 %v1012
      %v1291 = vpack.c.b16 %v1267, %v1263
      %v1292 = vpack.c.b16 %v1268, %v1264
      %v1293 = vpack.c.b16 %v1269, %v1265
      %v1294 = vpack.c.b16 %v1270, %v1266
      %v1295 = vpack.c.b16 %v1275, %v1271
      %v1296 = vpack.c.b16 %v1276, %v1272
      %v1297 = vpack.c.b16 %v1277, %v1273
      %v1298 = vpack.c.b16 %v1278, %v1274
      %v1299 = vpack.c.b16 %v1283, %v1279
      %v1300 = vpack.c.b16 %v1284, %v1280
      %v1301 = vpack.c.b16 %v1285, %v1281
      %v1302 = vpack.c.b16 %v1286, %v1282
      %v1303 = vpack.c.b16 %v1287, %v1287
      %v1304 = vpack.c.b16 %v1288, %v1288
      %v1305 = vpack.c.b16 %v1289, %v1289
      %v1306 = vpack.c.b16 %v1290, %v1290
      %v1320 = vsel %vm1098, %v483, 0
      %v1323 = vsel %vm1098, %v484, 0
      %v1326 = vsel %vm1098, %v485, 0
      %v1329 = vand.u32 %v1303, %v1110
      %v1332 = vand.u32 %v1304, %v1110
      %v1335 = vand.u32 %v1305, %v1110
      %v1338 = vand.u32 %v1306, %v1110
      %1340 = vmatprep.subr.bf16.mxu0 0
      %1341 = vmatpush1.bf16.msra.mxu0 0
      %1342 = vmatprep.subr.bf16.mxu0 0
      %1343 = vmatpush1.bf16.msra.mxu0 0
      %1344 = vmatprep.subr.bf16.mxu0 0
      %1345 = vmatpush1.bf16.msra.mxu0 0
      %1346 = vmatprep.subr.bf16.mxu0 0
      %1347 = vmatpush1.bf16.msra.mxu0 0
      %1348 = vmatprep.subr.bf16.mxu0 %v1332
      %1349 = vmatpush1.bf16.msra.mxu0 %v1329
      %1350 = vmatprep.subr.bf16.mxu0 %v1300
      %1351 = vmatpush1.bf16.msra.mxu0 %v1299
      %1352 = vmatprep.subr.bf16.mxu0 %v1296
      %1353 = vmatpush1.bf16.msra.mxu0 %v1295
      %1354 = vmatprep.subr.bf16.mxu0 %v1292
      %1355 = vmatpush1.bf16.msra.mxu0 %v1291
      %1356 = vmatprep.subr.bf16.mxu0 0
      %1357 = vmatpush2.bf16.msra.mxu0 0
      %1358 = vmatprep.subr.bf16.mxu0 0
      %1359 = vmatpush2.bf16.msra.mxu0 0
      %1360 = vmatprep.subr.bf16.mxu0 0
      %1361 = vmatpush2.bf16.msra.mxu0 0
      %1362 = vmatprep.subr.bf16.mxu0 0
      %1363 = vmatpush2.bf16.msra.mxu0 0
      %1364 = vmatprep.subr.bf16.mxu0 0
      %1365 = vmatpush2.bf16.msra.mxu0 0
      %1366 = vmatprep.subr.bf16.mxu0 0
      %1367 = vmatpush2.bf16.msra.mxu0 0
      %1368 = vmatprep.subr.bf16.mxu0 0
      %1369 = vmatpush2.bf16.msra.mxu0 0
      %1370 = vmatprep.subr.bf16.mxu0 0
      %1371 = vmatpush2.bf16.msra.mxu0 0
      %1372 = vmatprep.mubr.bf16.mxu0 0
      %1373 = vmatmul.mubr.bf16.gmra.mxu0 %v1320
      %v1374 = vpop.f32.mrf.mxu0
      %v1375 = vadd.f32 %v1158, %v1374
      %v1376 = vpop.f32.mrf.mxu0
      %v1377 = vadd.f32 %v1160, %v1376
      %v1378 = vpop.f32.mrf.mxu0
      %v1379 = vadd.f32 %v1162, %v1378
      %v1380 = vpop.f32.mrf.mxu0
      %v1381 = vadd.f32 %v1164, %v1380
      %1382 = vmatprep.mubr.bf16.mxu0 0
      %1383 = vmatmul.mubr.bf16.gmra.mxu0 %v1323
      %v1384 = vpop.f32.mrf.mxu0
      %v1385 = vadd.f32 %v1168, %v1384
      %v1386 = vpop.f32.mrf.mxu0
      %v1387 = vadd.f32 %v1170, %v1386
      %v1388 = vpop.f32.mrf.mxu0
      %v1389 = vadd.f32 %v1172, %v1388
      %v1390 = vpop.f32.mrf.mxu0
      %v1391 = vadd.f32 %v1174, %v1390
      %1392 = vmatprep.mubr.bf16.mxu0 0
      %1393 = vmatmul.mubr.bf16.gmra.mxu0 %v1326
      %v1394 = vpop.f32.mrf.mxu0
      %v1395 = vadd.f32 %v1178, %v1394
      %v1396 = vpop.f32.mrf.mxu0
      %v1397 = vadd.f32 %v1180, %v1396
      %v1398 = vpop.f32.mrf.mxu0
      %v1399 = vadd.f32 %v1182, %v1398
      %v1400 = vpop.f32.mrf.mxu0
      %v1401 = vadd.f32 %v1184, %v1400
      %1402 = vdwg.mxu0
      %1403 = vmatprep.subr.bf16.mxu0 0
      %1404 = vmatpush1.bf16.msra.mxu0 0
      %1405 = vmatprep.subr.bf16.mxu0 0
      %1406 = vmatpush1.bf16.msra.mxu0 0
      %1407 = vmatprep.subr.bf16.mxu0 0
      %1408 = vmatpush1.bf16.msra.mxu0 0
      %1409 = vmatprep.subr.bf16.mxu0 0
      %1410 = vmatpush1.bf16.msra.mxu0 0
      %1411 = vmatprep.subr.bf16.mxu0 %v1338
      %1412 = vmatpush1.bf16.msra.mxu0 %v1335
      %1413 = vmatprep.subr.bf16.mxu0 %v1302
      %1414 = vmatpush1.bf16.msra.mxu0 %v1301
      %1415 = vmatprep.subr.bf16.mxu0 %v1298
      %1416 = vmatpush1.bf16.msra.mxu0 %v1297
      %1417 = vmatprep.subr.bf16.mxu0 %v1294
      %1418 = vmatpush1.bf16.msra.mxu0 %v1293
      %1419 = vmatprep.subr.bf16.mxu0 0
      %1420 = vmatpush2.bf16.msra.mxu0 0
      %1421 = vmatprep.subr.bf16.mxu0 0
      %1422 = vmatpush2.bf16.msra.mxu0 0
      %1423 = vmatprep.subr.bf16.mxu0 0
      %1424 = vmatpush2.bf16.msra.mxu0 0
      %1425 = vmatprep.subr.bf16.mxu0 0
      %1426 = vmatpush2.bf16.msra.mxu0 0
      %1427 = vmatprep.subr.bf16.mxu0 0
      %1428 = vmatpush2.bf16.msra.mxu0 0
      %1429 = vmatprep.subr.bf16.mxu0 0
      %1430 = vmatpush2.bf16.msra.mxu0 0
      %1431 = vmatprep.subr.bf16.mxu0 0
      %1432 = vmatpush2.bf16.msra.mxu0 0
      %1433 = vmatprep.subr.bf16.mxu0 0
      %1434 = vmatpush2.bf16.msra.mxu0 0
      %1435 = vmatprep.mubr.bf16.mxu0 0
      %1436 = vmatmul.mubr.bf16.gmra.mxu0 %v1320
      %v1437 = vpop.f32.mrf.mxu0
      %v1438 = vadd.f32 %v1221, %v1437
      %v1439 = vpop.f32.mrf.mxu0
      %v1440 = vadd.f32 %v1223, %v1439
      %v1441 = vpop.f32.mrf.mxu0
      %v1442 = vadd.f32 %v1225, %v1441
      %v1443 = vpop.f32.mrf.mxu0
      %v1444 = vadd.f32 %v1227, %v1443
      %1445 = vmatprep.mubr.bf16.mxu0 0
      %1446 = vmatmul.mubr.bf16.gmra.mxu0 %v1323
      %v1447 = vpop.f32.mrf.mxu0
      %v1448 = vadd.f32 %v1231, %v1447
      %v1449 = vpop.f32.mrf.mxu0
      %v1450 = vadd.f32 %v1233, %v1449
      %v1451 = vpop.f32.mrf.mxu0
      %v1452 = vadd.f32 %v1235, %v1451
      %v1453 = vpop.f32.mrf.mxu0
      %v1454 = vadd.f32 %v1237, %v1453
      %1455 = vmatprep.mubr.bf16.mxu0 0
      %1456 = vmatmul.mubr.bf16.gmra.mxu0 %v1326
      %v1457 = vpop.f32.mrf.mxu0
      %v1458 = vadd.f32 %v1241, %v1457
      %v1459 = vpop.f32.mrf.mxu0
      %v1460 = vadd.f32 %v1243, %v1459
      %v1461 = vpop.f32.mrf.mxu0
      %v1462 = vadd.f32 %v1245, %v1461
      %v1463 = vpop.f32.mrf.mxu0
      %v1464 = vadd.f32 %v1247, %v1463
      %1465 = vdwg.mxu0
      %s1466 = scalar_lea.vmem %s1, 224
      %v1467 = vld [vmem:[%s1466] sm:$0xff]
      %v1468 = vld [vmem:[%s1466 + $0x8] sm:$0xff]
      %v1469 = vld [vmem:[%s1466 + $0x10] sm:$0xff]
      %v1470 = vld [vmem:[%s1466 + $0x18] sm:$0xff]
      %v1471 = vld [vmem:[%s1466 + $0x20] sm:$0xff]
      %v1472 = vld [vmem:[%s1466 + $0x28] sm:$0xff]
      %v1473 = vld [vmem:[%s1466 + $0x30] sm:$0xff]
      %v1474 = vld [vmem:[%s1466 + $0x38] sm:$0xff]
      %v1475 = vld [vmem:[%s1466 + $0x40] sm:$0xff]
      %v1476 = vld [vmem:[%s1466 + $0x48] sm:$0xff]
      %v1477 = vld [vmem:[%s1466 + $0x50] sm:$0xff]
      %v1478 = vld [vmem:[%s1466 + $0x58] sm:$0xff]
      %v1479 = vld [vmem:[%s1466 + $0x60] sm:$0x11]
      %v1480 = vld [vmem:[%s1466 + $0x68] sm:$0x11]
      %v1495 = vunpack.c.l.b16 %v1467
      %v1496 = vunpack.c.h.b16 %v1467
      %v1497 = vunpack.c.l.b16 %v1468
      %v1498 = vunpack.c.h.b16 %v1468
      %v1499 = vunpack.c.l.b16 %v1469
      %v1500 = vunpack.c.h.b16 %v1469
      %v1501 = vunpack.c.l.b16 %v1470
      %v1502 = vunpack.c.h.b16 %v1470
      %v1503 = vunpack.c.l.b16 %v1471
      %v1504 = vunpack.c.h.b16 %v1471
      %v1505 = vunpack.c.l.b16 %v1472
      %v1506 = vunpack.c.h.b16 %v1472
      %v1507 = vunpack.c.l.b16 %v1473
      %v1508 = vunpack.c.h.b16 %v1473
      %v1509 = vunpack.c.l.b16 %v1474
      %v1510 = vunpack.c.h.b16 %v1474
      %v1511 = vunpack.c.l.b16 %v1475
      %v1512 = vunpack.c.h.b16 %v1475
      %v1513 = vunpack.c.l.b16 %v1476
      %v1514 = vunpack.c.h.b16 %v1476
      %v1515 = vunpack.c.l.b16 %v1477
      %v1516 = vunpack.c.h.b16 %v1477
      %v1517 = vunpack.c.l.b16 %v1478
      %v1518 = vunpack.c.h.b16 %v1478
      %v1519 = vunpack.c.l.b16 %v1479
      %v1520 = vunpack.c.h.b16 %v1479
      %v1521 = vunpack.c.l.b16 %v1480
      %v1522 = vunpack.c.h.b16 %v1480
      %v1523 = vpack.c.b16 %v1499, %v1495
      %v1524 = vpack.c.b16 %v1500, %v1496
      %v1525 = vpack.c.b16 %v1501, %v1497
      %v1526 = vpack.c.b16 %v1502, %v1498
      %v1527 = vpack.c.b16 %v1507, %v1503
      %v1528 = vpack.c.b16 %v1508, %v1504
      %v1529 = vpack.c.b16 %v1509, %v1505
      %v1530 = vpack.c.b16 %v1510, %v1506
      %v1531 = vpack.c.b16 %v1515, %v1511
      %v1532 = vpack.c.b16 %v1516, %v1512
      %v1533 = vpack.c.b16 %v1517, %v1513
      %v1534 = vpack.c.b16 %v1518, %v1514
      %v1535 = vpack.c.b16 %v1519, %v1519
      %v1536 = vpack.c.b16 %v1520, %v1520
      %v1537 = vpack.c.b16 %v1521, %v1521
      %v1538 = vpack.c.b16 %v1522, %v1522
      %v1552 = vsel %vm1098, %v993, 0
      %v1555 = vsel %vm1098, %v994, 0
      %v1558 = vsel %vm1098, %v995, 0
      %v1561 = vand.u32 %v1535, %v1110
      %v1564 = vand.u32 %v1536, %v1110
      %v1567 = vand.u32 %v1537, %v1110
      %v1570 = vand.u32 %v1538, %v1110
      %1572 = vmatprep.subr.bf16.mxu0 0
      %1573 = vmatpush1.bf16.msra.mxu0 0
      %1574 = vmatprep.subr.bf16.mxu0 0
      %1575 = vmatpush1.bf16.msra.mxu0 0
      %1576 = vmatprep.subr.bf16.mxu0 0
      %1577 = vmatpush1.bf16.msra.mxu0 0
      %1578 = vmatprep.subr.bf16.mxu0 0
      %1579 = vmatpush1.bf16.msra.mxu0 0
      %1580 = vmatprep.subr.bf16.mxu0 %v1564
      %1581 = vmatpush1.bf16.msra.mxu0 %v1561
      %1582 = vmatprep.subr.bf16.mxu0 %v1532
      %1583 = vmatpush1.bf16.msra.mxu0 %v1531
      %1584 = vmatprep.subr.bf16.mxu0 %v1528
      %1585 = vmatpush1.bf16.msra.mxu0 %v1527
      %1586 = vmatprep.subr.bf16.mxu0 %v1524
      %1587 = vmatpush1.bf16.msra.mxu0 %v1523
      %1588 = vmatprep.subr.bf16.mxu0 0
      %1589 = vmatpush2.bf16.msra.mxu0 0
      %1590 = vmatprep.subr.bf16.mxu0 0
      %1591 = vmatpush2.bf16.msra.mxu0 0
      %1592 = vmatprep.subr.bf16.mxu0 0
      %1593 = vmatpush2.bf16.msra.mxu0 0
      %1594 = vmatprep.subr.bf16.mxu0 0
      %1595 = vmatpush2.bf16.msra.mxu0 0
      %1596 = vmatprep.subr.bf16.mxu0 0
      %1597 = vmatpush2.bf16.msra.mxu0 0
      %1598 = vmatprep.subr.bf16.mxu0 0
      %1599 = vmatpush2.bf16.msra.mxu0 0
      %1600 = vmatprep.subr.bf16.mxu0 0
      %1601 = vmatpush2.bf16.msra.mxu0 0
      %1602 = vmatprep.subr.bf16.mxu0 0
      %1603 = vmatpush2.bf16.msra.mxu0 0
      %1604 = vmatprep.mubr.bf16.mxu0 0
      %1605 = vmatmul.mubr.bf16.gmra.mxu0 %v1552
      %v1606 = vpop.f32.mrf.mxu0
      %v1607 = vadd.f32 0.0, %v1606
      %v1608 = vpop.f32.mrf.mxu0
      %v1609 = vadd.f32 0.0, %v1608
      %v1610 = vpop.f32.mrf.mxu0
      %v1611 = vadd.f32 0.0, %v1610
      %v1612 = vpop.f32.mrf.mxu0
      %v1613 = vadd.f32 0.0, %v1612
      %1614 = vmatprep.mubr.bf16.mxu0 0
      %1615 = vmatmul.mubr.bf16.gmra.mxu0 %v1555
      %v1616 = vpop.f32.mrf.mxu0
      %v1617 = vadd.f32 0.0, %v1616
      %v1618 = vpop.f32.mrf.mxu0
      %v1619 = vadd.f32 0.0, %v1618
      %v1620 = vpop.f32.mrf.mxu0
      %v1621 = vadd.f32 0.0, %v1620
      %v1622 = vpop.f32.mrf.mxu0
      %v1623 = vadd.f32 0.0, %v1622
      %1624 = vmatprep.mubr.bf16.mxu0 0
      %1625 = vmatmul.mubr.bf16.gmra.mxu0 %v1558
      %v1626 = vpop.f32.mrf.mxu0
      %v1627 = vadd.f32 0.0, %v1626
      %v1628 = vpop.f32.mrf.mxu0
      %v1629 = vadd.f32 0.0, %v1628
      %v1630 = vpop.f32.mrf.mxu0
      %v1631 = vadd.f32 0.0, %v1630
      %v1632 = vpop.f32.mrf.mxu0
      %v1633 = vadd.f32 0.0, %v1632
      %1634 = vdwg.mxu0
      %1635 = vmatprep.subr.bf16.mxu0 0
      %1636 = vmatpush1.bf16.msra.mxu0 0
      %1637 = vmatprep.subr.bf16.mxu0 0
      %1638 = vmatpush1.bf16.msra.mxu0 0
      %1639 = vmatprep.subr.bf16.mxu0 0
      %1640 = vmatpush1.bf16.msra.mxu0 0
      %1641 = vmatprep.subr.bf16.mxu0 0
      %1642 = vmatpush1.bf16.msra.mxu0 0
      %1643 = vmatprep.subr.bf16.mxu0 %v1570
      %1644 = vmatpush1.bf16.msra.mxu0 %v1567
      %1645 = vmatprep.subr.bf16.mxu0 %v1534
      %1646 = vmatpush1.bf16.msra.mxu0 %v1533
      %1647 = vmatprep.subr.bf16.mxu0 %v1530
      %1648 = vmatpush1.bf16.msra.mxu0 %v1529
      %1649 = vmatprep.subr.bf16.mxu0 %v1526
      %1650 = vmatpush1.bf16.msra.mxu0 %v1525
      %1651 = vmatprep.subr.bf16.mxu0 0
      %1652 = vmatpush2.bf16.msra.mxu0 0
      %1653 = vmatprep.subr.bf16.mxu0 0
      %1654 = vmatpush2.bf16.msra.mxu0 0
      %1655 = vmatprep.subr.bf16.mxu0 0
      %1656 = vmatpush2.bf16.msra.mxu0 0
      %1657 = vmatprep.subr.bf16.mxu0 0
      %1658 = vmatpush2.bf16.msra.mxu0 0
      %1659 = vmatprep.subr.bf16.mxu0 0
      %1660 = vmatpush2.bf16.msra.mxu0 0
      %1661 = vmatprep.subr.bf16.mxu0 0
      %1662 = vmatpush2.bf16.msra.mxu0 0
      %1663 = vmatprep.subr.bf16.mxu0 0
      %1664 = vmatpush2.bf16.msra.mxu0 0
      %1665 = vmatprep.subr.bf16.mxu0 0
      %1666 = vmatpush2.bf16.msra.mxu0 0
      %1667 = vmatprep.mubr.bf16.mxu0 0
      %1668 = vmatmul.mubr.bf16.gmra.mxu0 %v1552
      %v1669 = vpop.f32.mrf.mxu0
      %v1670 = vadd.f32 0.0, %v1669
      %v1671 = vpop.f32.mrf.mxu0
      %v1672 = vadd.f32 0.0, %v1671
      %v1673 = vpop.f32.mrf.mxu0
      %v1674 = vadd.f32 0.0, %v1673
      %v1675 = vpop.f32.mrf.mxu0
      %v1676 = vadd.f32 0.0, %v1675
      %1677 = vmatprep.mubr.bf16.mxu0 0
      %1678 = vmatmul.mubr.bf16.gmra.mxu0 %v1555
      %v1679 = vpop.f32.mrf.mxu0
      %v1680 = vadd.f32 0.0, %v1679
      %v1681 = vpop.f32.mrf.mxu0
      %v1682 = vadd.f32 0.0, %v1681
      %v1683 = vpop.f32.mrf.mxu0
      %v1684 = vadd.f32 0.0, %v1683
      %v1685 = vpop.f32.mrf.mxu0
      %v1686 = vadd.f32 0.0, %v1685
      %1687 = vmatprep.mubr.bf16.mxu0 0
      %1688 = vmatmul.mubr.bf16.gmra.mxu0 %v1558
      %v1689 = vpop.f32.mrf.mxu0
      %v1690 = vadd.f32 0.0, %v1689
      %v1691 = vpop.f32.mrf.mxu0
      %v1692 = vadd.f32 0.0, %v1691
      %v1693 = vpop.f32.mrf.mxu0
      %v1694 = vadd.f32 0.0, %v1693
      %v1695 = vpop.f32.mrf.mxu0
      %v1696 = vadd.f32 0.0, %v1695
      %1697 = vdwg.mxu0
      %v1698 = vadd.f32 %v1375, %v1607
      %v1699 = vadd.f32 %v1377, %v1609
      %v1700 = vadd.f32 %v1438, %v1670
      %v1701 = vadd.f32 %v1440, %v1672
      %v1702 = vadd.f32 %v1379, %v1611
      %v1703 = vadd.f32 %v1381, %v1613
      %v1704 = vadd.f32 %v1442, %v1674
      %v1705 = vadd.f32 %v1444, %v1676
      %v1706 = vadd.f32 %v1385, %v1617
      %v1707 = vadd.f32 %v1387, %v1619
      %v1708 = vadd.f32 %v1448, %v1680
      %v1709 = vadd.f32 %v1450, %v1682
      %v1710 = vadd.f32 %v1389, %v1621
      %v1711 = vadd.f32 %v1391, %v1623
      %v1712 = vadd.f32 %v1452, %v1684
      %v1713 = vadd.f32 %v1454, %v1686
      %v1714 = vadd.f32 %v1395, %v1627
      %v1715 = vadd.f32 %v1397, %v1629
      %v1716 = vadd.f32 %v1458, %v1690
      %v1717 = vadd.f32 %v1460, %v1692
      %v1718 = vadd.f32 %v1399, %v1631
      %v1719 = vadd.f32 %v1401, %v1633
      %v1720 = vadd.f32 %v1462, %v1694
      %v1721 = vadd.f32 %v1464, %v1696
      %v1723 = vlaneseq
      %v1724 = vshrl.u32 %v1723, 7
      %v1725 = vsub.s32 0, %v1724
      %v1726 = vrot.slane %v996, %v1725
      %v1727 = vlaneseq
      %v1728 = vshrl.u32 %v1727, 7
      %v1729 = vsub.s32 1, %v1728
      %v1730 = vrot.slane %v996, %v1729
      %v1731 = vlaneseq
      %v1732 = vshrl.u32 %v1731, 7
      %v1733 = vsub.s32 2, %v1732
      %v1734 = vrot.slane %v996, %v1733
      %v1735 = vlaneseq
      %v1736 = vshrl.u32 %v1735, 7
      %v1737 = vsub.s32 3, %v1736
      %v1738 = vrot.slane %v996, %v1737
      %v1743 = vadd.f32 %v1698, %v1726
      %v1744 = vadd.f32 %v1699, %v1730
      %v1745 = vadd.f32 %v1700, %v1734
      %v1746 = vadd.f32 %v1701, %v1738
      %v1747 = vadd.f32 %v1702, %v1726
      %v1748 = vadd.f32 %v1703, %v1730
      %v1749 = vadd.f32 %v1704, %v1734
      %v1750 = vadd.f32 %v1705, %v1738
      %v1751 = vadd.f32 %v1706, %v1726
      %v1752 = vadd.f32 %v1707, %v1730
      %v1753 = vadd.f32 %v1708, %v1734
      %v1754 = vadd.f32 %v1709, %v1738
      %v1755 = vadd.f32 %v1710, %v1726
      %v1756 = vadd.f32 %v1711, %v1730
      %v1757 = vadd.f32 %v1712, %v1734
      %v1758 = vadd.f32 %v1713, %v1738
      %v1759 = vadd.f32 %v1714, %v1726
      %v1760 = vadd.f32 %v1715, %v1730
      %v1761 = vadd.f32 %v1716, %v1734
      %v1762 = vadd.f32 %v1717, %v1738
      %v1763 = vadd.f32 %v1718, %v1726
      %v1764 = vadd.f32 %v1719, %v1730
      %v1765 = vadd.f32 %v1720, %v1734
      %v1766 = vadd.f32 %v1721, %v1738
      %vm1767 = vcmp.gt.f32.partialorder %v1743, 0.0
      %vm1768 = vcmp.gt.f32.partialorder %v1744, 0.0
      %vm1769 = vcmp.gt.f32.partialorder %v1745, 0.0
      %vm1770 = vcmp.gt.f32.partialorder %v1746, 0.0
      %vm1771 = vcmp.gt.f32.partialorder %v1747, 0.0
      %vm1772 = vcmp.gt.f32.partialorder %v1748, 0.0
      %vm1773 = vcmp.gt.f32.partialorder %v1749, 0.0
      %vm1774 = vcmp.gt.f32.partialorder %v1750, 0.0
      %vm1775 = vcmp.gt.f32.partialorder %v1751, 0.0
      %vm1776 = vcmp.gt.f32.partialorder %v1752, 0.0
      %vm1777 = vcmp.gt.f32.partialorder %v1753, 0.0
      %vm1778 = vcmp.gt.f32.partialorder %v1754, 0.0
      %vm1779 = vcmp.gt.f32.partialorder %v1755, 0.0
      %vm1780 = vcmp.gt.f32.partialorder %v1756, 0.0
      %vm1781 = vcmp.gt.f32.partialorder %v1757, 0.0
      %vm1782 = vcmp.gt.f32.partialorder %v1758, 0.0
      %vm1783 = vcmp.gt.f32.partialorder %v1759, 0.0
      %vm1784 = vcmp.gt.f32.partialorder %v1760, 0.0
      %vm1785 = vcmp.gt.f32.partialorder %v1761, 0.0
      %vm1786 = vcmp.gt.f32.partialorder %v1762, 0.0
      %vm1787 = vcmp.gt.f32.partialorder %v1763, 0.0
      %vm1788 = vcmp.gt.f32.partialorder %v1764, 0.0
      %vm1789 = vcmp.gt.f32.partialorder %v1765, 0.0
      %vm1790 = vcmp.gt.f32.partialorder %v1766, 0.0
      %v1792 = vlaneseq
      %v1793 = vshrl.u32 %v1792, 7
      %v1794 = vsub.s32 0, %v1793
      %v1795 = vrot.slane %v998, %v1794
      %v1796 = vlaneseq
      %v1797 = vshrl.u32 %v1796, 7
      %v1798 = vsub.s32 1, %v1797
      %v1799 = vrot.slane %v998, %v1798
      %v1800 = vlaneseq
      %v1801 = vshrl.u32 %v1800, 7
      %v1802 = vsub.s32 2, %v1801
      %v1803 = vrot.slane %v998, %v1802
      %v1804 = vlaneseq
      %v1805 = vshrl.u32 %v1804, 7
      %v1806 = vsub.s32 3, %v1805
      %v1807 = vrot.slane %v998, %v1806
      %v1812 = vmul.f32 %v1795, %v1743
      %v1813 = vmul.f32 %v1799, %v1744
      %v1814 = vmul.f32 %v1803, %v1745
      %v1815 = vmul.f32 %v1807, %v1746
      %v1816 = vmul.f32 %v1795, %v1747
      %v1817 = vmul.f32 %v1799, %v1748
      %v1818 = vmul.f32 %v1803, %v1749
      %v1819 = vmul.f32 %v1807, %v1750
      %v1820 = vmul.f32 %v1795, %v1751
      %v1821 = vmul.f32 %v1799, %v1752
      %v1822 = vmul.f32 %v1803, %v1753
      %v1823 = vmul.f32 %v1807, %v1754
      %v1824 = vmul.f32 %v1795, %v1755
      %v1825 = vmul.f32 %v1799, %v1756
      %v1826 = vmul.f32 %v1803, %v1757
      %v1827 = vmul.f32 %v1807, %v1758
      %v1828 = vmul.f32 %v1795, %v1759
      %v1829 = vmul.f32 %v1799, %v1760
      %v1830 = vmul.f32 %v1803, %v1761
      %v1831 = vmul.f32 %v1807, %v1762
      %v1832 = vmul.f32 %v1795, %v1763
      %v1833 = vmul.f32 %v1799, %v1764
      %v1834 = vmul.f32 %v1803, %v1765
      %v1835 = vmul.f32 %v1807, %v1766
      %v1836 = vsel %vm1767, %v1743, %v1812
      %v1837 = vsel %vm1768, %v1744, %v1813
      %v1838 = vsel %vm1769, %v1745, %v1814
      %v1839 = vsel %vm1770, %v1746, %v1815
      %v1840 = vsel %vm1771, %v1747, %v1816
      %v1841 = vsel %vm1772, %v1748, %v1817
      %v1842 = vsel %vm1773, %v1749, %v1818
      %v1843 = vsel %vm1774, %v1750, %v1819
      %v1844 = vsel %vm1775, %v1751, %v1820
      %v1845 = vsel %vm1776, %v1752, %v1821
      %v1846 = vsel %vm1777, %v1753, %v1822
      %v1847 = vsel %vm1778, %v1754, %v1823
      %v1848 = vsel %vm1779, %v1755, %v1824
      %v1849 = vsel %vm1780, %v1756, %v1825
      %v1850 = vsel %vm1781, %v1757, %v1826
      %v1851 = vsel %vm1782, %v1758, %v1827
      %v1852 = vsel %vm1783, %v1759, %v1828
      %v1853 = vsel %vm1784, %v1760, %v1829
      %v1854 = vsel %vm1785, %v1761, %v1830
      %v1855 = vsel %vm1786, %v1762, %v1831
      %v1856 = vsel %vm1787, %v1763, %v1832
      %v1857 = vsel %vm1788, %v1764, %v1833
      %v1858 = vsel %vm1789, %v1765, %v1834
      %v1859 = vsel %vm1790, %v1766, %v1835
      %s1860 = scalar_lea.vmem %s1, 336
      %v1861 = vld [vmem:[%s1860] sm:$0xff]
      %v1862 = vld [vmem:[%s1860 + $0x8] sm:$0xff]
      %v1863 = vld [vmem:[%s1860 + $0x10] sm:$0xff]
      %v1864 = vld [vmem:[%s1860 + $0x18] sm:$0xff]
      %v1865 = vld [vmem:[%s1860 + $0x20] sm:$0xff]
      %v1866 = vld [vmem:[%s1860 + $0x28] sm:$0xff]
      %v1867 = vld [vmem:[%s1860 + $0x30] sm:$0xff]
      %v1868 = vld [vmem:[%s1860 + $0x38] sm:$0xff]
      %v1869 = vld [vmem:[%s1860 + $0x40] sm:$0xff]
      %v1870 = vld [vmem:[%s1860 + $0x48] sm:$0xff]
      %v1871 = vld [vmem:[%s1860 + $0x50] sm:$0xff]
      %v1872 = vld [vmem:[%s1860 + $0x58] sm:$0xff]
      %v1873 = vld [vmem:[%s1860 + $0x60] sm:$0x11]
      %v1874 = vld [vmem:[%s1860 + $0x68] sm:$0x11]
      %s1875 = scalar_lea.vmem %s1, 448
      %v1876 = vld [vmem:[%s1875] sm:$0xff]
      %v1877 = vld [vmem:[%s1875 + $0x8] sm:$0xff]
      %v1878 = vld [vmem:[%s1875 + $0x10] sm:$0xff]
      %v1879 = vld [vmem:[%s1875 + $0x18] sm:$0xff]
      %v1880 = vld [vmem:[%s1875 + $0x20] sm:$0xff]
      %v1881 = vld [vmem:[%s1875 + $0x28] sm:$0xff]
      %v1882 = vld [vmem:[%s1875 + $0x30] sm:$0xff]
      %v1883 = vld [vmem:[%s1875 + $0x38] sm:$0xff]
      %v1884 = vld [vmem:[%s1875 + $0x40] sm:$0xff]
      %v1885 = vld [vmem:[%s1875 + $0x48] sm:$0xff]
      %v1886 = vld [vmem:[%s1875 + $0x50] sm:$0xff]
      %v1887 = vld [vmem:[%s1875 + $0x58] sm:$0xff]
      %v1888 = vld [vmem:[%s1875 + $0x60] sm:$0x11]
      %v1889 = vld [vmem:[%s1875 + $0x68] sm:$0x11]
      %v1904 = vunpack.c.l.b16 %v1876
      %v1905 = vunpack.c.h.b16 %v1876
      %v1906 = vunpack.c.l.b16 %v1877
      %v1907 = vunpack.c.h.b16 %v1877
      %v1908 = vunpack.c.l.b16 %v1878
      %v1909 = vunpack.c.h.b16 %v1878
      %v1910 = vunpack.c.l.b16 %v1879
      %v1911 = vunpack.c.h.b16 %v1879
      %v1912 = vunpack.c.l.b16 %v1880
      %v1913 = vunpack.c.h.b16 %v1880
      %v1914 = vunpack.c.l.b16 %v1881
      %v1915 = vunpack.c.h.b16 %v1881
      %v1916 = vunpack.c.l.b16 %v1882
      %v1917 = vunpack.c.h.b16 %v1882
      %v1918 = vunpack.c.l.b16 %v1883
      %v1919 = vunpack.c.h.b16 %v1883
      %v1920 = vunpack.c.l.b16 %v1884
      %v1921 = vunpack.c.h.b16 %v1884
      %v1922 = vunpack.c.l.b16 %v1885
      %v1923 = vunpack.c.h.b16 %v1885
      %v1924 = vunpack.c.l.b16 %v1886
      %v1925 = vunpack.c.h.b16 %v1886
      %v1926 = vunpack.c.l.b16 %v1887
      %v1927 = vunpack.c.h.b16 %v1887
      %v1928 = vunpack.c.l.b16 %v1888
      %v1929 = vunpack.c.h.b16 %v1888
      %v1930 = vunpack.c.l.b16 %v1889
      %v1931 = vunpack.c.h.b16 %v1889
      %v1932 = vpack.c.b16 %v1908, %v1904
      %v1933 = vpack.c.b16 %v1909, %v1905
      %v1934 = vpack.c.b16 %v1910, %v1906
      %v1935 = vpack.c.b16 %v1911, %v1907
      %v1936 = vpack.c.b16 %v1916, %v1912
      %v1937 = vpack.c.b16 %v1917, %v1913
      %v1938 = vpack.c.b16 %v1918, %v1914
      %v1939 = vpack.c.b16 %v1919, %v1915
      %v1940 = vpack.c.b16 %v1924, %v1920
      %v1941 = vpack.c.b16 %v1925, %v1921
      %v1942 = vpack.c.b16 %v1926, %v1922
      %v1943 = vpack.c.b16 %v1927, %v1923
      %v1944 = vpack.c.b16 %v1928, %v1928
      %v1945 = vpack.c.b16 %v1929, %v1929
      %v1946 = vpack.c.b16 %v1930, %v1930
      %v1947 = vpack.c.b16 %v1931, %v1931
      %v1961 = vand.u32 %v1944, %v1110
      %v1964 = vand.u32 %v1945, %v1110
      %v1967 = vand.u32 %v1946, %v1110
      %v1970 = vand.u32 %v1947, %v1110
      %1972 = vmatprep.subr.bf16.mxu0 0
      %1973 = vmatpush1.bf16.msra.mxu0 0
      %1974 = vmatprep.subr.bf16.mxu0 0
      %1975 = vmatpush1.bf16.msra.mxu0 0
      %1976 = vmatprep.subr.bf16.mxu0 0
      %1977 = vmatpush1.bf16.msra.mxu0 0
      %1978 = vmatprep.subr.bf16.mxu0 0
      %1979 = vmatpush1.bf16.msra.mxu0 0
      %1980 = vmatprep.subr.bf16.mxu0 %v1964
      %1981 = vmatpush1.bf16.msra.mxu0 %v1961
      %1982 = vmatprep.subr.bf16.mxu0 %v1941
      %1983 = vmatpush1.bf16.msra.mxu0 %v1940
      %1984 = vmatprep.subr.bf16.mxu0 %v1937
      %1985 = vmatpush1.bf16.msra.mxu0 %v1936
      %1986 = vmatprep.subr.bf16.mxu0 %v1933
      %1987 = vmatpush1.bf16.msra.mxu0 %v1932
      %1988 = vmatprep.subr.bf16.mxu0 0
      %1989 = vmatpush2.bf16.msra.mxu0 0
      %1990 = vmatprep.subr.bf16.mxu0 0
      %1991 = vmatpush2.bf16.msra.mxu0 0
      %1992 = vmatprep.subr.bf16.mxu0 0
      %1993 = vmatpush2.bf16.msra.mxu0 0
      %1994 = vmatprep.subr.bf16.mxu0 0
      %1995 = vmatpush2.bf16.msra.mxu0 0
      %1996 = vmatprep.subr.bf16.mxu0 0
      %1997 = vmatpush2.bf16.msra.mxu0 0
      %1998 = vmatprep.subr.bf16.mxu0 0
      %1999 = vmatpush2.bf16.msra.mxu0 0
      %2000 = vmatprep.subr.bf16.mxu0 0
      %2001 = vmatpush2.bf16.msra.mxu0 0
      %2002 = vmatprep.subr.bf16.mxu0 0
      %2003 = vmatpush2.bf16.msra.mxu0 0
      %2004 = vmatprep.mubr.bf16.mxu0 0
      %2005 = vmatmul.mubr.bf16.gmra.mxu0 %v1100
      %v2006 = vpop.f32.mrf.mxu0
      %v2007 = vadd.f32 0.0, %v2006
      %v2008 = vpop.f32.mrf.mxu0
      %v2009 = vadd.f32 0.0, %v2008
      %v2010 = vpop.f32.mrf.mxu0
      %v2011 = vadd.f32 0.0, %v2010
      %v2012 = vpop.f32.mrf.mxu0
      %v2013 = vadd.f32 0.0, %v2012
      %2014 = vmatprep.mubr.bf16.mxu0 0
      %2015 = vmatmul.mubr.bf16.gmra.mxu0 %v1103
      %v2016 = vpop.f32.mrf.mxu0
      %v2017 = vadd.f32 0.0, %v2016
      %v2018 = vpop.f32.mrf.mxu0
      %v2019 = vadd.f32 0.0, %v2018
      %v2020 = vpop.f32.mrf.mxu0
      %v2021 = vadd.f32 0.0, %v2020
      %v2022 = vpop.f32.mrf.mxu0
      %v2023 = vadd.f32 0.0, %v2022
      %2024 = vmatprep.mubr.bf16.mxu0 0
      %2025 = vmatmul.mubr.bf16.gmra.mxu0 %v1106
      %v2026 = vpop.f32.mrf.mxu0
      %v2027 = vadd.f32 0.0, %v2026
      %v2028 = vpop.f32.mrf.mxu0
      %v2029 = vadd.f32 0.0, %v2028
      %v2030 = vpop.f32.mrf.mxu0
      %v2031 = vadd.f32 0.0, %v2030
      %v2032 = vpop.f32.mrf.mxu0
      %v2033 = vadd.f32 0.0, %v2032
      %2034 = vdwg.mxu0
      %2035 = vmatprep.subr.bf16.mxu0 0
      %2036 = vmatpush1.bf16.msra.mxu0 0
      %2037 = vmatprep.subr.bf16.mxu0 0
      %2038 = vmatpush1.bf16.msra.mxu0 0
      %2039 = vmatprep.subr.bf16.mxu0 0
      %2040 = vmatpush1.bf16.msra.mxu0 0
      %2041 = vmatprep.subr.bf16.mxu0 0
      %2042 = vmatpush1.bf16.msra.mxu0 0
      %2043 = vmatprep.subr.bf16.mxu0 %v1970
      %2044 = vmatpush1.bf16.msra.mxu0 %v1967
      %2045 = vmatprep.subr.bf16.mxu0 %v1943
      %2046 = vmatpush1.bf16.msra.mxu0 %v1942
      %2047 = vmatprep.subr.bf16.mxu0 %v1939
      %2048 = vmatpush1.bf16.msra.mxu0 %v1938
      %2049 = vmatprep.subr.bf16.mxu0 %v1935
      %2050 = vmatpush1.bf16.msra.mxu0 %v1934
      %2051 = vmatprep.subr.bf16.mxu0 0
      %2052 = vmatpush2.bf16.msra.mxu0 0
      %2053 = vmatprep.subr.bf16.mxu0 0
      %2054 = vmatpush2.bf16.msra.mxu0 0
      %2055 = vmatprep.subr.bf16.mxu0 0
      %2056 = vmatpush2.bf16.msra.mxu0 0
      %2057 = vmatprep.subr.bf16.mxu0 0
      %2058 = vmatpush2.bf16.msra.mxu0 0
      %2059 = vmatprep.subr.bf16.mxu0 0
      %2060 = vmatpush2.bf16.msra.mxu0 0
      %2061 = vmatprep.subr.bf16.mxu0 0
      %2062 = vmatpush2.bf16.msra.mxu0 0
      %2063 = vmatprep.subr.bf16.mxu0 0
      %2064 = vmatpush2.bf16.msra.mxu0 0
      %2065 = vmatprep.subr.bf16.mxu0 0
      %2066 = vmatpush2.bf16.msra.mxu0 0
      %2067 = vmatprep.mubr.bf16.mxu0 0
      %2068 = vmatmul.mubr.bf16.gmra.mxu0 %v1100
      %v2069 = vpop.f32.mrf.mxu0
      %v2070 = vadd.f32 0.0, %v2069
      %v2071 = vpop.f32.mrf.mxu0
      %v2072 = vadd.f32 0.0, %v2071
      %v2073 = vpop.f32.mrf.mxu0
      %v2074 = vadd.f32 0.0, %v2073
      %v2075 = vpop.f32.mrf.mxu0
      %v2076 = vadd.f32 0.0, %v2075
      %2077 = vmatprep.mubr.bf16.mxu0 0
      %2078 = vmatmul.mubr.bf16.gmra.mxu0 %v1103
      %v2079 = vpop.f32.mrf.mxu0
      %v2080 = vadd.f32 0.0, %v2079
      %v2081 = vpop.f32.mrf.mxu0
      %v2082 = vadd.f32 0.0, %v2081
      %v2083 = vpop.f32.mrf.mxu0
      %v2084 = vadd.f32 0.0, %v2083
      %v2085 = vpop.f32.mrf.mxu0
      %v2086 = vadd.f32 0.0, %v2085
      %2087 = vmatprep.mubr.bf16.mxu0 0
      %2088 = vmatmul.mubr.bf16.gmra.mxu0 %v1106
      %v2089 = vpop.f32.mrf.mxu0
      %v2090 = vadd.f32 0.0, %v2089
      %v2091 = vpop.f32.mrf.mxu0
      %v2092 = vadd.f32 0.0, %v2091
      %v2093 = vpop.f32.mrf.mxu0
      %v2094 = vadd.f32 0.0, %v2093
      %v2095 = vpop.f32.mrf.mxu0
      %v2096 = vadd.f32 0.0, %v2095
      %2097 = vdwg.mxu0
      %v2112 = vunpack.c.l.b16 %v1861
      %v2113 = vunpack.c.h.b16 %v1861
      %v2114 = vunpack.c.l.b16 %v1862
      %v2115 = vunpack.c.h.b16 %v1862
      %v2116 = vunpack.c.l.b16 %v1863
      %v2117 = vunpack.c.h.b16 %v1863
      %v2118 = vunpack.c.l.b16 %v1864
      %v2119 = vunpack.c.h.b16 %v1864
      %v2120 = vunpack.c.l.b16 %v1865
      %v2121 = vunpack.c.h.b16 %v1865
      %v2122 = vunpack.c.l.b16 %v1866
      %v2123 = vunpack.c.h.b16 %v1866
      %v2124 = vunpack.c.l.b16 %v1867
      %v2125 = vunpack.c.h.b16 %v1867
      %v2126 = vunpack.c.l.b16 %v1868
      %v2127 = vunpack.c.h.b16 %v1868
      %v2128 = vunpack.c.l.b16 %v1869
      %v2129 = vunpack.c.h.b16 %v1869
      %v2130 = vunpack.c.l.b16 %v1870
      %v2131 = vunpack.c.h.b16 %v1870
      %v2132 = vunpack.c.l.b16 %v1871
      %v2133 = vunpack.c.h.b16 %v1871
      %v2134 = vunpack.c.l.b16 %v1872
      %v2135 = vunpack.c.h.b16 %v1872
      %v2136 = vunpack.c.l.b16 %v1873
      %v2137 = vunpack.c.h.b16 %v1873
      %v2138 = vunpack.c.l.b16 %v1874
      %v2139 = vunpack.c.h.b16 %v1874
      %v2140 = vpack.c.b16 %v2116, %v2112
      %v2141 = vpack.c.b16 %v2117, %v2113
      %v2142 = vpack.c.b16 %v2118, %v2114
      %v2143 = vpack.c.b16 %v2119, %v2115
      %v2144 = vpack.c.b16 %v2124, %v2120
      %v2145 = vpack.c.b16 %v2125, %v2121
      %v2146 = vpack.c.b16 %v2126, %v2122
      %v2147 = vpack.c.b16 %v2127, %v2123
      %v2148 = vpack.c.b16 %v2132, %v2128
      %v2149 = vpack.c.b16 %v2133, %v2129
      %v2150 = vpack.c.b16 %v2134, %v2130
      %v2151 = vpack.c.b16 %v2135, %v2131
      %v2152 = vpack.c.b16 %v2136, %v2136
      %v2153 = vpack.c.b16 %v2137, %v2137
      %v2154 = vpack.c.b16 %v2138, %v2138
      %v2155 = vpack.c.b16 %v2139, %v2139
      %v2169 = vand.u32 %v2152, %v1110
      %v2172 = vand.u32 %v2153, %v1110
      %v2175 = vand.u32 %v2154, %v1110
      %v2178 = vand.u32 %v2155, %v1110
      %2180 = vmatprep.subr.bf16.mxu0 0
      %2181 = vmatpush1.bf16.msra.mxu0 0
      %2182 = vmatprep.subr.bf16.mxu0 0
      %2183 = vmatpush1.bf16.msra.mxu0 0
      %2184 = vmatprep.subr.bf16.mxu0 0
      %2185 = vmatpush1.bf16.msra.mxu0 0
      %2186 = vmatprep.subr.bf16.mxu0 0
      %2187 = vmatpush1.bf16.msra.mxu0 0
      %2188 = vmatprep.subr.bf16.mxu0 %v2172
      %2189 = vmatpush1.bf16.msra.mxu0 %v2169
      %2190 = vmatprep.subr.bf16.mxu0 %v2149
      %2191 = vmatpush1.bf16.msra.mxu0 %v2148
      %2192 = vmatprep.subr.bf16.mxu0 %v2145
      %2193 = vmatpush1.bf16.msra.mxu0 %v2144
      %2194 = vmatprep.subr.bf16.mxu0 %v2141
      %2195 = vmatpush1.bf16.msra.mxu0 %v2140
      %2196 = vmatprep.subr.bf16.mxu0 0
      %2197 = vmatpush2.bf16.msra.mxu0 0
      %2198 = vmatprep.subr.bf16.mxu0 0
      %2199 = vmatpush2.bf16.msra.mxu0 0
      %2200 = vmatprep.subr.bf16.mxu0 0
      %2201 = vmatpush2.bf16.msra.mxu0 0
      %2202 = vmatprep.subr.bf16.mxu0 0
      %2203 = vmatpush2.bf16.msra.mxu0 0
      %2204 = vmatprep.subr.bf16.mxu0 0
      %2205 = vmatpush2.bf16.msra.mxu0 0
      %2206 = vmatprep.subr.bf16.mxu0 0
      %2207 = vmatpush2.bf16.msra.mxu0 0
      %2208 = vmatprep.subr.bf16.mxu0 0
      %2209 = vmatpush2.bf16.msra.mxu0 0
      %2210 = vmatprep.subr.bf16.mxu0 0
      %2211 = vmatpush2.bf16.msra.mxu0 0
      %2212 = vmatprep.mubr.bf16.mxu0 0
      %2213 = vmatmul.mubr.bf16.gmra.mxu0 %v1320
      %v2214 = vpop.f32.mrf.mxu0
      %v2215 = vadd.f32 %v2007, %v2214
      %v2216 = vpop.f32.mrf.mxu0
      %v2217 = vadd.f32 %v2009, %v2216
      %v2218 = vpop.f32.mrf.mxu0
      %v2219 = vadd.f32 %v2011, %v2218
      %v2220 = vpop.f32.mrf.mxu0
      %v2221 = vadd.f32 %v2013, %v2220
      %2222 = vmatprep.mubr.bf16.mxu0 0
      %2223 = vmatmul.mubr.bf16.gmra.mxu0 %v1323
      %v2224 = vpop.f32.mrf.mxu0
      %v2225 = vadd.f32 %v2017, %v2224
      %v2226 = vpop.f32.mrf.mxu0
      %v2227 = vadd.f32 %v2019, %v2226
      %v2228 = vpop.f32.mrf.mxu0
      %v2229 = vadd.f32 %v2021, %v2228
      %v2230 = vpop.f32.mrf.mxu0
      %v2231 = vadd.f32 %v2023, %v2230
      %2232 = vmatprep.mubr.bf16.mxu0 0
      %2233 = vmatmul.mubr.bf16.gmra.mxu0 %v1326
      %v2234 = vpop.f32.mrf.mxu0
      %v2235 = vadd.f32 %v2027, %v2234
      %v2236 = vpop.f32.mrf.mxu0
      %v2237 = vadd.f32 %v2029, %v2236
      %v2238 = vpop.f32.mrf.mxu0
      %v2239 = vadd.f32 %v2031, %v2238
      %v2240 = vpop.f32.mrf.mxu0
      %v2241 = vadd.f32 %v2033, %v2240
      %2242 = vdwg.mxu0
      %2243 = vmatprep.subr.bf16.mxu0 0
      %2244 = vmatpush1.bf16.msra.mxu0 0
      %2245 = vmatprep.subr.bf16.mxu0 0
      %2246 = vmatpush1.bf16.msra.mxu0 0
      %2247 = vmatprep.subr.bf16.mxu0 0
      %2248 = vmatpush1.bf16.msra.mxu0 0
      %2249 = vmatprep.subr.bf16.mxu0 0
      %2250 = vmatpush1.bf16.msra.mxu0 0
      %2251 = vmatprep.subr.bf16.mxu0 %v2178
      %2252 = vmatpush1.bf16.msra.mxu0 %v2175
      %2253 = vmatprep.subr.bf16.mxu0 %v2151
      %2254 = vmatpush1.bf16.msra.mxu0 %v2150
      %2255 = vmatprep.subr.bf16.mxu0 %v2147
      %2256 = vmatpush1.bf16.msra.mxu0 %v2146
      %2257 = vmatprep.subr.bf16.mxu0 %v2143
      %2258 = vmatpush1.bf16.msra.mxu0 %v2142
      %2259 = vmatprep.subr.bf16.mxu0 0
      %2260 = vmatpush2.bf16.msra.mxu0 0
      %2261 = vmatprep.subr.bf16.mxu0 0
      %2262 = vmatpush2.bf16.msra.mxu0 0
      %2263 = vmatprep.subr.bf16.mxu0 0
      %2264 = vmatpush2.bf16.msra.mxu0 0
      %2265 = vmatprep.subr.bf16.mxu0 0
      %2266 = vmatpush2.bf16.msra.mxu0 0
      %2267 = vmatprep.subr.bf16.mxu0 0
      %2268 = vmatpush2.bf16.msra.mxu0 0
      %2269 = vmatprep.subr.bf16.mxu0 0
      %2270 = vmatpush2.bf16.msra.mxu0 0
      %2271 = vmatprep.subr.bf16.mxu0 0
      %2272 = vmatpush2.bf16.msra.mxu0 0
      %2273 = vmatprep.subr.bf16.mxu0 0
      %2274 = vmatpush2.bf16.msra.mxu0 0
      %2275 = vmatprep.mubr.bf16.mxu0 0
      %2276 = vmatmul.mubr.bf16.gmra.mxu0 %v1320
      %v2277 = vpop.f32.mrf.mxu0
      %v2278 = vadd.f32 %v2070, %v2277
      %v2279 = vpop.f32.mrf.mxu0
      %v2280 = vadd.f32 %v2072, %v2279
      %v2281 = vpop.f32.mrf.mxu0
      %v2282 = vadd.f32 %v2074, %v2281
      %v2283 = vpop.f32.mrf.mxu0
      %v2284 = vadd.f32 %v2076, %v2283
      %2285 = vmatprep.mubr.bf16.mxu0 0
      %2286 = vmatmul.mubr.bf16.gmra.mxu0 %v1323
      %v2287 = vpop.f32.mrf.mxu0
      %v2288 = vadd.f32 %v2080, %v2287
      %v2289 = vpop.f32.mrf.mxu0
      %v2290 = vadd.f32 %v2082, %v2289
      %v2291 = vpop.f32.mrf.mxu0
      %v2292 = vadd.f32 %v2084, %v2291
      %v2293 = vpop.f32.mrf.mxu0
      %v2294 = vadd.f32 %v2086, %v2293
      %2295 = vmatprep.mubr.bf16.mxu0 0
      %2296 = vmatmul.mubr.bf16.gmra.mxu0 %v1326
      %v2297 = vpop.f32.mrf.mxu0
      %v2298 = vadd.f32 %v2090, %v2297
      %v2299 = vpop.f32.mrf.mxu0
      %v2300 = vadd.f32 %v2092, %v2299
      %v2301 = vpop.f32.mrf.mxu0
      %v2302 = vadd.f32 %v2094, %v2301
      %v2303 = vpop.f32.mrf.mxu0
      %v2304 = vadd.f32 %v2096, %v2303
      %2305 = vdwg.mxu0
      %s2306 = scalar_lea.vmem %s1, 560
      %v2307 = vld [vmem:[%s2306] sm:$0xff]
      %v2308 = vld [vmem:[%s2306 + $0x8] sm:$0xff]
      %v2309 = vld [vmem:[%s2306 + $0x10] sm:$0xff]
      %v2310 = vld [vmem:[%s2306 + $0x18] sm:$0xff]
      %v2311 = vld [vmem:[%s2306 + $0x20] sm:$0xff]
      %v2312 = vld [vmem:[%s2306 + $0x28] sm:$0xff]
      %v2313 = vld [vmem:[%s2306 + $0x30] sm:$0xff]
      %v2314 = vld [vmem:[%s2306 + $0x38] sm:$0xff]
      %v2315 = vld [vmem:[%s2306 + $0x40] sm:$0xff]
      %v2316 = vld [vmem:[%s2306 + $0x48] sm:$0xff]
      %v2317 = vld [vmem:[%s2306 + $0x50] sm:$0xff]
      %v2318 = vld [vmem:[%s2306 + $0x58] sm:$0xff]
      %v2319 = vld [vmem:[%s2306 + $0x60] sm:$0x11]
      %v2320 = vld [vmem:[%s2306 + $0x68] sm:$0x11]
      %v2335 = vunpack.c.l.b16 %v2307
      %v2336 = vunpack.c.h.b16 %v2307
      %v2337 = vunpack.c.l.b16 %v2308
      %v2338 = vunpack.c.h.b16 %v2308
      %v2339 = vunpack.c.l.b16 %v2309
      %v2340 = vunpack.c.h.b16 %v2309
      %v2341 = vunpack.c.l.b16 %v2310
      %v2342 = vunpack.c.h.b16 %v2310
      %v2343 = vunpack.c.l.b16 %v2311
      %v2344 = vunpack.c.h.b16 %v2311
      %v2345 = vunpack.c.l.b16 %v2312
      %v2346 = vunpack.c.h.b16 %v2312
      %v2347 = vunpack.c.l.b16 %v2313
      %v2348 = vunpack.c.h.b16 %v2313
      %v2349 = vunpack.c.l.b16 %v2314
      %v2350 = vunpack.c.h.b16 %v2314
      %v2351 = vunpack.c.l.b16 %v2315
      %v2352 = vunpack.c.h.b16 %v2315
      %v2353 = vunpack.c.l.b16 %v2316
      %v2354 = vunpack.c.h.b16 %v2316
      %v2355 = vunpack.c.l.b16 %v2317
      %v2356 = vunpack.c.h.b16 %v2317
      %v2357 = vunpack.c.l.b16 %v2318
      %v2358 = vunpack.c.h.b16 %v2318
      %v2359 = vunpack.c.l.b16 %v2319
      %v2360 = vunpack.c.h.b16 %v2319
      %v2361 = vunpack.c.l.b16 %v2320
      %v2362 = vunpack.c.h.b16 %v2320
      %v2363 = vpack.c.b16 %v2339, %v2335
      %v2364 = vpack.c.b16 %v2340, %v2336
      %v2365 = vpack.c.b16 %v2341, %v2337
      %v2366 = vpack.c.b16 %v2342, %v2338
      %v2367 = vpack.c.b16 %v2347, %v2343
      %v2368 = vpack.c.b16 %v2348, %v2344
      %v2369 = vpack.c.b16 %v2349, %v2345
      %v2370 = vpack.c.b16 %v2350, %v2346
      %v2371 = vpack.c.b16 %v2355, %v2351
      %v2372 = vpack.c.b16 %v2356, %v2352
      %v2373 = vpack.c.b16 %v2357, %v2353
      %v2374 = vpack.c.b16 %v2358, %v2354
      %v2375 = vpack.c.b16 %v2359, %v2359
      %v2376 = vpack.c.b16 %v2360, %v2360
      %v2377 = vpack.c.b16 %v2361, %v2361
      %v2378 = vpack.c.b16 %v2362, %v2362
      %v2392 = vand.u32 %v2375, %v1110
      %v2395 = vand.u32 %v2376, %v1110
      %v2398 = vand.u32 %v2377, %v1110
      %v2401 = vand.u32 %v2378, %v1110
      %2403 = vmatprep.subr.bf16.mxu0 0
      %2404 = vmatpush1.bf16.msra.mxu0 0
      %2405 = vmatprep.subr.bf16.mxu0 0
      %2406 = vmatpush1.bf16.msra.mxu0 0
      %2407 = vmatprep.subr.bf16.mxu0 0
      %2408 = vmatpush1.bf16.msra.mxu0 0
      %2409 = vmatprep.subr.bf16.mxu0 0
      %2410 = vmatpush1.bf16.msra.mxu0 0
      %2411 = vmatprep.subr.bf16.mxu0 %v2395
      %2412 = vmatpush1.bf16.msra.mxu0 %v2392
      %2413 = vmatprep.subr.bf16.mxu0 %v2372
      %2414 = vmatpush1.bf16.msra.mxu0 %v2371
      %2415 = vmatprep.subr.bf16.mxu0 %v2368
      %2416 = vmatpush1.bf16.msra.mxu0 %v2367
      %2417 = vmatprep.subr.bf16.mxu0 %v2364
      %2418 = vmatpush1.bf16.msra.mxu0 %v2363
      %2419 = vmatprep.subr.bf16.mxu0 0
      %2420 = vmatpush2.bf16.msra.mxu0 0
      %2421 = vmatprep.subr.bf16.mxu0 0
      %2422 = vmatpush2.bf16.msra.mxu0 0
      %2423 = vmatprep.subr.bf16.mxu0 0
      %2424 = vmatpush2.bf16.msra.mxu0 0
      %2425 = vmatprep.subr.bf16.mxu0 0
      %2426 = vmatpush2.bf16.msra.mxu0 0
      %2427 = vmatprep.subr.bf16.mxu0 0
      %2428 = vmatpush2.bf16.msra.mxu0 0
      %2429 = vmatprep.subr.bf16.mxu0 0
      %2430 = vmatpush2.bf16.msra.mxu0 0
      %2431 = vmatprep.subr.bf16.mxu0 0
      %2432 = vmatpush2.bf16.msra.mxu0 0
      %2433 = vmatprep.subr.bf16.mxu0 0
      %2434 = vmatpush2.bf16.msra.mxu0 0
      %2435 = vmatprep.mubr.bf16.mxu0 0
      %2436 = vmatmul.mubr.bf16.gmra.mxu0 %v1552
      %v2437 = vpop.f32.mrf.mxu0
      %v2438 = vadd.f32 0.0, %v2437
      %v2439 = vpop.f32.mrf.mxu0
      %v2440 = vadd.f32 0.0, %v2439
      %v2441 = vpop.f32.mrf.mxu0
      %v2442 = vadd.f32 0.0, %v2441
      %v2443 = vpop.f32.mrf.mxu0
      %v2444 = vadd.f32 0.0, %v2443
      %2445 = vmatprep.mubr.bf16.mxu0 0
      %2446 = vmatmul.mubr.bf16.gmra.mxu0 %v1555
      %v2447 = vpop.f32.mrf.mxu0
      %v2448 = vadd.f32 0.0, %v2447
      %v2449 = vpop.f32.mrf.mxu0
      %v2450 = vadd.f32 0.0, %v2449
      %v2451 = vpop.f32.mrf.mxu0
      %v2452 = vadd.f32 0.0, %v2451
      %v2453 = vpop.f32.mrf.mxu0
      %v2454 = vadd.f32 0.0, %v2453
      %2455 = vmatprep.mubr.bf16.mxu0 0
      %2456 = vmatmul.mubr.bf16.gmra.mxu0 %v1558
      %v2457 = vpop.f32.mrf.mxu0
      %v2458 = vadd.f32 0.0, %v2457
      %v2459 = vpop.f32.mrf.mxu0
      %v2460 = vadd.f32 0.0, %v2459
      %v2461 = vpop.f32.mrf.mxu0
      %v2462 = vadd.f32 0.0, %v2461
      %v2463 = vpop.f32.mrf.mxu0
      %v2464 = vadd.f32 0.0, %v2463
      %2465 = vdwg.mxu0
      %2466 = vmatprep.subr.bf16.mxu0 0
      %2467 = vmatpush1.bf16.msra.mxu0 0
      %2468 = vmatprep.subr.bf16.mxu0 0
      %2469 = vmatpush1.bf16.msra.mxu0 0
      %2470 = vmatprep.subr.bf16.mxu0 0
      %2471 = vmatpush1.bf16.msra.mxu0 0
      %2472 = vmatprep.subr.bf16.mxu0 0
      %2473 = vmatpush1.bf16.msra.mxu0 0
      %2474 = vmatprep.subr.bf16.mxu0 %v2401
      %2475 = vmatpush1.bf16.msra.mxu0 %v2398
      %2476 = vmatprep.subr.bf16.mxu0 %v2374
      %2477 = vmatpush1.bf16.msra.mxu0 %v2373
      %2478 = vmatprep.subr.bf16.mxu0 %v2370
      %2479 = vmatpush1.bf16.msra.mxu0 %v2369
      %2480 = vmatprep.subr.bf16.mxu0 %v2366
      %2481 = vmatpush1.bf16.msra.mxu0 %v2365
      %2482 = vmatprep.subr.bf16.mxu0 0
      %2483 = vmatpush2.bf16.msra.mxu0 0
      %2484 = vmatprep.subr.bf16.mxu0 0
      %2485 = vmatpush2.bf16.msra.mxu0 0
      %2486 = vmatprep.subr.bf16.mxu0 0
      %2487 = vmatpush2.bf16.msra.mxu0 0
      %2488 = vmatprep.subr.bf16.mxu0 0
      %2489 = vmatpush2.bf16.msra.mxu0 0
      %2490 = vmatprep.subr.bf16.mxu0 0
      %2491 = vmatpush2.bf16.msra.mxu0 0
      %2492 = vmatprep.subr.bf16.mxu0 0
      %2493 = vmatpush2.bf16.msra.mxu0 0
      %2494 = vmatprep.subr.bf16.mxu0 0
      %2495 = vmatpush2.bf16.msra.mxu0 0
      %2496 = vmatprep.subr.bf16.mxu0 0
      %2497 = vmatpush2.bf16.msra.mxu0 0
      %2498 = vmatprep.mubr.bf16.mxu0 0
      %2499 = vmatmul.mubr.bf16.gmra.mxu0 %v1552
      %v2500 = vpop.f32.mrf.mxu0
      %v2501 = vadd.f32 0.0, %v2500
      %v2502 = vpop.f32.mrf.mxu0
      %v2503 = vadd.f32 0.0, %v2502
      %v2504 = vpop.f32.mrf.mxu0
      %v2505 = vadd.f32 0.0, %v2504
      %v2506 = vpop.f32.mrf.mxu0
      %v2507 = vadd.f32 0.0, %v2506
      %2508 = vmatprep.mubr.bf16.mxu0 0
      %2509 = vmatmul.mubr.bf16.gmra.mxu0 %v1555
      %v2510 = vpop.f32.mrf.mxu0
      %v2511 = vadd.f32 0.0, %v2510
      %v2512 = vpop.f32.mrf.mxu0
      %v2513 = vadd.f32 0.0, %v2512
      %v2514 = vpop.f32.mrf.mxu0
      %v2515 = vadd.f32 0.0, %v2514
      %v2516 = vpop.f32.mrf.mxu0
      %v2517 = vadd.f32 0.0, %v2516
      %2518 = vmatprep.mubr.bf16.mxu0 0
      %2519 = vmatmul.mubr.bf16.gmra.mxu0 %v1558
      %v2520 = vpop.f32.mrf.mxu0
      %v2521 = vadd.f32 0.0, %v2520
      %v2522 = vpop.f32.mrf.mxu0
      %v2523 = vadd.f32 0.0, %v2522
      %v2524 = vpop.f32.mrf.mxu0
      %v2525 = vadd.f32 0.0, %v2524
      %v2526 = vpop.f32.mrf.mxu0
      %v2527 = vadd.f32 0.0, %v2526
      %2528 = vdwg.mxu0
      %v2529 = vadd.f32 %v2215, %v2438
      %v2530 = vadd.f32 %v2217, %v2440
      %v2531 = vadd.f32 %v2278, %v2501
      %v2532 = vadd.f32 %v2280, %v2503
      %v2533 = vadd.f32 %v2219, %v2442
      %v2534 = vadd.f32 %v2221, %v2444
      %v2535 = vadd.f32 %v2282, %v2505
      %v2536 = vadd.f32 %v2284, %v2507
      %v2537 = vadd.f32 %v2225, %v2448
      %v2538 = vadd.f32 %v2227, %v2450
      %v2539 = vadd.f32 %v2288, %v2511
      %v2540 = vadd.f32 %v2290, %v2513
      %v2541 = vadd.f32 %v2229, %v2452
      %v2542 = vadd.f32 %v2231, %v2454
      %v2543 = vadd.f32 %v2292, %v2515
      %v2544 = vadd.f32 %v2294, %v2517
      %v2545 = vadd.f32 %v2235, %v2458
      %v2546 = vadd.f32 %v2237, %v2460
      %v2547 = vadd.f32 %v2298, %v2521
      %v2548 = vadd.f32 %v2300, %v2523
      %v2549 = vadd.f32 %v2239, %v2462
      %v2550 = vadd.f32 %v2241, %v2464
      %v2551 = vadd.f32 %v2302, %v2525
      %v2552 = vadd.f32 %v2304, %v2527
      %v2553 = vadd.f32 %v2529, %v1726
      %v2554 = vadd.f32 %v2530, %v1730
      %v2555 = vadd.f32 %v2531, %v1734
      %v2556 = vadd.f32 %v2532, %v1738
      %v2557 = vadd.f32 %v2533, %v1726
      %v2558 = vadd.f32 %v2534, %v1730
      %v2559 = vadd.f32 %v2535, %v1734
      %v2560 = vadd.f32 %v2536, %v1738
      %v2561 = vadd.f32 %v2537, %v1726
      %v2562 = vadd.f32 %v2538, %v1730
      %v2563 = vadd.f32 %v2539, %v1734
      %v2564 = vadd.f32 %v2540, %v1738
      %v2565 = vadd.f32 %v2541, %v1726
      %v2566 = vadd.f32 %v2542, %v1730
      %v2567 = vadd.f32 %v2543, %v1734
      %v2568 = vadd.f32 %v2544, %v1738
      %v2569 = vadd.f32 %v2545, %v1726
      %v2570 = vadd.f32 %v2546, %v1730
      %v2571 = vadd.f32 %v2547, %v1734
      %v2572 = vadd.f32 %v2548, %v1738
      %v2573 = vadd.f32 %v2549, %v1726
      %v2574 = vadd.f32 %v2550, %v1730
      %v2575 = vadd.f32 %v2551, %v1734
      %v2576 = vadd.f32 %v2552, %v1738
      %vm2577 = vcmp.gt.f32.partialorder %v2553, 0.0
      %vm2578 = vcmp.gt.f32.partialorder %v2554, 0.0
      %vm2579 = vcmp.gt.f32.partialorder %v2555, 0.0
      %vm2580 = vcmp.gt.f32.partialorder %v2556, 0.0
      %vm2581 = vcmp.gt.f32.partialorder %v2557, 0.0
      %vm2582 = vcmp.gt.f32.partialorder %v2558, 0.0
      %vm2583 = vcmp.gt.f32.partialorder %v2559, 0.0
      %vm2584 = vcmp.gt.f32.partialorder %v2560, 0.0
      %vm2585 = vcmp.gt.f32.partialorder %v2561, 0.0
      %vm2586 = vcmp.gt.f32.partialorder %v2562, 0.0
      %vm2587 = vcmp.gt.f32.partialorder %v2563, 0.0
      %vm2588 = vcmp.gt.f32.partialorder %v2564, 0.0
      %vm2589 = vcmp.gt.f32.partialorder %v2565, 0.0
      %vm2590 = vcmp.gt.f32.partialorder %v2566, 0.0
      %vm2591 = vcmp.gt.f32.partialorder %v2567, 0.0
      %vm2592 = vcmp.gt.f32.partialorder %v2568, 0.0
      %vm2593 = vcmp.gt.f32.partialorder %v2569, 0.0
      %vm2594 = vcmp.gt.f32.partialorder %v2570, 0.0
      %vm2595 = vcmp.gt.f32.partialorder %v2571, 0.0
      %vm2596 = vcmp.gt.f32.partialorder %v2572, 0.0
      %vm2597 = vcmp.gt.f32.partialorder %v2573, 0.0
      %vm2598 = vcmp.gt.f32.partialorder %v2574, 0.0
      %vm2599 = vcmp.gt.f32.partialorder %v2575, 0.0
      %vm2600 = vcmp.gt.f32.partialorder %v2576, 0.0
      %v2601 = vmul.f32 %v1795, %v2553
      %v2602 = vmul.f32 %v1799, %v2554
      %v2603 = vmul.f32 %v1803, %v2555
      %v2604 = vmul.f32 %v1807, %v2556
      %v2605 = vmul.f32 %v1795, %v2557
      %v2606 = vmul.f32 %v1799, %v2558
      %v2607 = vmul.f32 %v1803, %v2559
      %v2608 = vmul.f32 %v1807, %v2560
      %v2609 = vmul.f32 %v1795, %v2561
      %v2610 = vmul.f32 %v1799, %v2562
      %v2611 = vmul.f32 %v1803, %v2563
      %v2612 = vmul.f32 %v1807, %v2564
      %v2613 = vmul.f32 %v1795, %v2565
      %v2614 = vmul.f32 %v1799, %v2566
      %v2615 = vmul.f32 %v1803, %v2567
      %v2616 = vmul.f32 %v1807, %v2568
      %v2617 = vmul.f32 %v1795, %v2569
      %v2618 = vmul.f32 %v1799, %v2570
      %v2619 = vmul.f32 %v1803, %v2571
      %v2620 = vmul.f32 %v1807, %v2572
      %v2621 = vmul.f32 %v1795, %v2573
      %v2622 = vmul.f32 %v1799, %v2574
      %v2623 = vmul.f32 %v1803, %v2575
      %v2624 = vmul.f32 %v1807, %v2576
      %v2625 = vsel %vm2577, %v2553, %v2601
      %v2626 = vsel %vm2578, %v2554, %v2602
      %v2627 = vsel %vm2579, %v2555, %v2603
      %v2628 = vsel %vm2580, %v2556, %v2604
      %v2629 = vsel %vm2581, %v2557, %v2605
      %v2630 = vsel %vm2582, %v2558, %v2606
      %v2631 = vsel %vm2583, %v2559, %v2607
      %v2632 = vsel %vm2584, %v2560, %v2608
      %v2633 = vsel %vm2585, %v2561, %v2609
      %v2634 = vsel %vm2586, %v2562, %v2610
      %v2635 = vsel %vm2587, %v2563, %v2611
      %v2636 = vsel %vm2588, %v2564, %v2612
      %v2637 = vsel %vm2589, %v2565, %v2613
      %v2638 = vsel %vm2590, %v2566, %v2614
      %v2639 = vsel %vm2591, %v2567, %v2615
      %v2640 = vsel %vm2592, %v2568, %v2616
      %v2641 = vsel %vm2593, %v2569, %v2617
      %v2642 = vsel %vm2594, %v2570, %v2618
      %v2643 = vsel %vm2595, %v2571, %v2619
      %v2644 = vsel %vm2596, %v2572, %v2620
      %v2645 = vsel %vm2597, %v2573, %v2621
      %v2646 = vsel %vm2598, %v2574, %v2622
      %v2647 = vsel %vm2599, %v2575, %v2623
      %v2648 = vsel %vm2600, %v2576, %v2624
      %v2649 = vmax.f32 %v1836, %v2625
      %v2650 = vmax.f32 %v1837, %v2626
      %v2651 = vmax.f32 %v1838, %v2627
      %v2652 = vmax.f32 %v1839, %v2628
      %v2653 = vmax.f32 %v1840, %v2629
      %v2654 = vmax.f32 %v1841, %v2630
      %v2655 = vmax.f32 %v1842, %v2631
      %v2656 = vmax.f32 %v1843, %v2632
      %v2657 = vmax.f32 %v1844, %v2633
      %v2658 = vmax.f32 %v1845, %v2634
      %v2659 = vmax.f32 %v1846, %v2635
      %v2660 = vmax.f32 %v1847, %v2636
      %v2661 = vmax.f32 %v1848, %v2637
      %v2662 = vmax.f32 %v1849, %v2638
      %v2663 = vmax.f32 %v1850, %v2639
      %v2664 = vmax.f32 %v1851, %v2640
      %v2665 = vmax.f32 %v1852, %v2641
      %v2666 = vmax.f32 %v1853, %v2642
      %v2667 = vmax.f32 %v1854, %v2643
      %v2668 = vmax.f32 %v1855, %v2644
      %v2669 = vmax.f32 %v1856, %v2645
      %v2670 = vmax.f32 %v1857, %v2646
      %v2671 = vmax.f32 %v1858, %v2647
      %v2672 = vmax.f32 %v1859, %v2648
      %s2673 = scalar_lea.vmem %s1, 672
      %v2674 = vld [vmem:[%s2673] sm:$0xff]
      %v2675 = vld [vmem:[%s2673 + $0x8] sm:$0xff]
      %v2676 = vld [vmem:[%s2673 + $0x10] sm:$0xff]
      %v2677 = vld [vmem:[%s2673 + $0x18] sm:$0xff]
      %v2678 = vld [vmem:[%s2673 + $0x20] sm:$0xff]
      %v2679 = vld [vmem:[%s2673 + $0x28] sm:$0xff]
      %v2680 = vld [vmem:[%s2673 + $0x30] sm:$0xff]
      %v2681 = vld [vmem:[%s2673 + $0x38] sm:$0xff]
      %v2682 = vld [vmem:[%s2673 + $0x40] sm:$0xff]
      %v2683 = vld [vmem:[%s2673 + $0x48] sm:$0xff]
      %v2684 = vld [vmem:[%s2673 + $0x50] sm:$0xff]
      %v2685 = vld [vmem:[%s2673 + $0x58] sm:$0xff]
      %v2686 = vld [vmem:[%s2673 + $0x60] sm:$0x11]
      %v2687 = vld [vmem:[%s2673 + $0x68] sm:$0x11]
      %s2688 = scalar_lea.vmem %s1, 784
      %v2689 = vld [vmem:[%s2688] sm:$0xff]
      %v2690 = vld [vmem:[%s2688 + $0x8] sm:$0xff]
      %v2691 = vld [vmem:[%s2688 + $0x10] sm:$0xff]
      %v2692 = vld [vmem:[%s2688 + $0x18] sm:$0xff]
      %v2693 = vld [vmem:[%s2688 + $0x20] sm:$0xff]
      %v2694 = vld [vmem:[%s2688 + $0x28] sm:$0xff]
      %v2695 = vld [vmem:[%s2688 + $0x30] sm:$0xff]
      %v2696 = vld [vmem:[%s2688 + $0x38] sm:$0xff]
      %v2697 = vld [vmem:[%s2688 + $0x40] sm:$0xff]
      %v2698 = vld [vmem:[%s2688 + $0x48] sm:$0xff]
      %v2699 = vld [vmem:[%s2688 + $0x50] sm:$0xff]
      %v2700 = vld [vmem:[%s2688 + $0x58] sm:$0xff]
      %v2701 = vld [vmem:[%s2688 + $0x60] sm:$0x11]
      %v2702 = vld [vmem:[%s2688 + $0x68] sm:$0x11]
      %v2717 = vunpack.c.l.b16 %v2689
      %v2718 = vunpack.c.h.b16 %v2689
      %v2719 = vunpack.c.l.b16 %v2690
      %v2720 = vunpack.c.h.b16 %v2690
      %v2721 = vunpack.c.l.b16 %v2691
      %v2722 = vunpack.c.h.b16 %v2691
      %v2723 = vunpack.c.l.b16 %v2692
      %v2724 = vunpack.c.h.b16 %v2692
      %v2725 = vunpack.c.l.b16 %v2693
      %v2726 = vunpack.c.h.b16 %v2693
      %v2727 = vunpack.c.l.b16 %v2694
      %v2728 = vunpack.c.h.b16 %v2694
      %v2729 = vunpack.c.l.b16 %v2695
      %v2730 = vunpack.c.h.b16 %v2695
      %v2731 = vunpack.c.l.b16 %v2696
      %v2732 = vunpack.c.h.b16 %v2696
      %v2733 = vunpack.c.l.b16 %v2697
      %v2734 = vunpack.c.h.b16 %v2697
      %v2735 = vunpack.c.l.b16 %v2698
      %v2736 = vunpack.c.h.b16 %v2698
      %v2737 = vunpack.c.l.b16 %v2699
      %v2738 = vunpack.c.h.b16 %v2699
      %v2739 = vunpack.c.l.b16 %v2700
      %v2740 = vunpack.c.h.b16 %v2700
      %v2741 = vunpack.c.l.b16 %v2701
      %v2742 = vunpack.c.h.b16 %v2701
      %v2743 = vunpack.c.l.b16 %v2702
      %v2744 = vunpack.c.h.b16 %v2702
      %v2745 = vpack.c.b16 %v2721, %v2717
      %v2746 = vpack.c.b16 %v2722, %v2718
      %v2747 = vpack.c.b16 %v2723, %v2719
      %v2748 = vpack.c.b16 %v2724, %v2720
      %v2749 = vpack.c.b16 %v2729, %v2725
      %v2750 = vpack.c.b16 %v2730, %v2726
      %v2751 = vpack.c.b16 %v2731, %v2727
      %v2752 = vpack.c.b16 %v2732, %v2728
      %v2753 = vpack.c.b16 %v2737, %v2733
      %v2754 = vpack.c.b16 %v2738, %v2734
      %v2755 = vpack.c.b16 %v2739, %v2735
      %v2756 = vpack.c.b16 %v2740, %v2736
      %v2757 = vpack.c.b16 %v2741, %v2741
      %v2758 = vpack.c.b16 %v2742, %v2742
      %v2759 = vpack.c.b16 %v2743, %v2743
      %v2760 = vpack.c.b16 %v2744, %v2744
      %v2774 = vand.u32 %v2757, %v1110
      %v2777 = vand.u32 %v2758, %v1110
      %v2780 = vand.u32 %v2759, %v1110
      %v2783 = vand.u32 %v2760, %v1110
      %2785 = vmatprep.subr.bf16.mxu0 0
      %2786 = vmatpush1.bf16.msra.mxu0 0
      %2787 = vmatprep.subr.bf16.mxu0 0
      %2788 = vmatpush1.bf16.msra.mxu0 0
      %2789 = vmatprep.subr.bf16.mxu0 0
      %2790 = vmatpush1.bf16.msra.mxu0 0
      %2791 = vmatprep.subr.bf16.mxu0 0
      %2792 = vmatpush1.bf16.msra.mxu0 0
      %2793 = vmatprep.subr.bf16.mxu0 %v2777
      %2794 = vmatpush1.bf16.msra.mxu0 %v2774
      %2795 = vmatprep.subr.bf16.mxu0 %v2754
      %2796 = vmatpush1.bf16.msra.mxu0 %v2753
      %2797 = vmatprep.subr.bf16.mxu0 %v2750
      %2798 = vmatpush1.bf16.msra.mxu0 %v2749
      %2799 = vmatprep.subr.bf16.mxu0 %v2746
      %2800 = vmatpush1.bf16.msra.mxu0 %v2745
      %2801 = vmatprep.subr.bf16.mxu0 0
      %2802 = vmatpush2.bf16.msra.mxu0 0
      %2803 = vmatprep.subr.bf16.mxu0 0
      %2804 = vmatpush2.bf16.msra.mxu0 0
      %2805 = vmatprep.subr.bf16.mxu0 0
      %2806 = vmatpush2.bf16.msra.mxu0 0
      %2807 = vmatprep.subr.bf16.mxu0 0
      %2808 = vmatpush2.bf16.msra.mxu0 0
      %2809 = vmatprep.subr.bf16.mxu0 0
      %2810 = vmatpush2.bf16.msra.mxu0 0
      %2811 = vmatprep.subr.bf16.mxu0 0
      %2812 = vmatpush2.bf16.msra.mxu0 0
      %2813 = vmatprep.subr.bf16.mxu0 0
      %2814 = vmatpush2.bf16.msra.mxu0 0
      %2815 = vmatprep.subr.bf16.mxu0 0
      %2816 = vmatpush2.bf16.msra.mxu0 0
      %2817 = vmatprep.mubr.bf16.mxu0 0
      %2818 = vmatmul.mubr.bf16.gmra.mxu0 %v1100
      %v2819 = vpop.f32.mrf.mxu0
      %v2820 = vadd.f32 0.0, %v2819
      %v2821 = vpop.f32.mrf.mxu0
      %v2822 = vadd.f32 0.0, %v2821
      %v2823 = vpop.f32.mrf.mxu0
      %v2824 = vadd.f32 0.0, %v2823
      %v2825 = vpop.f32.mrf.mxu0
      %v2826 = vadd.f32 0.0, %v2825
      %2827 = vmatprep.mubr.bf16.mxu0 0
      %2828 = vmatmul.mubr.bf16.gmra.mxu0 %v1103
      %v2829 = vpop.f32.mrf.mxu0
      %v2830 = vadd.f32 0.0, %v2829
      %v2831 = vpop.f32.mrf.mxu0
      %v2832 = vadd.f32 0.0, %v2831
      %v2833 = vpop.f32.mrf.mxu0
      %v2834 = vadd.f32 0.0, %v2833
      %v2835 = vpop.f32.mrf.mxu0
      %v2836 = vadd.f32 0.0, %v2835
      %2837 = vmatprep.mubr.bf16.mxu0 0
      %2838 = vmatmul.mubr.bf16.gmra.mxu0 %v1106
      %v2839 = vpop.f32.mrf.mxu0
      %v2840 = vadd.f32 0.0, %v2839
      %v2841 = vpop.f32.mrf.mxu0
      %v2842 = vadd.f32 0.0, %v2841
      %v2843 = vpop.f32.mrf.mxu0
      %v2844 = vadd.f32 0.0, %v2843
      %v2845 = vpop.f32.mrf.mxu0
      %v2846 = vadd.f32 0.0, %v2845
      %2847 = vdwg.mxu0
      %2848 = vmatprep.subr.bf16.mxu0 0
      %2849 = vmatpush1.bf16.msra.mxu0 0
      %2850 = vmatprep.subr.bf16.mxu0 0
      %2851 = vmatpush1.bf16.msra.mxu0 0
      %2852 = vmatprep.subr.bf16.mxu0 0
      %2853 = vmatpush1.bf16.msra.mxu0 0
      %2854 = vmatprep.subr.bf16.mxu0 0
      %2855 = vmatpush1.bf16.msra.mxu0 0
      %2856 = vmatprep.subr.bf16.mxu0 %v2783
      %2857 = vmatpush1.bf16.msra.mxu0 %v2780
      %2858 = vmatprep.subr.bf16.mxu0 %v2756
      %2859 = vmatpush1.bf16.msra.mxu0 %v2755
      %2860 = vmatprep.subr.bf16.mxu0 %v2752
      %2861 = vmatpush1.bf16.msra.mxu0 %v2751
      %2862 = vmatprep.subr.bf16.mxu0 %v2748
      %2863 = vmatpush1.bf16.msra.mxu0 %v2747
      %2864 = vmatprep.subr.bf16.mxu0 0
      %2865 = vmatpush2.bf16.msra.mxu0 0
      %2866 = vmatprep.subr.bf16.mxu0 0
      %2867 = vmatpush2.bf16.msra.mxu0 0
      %2868 = vmatprep.subr.bf16.mxu0 0
      %2869 = vmatpush2.bf16.msra.mxu0 0
      %2870 = vmatprep.subr.bf16.mxu0 0
      %2871 = vmatpush2.bf16.msra.mxu0 0
      %2872 = vmatprep.subr.bf16.mxu0 0
      %2873 = vmatpush2.bf16.msra.mxu0 0
      %2874 = vmatprep.subr.bf16.mxu0 0
      %2875 = vmatpush2.bf16.msra.mxu0 0
      %2876 = vmatprep.subr.bf16.mxu0 0
      %2877 = vmatpush2.bf16.msra.mxu0 0
      %2878 = vmatprep.subr.bf16.mxu0 0
      %2879 = vmatpush2.bf16.msra.mxu0 0
      %2880 = vmatprep.mubr.bf16.mxu0 0
      %2881 = vmatmul.mubr.bf16.gmra.mxu0 %v1100
      %v2882 = vpop.f32.mrf.mxu0
      %v2883 = vadd.f32 0.0, %v2882
      %v2884 = vpop.f32.mrf.mxu0
      %v2885 = vadd.f32 0.0, %v2884
      %v2886 = vpop.f32.mrf.mxu0
      %v2887 = vadd.f32 0.0, %v2886
      %v2888 = vpop.f32.mrf.mxu0
      %v2889 = vadd.f32 0.0, %v2888
      %2890 = vmatprep.mubr.bf16.mxu0 0
      %2891 = vmatmul.mubr.bf16.gmra.mxu0 %v1103
      %v2892 = vpop.f32.mrf.mxu0
      %v2893 = vadd.f32 0.0, %v2892
      %v2894 = vpop.f32.mrf.mxu0
      %v2895 = vadd.f32 0.0, %v2894
      %v2896 = vpop.f32.mrf.mxu0
      %v2897 = vadd.f32 0.0, %v2896
      %v2898 = vpop.f32.mrf.mxu0
      %v2899 = vadd.f32 0.0, %v2898
      %2900 = vmatprep.mubr.bf16.mxu0 0
      %2901 = vmatmul.mubr.bf16.gmra.mxu0 %v1106
      %v2902 = vpop.f32.mrf.mxu0
      %v2903 = vadd.f32 0.0, %v2902
      %v2904 = vpop.f32.mrf.mxu0
      %v2905 = vadd.f32 0.0, %v2904
      %v2906 = vpop.f32.mrf.mxu0
      %v2907 = vadd.f32 0.0, %v2906
      %v2908 = vpop.f32.mrf.mxu0
      %v2909 = vadd.f32 0.0, %v2908
      %2910 = vdwg.mxu0
      %v2925 = vunpack.c.l.b16 %v2674
      %v2926 = vunpack.c.h.b16 %v2674
      %v2927 = vunpack.c.l.b16 %v2675
      %v2928 = vunpack.c.h.b16 %v2675
      %v2929 = vunpack.c.l.b16 %v2676
      %v2930 = vunpack.c.h.b16 %v2676
      %v2931 = vunpack.c.l.b16 %v2677
      %v2932 = vunpack.c.h.b16 %v2677
      %v2933 = vunpack.c.l.b16 %v2678
      %v2934 = vunpack.c.h.b16 %v2678
      %v2935 = vunpack.c.l.b16 %v2679
      %v2936 = vunpack.c.h.b16 %v2679
      %v2937 = vunpack.c.l.b16 %v2680
      %v2938 = vunpack.c.h.b16 %v2680
      %v2939 = vunpack.c.l.b16 %v2681
      %v2940 = vunpack.c.h.b16 %v2681
      %v2941 = vunpack.c.l.b16 %v2682
      %v2942 = vunpack.c.h.b16 %v2682
      %v2943 = vunpack.c.l.b16 %v2683
      %v2944 = vunpack.c.h.b16 %v2683
      %v2945 = vunpack.c.l.b16 %v2684
      %v2946 = vunpack.c.h.b16 %v2684
      %v2947 = vunpack.c.l.b16 %v2685
      %v2948 = vunpack.c.h.b16 %v2685
      %v2949 = vunpack.c.l.b16 %v2686
      %v2950 = vunpack.c.h.b16 %v2686
      %v2951 = vunpack.c.l.b16 %v2687
      %v2952 = vunpack.c.h.b16 %v2687
      %v2953 = vpack.c.b16 %v2929, %v2925
      %v2954 = vpack.c.b16 %v2930, %v2926
      %v2955 = vpack.c.b16 %v2931, %v2927
      %v2956 = vpack.c.b16 %v2932, %v2928
      %v2957 = vpack.c.b16 %v2937, %v2933
      %v2958 = vpack.c.b16 %v2938, %v2934
      %v2959 = vpack.c.b16 %v2939, %v2935
      %v2960 = vpack.c.b16 %v2940, %v2936
      %v2961 = vpack.c.b16 %v2945, %v2941
      %v2962 = vpack.c.b16 %v2946, %v2942
      %v2963 = vpack.c.b16 %v2947, %v2943
      %v2964 = vpack.c.b16 %v2948, %v2944
      %v2965 = vpack.c.b16 %v2949, %v2949
      %v2966 = vpack.c.b16 %v2950, %v2950
      %v2967 = vpack.c.b16 %v2951, %v2951
      %v2968 = vpack.c.b16 %v2952, %v2952
      %v2982 = vand.u32 %v2965, %v1110
      %v2985 = vand.u32 %v2966, %v1110
      %v2988 = vand.u32 %v2967, %v1110
      %v2991 = vand.u32 %v2968, %v1110
      %2993 = vmatprep.subr.bf16.mxu0 0
      %2994 = vmatpush1.bf16.msra.mxu0 0
      %2995 = vmatprep.subr.bf16.mxu0 0
      %2996 = vmatpush1.bf16.msra.mxu0 0
      %2997 = vmatprep.subr.bf16.mxu0 0
      %2998 = vmatpush1.bf16.msra.mxu0 0
      %2999 = vmatprep.subr.bf16.mxu0 0
      %3000 = vmatpush1.bf16.msra.mxu0 0
      %3001 = vmatprep.subr.bf16.mxu0 %v2985
      %3002 = vmatpush1.bf16.msra.mxu0 %v2982
      %3003 = vmatprep.subr.bf16.mxu0 %v2962
      %3004 = vmatpush1.bf16.msra.mxu0 %v2961
      %3005 = vmatprep.subr.bf16.mxu0 %v2958
      %3006 = vmatpush1.bf16.msra.mxu0 %v2957
      %3007 = vmatprep.subr.bf16.mxu0 %v2954
      %3008 = vmatpush1.bf16.msra.mxu0 %v2953
      %3009 = vmatprep.subr.bf16.mxu0 0
      %3010 = vmatpush2.bf16.msra.mxu0 0
      %3011 = vmatprep.subr.bf16.mxu0 0
      %3012 = vmatpush2.bf16.msra.mxu0 0
      %3013 = vmatprep.subr.bf16.mxu0 0
      %3014 = vmatpush2.bf16.msra.mxu0 0
      %3015 = vmatprep.subr.bf16.mxu0 0
      %3016 = vmatpush2.bf16.msra.mxu0 0
      %3017 = vmatprep.subr.bf16.mxu0 0
      %3018 = vmatpush2.bf16.msra.mxu0 0
      %3019 = vmatprep.subr.bf16.mxu0 0
      %3020 = vmatpush2.bf16.msra.mxu0 0
      %3021 = vmatprep.subr.bf16.mxu0 0
      %3022 = vmatpush2.bf16.msra.mxu0 0
      %3023 = vmatprep.subr.bf16.mxu0 0
      %3024 = vmatpush2.bf16.msra.mxu0 0
      %3025 = vmatprep.mubr.bf16.mxu0 0
      %3026 = vmatmul.mubr.bf16.gmra.mxu0 %v1320
      %v3027 = vpop.f32.mrf.mxu0
      %v3028 = vadd.f32 %v2820, %v3027
      %v3029 = vpop.f32.mrf.mxu0
      %v3030 = vadd.f32 %v2822, %v3029
      %v3031 = vpop.f32.mrf.mxu0
      %v3032 = vadd.f32 %v2824, %v3031
      %v3033 = vpop.f32.mrf.mxu0
      %v3034 = vadd.f32 %v2826, %v3033
      %3035 = vmatprep.mubr.bf16.mxu0 0
      %3036 = vmatmul.mubr.bf16.gmra.mxu0 %v1323
      %v3037 = vpop.f32.mrf.mxu0
      %v3038 = vadd.f32 %v2830, %v3037
      %v3039 = vpop.f32.mrf.mxu0
      %v3040 = vadd.f32 %v2832, %v3039
      %v3041 = vpop.f32.mrf.mxu0
      %v3042 = vadd.f32 %v2834, %v3041
      %v3043 = vpop.f32.mrf.mxu0
      %v3044 = vadd.f32 %v2836, %v3043
      %3045 = vmatprep.mubr.bf16.mxu0 0
      %3046 = vmatmul.mubr.bf16.gmra.mxu0 %v1326
      %v3047 = vpop.f32.mrf.mxu0
      %v3048 = vadd.f32 %v2840, %v3047
      %v3049 = vpop.f32.mrf.mxu0
      %v3050 = vadd.f32 %v2842, %v3049
      %v3051 = vpop.f32.mrf.mxu0
      %v3052 = vadd.f32 %v2844, %v3051
      %v3053 = vpop.f32.mrf.mxu0
      %v3054 = vadd.f32 %v2846, %v3053
      %3055 = vdwg.mxu0
      %3056 = vmatprep.subr.bf16.mxu0 0
      %3057 = vmatpush1.bf16.msra.mxu0 0
      %3058 = vmatprep.subr.bf16.mxu0 0
      %3059 = vmatpush1.bf16.msra.mxu0 0
      %3060 = vmatprep.subr.bf16.mxu0 0
      %3061 = vmatpush1.bf16.msra.mxu0 0
      %3062 = vmatprep.subr.bf16.mxu0 0
      %3063 = vmatpush1.bf16.msra.mxu0 0
      %3064 = vmatprep.subr.bf16.mxu0 %v2991
      %3065 = vmatpush1.bf16.msra.mxu0 %v2988
      %3066 = vmatprep.subr.bf16.mxu0 %v2964
      %3067 = vmatpush1.bf16.msra.mxu0 %v2963
      %3068 = vmatprep.subr.bf16.mxu0 %v2960
      %3069 = vmatpush1.bf16.msra.mxu0 %v2959
      %3070 = vmatprep.subr.bf16.mxu0 %v2956
      %3071 = vmatpush1.bf16.msra.mxu0 %v2955
      %3072 = vmatprep.subr.bf16.mxu0 0
      %3073 = vmatpush2.bf16.msra.mxu0 0
      %3074 = vmatprep.subr.bf16.mxu0 0
      %3075 = vmatpush2.bf16.msra.mxu0 0
      %3076 = vmatprep.subr.bf16.mxu0 0
      %3077 = vmatpush2.bf16.msra.mxu0 0
      %3078 = vmatprep.subr.bf16.mxu0 0
      %3079 = vmatpush2.bf16.msra.mxu0 0
      %3080 = vmatprep.subr.bf16.mxu0 0
      %3081 = vmatpush2.bf16.msra.mxu0 0
      %3082 = vmatprep.subr.bf16.mxu0 0
      %3083 = vmatpush2.bf16.msra.mxu0 0
      %3084 = vmatprep.subr.bf16.mxu0 0
      %3085 = vmatpush2.bf16.msra.mxu0 0
      %3086 = vmatprep.subr.bf16.mxu0 0
      %3087 = vmatpush2.bf16.msra.mxu0 0
      %3088 = vmatprep.mubr.bf16.mxu0 0
      %3089 = vmatmul.mubr.bf16.gmra.mxu0 %v1320
      %v3090 = vpop.f32.mrf.mxu0
      %v3091 = vadd.f32 %v2883, %v3090
      %v3092 = vpop.f32.mrf.mxu0
      %v3093 = vadd.f32 %v2885, %v3092
      %v3094 = vpop.f32.mrf.mxu0
      %v3095 = vadd.f32 %v2887, %v3094
      %v3096 = vpop.f32.mrf.mxu0
      %v3097 = vadd.f32 %v2889, %v3096
      %3098 = vmatprep.mubr.bf16.mxu0 0
      %3099 = vmatmul.mubr.bf16.gmra.mxu0 %v1323
      %v3100 = vpop.f32.mrf.mxu0
      %v3101 = vadd.f32 %v2893, %v3100
      %v3102 = vpop.f32.mrf.mxu0
      %v3103 = vadd.f32 %v2895, %v3102
      %v3104 = vpop.f32.mrf.mxu0
      %v3105 = vadd.f32 %v2897, %v3104
      %v3106 = vpop.f32.mrf.mxu0
      %v3107 = vadd.f32 %v2899, %v3106
      %3108 = vmatprep.mubr.bf16.mxu0 0
      %3109 = vmatmul.mubr.bf16.gmra.mxu0 %v1326
      %v3110 = vpop.f32.mrf.mxu0
      %v3111 = vadd.f32 %v2903, %v3110
      %v3112 = vpop.f32.mrf.mxu0
      %v3113 = vadd.f32 %v2905, %v3112
      %v3114 = vpop.f32.mrf.mxu0
      %v3115 = vadd.f32 %v2907, %v3114
      %v3116 = vpop.f32.mrf.mxu0
      %v3117 = vadd.f32 %v2909, %v3116
      %3118 = vdwg.mxu0
      %s3119 = scalar_lea.vmem %s1, 896
      %v3120 = vld [vmem:[%s3119] sm:$0xff]
      %v3121 = vld [vmem:[%s3119 + $0x8] sm:$0xff]
      %v3122 = vld [vmem:[%s3119 + $0x10] sm:$0xff]
      %v3123 = vld [vmem:[%s3119 + $0x18] sm:$0xff]
      %v3124 = vld [vmem:[%s3119 + $0x20] sm:$0xff]
      %v3125 = vld [vmem:[%s3119 + $0x28] sm:$0xff]
      %v3126 = vld [vmem:[%s3119 + $0x30] sm:$0xff]
      %v3127 = vld [vmem:[%s3119 + $0x38] sm:$0xff]
      %v3128 = vld [vmem:[%s3119 + $0x40] sm:$0xff]
      %v3129 = vld [vmem:[%s3119 + $0x48] sm:$0xff]
      %v3130 = vld [vmem:[%s3119 + $0x50] sm:$0xff]
      %v3131 = vld [vmem:[%s3119 + $0x58] sm:$0xff]
      %v3132 = vld [vmem:[%s3119 + $0x60] sm:$0x11]
      %v3133 = vld [vmem:[%s3119 + $0x68] sm:$0x11]
      %v3148 = vunpack.c.l.b16 %v3120
      %v3149 = vunpack.c.h.b16 %v3120
      %v3150 = vunpack.c.l.b16 %v3121
      %v3151 = vunpack.c.h.b16 %v3121
      %v3152 = vunpack.c.l.b16 %v3122
      %v3153 = vunpack.c.h.b16 %v3122
      %v3154 = vunpack.c.l.b16 %v3123
      %v3155 = vunpack.c.h.b16 %v3123
      %v3156 = vunpack.c.l.b16 %v3124
      %v3157 = vunpack.c.h.b16 %v3124
      %v3158 = vunpack.c.l.b16 %v3125
      %v3159 = vunpack.c.h.b16 %v3125
      %v3160 = vunpack.c.l.b16 %v3126
      %v3161 = vunpack.c.h.b16 %v3126
      %v3162 = vunpack.c.l.b16 %v3127
      %v3163 = vunpack.c.h.b16 %v3127
      %v3164 = vunpack.c.l.b16 %v3128
      %v3165 = vunpack.c.h.b16 %v3128
      %v3166 = vunpack.c.l.b16 %v3129
      %v3167 = vunpack.c.h.b16 %v3129
      %v3168 = vunpack.c.l.b16 %v3130
      %v3169 = vunpack.c.h.b16 %v3130
      %v3170 = vunpack.c.l.b16 %v3131
      %v3171 = vunpack.c.h.b16 %v3131
      %v3172 = vunpack.c.l.b16 %v3132
      %v3173 = vunpack.c.h.b16 %v3132
      %v3174 = vunpack.c.l.b16 %v3133
      %v3175 = vunpack.c.h.b16 %v3133
      %v3176 = vpack.c.b16 %v3152, %v3148
      %v3177 = vpack.c.b16 %v3153, %v3149
      %v3178 = vpack.c.b16 %v3154, %v3150
      %v3179 = vpack.c.b16 %v3155, %v3151
      %v3180 = vpack.c.b16 %v3160, %v3156
      %v3181 = vpack.c.b16 %v3161, %v3157
      %v3182 = vpack.c.b16 %v3162, %v3158
      %v3183 = vpack.c.b16 %v3163, %v3159
      %v3184 = vpack.c.b16 %v3168, %v3164
      %v3185 = vpack.c.b16 %v3169, %v3165
      %v3186 = vpack.c.b16 %v3170, %v3166
      %v3187 = vpack.c.b16 %v3171, %v3167
      %v3188 = vpack.c.b16 %v3172, %v3172
      %v3189 = vpack.c.b16 %v3173, %v3173
      %v3190 = vpack.c.b16 %v3174, %v3174
      %v3191 = vpack.c.b16 %v3175, %v3175
      %v3205 = vand.u32 %v3188, %v1110
      %v3208 = vand.u32 %v3189, %v1110
      %v3211 = vand.u32 %v3190, %v1110
      %v3214 = vand.u32 %v3191, %v1110
      %3216 = vmatprep.subr.bf16.mxu0 0
      %3217 = vmatpush1.bf16.msra.mxu0 0
      %3218 = vmatprep.subr.bf16.mxu0 0
      %3219 = vmatpush1.bf16.msra.mxu0 0
      %3220 = vmatprep.subr.bf16.mxu0 0
      %3221 = vmatpush1.bf16.msra.mxu0 0
      %3222 = vmatprep.subr.bf16.mxu0 0
      %3223 = vmatpush1.bf16.msra.mxu0 0
      %3224 = vmatprep.subr.bf16.mxu0 %v3208
      %3225 = vmatpush1.bf16.msra.mxu0 %v3205
      %3226 = vmatprep.subr.bf16.mxu0 %v3185
      %3227 = vmatpush1.bf16.msra.mxu0 %v3184
      %3228 = vmatprep.subr.bf16.mxu0 %v3181
      %3229 = vmatpush1.bf16.msra.mxu0 %v3180
      %3230 = vmatprep.subr.bf16.mxu0 %v3177
      %3231 = vmatpush1.bf16.msra.mxu0 %v3176
      %3232 = vmatprep.subr.bf16.mxu0 0
      %3233 = vmatpush2.bf16.msra.mxu0 0
      %3234 = vmatprep.subr.bf16.mxu0 0
      %3235 = vmatpush2.bf16.msra.mxu0 0
      %3236 = vmatprep.subr.bf16.mxu0 0
      %3237 = vmatpush2.bf16.msra.mxu0 0
      %3238 = vmatprep.subr.bf16.mxu0 0
      %3239 = vmatpush2.bf16.msra.mxu0 0
      %3240 = vmatprep.subr.bf16.mxu0 0
      %3241 = vmatpush2.bf16.msra.mxu0 0
      %3242 = vmatprep.subr.bf16.mxu0 0
      %3243 = vmatpush2.bf16.msra.mxu0 0
      %3244 = vmatprep.subr.bf16.mxu0 0
      %3245 = vmatpush2.bf16.msra.mxu0 0
      %3246 = vmatprep.subr.bf16.mxu0 0
      %3247 = vmatpush2.bf16.msra.mxu0 0
      %3248 = vmatprep.mubr.bf16.mxu0 0
      %3249 = vmatmul.mubr.bf16.gmra.mxu0 %v1552
      %v3250 = vpop.f32.mrf.mxu0
      %v3251 = vadd.f32 0.0, %v3250
      %v3252 = vpop.f32.mrf.mxu0
      %v3253 = vadd.f32 0.0, %v3252
      %v3254 = vpop.f32.mrf.mxu0
      %v3255 = vadd.f32 0.0, %v3254
      %v3256 = vpop.f32.mrf.mxu0
      %v3257 = vadd.f32 0.0, %v3256
      %3258 = vmatprep.mubr.bf16.mxu0 0
      %3259 = vmatmul.mubr.bf16.gmra.mxu0 %v1555
      %v3260 = vpop.f32.mrf.mxu0
      %v3261 = vadd.f32 0.0, %v3260
      %v3262 = vpop.f32.mrf.mxu0
      %v3263 = vadd.f32 0.0, %v3262
      %v3264 = vpop.f32.mrf.mxu0
      %v3265 = vadd.f32 0.0, %v3264
      %v3266 = vpop.f32.mrf.mxu0
      %v3267 = vadd.f32 0.0, %v3266
      %3268 = vmatprep.mubr.bf16.mxu0 0
      %3269 = vmatmul.mubr.bf16.gmra.mxu0 %v1558
      %v3270 = vpop.f32.mrf.mxu0
      %v3271 = vadd.f32 0.0, %v3270
      %v3272 = vpop.f32.mrf.mxu0
      %v3273 = vadd.f32 0.0, %v3272
      %v3274 = vpop.f32.mrf.mxu0
      %v3275 = vadd.f32 0.0, %v3274
      %v3276 = vpop.f32.mrf.mxu0
      %v3277 = vadd.f32 0.0, %v3276
      %3278 = vdwg.mxu0
      %3279 = vmatprep.subr.bf16.mxu0 0
      %3280 = vmatpush1.bf16.msra.mxu0 0
      %3281 = vmatprep.subr.bf16.mxu0 0
      %3282 = vmatpush1.bf16.msra.mxu0 0
      %3283 = vmatprep.subr.bf16.mxu0 0
      %3284 = vmatpush1.bf16.msra.mxu0 0
      %3285 = vmatprep.subr.bf16.mxu0 0
      %3286 = vmatpush1.bf16.msra.mxu0 0
      %3287 = vmatprep.subr.bf16.mxu0 %v3214
      %3288 = vmatpush1.bf16.msra.mxu0 %v3211
      %3289 = vmatprep.subr.bf16.mxu0 %v3187
      %3290 = vmatpush1.bf16.msra.mxu0 %v3186
      %3291 = vmatprep.subr.bf16.mxu0 %v3183
      %3292 = vmatpush1.bf16.msra.mxu0 %v3182
      %3293 = vmatprep.subr.bf16.mxu0 %v3179
      %3294 = vmatpush1.bf16.msra.mxu0 %v3178
      %3295 = vmatprep.subr.bf16.mxu0 0
      %3296 = vmatpush2.bf16.msra.mxu0 0
      %3297 = vmatprep.subr.bf16.mxu0 0
      %3298 = vmatpush2.bf16.msra.mxu0 0
      %3299 = vmatprep.subr.bf16.mxu0 0
      %3300 = vmatpush2.bf16.msra.mxu0 0
      %3301 = vmatprep.subr.bf16.mxu0 0
      %3302 = vmatpush2.bf16.msra.mxu0 0
      %3303 = vmatprep.subr.bf16.mxu0 0
      %3304 = vmatpush2.bf16.msra.mxu0 0
      %3305 = vmatprep.subr.bf16.mxu0 0
      %3306 = vmatpush2.bf16.msra.mxu0 0
      %3307 = vmatprep.subr.bf16.mxu0 0
      %3308 = vmatpush2.bf16.msra.mxu0 0
      %3309 = vmatprep.subr.bf16.mxu0 0
      %3310 = vmatpush2.bf16.msra.mxu0 0
      %3311 = vmatprep.mubr.bf16.mxu0 0
      %3312 = vmatmul.mubr.bf16.gmra.mxu0 %v1552
      %v3313 = vpop.f32.mrf.mxu0
      %v3314 = vadd.f32 0.0, %v3313
      %v3315 = vpop.f32.mrf.mxu0
      %v3316 = vadd.f32 0.0, %v3315
      %v3317 = vpop.f32.mrf.mxu0
      %v3318 = vadd.f32 0.0, %v3317
      %v3319 = vpop.f32.mrf.mxu0
      %v3320 = vadd.f32 0.0, %v3319
      %3321 = vmatprep.mubr.bf16.mxu0 0
      %3322 = vmatmul.mubr.bf16.gmra.mxu0 %v1555
      %v3323 = vpop.f32.mrf.mxu0
      %v3324 = vadd.f32 0.0, %v3323
      %v3325 = vpop.f32.mrf.mxu0
      %v3326 = vadd.f32 0.0, %v3325
      %v3327 = vpop.f32.mrf.mxu0
      %v3328 = vadd.f32 0.0, %v3327
      %v3329 = vpop.f32.mrf.mxu0
      %v3330 = vadd.f32 0.0, %v3329
      %3331 = vmatprep.mubr.bf16.mxu0 0
      %3332 = vmatmul.mubr.bf16.gmra.mxu0 %v1558
      %v3333 = vpop.f32.mrf.mxu0
      %v3334 = vadd.f32 0.0, %v3333
      %v3335 = vpop.f32.mrf.mxu0
      %v3336 = vadd.f32 0.0, %v3335
      %v3337 = vpop.f32.mrf.mxu0
      %v3338 = vadd.f32 0.0, %v3337
      %v3339 = vpop.f32.mrf.mxu0
      %v3340 = vadd.f32 0.0, %v3339
      %3341 = vdwg.mxu0
      %v3342 = vadd.f32 %v3028, %v3251
      %v3343 = vadd.f32 %v3030, %v3253
      %v3344 = vadd.f32 %v3091, %v3314
      %v3345 = vadd.f32 %v3093, %v3316
      %v3346 = vadd.f32 %v3032, %v3255
      %v3347 = vadd.f32 %v3034, %v3257
      %v3348 = vadd.f32 %v3095, %v3318
      %v3349 = vadd.f32 %v3097, %v3320
      %v3350 = vadd.f32 %v3038, %v3261
      %v3351 = vadd.f32 %v3040, %v3263
      %v3352 = vadd.f32 %v3101, %v3324
      %v3353 = vadd.f32 %v3103, %v3326
      %v3354 = vadd.f32 %v3042, %v3265
      %v3355 = vadd.f32 %v3044, %v3267
      %v3356 = vadd.f32 %v3105, %v3328
      %v3357 = vadd.f32 %v3107, %v3330
      %v3358 = vadd.f32 %v3048, %v3271
      %v3359 = vadd.f32 %v3050, %v3273
      %v3360 = vadd.f32 %v3111, %v3334
      %v3361 = vadd.f32 %v3113, %v3336
      %v3362 = vadd.f32 %v3052, %v3275
      %v3363 = vadd.f32 %v3054, %v3277
      %v3364 = vadd.f32 %v3115, %v3338
      %v3365 = vadd.f32 %v3117, %v3340
      %v3366 = vadd.f32 %v3342, %v1726
      %v3367 = vadd.f32 %v3343, %v1730
      %v3368 = vadd.f32 %v3344, %v1734
      %v3369 = vadd.f32 %v3345, %v1738
      %v3370 = vadd.f32 %v3346, %v1726
      %v3371 = vadd.f32 %v3347, %v1730
      %v3372 = vadd.f32 %v3348, %v1734
      %v3373 = vadd.f32 %v3349, %v1738
      %v3374 = vadd.f32 %v3350, %v1726
      %v3375 = vadd.f32 %v3351, %v1730
      %v3376 = vadd.f32 %v3352, %v1734
      %v3377 = vadd.f32 %v3353, %v1738
      %v3378 = vadd.f32 %v3354, %v1726
      %v3379 = vadd.f32 %v3355, %v1730
      %v3380 = vadd.f32 %v3356, %v1734
      %v3381 = vadd.f32 %v3357, %v1738
      %v3382 = vadd.f32 %v3358, %v1726
      %v3383 = vadd.f32 %v3359, %v1730
      %v3384 = vadd.f32 %v3360, %v1734
      %v3385 = vadd.f32 %v3361, %v1738
      %v3386 = vadd.f32 %v3362, %v1726
      %v3387 = vadd.f32 %v3363, %v1730
      %v3388 = vadd.f32 %v3364, %v1734
      %v3389 = vadd.f32 %v3365, %v1738
      %vm3390 = vcmp.gt.f32.partialorder %v3366, 0.0
      %vm3391 = vcmp.gt.f32.partialorder %v3367, 0.0
      %vm3392 = vcmp.gt.f32.partialorder %v3368, 0.0
      %vm3393 = vcmp.gt.f32.partialorder %v3369, 0.0
      %vm3394 = vcmp.gt.f32.partialorder %v3370, 0.0
      %vm3395 = vcmp.gt.f32.partialorder %v3371, 0.0
      %vm3396 = vcmp.gt.f32.partialorder %v3372, 0.0
      %vm3397 = vcmp.gt.f32.partialorder %v3373, 0.0
      %vm3398 = vcmp.gt.f32.partialorder %v3374, 0.0
      %vm3399 = vcmp.gt.f32.partialorder %v3375, 0.0
      %vm3400 = vcmp.gt.f32.partialorder %v3376, 0.0
      %vm3401 = vcmp.gt.f32.partialorder %v3377, 0.0
      %vm3402 = vcmp.gt.f32.partialorder %v3378, 0.0
      %vm3403 = vcmp.gt.f32.partialorder %v3379, 0.0
      %vm3404 = vcmp.gt.f32.partialorder %v3380, 0.0
      %vm3405 = vcmp.gt.f32.partialorder %v3381, 0.0
      %vm3406 = vcmp.gt.f32.partialorder %v3382, 0.0
      %vm3407 = vcmp.gt.f32.partialorder %v3383, 0.0
      %vm3408 = vcmp.gt.f32.partialorder %v3384, 0.0
      %vm3409 = vcmp.gt.f32.partialorder %v3385, 0.0
      %vm3410 = vcmp.gt.f32.partialorder %v3386, 0.0
      %vm3411 = vcmp.gt.f32.partialorder %v3387, 0.0
      %vm3412 = vcmp.gt.f32.partialorder %v3388, 0.0
      %vm3413 = vcmp.gt.f32.partialorder %v3389, 0.0
      %v3414 = vmul.f32 %v1795, %v3366
      %v3415 = vmul.f32 %v1799, %v3367
      %v3416 = vmul.f32 %v1803, %v3368
      %v3417 = vmul.f32 %v1807, %v3369
      %v3418 = vmul.f32 %v1795, %v3370
      %v3419 = vmul.f32 %v1799, %v3371
      %v3420 = vmul.f32 %v1803, %v3372
      %v3421 = vmul.f32 %v1807, %v3373
      %v3422 = vmul.f32 %v1795, %v3374
      %v3423 = vmul.f32 %v1799, %v3375
      %v3424 = vmul.f32 %v1803, %v3376
      %v3425 = vmul.f32 %v1807, %v3377
      %v3426 = vmul.f32 %v1795, %v3378
      %v3427 = vmul.f32 %v1799, %v3379
      %v3428 = vmul.f32 %v1803, %v3380
      %v3429 = vmul.f32 %v1807, %v3381
      %v3430 = vmul.f32 %v1795, %v3382
      %v3431 = vmul.f32 %v1799, %v3383
      %v3432 = vmul.f32 %v1803, %v3384
      %v3433 = vmul.f32 %v1807, %v3385
      %v3434 = vmul.f32 %v1795, %v3386
      %v3435 = vmul.f32 %v1799, %v3387
      %v3436 = vmul.f32 %v1803, %v3388
      %v3437 = vmul.f32 %v1807, %v3389
      %v3438 = vsel %vm3390, %v3366, %v3414
      %v3439 = vsel %vm3391, %v3367, %v3415
      %v3440 = vsel %vm3392, %v3368, %v3416
      %v3441 = vsel %vm3393, %v3369, %v3417
      %v3442 = vsel %vm3394, %v3370, %v3418
      %v3443 = vsel %vm3395, %v3371, %v3419
      %v3444 = vsel %vm3396, %v3372, %v3420
      %v3445 = vsel %vm3397, %v3373, %v3421
      %v3446 = vsel %vm3398, %v3374, %v3422
      %v3447 = vsel %vm3399, %v3375, %v3423
      %v3448 = vsel %vm3400, %v3376, %v3424
      %v3449 = vsel %vm3401, %v3377, %v3425
      %v3450 = vsel %vm3402, %v3378, %v3426
      %v3451 = vsel %vm3403, %v3379, %v3427
      %v3452 = vsel %vm3404, %v3380, %v3428
      %v3453 = vsel %vm3405, %v3381, %v3429
      %v3454 = vsel %vm3406, %v3382, %v3430
      %v3455 = vsel %vm3407, %v3383, %v3431
      %v3456 = vsel %vm3408, %v3384, %v3432
      %v3457 = vsel %vm3409, %v3385, %v3433
      %v3458 = vsel %vm3410, %v3386, %v3434
      %v3459 = vsel %vm3411, %v3387, %v3435
      %v3460 = vsel %vm3412, %v3388, %v3436
      %v3461 = vsel %vm3413, %v3389, %v3437
      %v3462 = vmax.f32 %v2649, %v3438
      %v3463 = vmax.f32 %v2650, %v3439
      %v3464 = vmax.f32 %v2651, %v3440
      %v3465 = vmax.f32 %v2652, %v3441
      %v3466 = vmax.f32 %v2653, %v3442
      %v3467 = vmax.f32 %v2654, %v3443
      %v3468 = vmax.f32 %v2655, %v3444
      %v3469 = vmax.f32 %v2656, %v3445
      %v3470 = vmax.f32 %v2657, %v3446
      %v3471 = vmax.f32 %v2658, %v3447
      %v3472 = vmax.f32 %v2659, %v3448
      %v3473 = vmax.f32 %v2660, %v3449
      %v3474 = vmax.f32 %v2661, %v3450
      %v3475 = vmax.f32 %v2662, %v3451
      %v3476 = vmax.f32 %v2663, %v3452
      %v3477 = vmax.f32 %v2664, %v3453
      %v3478 = vmax.f32 %v2665, %v3454
      %v3479 = vmax.f32 %v2666, %v3455
      %v3480 = vmax.f32 %v2667, %v3456
      %v3481 = vmax.f32 %v2668, %v3457
      %v3482 = vmax.f32 %v2669, %v3458
      %v3483 = vmax.f32 %v2670, %v3459
      %v3484 = vmax.f32 %v2671, %v3460
      %v3485 = vmax.f32 %v2672, %v3461
      %v3510 = vcombine.low %v3462, %v3463
      %v3511 = vcombine.high %v3462, %v3463
      %v3512 = vcombine.low %v3464, %v3465
      %v3513 = vcombine.high %v3464, %v3465
      %v3515 = vunpack.c.l.s4 1983009808
      %v3516 = vunpack.c.0.s8 %v3515
      %v3517 = vlaneseq
      %v3518 = vshrl.u32 %v3517, 7
      %v3519 = vsub.s32 %v3516, %v3518
      %v3520 = vrot.slane %v3510, %v3519
      %v3522 = vunpack.c.l.s4 1983009808
      %v3523 = vunpack.c.0.s8 %v3522
      %v3524 = vlaneseq
      %v3525 = vshrl.u32 %v3524, 7
      %v3526 = vsub.s32 %v3523, %v3525
      %v3527 = vrot.slane %v3511, %v3526
      %v3529 = vunpack.c.l.s4 1983009808
      %v3530 = vunpack.c.0.s8 %v3529
      %v3531 = vlaneseq
      %v3532 = vshrl.u32 %v3531, 7
      %v3533 = vsub.s32 %v3530, %v3532
      %v3534 = vrot.slane %v3512, %v3533
      %v3536 = vunpack.c.l.s4 1983009808
      %v3537 = vunpack.c.0.s8 %v3536
      %v3538 = vlaneseq
      %v3539 = vshrl.u32 %v3538, 7
      %v3540 = vsub.s32 %v3537, %v3539
      %v3541 = vrot.slane %v3513, %v3540
      %v3542 = vcombine.low %v3520, %v3534
      %v3543 = vcombine.high %v3520, %v3534
      %v3544 = vcombine.low %v3527, %v3541
      %v3545 = vcombine.high %v3527, %v3541
      %v3546 = vcombine.low %v3466, %v3467
      %v3547 = vcombine.high %v3466, %v3467
      %v3548 = vcombine.low %v3468, %v3469
      %v3549 = vcombine.high %v3468, %v3469
      %v3551 = vunpack.c.l.s4 1983009808
      %v3552 = vunpack.c.0.s8 %v3551
      %v3553 = vlaneseq
      %v3554 = vshrl.u32 %v3553, 7
      %v3555 = vsub.s32 %v3552, %v3554
      %v3556 = vrot.slane %v3546, %v3555
      %v3558 = vunpack.c.l.s4 1983009808
      %v3559 = vunpack.c.0.s8 %v3558
      %v3560 = vlaneseq
      %v3561 = vshrl.u32 %v3560, 7
      %v3562 = vsub.s32 %v3559, %v3561
      %v3563 = vrot.slane %v3547, %v3562
      %v3565 = vunpack.c.l.s4 1983009808
      %v3566 = vunpack.c.0.s8 %v3565
      %v3567 = vlaneseq
      %v3568 = vshrl.u32 %v3567, 7
      %v3569 = vsub.s32 %v3566, %v3568
      %v3570 = vrot.slane %v3548, %v3569
      %v3572 = vunpack.c.l.s4 1983009808
      %v3573 = vunpack.c.0.s8 %v3572
      %v3574 = vlaneseq
      %v3575 = vshrl.u32 %v3574, 7
      %v3576 = vsub.s32 %v3573, %v3575
      %v3577 = vrot.slane %v3549, %v3576
      %v3578 = vcombine.low %v3556, %v3570
      %v3579 = vcombine.high %v3556, %v3570
      %v3580 = vcombine.low %v3563, %v3577
      %v3581 = vcombine.high %v3563, %v3577
      %v3582 = vcombine.low %v3470, %v3471
      %v3583 = vcombine.high %v3470, %v3471
      %v3584 = vcombine.low %v3472, %v3473
      %v3585 = vcombine.high %v3472, %v3473
      %v3587 = vunpack.c.l.s4 1983009808
      %v3588 = vunpack.c.0.s8 %v3587
      %v3589 = vlaneseq
      %v3590 = vshrl.u32 %v3589, 7
      %v3591 = vsub.s32 %v3588, %v3590
      %v3592 = vrot.slane %v3582, %v3591
      %v3594 = vunpack.c.l.s4 1983009808
      %v3595 = vunpack.c.0.s8 %v3594
      %v3596 = vlaneseq
      %v3597 = vshrl.u32 %v3596, 7
      %v3598 = vsub.s32 %v3595, %v3597
      %v3599 = vrot.slane %v3583, %v3598
      %v3601 = vunpack.c.l.s4 1983009808
      %v3602 = vunpack.c.0.s8 %v3601
      %v3603 = vlaneseq
      %v3604 = vshrl.u32 %v3603, 7
      %v3605 = vsub.s32 %v3602, %v3604
      %v3606 = vrot.slane %v3584, %v3605
      %v3608 = vunpack.c.l.s4 1983009808
      %v3609 = vunpack.c.0.s8 %v3608
      %v3610 = vlaneseq
      %v3611 = vshrl.u32 %v3610, 7
      %v3612 = vsub.s32 %v3609, %v3611
      %v3613 = vrot.slane %v3585, %v3612
      %v3614 = vcombine.low %v3592, %v3606
      %v3615 = vcombine.high %v3592, %v3606
      %v3616 = vcombine.low %v3599, %v3613
      %v3617 = vcombine.high %v3599, %v3613
      %v3618 = vcombine.low %v3474, %v3475
      %v3619 = vcombine.high %v3474, %v3475
      %v3620 = vcombine.low %v3476, %v3477
      %v3621 = vcombine.high %v3476, %v3477
      %v3623 = vunpack.c.l.s4 1983009808
      %v3624 = vunpack.c.0.s8 %v3623
      %v3625 = vlaneseq
      %v3626 = vshrl.u32 %v3625, 7
      %v3627 = vsub.s32 %v3624, %v3626
      %v3628 = vrot.slane %v3618, %v3627
      %v3630 = vunpack.c.l.s4 1983009808
      %v3631 = vunpack.c.0.s8 %v3630
      %v3632 = vlaneseq
      %v3633 = vshrl.u32 %v3632, 7
      %v3634 = vsub.s32 %v3631, %v3633
      %v3635 = vrot.slane %v3619, %v3634
      %v3637 = vunpack.c.l.s4 1983009808
      %v3638 = vunpack.c.0.s8 %v3637
      %v3639 = vlaneseq
      %v3640 = vshrl.u32 %v3639, 7
      %v3641 = vsub.s32 %v3638, %v3640
      %v3642 = vrot.slane %v3620, %v3641
      %v3644 = vunpack.c.l.s4 1983009808
      %v3645 = vunpack.c.0.s8 %v3644
      %v3646 = vlaneseq
      %v3647 = vshrl.u32 %v3646, 7
      %v3648 = vsub.s32 %v3645, %v3647
      %v3649 = vrot.slane %v3621, %v3648
      %v3650 = vcombine.low %v3628, %v3642
      %v3651 = vcombine.high %v3628, %v3642
      %v3652 = vcombine.low %v3635, %v3649
      %v3653 = vcombine.high %v3635, %v3649
      %v3654 = vcombine.low %v3478, %v3479
      %v3655 = vcombine.high %v3478, %v3479
      %v3656 = vcombine.low %v3480, %v3481
      %v3657 = vcombine.high %v3480, %v3481
      %v3659 = vunpack.c.l.s4 1983009808
      %v3660 = vunpack.c.0.s8 %v3659
      %v3661 = vlaneseq
      %v3662 = vshrl.u32 %v3661, 7
      %v3663 = vsub.s32 %v3660, %v3662
      %v3664 = vrot.slane %v3654, %v3663
      %v3666 = vunpack.c.l.s4 1983009808
      %v3667 = vunpack.c.0.s8 %v3666
      %v3668 = vlaneseq
      %v3669 = vshrl.u32 %v3668, 7
      %v3670 = vsub.s32 %v3667, %v3669
      %v3671 = vrot.slane %v3655, %v3670
      %v3673 = vunpack.c.l.s4 1983009808
      %v3674 = vunpack.c.0.s8 %v3673
      %v3675 = vlaneseq
      %v3676 = vshrl.u32 %v3675, 7
      %v3677 = vsub.s32 %v3674, %v3676
      %v3678 = vrot.slane %v3656, %v3677
      %v3680 = vunpack.c.l.s4 1983009808
      %v3681 = vunpack.c.0.s8 %v3680
      %v3682 = vlaneseq
      %v3683 = vshrl.u32 %v3682, 7
      %v3684 = vsub.s32 %v3681, %v3683
      %v3685 = vrot.slane %v3657, %v3684
      %v3686 = vcombine.low %v3664, %v3678
      %v3687 = vcombine.high %v3664, %v3678
      %v3688 = vcombine.low %v3671, %v3685
      %v3689 = vcombine.high %v3671, %v3685
      %v3690 = vcombine.low %v3482, %v3483
      %v3691 = vcombine.high %v3482, %v3483
      %v3692 = vcombine.low %v3484, %v3485
      %v3693 = vcombine.high %v3484, %v3485
      %v3695 = vunpack.c.l.s4 1983009808
      %v3696 = vunpack.c.0.s8 %v3695
      %v3697 = vlaneseq
      %v3698 = vshrl.u32 %v3697, 7
      %v3699 = vsub.s32 %v3696, %v3698
      %v3700 = vrot.slane %v3690, %v3699
      %v3702 = vunpack.c.l.s4 1983009808
      %v3703 = vunpack.c.0.s8 %v3702
      %v3704 = vlaneseq
      %v3705 = vshrl.u32 %v3704, 7
      %v3706 = vsub.s32 %v3703, %v3705
      %v3707 = vrot.slane %v3691, %v3706
      %v3709 = vunpack.c.l.s4 1983009808
      %v3710 = vunpack.c.0.s8 %v3709
      %v3711 = vlaneseq
      %v3712 = vshrl.u32 %v3711, 7
      %v3713 = vsub.s32 %v3710, %v3712
      %v3714 = vrot.slane %v3692, %v3713
      %v3716 = vunpack.c.l.s4 1983009808
      %v3717 = vunpack.c.0.s8 %v3716
      %v3718 = vlaneseq
      %v3719 = vshrl.u32 %v3718, 7
      %v3720 = vsub.s32 %v3717, %v3719
      %v3721 = vrot.slane %v3693, %v3720
      %v3722 = vcombine.low %v3700, %v3714
      %v3723 = vcombine.high %v3700, %v3714
      %v3724 = vcombine.low %v3707, %v3721
      %v3725 = vcombine.high %v3707, %v3721
      %v3726 = vcombine.low %v3542, %v3543
      %v3727 = vcombine.high %v3542, %v3543
      %v3728 = vcombine.low %v3545, %v3578
      %v3729 = vcombine.high %v3545, %v3578
      %v3731 = vunpack.c.l.s4 1983009808
      %v3732 = vunpack.c.0.s8 %v3731
      %v3733 = vlaneseq
      %v3734 = vshrl.u32 %v3733, 7
      %v3735 = vsub.s32 %v3732, %v3734
      %v3736 = vrot.slane %v3726, %v3735
      %v3738 = vunpack.c.l.s4 1983009808
      %v3739 = vunpack.c.0.s8 %v3738
      %v3740 = vlaneseq
      %v3741 = vshrl.u32 %v3740, 7
      %v3742 = vsub.s32 %v3739, %v3741
      %v3743 = vrot.slane %v3727, %v3742
      %v3745 = vunpack.c.l.s4 1983009808
      %v3746 = vunpack.c.0.s8 %v3745
      %v3747 = vlaneseq
      %v3748 = vshrl.u32 %v3747, 7
      %v3749 = vsub.s32 %v3746, %v3748
      %v3750 = vrot.slane %v3728, %v3749
      %v3752 = vunpack.c.l.s4 1983009808
      %v3753 = vunpack.c.0.s8 %v3752
      %v3754 = vlaneseq
      %v3755 = vshrl.u32 %v3754, 7
      %v3756 = vsub.s32 %v3753, %v3755
      %v3757 = vrot.slane %v3729, %v3756
      %v3758 = vcombine.low %v3736, %v3750
      %v3759 = vcombine.high %v3736, %v3750
      %v3760 = vcombine.low %v3743, %v3757
      %v3761 = vcombine.high %v3743, %v3757
      %v3762 = vcombine.low %v3580, %v3581
      %v3763 = vcombine.high %v3580, %v3581
      %v3764 = vcombine.low %v3615, %v3616
      %v3765 = vcombine.high %v3615, %v3616
      %v3767 = vunpack.c.l.s4 1983009808
      %v3768 = vunpack.c.0.s8 %v3767
      %v3769 = vlaneseq
      %v3770 = vshrl.u32 %v3769, 7
      %v3771 = vsub.s32 %v3768, %v3770
      %v3772 = vrot.slane %v3762, %v3771
      %v3774 = vunpack.c.l.s4 1983009808
      %v3775 = vunpack.c.0.s8 %v3774
      %v3776 = vlaneseq
      %v3777 = vshrl.u32 %v3776, 7
      %v3778 = vsub.s32 %v3775, %v3777
      %v3779 = vrot.slane %v3763, %v3778
      %v3781 = vunpack.c.l.s4 1983009808
      %v3782 = vunpack.c.0.s8 %v3781
      %v3783 = vlaneseq
      %v3784 = vshrl.u32 %v3783, 7
      %v3785 = vsub.s32 %v3782, %v3784
      %v3786 = vrot.slane %v3764, %v3785
      %v3788 = vunpack.c.l.s4 1983009808
      %v3789 = vunpack.c.0.s8 %v3788
      %v3790 = vlaneseq
      %v3791 = vshrl.u32 %v3790, 7
      %v3792 = vsub.s32 %v3789, %v3791
      %v3793 = vrot.slane %v3765, %v3792
      %v3794 = vcombine.low %v3772, %v3786
      %v3795 = vcombine.high %v3772, %v3786
      %v3796 = vcombine.low %v3779, %v3793
      %v3797 = vcombine.high %v3779, %v3793
      %v3798 = vcombine.low %v3650, %v3651
      %v3799 = vcombine.high %v3650, %v3651
      %v3800 = vcombine.low %v3653, %v3686
      %v3801 = vcombine.high %v3653, %v3686
      %v3803 = vunpack.c.l.s4 1983009808
      %v3804 = vunpack.c.0.s8 %v3803
      %v3805 = vlaneseq
      %v3806 = vshrl.u32 %v3805, 7
      %v3807 = vsub.s32 %v3804, %v3806
      %v3808 = vrot.slane %v3798, %v3807
      %v3810 = vunpack.c.l.s4 1983009808
      %v3811 = vunpack.c.0.s8 %v3810
      %v3812 = vlaneseq
      %v3813 = vshrl.u32 %v3812, 7
      %v3814 = vsub.s32 %v3811, %v3813
      %v3815 = vrot.slane %v3799, %v3814
      %v3817 = vunpack.c.l.s4 1983009808
      %v3818 = vunpack.c.0.s8 %v3817
      %v3819 = vlaneseq
      %v3820 = vshrl.u32 %v3819, 7
      %v3821 = vsub.s32 %v3818, %v3820
      %v3822 = vrot.slane %v3800, %v3821
      %v3824 = vunpack.c.l.s4 1983009808
      %v3825 = vunpack.c.0.s8 %v3824
      %v3826 = vlaneseq
      %v3827 = vshrl.u32 %v3826, 7
      %v3828 = vsub.s32 %v3825, %v3827
      %v3829 = vrot.slane %v3801, %v3828
      %v3830 = vcombine.low %v3808, %v3822
      %v3831 = vcombine.high %v3808, %v3822
      %v3832 = vcombine.low %v3815, %v3829
      %v3833 = vcombine.high %v3815, %v3829
      %v3834 = vcombine.low %v3688, %v3689
      %v3835 = vcombine.high %v3688, %v3689
      %v3836 = vcombine.low %v3723, %v3724
      %v3837 = vcombine.high %v3723, %v3724
      %v3839 = vunpack.c.l.s4 1983009808
      %v3840 = vunpack.c.0.s8 %v3839
      %v3841 = vlaneseq
      %v3842 = vshrl.u32 %v3841, 7
      %v3843 = vsub.s32 %v3840, %v3842
      %v3844 = vrot.slane %v3834, %v3843
      %v3846 = vunpack.c.l.s4 1983009808
      %v3847 = vunpack.c.0.s8 %v3846
      %v3848 = vlaneseq
      %v3849 = vshrl.u32 %v3848, 7
      %v3850 = vsub.s32 %v3847, %v3849
      %v3851 = vrot.slane %v3835, %v3850
      %v3853 = vunpack.c.l.s4 1983009808
      %v3854 = vunpack.c.0.s8 %v3853
      %v3855 = vlaneseq
      %v3856 = vshrl.u32 %v3855, 7
      %v3857 = vsub.s32 %v3854, %v3856
      %v3858 = vrot.slane %v3836, %v3857
      %v3860 = vunpack.c.l.s4 1983009808
      %v3861 = vunpack.c.0.s8 %v3860
      %v3862 = vlaneseq
      %v3863 = vshrl.u32 %v3862, 7
      %v3864 = vsub.s32 %v3861, %v3863
      %v3865 = vrot.slane %v3837, %v3864
      %v3866 = vcombine.low %v3844, %v3858
      %v3867 = vcombine.high %v3844, %v3858
      %v3868 = vcombine.low %v3851, %v3865
      %v3869 = vcombine.high %v3851, %v3865
      %v3886 = vpack.c.bf16 %v3794, %v3758
      %v3887 = vpack.c.bf16 %v3795, %v3759
      %v3888 = vpack.c.bf16 %v3796, %v3760
      %v3889 = vpack.c.bf16 %v3797, %v3761
      %v3890 = vpack.c.bf16 %v3866, %v3830
      %v3891 = vpack.c.bf16 %v3867, %v3831
      %v3892 = vpack.c.bf16 %v3868, %v3832
      %v3893 = vpack.c.bf16 %v3869, %v3833
      %vm3894 = vcmask 1042434
      %vm3895 = vmor %vm1108, %vm3894
      %vm3896 = vcmask 1044484
      %vm3897 = vmor %vm3895, %vm3896
      %vm3898 = vcmask 1046534
      %vm3899 = vmor %vm3897, %vm3898
      %v3900 = vrot.slane %v3542, 7
      %v3901 = vrot.slane %v3900, 2
      %v3902 = vrot.slane %v3543, 7
      %v3903 = vsel %vm3899, %v3901, %v3902
      %v3904 = vrot.slane %v3902, 2
      %v3905 = vrot.slane %v3544, 7
      %v3906 = vsel %vm3899, %v3904, %v3905
      %v3907 = vrot.slane %v3545, 7
      %v3908 = vrot.slane %v3907, 2
      %v3909 = vrot.slane %v3578, 7
      %v3910 = vsel %vm3899, %v3908, %v3909
      %v3911 = vrot.slane %v3909, 2
      %v3912 = vrot.slane %v3579, 7
      %v3913 = vsel %vm3899, %v3911, %v3912
      %v3914 = vrot.slane %v3580, 7
      %v3915 = vrot.slane %v3914, 2
      %v3916 = vrot.slane %v3581, 7
      %v3917 = vsel %vm3899, %v3915, %v3916
      %v3918 = vrot.slane %v3916, 2
      %v3919 = vrot.slane %v3614, 7
      %v3920 = vsel %vm3899, %v3918, %v3919
      %v3921 = vrot.slane %v3615, 7
      %v3922 = vrot.slane %v3921, 2
      %v3923 = vrot.slane %v3616, 7
      %v3924 = vsel %vm3899, %v3922, %v3923
      %v3925 = vrot.slane %v3923, 2
      %v3926 = vrot.slane %v3617, 7
      %v3927 = vsel %vm3899, %v3925, %v3926
      %v3928 = vrot.slane %v3650, 7
      %v3929 = vrot.slane %v3928, 2
      %v3930 = vrot.slane %v3651, 7
      %v3931 = vsel %vm3899, %v3929, %v3930
      %v3932 = vrot.slane %v3930, 2
      %v3933 = vrot.slane %v3652, 7
      %v3934 = vsel %vm3899, %v3932, %v3933
      %v3935 = vrot.slane %v3653, 7
      %v3936 = vrot.slane %v3935, 2
      %v3937 = vrot.slane %v3686, 7
      %v3938 = vsel %vm3899, %v3936, %v3937
      %v3939 = vrot.slane %v3937, 2
      %v3940 = vrot.slane %v3687, 7
      %v3941 = vsel %vm3899, %v3939, %v3940
      %v3942 = vrot.slane %v3688, 7
      %v3943 = vrot.slane %v3942, 2
      %v3944 = vrot.slane %v3689, 7
      %v3945 = vsel %vm3899, %v3943, %v3944
      %v3946 = vrot.slane %v3944, 2
      %v3947 = vrot.slane %v3722, 7
      %v3948 = vsel %vm3899, %v3946, %v3947
      %v3949 = vrot.slane %v3723, 7
      %v3950 = vrot.slane %v3949, 2
      %v3951 = vrot.slane %v3724, 7
      %v3952 = vsel %vm3899, %v3950, %v3951
      %v3953 = vrot.slane %v3951, 2
      %v3954 = vrot.slane %v3725, 7
      %v3955 = vsel %vm3899, %v3953, %v3954
      %v3956 = vcombine.low %v3903, %v3906
      %v3957 = vcombine.high %v3903, %v3906
      %v3958 = vcombine.low %v3910, %v3913
      %v3959 = vcombine.high %v3910, %v3913
      %v3961 = vunpack.c.l.s4 1983009808
      %v3962 = vunpack.c.0.s8 %v3961
      %v3963 = vlaneseq
      %v3964 = vshrl.u32 %v3963, 7
      %v3965 = vsub.s32 %v3962, %v3964
      %v3966 = vrot.slane %v3956, %v3965
      %v3968 = vunpack.c.l.s4 1983009808
      %v3969 = vunpack.c.0.s8 %v3968
      %v3970 = vlaneseq
      %v3971 = vshrl.u32 %v3970, 7
      %v3972 = vsub.s32 %v3969, %v3971
      %v3973 = vrot.slane %v3957, %v3972
      %v3975 = vunpack.c.l.s4 1983009808
      %v3976 = vunpack.c.0.s8 %v3975
      %v3977 = vlaneseq
      %v3978 = vshrl.u32 %v3977, 7
      %v3979 = vsub.s32 %v3976, %v3978
      %v3980 = vrot.slane %v3958, %v3979
      %v3982 = vunpack.c.l.s4 1983009808
      %v3983 = vunpack.c.0.s8 %v3982
      %v3984 = vlaneseq
      %v3985 = vshrl.u32 %v3984, 7
      %v3986 = vsub.s32 %v3983, %v3985
      %v3987 = vrot.slane %v3959, %v3986
      %v3988 = vcombine.low %v3966, %v3980
      %v3989 = vcombine.high %v3966, %v3980
      %v3990 = vcombine.low %v3973, %v3987
      %v3991 = vcombine.high %v3973, %v3987
      %v3992 = vcombine.low %v3917, %v3920
      %v3993 = vcombine.high %v3917, %v3920
      %v3994 = vcombine.low %v3924, %v3927
      %v3995 = vcombine.high %v3924, %v3927
      %v3997 = vunpack.c.l.s4 1983009808
      %v3998 = vunpack.c.0.s8 %v3997
      %v3999 = vlaneseq
      %v4000 = vshrl.u32 %v3999, 7
      %v4001 = vsub.s32 %v3998, %v4000
      %v4002 = vrot.slane %v3992, %v4001
      %v4004 = vunpack.c.l.s4 1983009808
      %v4005 = vunpack.c.0.s8 %v4004
      %v4006 = vlaneseq
      %v4007 = vshrl.u32 %v4006, 7
      %v4008 = vsub.s32 %v4005, %v4007
      %v4009 = vrot.slane %v3993, %v4008
      %v4011 = vunpack.c.l.s4 1983009808
      %v4012 = vunpack.c.0.s8 %v4011
      %v4013 = vlaneseq
      %v4014 = vshrl.u32 %v4013, 7
      %v4015 = vsub.s32 %v4012, %v4014
      %v4016 = vrot.slane %v3994, %v4015
      %v4018 = vunpack.c.l.s4 1983009808
      %v4019 = vunpack.c.0.s8 %v4018
      %v4020 = vlaneseq
      %v4021 = vshrl.u32 %v4020, 7
      %v4022 = vsub.s32 %v4019, %v4021
      %v4023 = vrot.slane %v3995, %v4022
      %v4024 = vcombine.low %v4002, %v4016
      %v4025 = vcombine.high %v4002, %v4016
      %v4026 = vcombine.low %v4009, %v4023
      %v4027 = vcombine.high %v4009, %v4023
      %v4028 = vcombine.low %v3931, %v3934
      %v4029 = vcombine.high %v3931, %v3934
      %v4030 = vcombine.low %v3938, %v3941
      %v4031 = vcombine.high %v3938, %v3941
      %v4033 = vunpack.c.l.s4 1983009808
      %v4034 = vunpack.c.0.s8 %v4033
      %v4035 = vlaneseq
      %v4036 = vshrl.u32 %v4035, 7
      %v4037 = vsub.s32 %v4034, %v4036
      %v4038 = vrot.slane %v4028, %v4037
      %v4040 = vunpack.c.l.s4 1983009808
      %v4041 = vunpack.c.0.s8 %v4040
      %v4042 = vlaneseq
      %v4043 = vshrl.u32 %v4042, 7
      %v4044 = vsub.s32 %v4041, %v4043
      %v4045 = vrot.slane %v4029, %v4044
      %v4047 = vunpack.c.l.s4 1983009808
      %v4048 = vunpack.c.0.s8 %v4047
      %v4049 = vlaneseq
      %v4050 = vshrl.u32 %v4049, 7
      %v4051 = vsub.s32 %v4048, %v4050
      %v4052 = vrot.slane %v4030, %v4051
      %v4054 = vunpack.c.l.s4 1983009808
      %v4055 = vunpack.c.0.s8 %v4054
      %v4056 = vlaneseq
      %v4057 = vshrl.u32 %v4056, 7
      %v4058 = vsub.s32 %v4055, %v4057
      %v4059 = vrot.slane %v4031, %v4058
      %v4060 = vcombine.low %v4038, %v4052
      %v4061 = vcombine.high %v4038, %v4052
      %v4062 = vcombine.low %v4045, %v4059
      %v4063 = vcombine.high %v4045, %v4059
      %v4064 = vcombine.low %v3945, %v3948
      %v4065 = vcombine.high %v3945, %v3948
      %v4066 = vcombine.low %v3952, %v3955
      %v4067 = vcombine.high %v3952, %v3955
      %v4069 = vunpack.c.l.s4 1983009808
      %v4070 = vunpack.c.0.s8 %v4069
      %v4071 = vlaneseq
      %v4072 = vshrl.u32 %v4071, 7
      %v4073 = vsub.s32 %v4070, %v4072
      %v4074 = vrot.slane %v4064, %v4073
      %v4076 = vunpack.c.l.s4 1983009808
      %v4077 = vunpack.c.0.s8 %v4076
      %v4078 = vlaneseq
      %v4079 = vshrl.u32 %v4078, 7
      %v4080 = vsub.s32 %v4077, %v4079
      %v4081 = vrot.slane %v4065, %v4080
      %v4083 = vunpack.c.l.s4 1983009808
      %v4084 = vunpack.c.0.s8 %v4083
      %v4085 = vlaneseq
      %v4086 = vshrl.u32 %v4085, 7
      %v4087 = vsub.s32 %v4084, %v4086
      %v4088 = vrot.slane %v4066, %v4087
      %v4090 = vunpack.c.l.s4 1983009808
      %v4091 = vunpack.c.0.s8 %v4090
      %v4092 = vlaneseq
      %v4093 = vshrl.u32 %v4092, 7
      %v4094 = vsub.s32 %v4091, %v4093
      %v4095 = vrot.slane %v4067, %v4094
      %v4096 = vcombine.low %v4074, %v4088
      %v4097 = vcombine.high %v4074, %v4088
      %v4098 = vcombine.low %v4081, %v4095
      %v4099 = vcombine.high %v4081, %v4095
      %v4116 = vpack.c.bf16 %v4024, %v3988
      %v4117 = vpack.c.bf16 %v4025, %v3989
      %v4118 = vpack.c.bf16 %v4026, %v3990
      %v4119 = vpack.c.bf16 %v4027, %v3991
      %v4120 = vpack.c.bf16 %v4096, %v4060
      %v4121 = vpack.c.bf16 %v4097, %v4061
      %v4122 = vpack.c.bf16 %v4098, %v4062
      %v4123 = vpack.c.bf16 %v4099, %v4063
      %v4124 = vcombine.low %v3543, %v3544
      %v4125 = vcombine.high %v3543, %v3544
      %v4126 = vcombine.low %v3578, %v3579
      %v4127 = vcombine.high %v3578, %v3579
      %v4129 = vunpack.c.l.s4 1983009808
      %v4130 = vunpack.c.0.s8 %v4129
      %v4131 = vlaneseq
      %v4132 = vshrl.u32 %v4131, 7
      %v4133 = vsub.s32 %v4130, %v4132
      %v4134 = vrot.slane %v4124, %v4133
      %v4136 = vunpack.c.l.s4 1983009808
      %v4137 = vunpack.c.0.s8 %v4136
      %v4138 = vlaneseq
      %v4139 = vshrl.u32 %v4138, 7
      %v4140 = vsub.s32 %v4137, %v4139
      %v4141 = vrot.slane %v4125, %v4140
      %v4143 = vunpack.c.l.s4 1983009808
      %v4144 = vunpack.c.0.s8 %v4143
      %v4145 = vlaneseq
      %v4146 = vshrl.u32 %v4145, 7
      %v4147 = vsub.s32 %v4144, %v4146
      %v4148 = vrot.slane %v4126, %v4147
      %v4150 = vunpack.c.l.s4 1983009808
      %v4151 = vunpack.c.0.s8 %v4150
      %v4152 = vlaneseq
      %v4153 = vshrl.u32 %v4152, 7
      %v4154 = vsub.s32 %v4151, %v4153
      %v4155 = vrot.slane %v4127, %v4154
      %v4156 = vcombine.low %v4134, %v4148
      %v4157 = vcombine.high %v4134, %v4148
      %v4158 = vcombine.low %v4141, %v4155
      %v4159 = vcombine.high %v4141, %v4155
      %v4160 = vcombine.low %v3581, %v3614
      %v4161 = vcombine.high %v3581, %v3614
      %v4162 = vcombine.low %v3616, %v3617
      %v4163 = vcombine.high %v3616, %v3617
      %v4165 = vunpack.c.l.s4 1983009808
      %v4166 = vunpack.c.0.s8 %v4165
      %v4167 = vlaneseq
      %v4168 = vshrl.u32 %v4167, 7
      %v4169 = vsub.s32 %v4166, %v4168
      %v4170 = vrot.slane %v4160, %v4169
      %v4172 = vunpack.c.l.s4 1983009808
      %v4173 = vunpack.c.0.s8 %v4172
      %v4174 = vlaneseq
      %v4175 = vshrl.u32 %v4174, 7
      %v4176 = vsub.s32 %v4173, %v4175
      %v4177 = vrot.slane %v4161, %v4176
      %v4179 = vunpack.c.l.s4 1983009808
      %v4180 = vunpack.c.0.s8 %v4179
      %v4181 = vlaneseq
      %v4182 = vshrl.u32 %v4181, 7
      %v4183 = vsub.s32 %v4180, %v4182
      %v4184 = vrot.slane %v4162, %v4183
      %v4186 = vunpack.c.l.s4 1983009808
      %v4187 = vunpack.c.0.s8 %v4186
      %v4188 = vlaneseq
      %v4189 = vshrl.u32 %v4188, 7
      %v4190 = vsub.s32 %v4187, %v4189
      %v4191 = vrot.slane %v4163, %v4190
      %v4192 = vcombine.low %v4170, %v4184
      %v4193 = vcombine.high %v4170, %v4184
      %v4194 = vcombine.low %v4177, %v4191
      %v4195 = vcombine.high %v4177, %v4191
      %v4196 = vcombine.low %v3651, %v3652
      %v4197 = vcombine.high %v3651, %v3652
      %v4198 = vcombine.low %v3686, %v3687
      %v4199 = vcombine.high %v3686, %v3687
      %v4201 = vunpack.c.l.s4 1983009808
      %v4202 = vunpack.c.0.s8 %v4201
      %v4203 = vlaneseq
      %v4204 = vshrl.u32 %v4203, 7
      %v4205 = vsub.s32 %v4202, %v4204
      %v4206 = vrot.slane %v4196, %v4205
      %v4208 = vunpack.c.l.s4 1983009808
      %v4209 = vunpack.c.0.s8 %v4208
      %v4210 = vlaneseq
      %v4211 = vshrl.u32 %v4210, 7
      %v4212 = vsub.s32 %v4209, %v4211
      %v4213 = vrot.slane %v4197, %v4212
      %v4215 = vunpack.c.l.s4 1983009808
      %v4216 = vunpack.c.0.s8 %v4215
      %v4217 = vlaneseq
      %v4218 = vshrl.u32 %v4217, 7
      %v4219 = vsub.s32 %v4216, %v4218
      %v4220 = vrot.slane %v4198, %v4219
      %v4222 = vunpack.c.l.s4 1983009808
      %v4223 = vunpack.c.0.s8 %v4222
      %v4224 = vlaneseq
      %v4225 = vshrl.u32 %v4224, 7
      %v4226 = vsub.s32 %v4223, %v4225
      %v4227 = vrot.slane %v4199, %v4226
      %v4228 = vcombine.low %v4206, %v4220
      %v4229 = vcombine.high %v4206, %v4220
      %v4230 = vcombine.low %v4213, %v4227
      %v4231 = vcombine.high %v4213, %v4227
      %v4232 = vcombine.low %v3689, %v3722
      %v4233 = vcombine.high %v3689, %v3722
      %v4234 = vcombine.low %v3724, %v3725
      %v4235 = vcombine.high %v3724, %v3725
      %v4237 = vunpack.c.l.s4 1983009808
      %v4238 = vunpack.c.0.s8 %v4237
      %v4239 = vlaneseq
      %v4240 = vshrl.u32 %v4239, 7
      %v4241 = vsub.s32 %v4238, %v4240
      %v4242 = vrot.slane %v4232, %v4241
      %v4244 = vunpack.c.l.s4 1983009808
      %v4245 = vunpack.c.0.s8 %v4244
      %v4246 = vlaneseq
      %v4247 = vshrl.u32 %v4246, 7
      %v4248 = vsub.s32 %v4245, %v4247
      %v4249 = vrot.slane %v4233, %v4248
      %v4251 = vunpack.c.l.s4 1983009808
      %v4252 = vunpack.c.0.s8 %v4251
      %v4253 = vlaneseq
      %v4254 = vshrl.u32 %v4253, 7
      %v4255 = vsub.s32 %v4252, %v4254
      %v4256 = vrot.slane %v4234, %v4255
      %v4258 = vunpack.c.l.s4 1983009808
      %v4259 = vunpack.c.0.s8 %v4258
      %v4260 = vlaneseq
      %v4261 = vshrl.u32 %v4260, 7
      %v4262 = vsub.s32 %v4259, %v4261
      %v4263 = vrot.slane %v4235, %v4262
      %v4264 = vcombine.low %v4242, %v4256
      %v4265 = vcombine.high %v4242, %v4256
      %v4266 = vcombine.low %v4249, %v4263
      %v4267 = vcombine.high %v4249, %v4263
      %v4284 = vpack.c.bf16 %v4192, %v4156
      %v4285 = vpack.c.bf16 %v4193, %v4157
      %v4286 = vpack.c.bf16 %v4194, %v4158
      %v4287 = vpack.c.bf16 %v4195, %v4159
      %v4288 = vpack.c.bf16 %v4264, %v4228
      %v4289 = vpack.c.bf16 %v4265, %v4229
      %v4290 = vpack.c.bf16 %v4266, %v4230
      %v4291 = vpack.c.bf16 %v4267, %v4231
      %v4292 = vld [vmem:[%s4] ss:$2 sm:$0x3]
      %s4293 = scalar_lea.vmem %s4, 1
      %v4294 = vld [vmem:[%s4293] ss:$2 sm:$0x3]
      %v4295 = vld [vmem:[%s2] sm:$0xff]
      %v4296 = vld [vmem:[%s2 + $0x8] sm:$0xff]
      %v4297 = vld [vmem:[%s2 + $0x10] sm:$0xff]
      %v4298 = vld [vmem:[%s2 + $0x18] sm:$0xff]
      %v4299 = vld [vmem:[%s2 + $0x20] sm:$0xff]
      %v4300 = vld [vmem:[%s2 + $0x28] sm:$0xff]
      %v4301 = vld [vmem:[%s2 + $0x30] sm:$0xff]
      %v4302 = vld [vmem:[%s2 + $0x38] sm:$0xff]
      %v4303 = vld [vmem:[%s2 + $0x40] sm:$0xff]
      %v4304 = vld [vmem:[%s2 + $0x48] sm:$0xff]
      %v4305 = vld [vmem:[%s2 + $0x50] sm:$0xff]
      %v4306 = vld [vmem:[%s2 + $0x58] sm:$0xff]
      %v4307 = vld [vmem:[%s2 + $0x60] sm:$0xff]
      %v4308 = vld [vmem:[%s2 + $0x68] sm:$0xff]
      %v4309 = vld [vmem:[%s2 + $0x70] sm:$0xff]
      %v4310 = vld [vmem:[%s2 + $0x78] sm:$0xff]
      %v4311 = vld [vmem:[%s2 + $0x80] sm:$0xff]
      %v4312 = vld [vmem:[%s2 + $0x88] sm:$0xff]
      %v4313 = vld [vmem:[%s2 + $0x90] sm:$0xff]
      %v4314 = vld [vmem:[%s2 + $0x98] sm:$0xff]
      %v4315 = vld [vmem:[%s2 + $0xa0] sm:$0xff]
      %v4316 = vld [vmem:[%s2 + $0xa8] sm:$0xff]
      %v4317 = vld [vmem:[%s2 + $0xb0] sm:$0xff]
      %v4318 = vld [vmem:[%s2 + $0xb8] sm:$0xff]
      %v4319 = vld [vmem:[%s2 + $0xc0] sm:$0xff]
      %v4320 = vld [vmem:[%s2 + $0xc8] sm:$0xff]
      %v4321 = vld [vmem:[%s2 + $0xd0] sm:$0xff]
      %v4322 = vld [vmem:[%s2 + $0xd8] sm:$0xff]
      %v4323 = vld [vmem:[%s2 + $0xe0] sm:$0xff]
      %v4324 = vld [vmem:[%s2 + $0xe8] sm:$0xff]
      %v4325 = vld [vmem:[%s2 + $0xf0] sm:$0xff]
      %v4326 = vld [vmem:[%s2 + $0xf8] sm:$0xff]
      %v4327 = vld [vmem:[%s2 + $0x100] sm:$0xff]
      %v4328 = vld [vmem:[%s2 + $0x108] sm:$0xff]
      %v4329 = vld [vmem:[%s2 + $0x110] sm:$0xff]
      %v4330 = vld [vmem:[%s2 + $0x118] sm:$0xff]
      %v4331 = vld [vmem:[%s2 + $0x120] sm:$0xff]
      %v4332 = vld [vmem:[%s2 + $0x128] sm:$0xff]
      %v4333 = vld [vmem:[%s2 + $0x130] sm:$0xff]
      %v4334 = vld [vmem:[%s2 + $0x138] sm:$0xff]
      %v4335 = vld [vmem:[%s2 + $0x140] sm:$0xff]
      %v4336 = vld [vmem:[%s2 + $0x148] sm:$0xff]
      %v4337 = vld [vmem:[%s2 + $0x150] sm:$0xff]
      %v4338 = vld [vmem:[%s2 + $0x158] sm:$0xff]
      %v4339 = vld [vmem:[%s2 + $0x160] sm:$0xff]
      %v4340 = vld [vmem:[%s2 + $0x168] sm:$0xff]
      %v4341 = vld [vmem:[%s2 + $0x170] sm:$0xff]
      %v4342 = vld [vmem:[%s2 + $0x178] sm:$0xff]
      %v4343 = vld [vmem:[%s2 + $0x180] sm:$0xff]
      %v4344 = vld [vmem:[%s2 + $0x188] sm:$0xff]
      %v4345 = vld [vmem:[%s2 + $0x190] sm:$0xff]
      %v4346 = vld [vmem:[%s2 + $0x198] sm:$0xff]
      %v4347 = vld [vmem:[%s2 + $0x1a0] sm:$0xff]
      %v4348 = vld [vmem:[%s2 + $0x1a8] sm:$0xff]
      %v4349 = vld [vmem:[%s2 + $0x1b0] sm:$0xff]
      %v4350 = vld [vmem:[%s2 + $0x1b8] sm:$0xff]
      %v4351 = vld [vmem:[%s2 + $0x1c0] sm:$0xff]
      %v4352 = vld [vmem:[%s2 + $0x1c8] sm:$0xff]
      %v4353 = vld [vmem:[%s2 + $0x1d0] sm:$0xff]
      %v4354 = vld [vmem:[%s2 + $0x1d8] sm:$0xff]
      %s4355 = scalar_lea.vmem %s2, 480
      %v4356 = vld [vmem:[%s4355] sm:$0xff]
      %v4357 = vld [vmem:[%s4355 + $0x8] sm:$0xff]
      %v4358 = vld [vmem:[%s4355 + $0x10] sm:$0xff]
      %v4359 = vld [vmem:[%s4355 + $0x18] sm:$0xff]
      %v4360 = vld [vmem:[%s4355 + $0x20] sm:$0xff]
      %v4361 = vld [vmem:[%s4355 + $0x28] sm:$0xff]
      %v4362 = vld [vmem:[%s4355 + $0x30] sm:$0xff]
      %v4363 = vld [vmem:[%s4355 + $0x38] sm:$0xff]
      %v4364 = vld [vmem:[%s4355 + $0x40] sm:$0xff]
      %v4365 = vld [vmem:[%s4355 + $0x48] sm:$0xff]
      %v4366 = vld [vmem:[%s4355 + $0x50] sm:$0xff]
      %v4367 = vld [vmem:[%s4355 + $0x58] sm:$0xff]
      %v4368 = vld [vmem:[%s4355 + $0x60] sm:$0xff]
      %v4369 = vld [vmem:[%s4355 + $0x68] sm:$0xff]
      %v4370 = vld [vmem:[%s4355 + $0x70] sm:$0xff]
      %v4371 = vld [vmem:[%s4355 + $0x78] sm:$0xff]
      %v4372 = vld [vmem:[%s4355 + $0x80] sm:$0xff]
      %v4373 = vld [vmem:[%s4355 + $0x88] sm:$0xff]
      %v4374 = vld [vmem:[%s4355 + $0x90] sm:$0xff]
      %v4375 = vld [vmem:[%s4355 + $0x98] sm:$0xff]
      %v4376 = vld [vmem:[%s4355 + $0xa0] sm:$0xff]
      %v4377 = vld [vmem:[%s4355 + $0xa8] sm:$0xff]
      %v4378 = vld [vmem:[%s4355 + $0xb0] sm:$0xff]
      %v4379 = vld [vmem:[%s4355 + $0xb8] sm:$0xff]
      %v4380 = vld [vmem:[%s4355 + $0xc0] sm:$0xff]
      %v4381 = vld [vmem:[%s4355 + $0xc8] sm:$0xff]
      %v4382 = vld [vmem:[%s4355 + $0xd0] sm:$0xff]
      %v4383 = vld [vmem:[%s4355 + $0xd8] sm:$0xff]
      %v4384 = vld [vmem:[%s4355 + $0xe0] sm:$0xff]
      %v4385 = vld [vmem:[%s4355 + $0xe8] sm:$0xff]
      %v4386 = vld [vmem:[%s4355 + $0xf0] sm:$0xff]
      %v4387 = vld [vmem:[%s4355 + $0xf8] sm:$0xff]
      %v4388 = vld [vmem:[%s4355 + $0x100] sm:$0xff]
      %v4389 = vld [vmem:[%s4355 + $0x108] sm:$0xff]
      %v4390 = vld [vmem:[%s4355 + $0x110] sm:$0xff]
      %v4391 = vld [vmem:[%s4355 + $0x118] sm:$0xff]
      %v4392 = vld [vmem:[%s4355 + $0x120] sm:$0xff]
      %v4393 = vld [vmem:[%s4355 + $0x128] sm:$0xff]
      %v4394 = vld [vmem:[%s4355 + $0x130] sm:$0xff]
      %v4395 = vld [vmem:[%s4355 + $0x138] sm:$0xff]
      %v4396 = vld [vmem:[%s4355 + $0x140] sm:$0xff]
      %v4397 = vld [vmem:[%s4355 + $0x148] sm:$0xff]
      %v4398 = vld [vmem:[%s4355 + $0x150] sm:$0xff]
      %v4399 = vld [vmem:[%s4355 + $0x158] sm:$0xff]
      %v4400 = vld [vmem:[%s4355 + $0x160] sm:$0xff]
      %v4401 = vld [vmem:[%s4355 + $0x168] sm:$0xff]
      %v4402 = vld [vmem:[%s4355 + $0x170] sm:$0xff]
      %v4403 = vld [vmem:[%s4355 + $0x178] sm:$0xff]
      %v4404 = vld [vmem:[%s4355 + $0x180] sm:$0xff]
      %v4405 = vld [vmem:[%s4355 + $0x188] sm:$0xff]
      %v4406 = vld [vmem:[%s4355 + $0x190] sm:$0xff]
      %v4407 = vld [vmem:[%s4355 + $0x198] sm:$0xff]
      %v4408 = vld [vmem:[%s4355 + $0x1a0] sm:$0xff]
      %v4409 = vld [vmem:[%s4355 + $0x1a8] sm:$0xff]
      %v4410 = vld [vmem:[%s4355 + $0x1b0] sm:$0xff]
      %v4411 = vld [vmem:[%s4355 + $0x1b8] sm:$0xff]
      %v4412 = vld [vmem:[%s4355 + $0x1c0] sm:$0xff]
      %v4413 = vld [vmem:[%s4355 + $0x1c8] sm:$0xff]
      %v4414 = vld [vmem:[%s4355 + $0x1d0] sm:$0xff]
      %v4415 = vld [vmem:[%s4355 + $0x1d8] sm:$0xff]
      %v4476 = vunpack.c.l.b16 %v4356
      %v4477 = vunpack.c.h.b16 %v4356
      %v4478 = vunpack.c.l.b16 %v4357
      %v4479 = vunpack.c.h.b16 %v4357
      %v4480 = vunpack.c.l.b16 %v4358
      %v4481 = vunpack.c.h.b16 %v4358
      %v4482 = vunpack.c.l.b16 %v4359
      %v4483 = vunpack.c.h.b16 %v4359
      %v4484 = vunpack.c.l.b16 %v4360
      %v4485 = vunpack.c.h.b16 %v4360
      %v4486 = vunpack.c.l.b16 %v4361
      %v4487 = vunpack.c.h.b16 %v4361
      %v4488 = vunpack.c.l.b16 %v4362
      %v4489 = vunpack.c.h.b16 %v4362
      %v4490 = vunpack.c.l.b16 %v4363
      %v4491 = vunpack.c.h.b16 %v4363
      %v4492 = vunpack.c.l.b16 %v4364
      %v4493 = vunpack.c.h.b16 %v4364
      %v4494 = vunpack.c.l.b16 %v4365
      %v4495 = vunpack.c.h.b16 %v4365
      %v4496 = vunpack.c.l.b16 %v4366
      %v4497 = vunpack.c.h.b16 %v4366
      %v4498 = vunpack.c.l.b16 %v4367
      %v4499 = vunpack.c.h.b16 %v4367
      %v4500 = vunpack.c.l.b16 %v4368
      %v4501 = vunpack.c.h.b16 %v4368
      %v4502 = vunpack.c.l.b16 %v4369
      %v4503 = vunpack.c.h.b16 %v4369
      %v4504 = vunpack.c.l.b16 %v4370
      %v4505 = vunpack.c.h.b16 %v4370
      %v4506 = vunpack.c.l.b16 %v4371
      %v4507 = vunpack.c.h.b16 %v4371
      %v4508 = vunpack.c.l.b16 %v4372
      %v4509 = vunpack.c.h.b16 %v4372
      %v4510 = vunpack.c.l.b16 %v4373
      %v4511 = vunpack.c.h.b16 %v4373
      %v4512 = vunpack.c.l.b16 %v4374
      %v4513 = vunpack.c.h.b16 %v4374
      %v4514 = vunpack.c.l.b16 %v4375
      %v4515 = vunpack.c.h.b16 %v4375
      %v4516 = vunpack.c.l.b16 %v4376
      %v4517 = vunpack.c.h.b16 %v4376
      %v4518 = vunpack.c.l.b16 %v4377
      %v4519 = vunpack.c.h.b16 %v4377
      %v4520 = vunpack.c.l.b16 %v4378
      %v4521 = vunpack.c.h.b16 %v4378
      %v4522 = vunpack.c.l.b16 %v4379
      %v4523 = vunpack.c.h.b16 %v4379
      %v4524 = vunpack.c.l.b16 %v4380
      %v4525 = vunpack.c.h.b16 %v4380
      %v4526 = vunpack.c.l.b16 %v4381
      %v4527 = vunpack.c.h.b16 %v4381
      %v4528 = vunpack.c.l.b16 %v4382
      %v4529 = vunpack.c.h.b16 %v4382
      %v4530 = vunpack.c.l.b16 %v4383
      %v4531 = vunpack.c.h.b16 %v4383
      %v4532 = vunpack.c.l.b16 %v4384
      %v4533 = vunpack.c.h.b16 %v4384
      %v4534 = vunpack.c.l.b16 %v4385
      %v4535 = vunpack.c.h.b16 %v4385
      %v4536 = vunpack.c.l.b16 %v4386
      %v4537 = vunpack.c.h.b16 %v4386
      %v4538 = vunpack.c.l.b16 %v4387
      %v4539 = vunpack.c.h.b16 %v4387
      %v4540 = vunpack.c.l.b16 %v4388
      %v4541 = vunpack.c.h.b16 %v4388
      %v4542 = vunpack.c.l.b16 %v4389
      %v4543 = vunpack.c.h.b16 %v4389
      %v4544 = vunpack.c.l.b16 %v4390
      %v4545 = vunpack.c.h.b16 %v4390
      %v4546 = vunpack.c.l.b16 %v4391
      %v4547 = vunpack.c.h.b16 %v4391
      %v4548 = vunpack.c.l.b16 %v4392
      %v4549 = vunpack.c.h.b16 %v4392
      %v4550 = vunpack.c.l.b16 %v4393
      %v4551 = vunpack.c.h.b16 %v4393
      %v4552 = vunpack.c.l.b16 %v4394
      %v4553 = vunpack.c.h.b16 %v4394
      %v4554 = vunpack.c.l.b16 %v4395
      %v4555 = vunpack.c.h.b16 %v4395
      %v4556 = vunpack.c.l.b16 %v4396
      %v4557 = vunpack.c.h.b16 %v4396
      %v4558 = vunpack.c.l.b16 %v4397
      %v4559 = vunpack.c.h.b16 %v4397
      %v4560 = vunpack.c.l.b16 %v4398
      %v4561 = vunpack.c.h.b16 %v4398
      %v4562 = vunpack.c.l.b16 %v4399
      %v4563 = vunpack.c.h.b16 %v4399
      %v4564 = vunpack.c.l.b16 %v4400
      %v4565 = vunpack.c.h.b16 %v4400
      %v4566 = vunpack.c.l.b16 %v4401
      %v4567 = vunpack.c.h.b16 %v4401
      %v4568 = vunpack.c.l.b16 %v4402
      %v4569 = vunpack.c.h.b16 %v4402
      %v4570 = vunpack.c.l.b16 %v4403
      %v4571 = vunpack.c.h.b16 %v4403
      %v4572 = vunpack.c.l.b16 %v4404
      %v4573 = vunpack.c.h.b16 %v4404
      %v4574 = vunpack.c.l.b16 %v4405
      %v4575 = vunpack.c.h.b16 %v4405
      %v4576 = vunpack.c.l.b16 %v4406
      %v4577 = vunpack.c.h.b16 %v4406
      %v4578 = vunpack.c.l.b16 %v4407
      %v4579 = vunpack.c.h.b16 %v4407
      %v4580 = vunpack.c.l.b16 %v4408
      %v4581 = vunpack.c.h.b16 %v4408
      %v4582 = vunpack.c.l.b16 %v4409
      %v4583 = vunpack.c.h.b16 %v4409
      %v4584 = vunpack.c.l.b16 %v4410
      %v4585 = vunpack.c.h.b16 %v4410
      %v4586 = vunpack.c.l.b16 %v4411
      %v4587 = vunpack.c.h.b16 %v4411
      %v4588 = vunpack.c.l.b16 %v4412
      %v4589 = vunpack.c.h.b16 %v4412
      %v4590 = vunpack.c.l.b16 %v4413
      %v4591 = vunpack.c.h.b16 %v4413
      %v4592 = vunpack.c.l.b16 %v4414
      %v4593 = vunpack.c.h.b16 %v4414
      %v4594 = vunpack.c.l.b16 %v4415
      %v4595 = vunpack.c.h.b16 %v4415
      %v4596 = vpack.c.b16 %v4478, %v4476
      %v4597 = vpack.c.b16 %v4479, %v4477
      %v4598 = vpack.c.b16 %v4482, %v4480
      %v4599 = vpack.c.b16 %v4483, %v4481
      %v4600 = vpack.c.b16 %v4486, %v4484
      %v4601 = vpack.c.b16 %v4487, %v4485
      %v4602 = vpack.c.b16 %v4490, %v4488
      %v4603 = vpack.c.b16 %v4491, %v4489
      %v4604 = vpack.c.b16 %v4494, %v4492
      %v4605 = vpack.c.b16 %v4495, %v4493
      %v4606 = vpack.c.b16 %v4498, %v4496
      %v4607 = vpack.c.b16 %v4499, %v4497
      %v4608 = vpack.c.b16 %v4502, %v4500
      %v4609 = vpack.c.b16 %v4503, %v4501
      %v4610 = vpack.c.b16 %v4506, %v4504
      %v4611 = vpack.c.b16 %v4507, %v4505
      %v4612 = vpack.c.b16 %v4510, %v4508
      %v4613 = vpack.c.b16 %v4511, %v4509
      %v4614 = vpack.c.b16 %v4514, %v4512
      %v4615 = vpack.c.b16 %v4515, %v4513
      %v4616 = vpack.c.b16 %v4518, %v4516
      %v4617 = vpack.c.b16 %v4519, %v4517
      %v4618 = vpack.c.b16 %v4522, %v4520
      %v4619 = vpack.c.b16 %v4523, %v4521
      %v4620 = vpack.c.b16 %v4526, %v4524
      %v4621 = vpack.c.b16 %v4527, %v4525
      %v4622 = vpack.c.b16 %v4530, %v4528
      %v4623 = vpack.c.b16 %v4531, %v4529
      %v4624 = vpack.c.b16 %v4534, %v4532
      %v4625 = vpack.c.b16 %v4535, %v4533
      %v4626 = vpack.c.b16 %v4538, %v4536
      %v4627 = vpack.c.b16 %v4539, %v4537
      %v4628 = vpack.c.b16 %v4542, %v4540
      %v4629 = vpack.c.b16 %v4543, %v4541
      %v4630 = vpack.c.b16 %v4546, %v4544
      %v4631 = vpack.c.b16 %v4547, %v4545
      %v4632 = vpack.c.b16 %v4550, %v4548
      %v4633 = vpack.c.b16 %v4551, %v4549
      %v4634 = vpack.c.b16 %v4554, %v4552
      %v4635 = vpack.c.b16 %v4555, %v4553
      %v4636 = vpack.c.b16 %v4558, %v4556
      %v4637 = vpack.c.b16 %v4559, %v4557
      %v4638 = vpack.c.b16 %v4562, %v4560
      %v4639 = vpack.c.b16 %v4563, %v4561
      %v4640 = vpack.c.b16 %v4566, %v4564
      %v4641 = vpack.c.b16 %v4567, %v4565
      %v4642 = vpack.c.b16 %v4570, %v4568
      %v4643 = vpack.c.b16 %v4571, %v4569
      %v4644 = vpack.c.b16 %v4574, %v4572
      %v4645 = vpack.c.b16 %v4575, %v4573
      %v4646 = vpack.c.b16 %v4578, %v4576
      %v4647 = vpack.c.b16 %v4579, %v4577
      %v4648 = vpack.c.b16 %v4582, %v4580
      %v4649 = vpack.c.b16 %v4583, %v4581
      %v4650 = vpack.c.b16 %v4586, %v4584
      %v4651 = vpack.c.b16 %v4587, %v4585
      %v4652 = vpack.c.b16 %v4590, %v4588
      %v4653 = vpack.c.b16 %v4591, %v4589
      %v4654 = vpack.c.b16 %v4594, %v4592
      %v4655 = vpack.c.b16 %v4595, %v4593
      %vm4716 = vcmask 785408
      %v4718 = vsel %vm4716, %v4119, 0
      %v4721 = vsel %vm4716, %v4123, 0
      %4723 = vmatprep.subr.bf16.mxu0 %v4611
      %4724 = vmatpush1.bf16.msra.mxu0 %v4610
      %4725 = vmatprep.subr.bf16.mxu0 %v4609
      %4726 = vmatpush1.bf16.msra.mxu0 %v4608
      %4727 = vmatprep.subr.bf16.mxu0 %v4607
      %4728 = vmatpush1.bf16.msra.mxu0 %v4606
      %4729 = vmatprep.subr.bf16.mxu0 %v4605
      %4730 = vmatpush1.bf16.msra.mxu0 %v4604
      %4731 = vmatprep.subr.bf16.mxu0 %v4603
      %4732 = vmatpush1.bf16.msra.mxu0 %v4602
      %4733 = vmatprep.subr.bf16.mxu0 %v4601
      %4734 = vmatpush1.bf16.msra.mxu0 %v4600
      %4735 = vmatprep.subr.bf16.mxu0 %v4599
      %4736 = vmatpush1.bf16.msra.mxu0 %v4598
      %4737 = vmatprep.subr.bf16.mxu0 %v4597
      %4738 = vmatpush1.bf16.msra.mxu0 %v4596
      %4739 = vmatprep.subr.bf16.mxu0 %v4627
      %4740 = vmatpush2.bf16.msra.mxu0 %v4626
      %4741 = vmatprep.subr.bf16.mxu0 %v4625
      %4742 = vmatpush2.bf16.msra.mxu0 %v4624
      %4743 = vmatprep.subr.bf16.mxu0 %v4623
      %4744 = vmatpush2.bf16.msra.mxu0 %v4622
      %4745 = vmatprep.subr.bf16.mxu0 %v4621
      %4746 = vmatpush2.bf16.msra.mxu0 %v4620
      %4747 = vmatprep.subr.bf16.mxu0 %v4619
      %4748 = vmatpush2.bf16.msra.mxu0 %v4618
      %4749 = vmatprep.subr.bf16.mxu0 %v4617
      %4750 = vmatpush2.bf16.msra.mxu0 %v4616
      %4751 = vmatprep.subr.bf16.mxu0 %v4615
      %4752 = vmatpush2.bf16.msra.mxu0 %v4614
      %4753 = vmatprep.subr.bf16.mxu0 %v4613
      %4754 = vmatpush2.bf16.msra.mxu0 %v4612
      %4755 = vmatprep.mubr.bf16.mxu0 %v4117
      %4756 = vmatmul.mubr.bf16.gmra.mxu0 %v4116
      %v4757 = vpop.f32.mrf.mxu0
      %v4758 = vadd.f32 0.0, %v4757
      %v4759 = vpop.f32.mrf.mxu0
      %v4760 = vadd.f32 0.0, %v4759
      %v4761 = vpop.f32.mrf.mxu0
      %v4762 = vadd.f32 0.0, %v4761
      %v4763 = vpop.f32.mrf.mxu0
      %v4764 = vadd.f32 0.0, %v4763
      %4765 = vmatprep.mubr.bf16.mxu0 %v4121
      %4766 = vmatmul.mubr.bf16.gmra.mxu0 %v4120
      %v4767 = vpop.f32.mrf.mxu0
      %v4768 = vadd.f32 0.0, %v4767
      %v4769 = vpop.f32.mrf.mxu0
      %v4770 = vadd.f32 0.0, %v4769
      %v4771 = vpop.f32.mrf.mxu0
      %v4772 = vadd.f32 0.0, %v4771
      %v4773 = vpop.f32.mrf.mxu0
      %v4774 = vadd.f32 0.0, %v4773
      %4775 = vdwg.mxu0
      %4776 = vmatprep.subr.bf16.mxu0 %v4643
      %4777 = vmatpush1.bf16.msra.mxu0 %v4642
      %4778 = vmatprep.subr.bf16.mxu0 %v4641
      %4779 = vmatpush1.bf16.msra.mxu0 %v4640
      %4780 = vmatprep.subr.bf16.mxu0 %v4639
      %4781 = vmatpush1.bf16.msra.mxu0 %v4638
      %4782 = vmatprep.subr.bf16.mxu0 %v4637
      %4783 = vmatpush1.bf16.msra.mxu0 %v4636
      %4784 = vmatprep.subr.bf16.mxu0 %v4635
      %4785 = vmatpush1.bf16.msra.mxu0 %v4634
      %4786 = vmatprep.subr.bf16.mxu0 %v4633
      %4787 = vmatpush1.bf16.msra.mxu0 %v4632
      %4788 = vmatprep.subr.bf16.mxu0 %v4631
      %4789 = vmatpush1.bf16.msra.mxu0 %v4630
      %4790 = vmatprep.subr.bf16.mxu0 %v4629
      %4791 = vmatpush1.bf16.msra.mxu0 %v4628
      %4792 = vmatprep.subr.bf16.mxu0 0
      %4793 = vmatpush2.bf16.msra.mxu0 0
      %4794 = vmatprep.subr.bf16.mxu0 0
      %4795 = vmatpush2.bf16.msra.mxu0 0
      %4796 = vmatprep.subr.bf16.mxu0 %v4655
      %4797 = vmatpush2.bf16.msra.mxu0 %v4654
      %4798 = vmatprep.subr.bf16.mxu0 %v4653
      %4799 = vmatpush2.bf16.msra.mxu0 %v4652
      %4800 = vmatprep.subr.bf16.mxu0 %v4651
      %4801 = vmatpush2.bf16.msra.mxu0 %v4650
      %4802 = vmatprep.subr.bf16.mxu0 %v4649
      %4803 = vmatpush2.bf16.msra.mxu0 %v4648
      %4804 = vmatprep.subr.bf16.mxu0 %v4647
      %4805 = vmatpush2.bf16.msra.mxu0 %v4646
      %4806 = vmatprep.subr.bf16.mxu0 %v4645
      %4807 = vmatpush2.bf16.msra.mxu0 %v4644
      %4808 = vmatprep.mubr.bf16.mxu0 %v4718
      %4809 = vmatmul.mubr.bf16.gmra.mxu0 %v4118
      %v4810 = vpop.f32.mrf.mxu0
      %v4811 = vadd.f32 %v4758, %v4810
      %v4812 = vpop.f32.mrf.mxu0
      %v4813 = vadd.f32 %v4760, %v4812
      %v4814 = vpop.f32.mrf.mxu0
      %v4815 = vadd.f32 %v4762, %v4814
      %v4816 = vpop.f32.mrf.mxu0
      %v4817 = vadd.f32 %v4764, %v4816
      %4818 = vmatprep.mubr.bf16.mxu0 %v4721
      %4819 = vmatmul.mubr.bf16.gmra.mxu0 %v4122
      %v4820 = vpop.f32.mrf.mxu0
      %v4821 = vadd.f32 %v4768, %v4820
      %v4822 = vpop.f32.mrf.mxu0
      %v4823 = vadd.f32 %v4770, %v4822
      %v4824 = vpop.f32.mrf.mxu0
      %v4825 = vadd.f32 %v4772, %v4824
      %v4826 = vpop.f32.mrf.mxu0
      %v4827 = vadd.f32 %v4774, %v4826
      %4828 = vdwg.mxu0
      %v4889 = vunpack.c.l.b16 %v4295
      %v4890 = vunpack.c.h.b16 %v4295
      %v4891 = vunpack.c.l.b16 %v4296
      %v4892 = vunpack.c.h.b16 %v4296
      %v4893 = vunpack.c.l.b16 %v4297
      %v4894 = vunpack.c.h.b16 %v4297
      %v4895 = vunpack.c.l.b16 %v4298
      %v4896 = vunpack.c.h.b16 %v4298
      %v4897 = vunpack.c.l.b16 %v4299
      %v4898 = vunpack.c.h.b16 %v4299
      %v4899 = vunpack.c.l.b16 %v4300
      %v4900 = vunpack.c.h.b16 %v4300
      %v4901 = vunpack.c.l.b16 %v4301
      %v4902 = vunpack.c.h.b16 %v4301
      %v4903 = vunpack.c.l.b16 %v4302
      %v4904 = vunpack.c.h.b16 %v4302
      %v4905 = vunpack.c.l.b16 %v4303
      %v4906 = vunpack.c.h.b16 %v4303
      %v4907 = vunpack.c.l.b16 %v4304
      %v4908 = vunpack.c.h.b16 %v4304
      %v4909 = vunpack.c.l.b16 %v4305
      %v4910 = vunpack.c.h.b16 %v4305
      %v4911 = vunpack.c.l.b16 %v4306
      %v4912 = vunpack.c.h.b16 %v4306
      %v4913 = vunpack.c.l.b16 %v4307
      %v4914 = vunpack.c.h.b16 %v4307
      %v4915 = vunpack.c.l.b16 %v4308
      %v4916 = vunpack.c.h.b16 %v4308
      %v4917 = vunpack.c.l.b16 %v4309
      %v4918 = vunpack.c.h.b16 %v4309
      %v4919 = vunpack.c.l.b16 %v4310
      %v4920 = vunpack.c.h.b16 %v4310
      %v4921 = vunpack.c.l.b16 %v4311
      %v4922 = vunpack.c.h.b16 %v4311
      %v4923 = vunpack.c.l.b16 %v4312
      %v4924 = vunpack.c.h.b16 %v4312
      %v4925 = vunpack.c.l.b16 %v4313
      %v4926 = vunpack.c.h.b16 %v4313
      %v4927 = vunpack.c.l.b16 %v4314
      %v4928 = vunpack.c.h.b16 %v4314
      %v4929 = vunpack.c.l.b16 %v4315
      %v4930 = vunpack.c.h.b16 %v4315
      %v4931 = vunpack.c.l.b16 %v4316
      %v4932 = vunpack.c.h.b16 %v4316
      %v4933 = vunpack.c.l.b16 %v4317
      %v4934 = vunpack.c.h.b16 %v4317
      %v4935 = vunpack.c.l.b16 %v4318
      %v4936 = vunpack.c.h.b16 %v4318
      %v4937 = vunpack.c.l.b16 %v4319
      %v4938 = vunpack.c.h.b16 %v4319
      %v4939 = vunpack.c.l.b16 %v4320
      %v4940 = vunpack.c.h.b16 %v4320
      %v4941 = vunpack.c.l.b16 %v4321
      %v4942 = vunpack.c.h.b16 %v4321
      %v4943 = vunpack.c.l.b16 %v4322
      %v4944 = vunpack.c.h.b16 %v4322
      %v4945 = vunpack.c.l.b16 %v4323
      %v4946 = vunpack.c.h.b16 %v4323
      %v4947 = vunpack.c.l.b16 %v4324
      %v4948 = vunpack.c.h.b16 %v4324
      %v4949 = vunpack.c.l.b16 %v4325
      %v4950 = vunpack.c.h.b16 %v4325
      %v4951 = vunpack.c.l.b16 %v4326
      %v4952 = vunpack.c.h.b16 %v4326
      %v4953 = vunpack.c.l.b16 %v4327
      %v4954 = vunpack.c.h.b16 %v4327
      %v4955 = vunpack.c.l.b16 %v4328
      %v4956 = vunpack.c.h.b16 %v4328
      %v4957 = vunpack.c.l.b16 %v4329
      %v4958 = vunpack.c.h.b16 %v4329
      %v4959 = vunpack.c.l.b16 %v4330
      %v4960 = vunpack.c.h.b16 %v4330
      %v4961 = vunpack.c.l.b16 %v4331
      %v4962 = vunpack.c.h.b16 %v4331
      %v4963 = vunpack.c.l.b16 %v4332
      %v4964 = vunpack.c.h.b16 %v4332
      %v4965 = vunpack.c.l.b16 %v4333
      %v4966 = vunpack.c.h.b16 %v4333
      %v4967 = vunpack.c.l.b16 %v4334
      %v4968 = vunpack.c.h.b16 %v4334
      %v4969 = vunpack.c.l.b16 %v4335
      %v4970 = vunpack.c.h.b16 %v4335
      %v4971 = vunpack.c.l.b16 %v4336
      %v4972 = vunpack.c.h.b16 %v4336
      %v4973 = vunpack.c.l.b16 %v4337
      %v4974 = vunpack.c.h.b16 %v4337
      %v4975 = vunpack.c.l.b16 %v4338
      %v4976 = vunpack.c.h.b16 %v4338
      %v4977 = vunpack.c.l.b16 %v4339
      %v4978 = vunpack.c.h.b16 %v4339
      %v4979 = vunpack.c.l.b16 %v4340
      %v4980 = vunpack.c.h.b16 %v4340
      %v4981 = vunpack.c.l.b16 %v4341
      %v4982 = vunpack.c.h.b16 %v4341
      %v4983 = vunpack.c.l.b16 %v4342
      %v4984 = vunpack.c.h.b16 %v4342
      %v4985 = vunpack.c.l.b16 %v4343
      %v4986 = vunpack.c.h.b16 %v4343
      %v4987 = vunpack.c.l.b16 %v4344
      %v4988 = vunpack.c.h.b16 %v4344
      %v4989 = vunpack.c.l.b16 %v4345
      %v4990 = vunpack.c.h.b16 %v4345
      %v4991 = vunpack.c.l.b16 %v4346
      %v4992 = vunpack.c.h.b16 %v4346
      %v4993 = vunpack.c.l.b16 %v4347
      %v4994 = vunpack.c.h.b16 %v4347
      %v4995 = vunpack.c.l.b16 %v4348
      %v4996 = vunpack.c.h.b16 %v4348
      %v4997 = vunpack.c.l.b16 %v4349
      %v4998 = vunpack.c.h.b16 %v4349
      %v4999 = vunpack.c.l.b16 %v4350
      %v5000 = vunpack.c.h.b16 %v4350
      %v5001 = vunpack.c.l.b16 %v4351
      %v5002 = vunpack.c.h.b16 %v4351
      %v5003 = vunpack.c.l.b16 %v4352
      %v5004 = vunpack.c.h.b16 %v4352
      %v5005 = vunpack.c.l.b16 %v4353
      %v5006 = vunpack.c.h.b16 %v4353
      %v5007 = vunpack.c.l.b16 %v4354
      %v5008 = vunpack.c.h.b16 %v4354
      %v5009 = vpack.c.b16 %v4891, %v4889
      %v5010 = vpack.c.b16 %v4892, %v4890
      %v5011 = vpack.c.b16 %v4895, %v4893
      %v5012 = vpack.c.b16 %v4896, %v4894
      %v5013 = vpack.c.b16 %v4899, %v4897
      %v5014 = vpack.c.b16 %v4900, %v4898
      %v5015 = vpack.c.b16 %v4903, %v4901
      %v5016 = vpack.c.b16 %v4904, %v4902
      %v5017 = vpack.c.b16 %v4907, %v4905
      %v5018 = vpack.c.b16 %v4908, %v4906
      %v5019 = vpack.c.b16 %v4911, %v4909
      %v5020 = vpack.c.b16 %v4912, %v4910
      %v5021 = vpack.c.b16 %v4915, %v4913
      %v5022 = vpack.c.b16 %v4916, %v4914
      %v5023 = vpack.c.b16 %v4919, %v4917
      %v5024 = vpack.c.b16 %v4920, %v4918
      %v5025 = vpack.c.b16 %v4923, %v4921
      %v5026 = vpack.c.b16 %v4924, %v4922
      %v5027 = vpack.c.b16 %v4927, %v4925
      %v5028 = vpack.c.b16 %v4928, %v4926
      %v5029 = vpack.c.b16 %v4931, %v4929
      %v5030 = vpack.c.b16 %v4932, %v4930
      %v5031 = vpack.c.b16 %v4935, %v4933
      %v5032 = vpack.c.b16 %v4936, %v4934
      %v5033 = vpack.c.b16 %v4939, %v4937
      %v5034 = vpack.c.b16 %v4940, %v4938
      %v5035 = vpack.c.b16 %v4943, %v4941
      %v5036 = vpack.c.b16 %v4944, %v4942
      %v5037 = vpack.c.b16 %v4947, %v4945
      %v5038 = vpack.c.b16 %v4948, %v4946
      %v5039 = vpack.c.b16 %v4951, %v4949
      %v5040 = vpack.c.b16 %v4952, %v4950
      %v5041 = vpack.c.b16 %v4955, %v4953
      %v5042 = vpack.c.b16 %v4956, %v4954
      %v5043 = vpack.c.b16 %v4959, %v4957
      %v5044 = vpack.c.b16 %v4960, %v4958
      %v5045 = vpack.c.b16 %v4963, %v4961
      %v5046 = vpack.c.b16 %v4964, %v4962
      %v5047 = vpack.c.b16 %v4967, %v4965
      %v5048 = vpack.c.b16 %v4968, %v4966
      %v5049 = vpack.c.b16 %v4971, %v4969
      %v5050 = vpack.c.b16 %v4972, %v4970
      %v5051 = vpack.c.b16 %v4975, %v4973
      %v5052 = vpack.c.b16 %v4976, %v4974
      %v5053 = vpack.c.b16 %v4979, %v4977
      %v5054 = vpack.c.b16 %v4980, %v4978
      %v5055 = vpack.c.b16 %v4983, %v4981
      %v5056 = vpack.c.b16 %v4984, %v4982
      %v5057 = vpack.c.b16 %v4987, %v4985
      %v5058 = vpack.c.b16 %v4988, %v4986
      %v5059 = vpack.c.b16 %v4991, %v4989
      %v5060 = vpack.c.b16 %v4992, %v4990
      %v5061 = vpack.c.b16 %v4995, %v4993
      %v5062 = vpack.c.b16 %v4996, %v4994
      %v5063 = vpack.c.b16 %v4999, %v4997
      %v5064 = vpack.c.b16 %v5000, %v4998
      %v5065 = vpack.c.b16 %v5003, %v5001
      %v5066 = vpack.c.b16 %v5004, %v5002
      %v5067 = vpack.c.b16 %v5007, %v5005
      %v5068 = vpack.c.b16 %v5008, %v5006
      %v5130 = vsel %vm4716, %v3889, 0
      %v5133 = vsel %vm4716, %v3893, 0
      %5135 = vmatprep.subr.bf16.mxu0 %v5024
      %5136 = vmatpush1.bf16.msra.mxu0 %v5023
      %5137 = vmatprep.subr.bf16.mxu0 %v5022
      %5138 = vmatpush1.bf16.msra.mxu0 %v5021
      %5139 = vmatprep.subr.bf16.mxu0 %v5020
      %5140 = vmatpush1.bf16.msra.mxu0 %v5019
      %5141 = vmatprep.subr.bf16.mxu0 %v5018
      %5142 = vmatpush1.bf16.msra.mxu0 %v5017
      %5143 = vmatprep.subr.bf16.mxu0 %v5016
      %5144 = vmatpush1.bf16.msra.mxu0 %v5015
      %5145 = vmatprep.subr.bf16.mxu0 %v5014
      %5146 = vmatpush1.bf16.msra.mxu0 %v5013
      %5147 = vmatprep.subr.bf16.mxu0 %v5012
      %5148 = vmatpush1.bf16.msra.mxu0 %v5011
      %5149 = vmatprep.subr.bf16.mxu0 %v5010
      %5150 = vmatpush1.bf16.msra.mxu0 %v5009
      %5151 = vmatprep.subr.bf16.mxu0 %v5040
      %5152 = vmatpush2.bf16.msra.mxu0 %v5039
      %5153 = vmatprep.subr.bf16.mxu0 %v5038
      %5154 = vmatpush2.bf16.msra.mxu0 %v5037
      %5155 = vmatprep.subr.bf16.mxu0 %v5036
      %5156 = vmatpush2.bf16.msra.mxu0 %v5035
      %5157 = vmatprep.subr.bf16.mxu0 %v5034
      %5158 = vmatpush2.bf16.msra.mxu0 %v5033
      %5159 = vmatprep.subr.bf16.mxu0 %v5032
      %5160 = vmatpush2.bf16.msra.mxu0 %v5031
      %5161 = vmatprep.subr.bf16.mxu0 %v5030
      %5162 = vmatpush2.bf16.msra.mxu0 %v5029
      %5163 = vmatprep.subr.bf16.mxu0 %v5028
      %5164 = vmatpush2.bf16.msra.mxu0 %v5027
      %5165 = vmatprep.subr.bf16.mxu0 %v5026
      %5166 = vmatpush2.bf16.msra.mxu0 %v5025
      %5167 = vmatprep.mubr.bf16.mxu0 %v3887
      %5168 = vmatmul.mubr.bf16.gmra.mxu0 %v3886
      %v5169 = vpop.f32.mrf.mxu0
      %v5170 = vadd.f32 %v4811, %v5169
      %v5171 = vpop.f32.mrf.mxu0
      %v5172 = vadd.f32 %v4813, %v5171
      %v5173 = vpop.f32.mrf.mxu0
      %v5174 = vadd.f32 %v4815, %v5173
      %v5175 = vpop.f32.mrf.mxu0
      %v5176 = vadd.f32 %v4817, %v5175
      %5177 = vmatprep.mubr.bf16.mxu0 %v3891
      %5178 = vmatmul.mubr.bf16.gmra.mxu0 %v3890
      %v5179 = vpop.f32.mrf.mxu0
      %v5180 = vadd.f32 %v4821, %v5179
      %v5181 = vpop.f32.mrf.mxu0
      %v5182 = vadd.f32 %v4823, %v5181
      %v5183 = vpop.f32.mrf.mxu0
      %v5184 = vadd.f32 %v4825, %v5183
      %v5185 = vpop.f32.mrf.mxu0
      %v5186 = vadd.f32 %v4827, %v5185
      %5187 = vdwg.mxu0
      %5188 = vmatprep.subr.bf16.mxu0 %v5056
      %5189 = vmatpush1.bf16.msra.mxu0 %v5055
      %5190 = vmatprep.subr.bf16.mxu0 %v5054
      %5191 = vmatpush1.bf16.msra.mxu0 %v5053
      %5192 = vmatprep.subr.bf16.mxu0 %v5052
      %5193 = vmatpush1.bf16.msra.mxu0 %v5051
      %5194 = vmatprep.subr.bf16.mxu0 %v5050
      %5195 = vmatpush1.bf16.msra.mxu0 %v5049
      %5196 = vmatprep.subr.bf16.mxu0 %v5048
      %5197 = vmatpush1.bf16.msra.mxu0 %v5047
      %5198 = vmatprep.subr.bf16.mxu0 %v5046
      %5199 = vmatpush1.bf16.msra.mxu0 %v5045
      %5200 = vmatprep.subr.bf16.mxu0 %v5044
      %5201 = vmatpush1.bf16.msra.mxu0 %v5043
      %5202 = vmatprep.subr.bf16.mxu0 %v5042
      %5203 = vmatpush1.bf16.msra.mxu0 %v5041
      %5204 = vmatprep.subr.bf16.mxu0 0
      %5205 = vmatpush2.bf16.msra.mxu0 0
      %5206 = vmatprep.subr.bf16.mxu0 0
      %5207 = vmatpush2.bf16.msra.mxu0 0
      %5208 = vmatprep.subr.bf16.mxu0 %v5068
      %5209 = vmatpush2.bf16.msra.mxu0 %v5067
      %5210 = vmatprep.subr.bf16.mxu0 %v5066
      %5211 = vmatpush2.bf16.msra.mxu0 %v5065
      %5212 = vmatprep.subr.bf16.mxu0 %v5064
      %5213 = vmatpush2.bf16.msra.mxu0 %v5063
      %5214 = vmatprep.subr.bf16.mxu0 %v5062
      %5215 = vmatpush2.bf16.msra.mxu0 %v5061
      %5216 = vmatprep.subr.bf16.mxu0 %v5060
      %5217 = vmatpush2.bf16.msra.mxu0 %v5059
      %5218 = vmatprep.subr.bf16.mxu0 %v5058
      %5219 = vmatpush2.bf16.msra.mxu0 %v5057
      %5220 = vmatprep.mubr.bf16.mxu0 %v5130
      %5221 = vmatmul.mubr.bf16.gmra.mxu0 %v3888
      %v5222 = vpop.f32.mrf.mxu0
      %v5223 = vadd.f32 %v5170, %v5222
      %v5224 = vpop.f32.mrf.mxu0
      %v5225 = vadd.f32 %v5172, %v5224
      %v5226 = vpop.f32.mrf.mxu0
      %v5227 = vadd.f32 %v5174, %v5226
      %v5228 = vpop.f32.mrf.mxu0
      %v5229 = vadd.f32 %v5176, %v5228
      %5230 = vmatprep.mubr.bf16.mxu0 %v5133
      %5231 = vmatmul.mubr.bf16.gmra.mxu0 %v3892
      %v5232 = vpop.f32.mrf.mxu0
      %v5233 = vadd.f32 %v5180, %v5232
      %v5234 = vpop.f32.mrf.mxu0
      %v5235 = vadd.f32 %v5182, %v5234
      %v5236 = vpop.f32.mrf.mxu0
      %v5237 = vadd.f32 %v5184, %v5236
      %v5238 = vpop.f32.mrf.mxu0
      %v5239 = vadd.f32 %v5186, %v5238
      %5240 = vdwg.mxu0
      %s5241 = scalar_lea.vmem %s2, 960
      %v5242 = vld [vmem:[%s5241] sm:$0xff]
      %v5243 = vld [vmem:[%s5241 + $0x8] sm:$0xff]
      %v5244 = vld [vmem:[%s5241 + $0x10] sm:$0xff]
      %v5245 = vld [vmem:[%s5241 + $0x18] sm:$0xff]
      %v5246 = vld [vmem:[%s5241 + $0x20] sm:$0xff]
      %v5247 = vld [vmem:[%s5241 + $0x28] sm:$0xff]
      %v5248 = vld [vmem:[%s5241 + $0x30] sm:$0xff]
      %v5249 = vld [vmem:[%s5241 + $0x38] sm:$0xff]
      %v5250 = vld [vmem:[%s5241 + $0x40] sm:$0xff]
      %v5251 = vld [vmem:[%s5241 + $0x48] sm:$0xff]
      %v5252 = vld [vmem:[%s5241 + $0x50] sm:$0xff]
      %v5253 = vld [vmem:[%s5241 + $0x58] sm:$0xff]
      %v5254 = vld [vmem:[%s5241 + $0x60] sm:$0xff]
      %v5255 = vld [vmem:[%s5241 + $0x68] sm:$0xff]
      %v5256 = vld [vmem:[%s5241 + $0x70] sm:$0xff]
      %v5257 = vld [vmem:[%s5241 + $0x78] sm:$0xff]
      %v5258 = vld [vmem:[%s5241 + $0x80] sm:$0xff]
      %v5259 = vld [vmem:[%s5241 + $0x88] sm:$0xff]
      %v5260 = vld [vmem:[%s5241 + $0x90] sm:$0xff]
      %v5261 = vld [vmem:[%s5241 + $0x98] sm:$0xff]
      %v5262 = vld [vmem:[%s5241 + $0xa0] sm:$0xff]
      %v5263 = vld [vmem:[%s5241 + $0xa8] sm:$0xff]
      %v5264 = vld [vmem:[%s5241 + $0xb0] sm:$0xff]
      %v5265 = vld [vmem:[%s5241 + $0xb8] sm:$0xff]
      %v5266 = vld [vmem:[%s5241 + $0xc0] sm:$0xff]
      %v5267 = vld [vmem:[%s5241 + $0xc8] sm:$0xff]
      %v5268 = vld [vmem:[%s5241 + $0xd0] sm:$0xff]
      %v5269 = vld [vmem:[%s5241 + $0xd8] sm:$0xff]
      %v5270 = vld [vmem:[%s5241 + $0xe0] sm:$0xff]
      %v5271 = vld [vmem:[%s5241 + $0xe8] sm:$0xff]
      %v5272 = vld [vmem:[%s5241 + $0xf0] sm:$0xff]
      %v5273 = vld [vmem:[%s5241 + $0xf8] sm:$0xff]
      %v5274 = vld [vmem:[%s5241 + $0x100] sm:$0xff]
      %v5275 = vld [vmem:[%s5241 + $0x108] sm:$0xff]
      %v5276 = vld [vmem:[%s5241 + $0x110] sm:$0xff]
      %v5277 = vld [vmem:[%s5241 + $0x118] sm:$0xff]
      %v5278 = vld [vmem:[%s5241 + $0x120] sm:$0xff]
      %v5279 = vld [vmem:[%s5241 + $0x128] sm:$0xff]
      %v5280 = vld [vmem:[%s5241 + $0x130] sm:$0xff]
      %v5281 = vld [vmem:[%s5241 + $0x138] sm:$0xff]
      %v5282 = vld [vmem:[%s5241 + $0x140] sm:$0xff]
      %v5283 = vld [vmem:[%s5241 + $0x148] sm:$0xff]
      %v5284 = vld [vmem:[%s5241 + $0x150] sm:$0xff]
      %v5285 = vld [vmem:[%s5241 + $0x158] sm:$0xff]
      %v5286 = vld [vmem:[%s5241 + $0x160] sm:$0xff]
      %v5287 = vld [vmem:[%s5241 + $0x168] sm:$0xff]
      %v5288 = vld [vmem:[%s5241 + $0x170] sm:$0xff]
      %v5289 = vld [vmem:[%s5241 + $0x178] sm:$0xff]
      %v5290 = vld [vmem:[%s5241 + $0x180] sm:$0xff]
      %v5291 = vld [vmem:[%s5241 + $0x188] sm:$0xff]
      %v5292 = vld [vmem:[%s5241 + $0x190] sm:$0xff]
      %v5293 = vld [vmem:[%s5241 + $0x198] sm:$0xff]
      %v5294 = vld [vmem:[%s5241 + $0x1a0] sm:$0xff]
      %v5295 = vld [vmem:[%s5241 + $0x1a8] sm:$0xff]
      %v5296 = vld [vmem:[%s5241 + $0x1b0] sm:$0xff]
      %v5297 = vld [vmem:[%s5241 + $0x1b8] sm:$0xff]
      %v5298 = vld [vmem:[%s5241 + $0x1c0] sm:$0xff]
      %v5299 = vld [vmem:[%s5241 + $0x1c8] sm:$0xff]
      %v5300 = vld [vmem:[%s5241 + $0x1d0] sm:$0xff]
      %v5301 = vld [vmem:[%s5241 + $0x1d8] sm:$0xff]
      %v5362 = vunpack.c.l.b16 %v5242
      %v5363 = vunpack.c.h.b16 %v5242
      %v5364 = vunpack.c.l.b16 %v5243
      %v5365 = vunpack.c.h.b16 %v5243
      %v5366 = vunpack.c.l.b16 %v5244
      %v5367 = vunpack.c.h.b16 %v5244
      %v5368 = vunpack.c.l.b16 %v5245
      %v5369 = vunpack.c.h.b16 %v5245
      %v5370 = vunpack.c.l.b16 %v5246
      %v5371 = vunpack.c.h.b16 %v5246
      %v5372 = vunpack.c.l.b16 %v5247
      %v5373 = vunpack.c.h.b16 %v5247
      %v5374 = vunpack.c.l.b16 %v5248
      %v5375 = vunpack.c.h.b16 %v5248
      %v5376 = vunpack.c.l.b16 %v5249
      %v5377 = vunpack.c.h.b16 %v5249
      %v5378 = vunpack.c.l.b16 %v5250
      %v5379 = vunpack.c.h.b16 %v5250
      %v5380 = vunpack.c.l.b16 %v5251
      %v5381 = vunpack.c.h.b16 %v5251
      %v5382 = vunpack.c.l.b16 %v5252
      %v5383 = vunpack.c.h.b16 %v5252
      %v5384 = vunpack.c.l.b16 %v5253
      %v5385 = vunpack.c.h.b16 %v5253
      %v5386 = vunpack.c.l.b16 %v5254
      %v5387 = vunpack.c.h.b16 %v5254
      %v5388 = vunpack.c.l.b16 %v5255
      %v5389 = vunpack.c.h.b16 %v5255
      %v5390 = vunpack.c.l.b16 %v5256
      %v5391 = vunpack.c.h.b16 %v5256
      %v5392 = vunpack.c.l.b16 %v5257
      %v5393 = vunpack.c.h.b16 %v5257
      %v5394 = vunpack.c.l.b16 %v5258
      %v5395 = vunpack.c.h.b16 %v5258
      %v5396 = vunpack.c.l.b16 %v5259
      %v5397 = vunpack.c.h.b16 %v5259
      %v5398 = vunpack.c.l.b16 %v5260
      %v5399 = vunpack.c.h.b16 %v5260
      %v5400 = vunpack.c.l.b16 %v5261
      %v5401 = vunpack.c.h.b16 %v5261
      %v5402 = vunpack.c.l.b16 %v5262
      %v5403 = vunpack.c.h.b16 %v5262
      %v5404 = vunpack.c.l.b16 %v5263
      %v5405 = vunpack.c.h.b16 %v5263
      %v5406 = vunpack.c.l.b16 %v5264
      %v5407 = vunpack.c.h.b16 %v5264
      %v5408 = vunpack.c.l.b16 %v5265
      %v5409 = vunpack.c.h.b16 %v5265
      %v5410 = vunpack.c.l.b16 %v5266
      %v5411 = vunpack.c.h.b16 %v5266
      %v5412 = vunpack.c.l.b16 %v5267
      %v5413 = vunpack.c.h.b16 %v5267
      %v5414 = vunpack.c.l.b16 %v5268
      %v5415 = vunpack.c.h.b16 %v5268
      %v5416 = vunpack.c.l.b16 %v5269
      %v5417 = vunpack.c.h.b16 %v5269
      %v5418 = vunpack.c.l.b16 %v5270
      %v5419 = vunpack.c.h.b16 %v5270
      %v5420 = vunpack.c.l.b16 %v5271
      %v5421 = vunpack.c.h.b16 %v5271
      %v5422 = vunpack.c.l.b16 %v5272
      %v5423 = vunpack.c.h.b16 %v5272
      %v5424 = vunpack.c.l.b16 %v5273
      %v5425 = vunpack.c.h.b16 %v5273
      %v5426 = vunpack.c.l.b16 %v5274
      %v5427 = vunpack.c.h.b16 %v5274
      %v5428 = vunpack.c.l.b16 %v5275
      %v5429 = vunpack.c.h.b16 %v5275
      %v5430 = vunpack.c.l.b16 %v5276
      %v5431 = vunpack.c.h.b16 %v5276
      %v5432 = vunpack.c.l.b16 %v5277
      %v5433 = vunpack.c.h.b16 %v5277
      %v5434 = vunpack.c.l.b16 %v5278
      %v5435 = vunpack.c.h.b16 %v5278
      %v5436 = vunpack.c.l.b16 %v5279
      %v5437 = vunpack.c.h.b16 %v5279
      %v5438 = vunpack.c.l.b16 %v5280
      %v5439 = vunpack.c.h.b16 %v5280
      %v5440 = vunpack.c.l.b16 %v5281
      %v5441 = vunpack.c.h.b16 %v5281
      %v5442 = vunpack.c.l.b16 %v5282
      %v5443 = vunpack.c.h.b16 %v5282
      %v5444 = vunpack.c.l.b16 %v5283
      %v5445 = vunpack.c.h.b16 %v5283
      %v5446 = vunpack.c.l.b16 %v5284
      %v5447 = vunpack.c.h.b16 %v5284
      %v5448 = vunpack.c.l.b16 %v5285
      %v5449 = vunpack.c.h.b16 %v5285
      %v5450 = vunpack.c.l.b16 %v5286
      %v5451 = vunpack.c.h.b16 %v5286
      %v5452 = vunpack.c.l.b16 %v5287
      %v5453 = vunpack.c.h.b16 %v5287
      %v5454 = vunpack.c.l.b16 %v5288
      %v5455 = vunpack.c.h.b16 %v5288
      %v5456 = vunpack.c.l.b16 %v5289
      %v5457 = vunpack.c.h.b16 %v5289
      %v5458 = vunpack.c.l.b16 %v5290
      %v5459 = vunpack.c.h.b16 %v5290
      %v5460 = vunpack.c.l.b16 %v5291
      %v5461 = vunpack.c.h.b16 %v5291
      %v5462 = vunpack.c.l.b16 %v5292
      %v5463 = vunpack.c.h.b16 %v5292
      %v5464 = vunpack.c.l.b16 %v5293
      %v5465 = vunpack.c.h.b16 %v5293
      %v5466 = vunpack.c.l.b16 %v5294
      %v5467 = vunpack.c.h.b16 %v5294
      %v5468 = vunpack.c.l.b16 %v5295
      %v5469 = vunpack.c.h.b16 %v5295
      %v5470 = vunpack.c.l.b16 %v5296
      %v5471 = vunpack.c.h.b16 %v5296
      %v5472 = vunpack.c.l.b16 %v5297
      %v5473 = vunpack.c.h.b16 %v5297
      %v5474 = vunpack.c.l.b16 %v5298
      %v5475 = vunpack.c.h.b16 %v5298
      %v5476 = vunpack.c.l.b16 %v5299
      %v5477 = vunpack.c.h.b16 %v5299
      %v5478 = vunpack.c.l.b16 %v5300
      %v5479 = vunpack.c.h.b16 %v5300
      %v5480 = vunpack.c.l.b16 %v5301
      %v5481 = vunpack.c.h.b16 %v5301
      %v5482 = vpack.c.b16 %v5364, %v5362
      %v5483 = vpack.c.b16 %v5365, %v5363
      %v5484 = vpack.c.b16 %v5368, %v5366
      %v5485 = vpack.c.b16 %v5369, %v5367
      %v5486 = vpack.c.b16 %v5372, %v5370
      %v5487 = vpack.c.b16 %v5373, %v5371
      %v5488 = vpack.c.b16 %v5376, %v5374
      %v5489 = vpack.c.b16 %v5377, %v5375
      %v5490 = vpack.c.b16 %v5380, %v5378
      %v5491 = vpack.c.b16 %v5381, %v5379
      %v5492 = vpack.c.b16 %v5384, %v5382
      %v5493 = vpack.c.b16 %v5385, %v5383
      %v5494 = vpack.c.b16 %v5388, %v5386
      %v5495 = vpack.c.b16 %v5389, %v5387
      %v5496 = vpack.c.b16 %v5392, %v5390
      %v5497 = vpack.c.b16 %v5393, %v5391
      %v5498 = vpack.c.b16 %v5396, %v5394
      %v5499 = vpack.c.b16 %v5397, %v5395
      %v5500 = vpack.c.b16 %v5400, %v5398
      %v5501 = vpack.c.b16 %v5401, %v5399
      %v5502 = vpack.c.b16 %v5404, %v5402
      %v5503 = vpack.c.b16 %v5405, %v5403
      %v5504 = vpack.c.b16 %v5408, %v5406
      %v5505 = vpack.c.b16 %v5409, %v5407
      %v5506 = vpack.c.b16 %v5412, %v5410
      %v5507 = vpack.c.b16 %v5413, %v5411
      %v5508 = vpack.c.b16 %v5416, %v5414
      %v5509 = vpack.c.b16 %v5417, %v5415
      %v5510 = vpack.c.b16 %v5420, %v5418
      %v5511 = vpack.c.b16 %v5421, %v5419
      %v5512 = vpack.c.b16 %v5424, %v5422
      %v5513 = vpack.c.b16 %v5425, %v5423
      %v5514 = vpack.c.b16 %v5428, %v5426
      %v5515 = vpack.c.b16 %v5429, %v5427
      %v5516 = vpack.c.b16 %v5432, %v5430
      %v5517 = vpack.c.b16 %v5433, %v5431
      %v5518 = vpack.c.b16 %v5436, %v5434
      %v5519 = vpack.c.b16 %v5437, %v5435
      %v5520 = vpack.c.b16 %v5440, %v5438
      %v5521 = vpack.c.b16 %v5441, %v5439
      %v5522 = vpack.c.b16 %v5444, %v5442
      %v5523 = vpack.c.b16 %v5445, %v5443
      %v5524 = vpack.c.b16 %v5448, %v5446
      %v5525 = vpack.c.b16 %v5449, %v5447
      %v5526 = vpack.c.b16 %v5452, %v5450
      %v5527 = vpack.c.b16 %v5453, %v5451
      %v5528 = vpack.c.b16 %v5456, %v5454
      %v5529 = vpack.c.b16 %v5457, %v5455
      %v5530 = vpack.c.b16 %v5460, %v5458
      %v5531 = vpack.c.b16 %v5461, %v5459
      %v5532 = vpack.c.b16 %v5464, %v5462
      %v5533 = vpack.c.b16 %v5465, %v5463
      %v5534 = vpack.c.b16 %v5468, %v5466
      %v5535 = vpack.c.b16 %v5469, %v5467
      %v5536 = vpack.c.b16 %v5472, %v5470
      %v5537 = vpack.c.b16 %v5473, %v5471
      %v5538 = vpack.c.b16 %v5476, %v5474
      %v5539 = vpack.c.b16 %v5477, %v5475
      %v5540 = vpack.c.b16 %v5480, %v5478
      %v5541 = vpack.c.b16 %v5481, %v5479
      %v5603 = vsel %vm4716, %v4287, 0
      %v5606 = vsel %vm4716, %v4291, 0
      %5608 = vmatprep.subr.bf16.mxu0 %v5497
      %5609 = vmatpush1.bf16.msra.mxu0 %v5496
      %5610 = vmatprep.subr.bf16.mxu0 %v5495
      %5611 = vmatpush1.bf16.msra.mxu0 %v5494
      %5612 = vmatprep.subr.bf16.mxu0 %v5493
      %5613 = vmatpush1.bf16.msra.mxu0 %v5492
      %5614 = vmatprep.subr.bf16.mxu0 %v5491
      %5615 = vmatpush1.bf16.msra.mxu0 %v5490
      %5616 = vmatprep.subr.bf16.mxu0 %v5489
      %5617 = vmatpush1.bf16.msra.mxu0 %v5488
      %5618 = vmatprep.subr.bf16.mxu0 %v5487
      %5619 = vmatpush1.bf16.msra.mxu0 %v5486
      %5620 = vmatprep.subr.bf16.mxu0 %v5485
      %5621 = vmatpush1.bf16.msra.mxu0 %v5484
      %5622 = vmatprep.subr.bf16.mxu0 %v5483
      %5623 = vmatpush1.bf16.msra.mxu0 %v5482
      %5624 = vmatprep.subr.bf16.mxu0 %v5513
      %5625 = vmatpush2.bf16.msra.mxu0 %v5512
      %5626 = vmatprep.subr.bf16.mxu0 %v5511
      %5627 = vmatpush2.bf16.msra.mxu0 %v5510
      %5628 = vmatprep.subr.bf16.mxu0 %v5509
      %5629 = vmatpush2.bf16.msra.mxu0 %v5508
      %5630 = vmatprep.subr.bf16.mxu0 %v5507
      %5631 = vmatpush2.bf16.msra.mxu0 %v5506
      %5632 = vmatprep.subr.bf16.mxu0 %v5505
      %5633 = vmatpush2.bf16.msra.mxu0 %v5504
      %5634 = vmatprep.subr.bf16.mxu0 %v5503
      %5635 = vmatpush2.bf16.msra.mxu0 %v5502
      %5636 = vmatprep.subr.bf16.mxu0 %v5501
      %5637 = vmatpush2.bf16.msra.mxu0 %v5500
      %5638 = vmatprep.subr.bf16.mxu0 %v5499
      %5639 = vmatpush2.bf16.msra.mxu0 %v5498
      %5640 = vmatprep.mubr.bf16.mxu0 %v4285
      %5641 = vmatmul.mubr.bf16.gmra.mxu0 %v4284
      %v5642 = vpop.f32.mrf.mxu0
      %v5643 = vadd.f32 0.0, %v5642
      %v5644 = vpop.f32.mrf.mxu0
      %v5645 = vadd.f32 0.0, %v5644
      %v5646 = vpop.f32.mrf.mxu0
      %v5647 = vadd.f32 0.0, %v5646
      %v5648 = vpop.f32.mrf.mxu0
      %v5649 = vadd.f32 0.0, %v5648
      %5650 = vmatprep.mubr.bf16.mxu0 %v4289
      %5651 = vmatmul.mubr.bf16.gmra.mxu0 %v4288
      %v5652 = vpop.f32.mrf.mxu0
      %v5653 = vadd.f32 0.0, %v5652
      %v5654 = vpop.f32.mrf.mxu0
      %v5655 = vadd.f32 0.0, %v5654
      %v5656 = vpop.f32.mrf.mxu0
      %v5657 = vadd.f32 0.0, %v5656
      %v5658 = vpop.f32.mrf.mxu0
      %v5659 = vadd.f32 0.0, %v5658
      %5660 = vdwg.mxu0
      %5661 = vmatprep.subr.bf16.mxu0 %v5529
      %5662 = vmatpush1.bf16.msra.mxu0 %v5528
      %5663 = vmatprep.subr.bf16.mxu0 %v5527
      %5664 = vmatpush1.bf16.msra.mxu0 %v5526
      %5665 = vmatprep.subr.bf16.mxu0 %v5525
      %5666 = vmatpush1.bf16.msra.mxu0 %v5524
      %5667 = vmatprep.subr.bf16.mxu0 %v5523
      %5668 = vmatpush1.bf16.msra.mxu0 %v5522
      %5669 = vmatprep.subr.bf16.mxu0 %v5521
      %5670 = vmatpush1.bf16.msra.mxu0 %v5520
      %5671 = vmatprep.subr.bf16.mxu0 %v5519
      %5672 = vmatpush1.bf16.msra.mxu0 %v5518
      %5673 = vmatprep.subr.bf16.mxu0 %v5517
      %5674 = vmatpush1.bf16.msra.mxu0 %v5516
      %5675 = vmatprep.subr.bf16.mxu0 %v5515
      %5676 = vmatpush1.bf16.msra.mxu0 %v5514
      %5677 = vmatprep.subr.bf16.mxu0 0
      %5678 = vmatpush2.bf16.msra.mxu0 0
      %5679 = vmatprep.subr.bf16.mxu0 0
      %5680 = vmatpush2.bf16.msra.mxu0 0
      %5681 = vmatprep.subr.bf16.mxu0 %v5541
      %5682 = vmatpush2.bf16.msra.mxu0 %v5540
      %5683 = vmatprep.subr.bf16.mxu0 %v5539
      %5684 = vmatpush2.bf16.msra.mxu0 %v5538
      %5685 = vmatprep.subr.bf16.mxu0 %v5537
      %5686 = vmatpush2.bf16.msra.mxu0 %v5536
      %5687 = vmatprep.subr.bf16.mxu0 %v5535
      %5688 = vmatpush2.bf16.msra.mxu0 %v5534
      %5689 = vmatprep.subr.bf16.mxu0 %v5533
      %5690 = vmatpush2.bf16.msra.mxu0 %v5532
      %5691 = vmatprep.subr.bf16.mxu0 %v5531
      %5692 = vmatpush2.bf16.msra.mxu0 %v5530
      %5693 = vmatprep.mubr.bf16.mxu0 %v5603
      %5694 = vmatmul.mubr.bf16.gmra.mxu0 %v4286
      %v5695 = vpop.f32.mrf.mxu0
      %v5696 = vadd.f32 %v5643, %v5695
      %v5697 = vpop.f32.mrf.mxu0
      %v5698 = vadd.f32 %v5645, %v5697
      %v5699 = vpop.f32.mrf.mxu0
      %v5700 = vadd.f32 %v5647, %v5699
      %v5701 = vpop.f32.mrf.mxu0
      %v5702 = vadd.f32 %v5649, %v5701
      %5703 = vmatprep.mubr.bf16.mxu0 %v5606
      %5704 = vmatmul.mubr.bf16.gmra.mxu0 %v4290
      %v5705 = vpop.f32.mrf.mxu0
      %v5706 = vadd.f32 %v5653, %v5705
      %v5707 = vpop.f32.mrf.mxu0
      %v5708 = vadd.f32 %v5655, %v5707
      %v5709 = vpop.f32.mrf.mxu0
      %v5710 = vadd.f32 %v5657, %v5709
      %v5711 = vpop.f32.mrf.mxu0
      %v5712 = vadd.f32 %v5659, %v5711
      %5713 = vdwg.mxu0
      %v5714 = vadd.f32 %v5223, %v5696
      %v5715 = vadd.f32 %v5225, %v5698
      %v5716 = vadd.f32 %v5227, %v5700
      %v5717 = vadd.f32 %v5229, %v5702
      %v5718 = vadd.f32 %v5233, %v5706
      %v5719 = vadd.f32 %v5235, %v5708
      %v5720 = vadd.f32 %v5237, %v5710
      %v5721 = vadd.f32 %v5239, %v5712
      %v5723 = vlaneseq
      %v5724 = vshrl.u32 %v5723, 7
      %v5725 = vsub.s32 0, %v5724
      %v5726 = vrot.slane %v4292, %v5725
      %v5727 = vlaneseq
      %v5728 = vshrl.u32 %v5727, 7
      %v5729 = vsub.s32 1, %v5728
      %v5730 = vrot.slane %v4292, %v5729
      %v5733 = vadd.f32 %v5714, %v5726
      %v5734 = vadd.f32 %v5715, %v5730
      %v5735 = vadd.f32 %v5716, %v5726
      %v5736 = vadd.f32 %v5717, %v5730
      %v5737 = vadd.f32 %v5718, %v5726
      %v5738 = vadd.f32 %v5719, %v5730
      %v5739 = vadd.f32 %v5720, %v5726
      %v5740 = vadd.f32 %v5721, %v5730
      %vm5741 = vcmp.gt.f32.partialorder %v5733, 0.0
      %vm5742 = vcmp.gt.f32.partialorder %v5734, 0.0
      %vm5743 = vcmp.gt.f32.partialorder %v5735, 0.0
      %vm5744 = vcmp.gt.f32.partialorder %v5736, 0.0
      %vm5745 = vcmp.gt.f32.partialorder %v5737, 0.0
      %vm5746 = vcmp.gt.f32.partialorder %v5738, 0.0
      %vm5747 = vcmp.gt.f32.partialorder %v5739, 0.0
      %vm5748 = vcmp.gt.f32.partialorder %v5740, 0.0
      %v5750 = vlaneseq
      %v5751 = vshrl.u32 %v5750, 7
      %v5752 = vsub.s32 0, %v5751
      %v5753 = vrot.slane %v4294, %v5752
      %v5754 = vlaneseq
      %v5755 = vshrl.u32 %v5754, 7
      %v5756 = vsub.s32 1, %v5755
      %v5757 = vrot.slane %v4294, %v5756
      %v5760 = vmul.f32 %v5753, %v5733
      %v5761 = vmul.f32 %v5757, %v5734
      %v5762 = vmul.f32 %v5753, %v5735
      %v5763 = vmul.f32 %v5757, %v5736
      %v5764 = vmul.f32 %v5753, %v5737
      %v5765 = vmul.f32 %v5757, %v5738
      %v5766 = vmul.f32 %v5753, %v5739
      %v5767 = vmul.f32 %v5757, %v5740
      %v5768 = vsel %vm5741, %v5733, %v5760
      %v5769 = vsel %vm5742, %v5734, %v5761
      %v5770 = vsel %vm5743, %v5735, %v5762
      %v5771 = vsel %vm5744, %v5736, %v5763
      %v5772 = vsel %vm5745, %v5737, %v5764
      %v5773 = vsel %vm5746, %v5738, %v5765
      %v5774 = vsel %vm5747, %v5739, %v5766
      %v5775 = vsel %vm5748, %v5740, %v5767
      %s5776 = scalar_lea.vmem %s2, 1440
      %v5777 = vld [vmem:[%s5776] sm:$0xff]
      %v5778 = vld [vmem:[%s5776 + $0x8] sm:$0xff]
      %v5779 = vld [vmem:[%s5776 + $0x10] sm:$0xff]
      %v5780 = vld [vmem:[%s5776 + $0x18] sm:$0xff]
      %v5781 = vld [vmem:[%s5776 + $0x20] sm:$0xff]
      %v5782 = vld [vmem:[%s5776 + $0x28] sm:$0xff]
      %v5783 = vld [vmem:[%s5776 + $0x30] sm:$0xff]
      %v5784 = vld [vmem:[%s5776 + $0x38] sm:$0xff]
      %v5785 = vld [vmem:[%s5776 + $0x40] sm:$0xff]
      %v5786 = vld [vmem:[%s5776 + $0x48] sm:$0xff]
      %v5787 = vld [vmem:[%s5776 + $0x50] sm:$0xff]
      %v5788 = vld [vmem:[%s5776 + $0x58] sm:$0xff]
      %v5789 = vld [vmem:[%s5776 + $0x60] sm:$0xff]
      %v5790 = vld [vmem:[%s5776 + $0x68] sm:$0xff]
      %v5791 = vld [vmem:[%s5776 + $0x70] sm:$0xff]
      %v5792 = vld [vmem:[%s5776 + $0x78] sm:$0xff]
      %v5793 = vld [vmem:[%s5776 + $0x80] sm:$0xff]
      %v5794 = vld [vmem:[%s5776 + $0x88] sm:$0xff]
      %v5795 = vld [vmem:[%s5776 + $0x90] sm:$0xff]
      %v5796 = vld [vmem:[%s5776 + $0x98] sm:$0xff]
      %v5797 = vld [vmem:[%s5776 + $0xa0] sm:$0xff]
      %v5798 = vld [vmem:[%s5776 + $0xa8] sm:$0xff]
      %v5799 = vld [vmem:[%s5776 + $0xb0] sm:$0xff]
      %v5800 = vld [vmem:[%s5776 + $0xb8] sm:$0xff]
      %v5801 = vld [vmem:[%s5776 + $0xc0] sm:$0xff]
      %v5802 = vld [vmem:[%s5776 + $0xc8] sm:$0xff]
      %v5803 = vld [vmem:[%s5776 + $0xd0] sm:$0xff]
      %v5804 = vld [vmem:[%s5776 + $0xd8] sm:$0xff]
      %v5805 = vld [vmem:[%s5776 + $0xe0] sm:$0xff]
      %v5806 = vld [vmem:[%s5776 + $0xe8] sm:$0xff]
      %v5807 = vld [vmem:[%s5776 + $0xf0] sm:$0xff]
      %v5808 = vld [vmem:[%s5776 + $0xf8] sm:$0xff]
      %v5809 = vld [vmem:[%s5776 + $0x100] sm:$0xff]
      %v5810 = vld [vmem:[%s5776 + $0x108] sm:$0xff]
      %v5811 = vld [vmem:[%s5776 + $0x110] sm:$0xff]
      %v5812 = vld [vmem:[%s5776 + $0x118] sm:$0xff]
      %v5813 = vld [vmem:[%s5776 + $0x120] sm:$0xff]
      %v5814 = vld [vmem:[%s5776 + $0x128] sm:$0xff]
      %v5815 = vld [vmem:[%s5776 + $0x130] sm:$0xff]
      %v5816 = vld [vmem:[%s5776 + $0x138] sm:$0xff]
      %v5817 = vld [vmem:[%s5776 + $0x140] sm:$0xff]
      %v5818 = vld [vmem:[%s5776 + $0x148] sm:$0xff]
      %v5819 = vld [vmem:[%s5776 + $0x150] sm:$0xff]
      %v5820 = vld [vmem:[%s5776 + $0x158] sm:$0xff]
      %v5821 = vld [vmem:[%s5776 + $0x160] sm:$0xff]
      %v5822 = vld [vmem:[%s5776 + $0x168] sm:$0xff]
      %v5823 = vld [vmem:[%s5776 + $0x170] sm:$0xff]
      %v5824 = vld [vmem:[%s5776 + $0x178] sm:$0xff]
      %v5825 = vld [vmem:[%s5776 + $0x180] sm:$0xff]
      %v5826 = vld [vmem:[%s5776 + $0x188] sm:$0xff]
      %v5827 = vld [vmem:[%s5776 + $0x190] sm:$0xff]
      %v5828 = vld [vmem:[%s5776 + $0x198] sm:$0xff]
      %v5829 = vld [vmem:[%s5776 + $0x1a0] sm:$0xff]
      %v5830 = vld [vmem:[%s5776 + $0x1a8] sm:$0xff]
      %v5831 = vld [vmem:[%s5776 + $0x1b0] sm:$0xff]
      %v5832 = vld [vmem:[%s5776 + $0x1b8] sm:$0xff]
      %v5833 = vld [vmem:[%s5776 + $0x1c0] sm:$0xff]
      %v5834 = vld [vmem:[%s5776 + $0x1c8] sm:$0xff]
      %v5835 = vld [vmem:[%s5776 + $0x1d0] sm:$0xff]
      %v5836 = vld [vmem:[%s5776 + $0x1d8] sm:$0xff]
      %s5837 = scalar_lea.vmem %s2, 1920
      %v5838 = vld [vmem:[%s5837] sm:$0xff]
      %v5839 = vld [vmem:[%s5837 + $0x8] sm:$0xff]
      %v5840 = vld [vmem:[%s5837 + $0x10] sm:$0xff]
      %v5841 = vld [vmem:[%s5837 + $0x18] sm:$0xff]
      %v5842 = vld [vmem:[%s5837 + $0x20] sm:$0xff]
      %v5843 = vld [vmem:[%s5837 + $0x28] sm:$0xff]
      %v5844 = vld [vmem:[%s5837 + $0x30] sm:$0xff]
      %v5845 = vld [vmem:[%s5837 + $0x38] sm:$0xff]
      %v5846 = vld [vmem:[%s5837 + $0x40] sm:$0xff]
      %v5847 = vld [vmem:[%s5837 + $0x48] sm:$0xff]
      %v5848 = vld [vmem:[%s5837 + $0x50] sm:$0xff]
      %v5849 = vld [vmem:[%s5837 + $0x58] sm:$0xff]
      %v5850 = vld [vmem:[%s5837 + $0x60] sm:$0xff]
      %v5851 = vld [vmem:[%s5837 + $0x68] sm:$0xff]
      %v5852 = vld [vmem:[%s5837 + $0x70] sm:$0xff]
      %v5853 = vld [vmem:[%s5837 + $0x78] sm:$0xff]
      %v5854 = vld [vmem:[%s5837 + $0x80] sm:$0xff]
      %v5855 = vld [vmem:[%s5837 + $0x88] sm:$0xff]
      %v5856 = vld [vmem:[%s5837 + $0x90] sm:$0xff]
      %v5857 = vld [vmem:[%s5837 + $0x98] sm:$0xff]
      %v5858 = vld [vmem:[%s5837 + $0xa0] sm:$0xff]
      %v5859 = vld [vmem:[%s5837 + $0xa8] sm:$0xff]
      %v5860 = vld [vmem:[%s5837 + $0xb0] sm:$0xff]
      %v5861 = vld [vmem:[%s5837 + $0xb8] sm:$0xff]
      %v5862 = vld [vmem:[%s5837 + $0xc0] sm:$0xff]
      %v5863 = vld [vmem:[%s5837 + $0xc8] sm:$0xff]
      %v5864 = vld [vmem:[%s5837 + $0xd0] sm:$0xff]
      %v5865 = vld [vmem:[%s5837 + $0xd8] sm:$0xff]
      %v5866 = vld [vmem:[%s5837 + $0xe0] sm:$0xff]
      %v5867 = vld [vmem:[%s5837 + $0xe8] sm:$0xff]
      %v5868 = vld [vmem:[%s5837 + $0xf0] sm:$0xff]
      %v5869 = vld [vmem:[%s5837 + $0xf8] sm:$0xff]
      %v5870 = vld [vmem:[%s5837 + $0x100] sm:$0xff]
      %v5871 = vld [vmem:[%s5837 + $0x108] sm:$0xff]
      %v5872 = vld [vmem:[%s5837 + $0x110] sm:$0xff]
      %v5873 = vld [vmem:[%s5837 + $0x118] sm:$0xff]
      %v5874 = vld [vmem:[%s5837 + $0x120] sm:$0xff]
      %v5875 = vld [vmem:[%s5837 + $0x128] sm:$0xff]
      %v5876 = vld [vmem:[%s5837 + $0x130] sm:$0xff]
      %v5877 = vld [vmem:[%s5837 + $0x138] sm:$0xff]
      %v5878 = vld [vmem:[%s5837 + $0x140] sm:$0xff]
      %v5879 = vld [vmem:[%s5837 + $0x148] sm:$0xff]
      %v5880 = vld [vmem:[%s5837 + $0x150] sm:$0xff]
      %v5881 = vld [vmem:[%s5837 + $0x158] sm:$0xff]
      %v5882 = vld [vmem:[%s5837 + $0x160] sm:$0xff]
      %v5883 = vld [vmem:[%s5837 + $0x168] sm:$0xff]
      %v5884 = vld [vmem:[%s5837 + $0x170] sm:$0xff]
      %v5885 = vld [vmem:[%s5837 + $0x178] sm:$0xff]
      %v5886 = vld [vmem:[%s5837 + $0x180] sm:$0xff]
      %v5887 = vld [vmem:[%s5837 + $0x188] sm:$0xff]
      %v5888 = vld [vmem:[%s5837 + $0x190] sm:$0xff]
      %v5889 = vld [vmem:[%s5837 + $0x198] sm:$0xff]
      %v5890 = vld [vmem:[%s5837 + $0x1a0] sm:$0xff]
      %v5891 = vld [vmem:[%s5837 + $0x1a8] sm:$0xff]
      %v5892 = vld [vmem:[%s5837 + $0x1b0] sm:$0xff]
      %v5893 = vld [vmem:[%s5837 + $0x1b8] sm:$0xff]
      %v5894 = vld [vmem:[%s5837 + $0x1c0] sm:$0xff]
      %v5895 = vld [vmem:[%s5837 + $0x1c8] sm:$0xff]
      %v5896 = vld [vmem:[%s5837 + $0x1d0] sm:$0xff]
      %v5897 = vld [vmem:[%s5837 + $0x1d8] sm:$0xff]
      %v5958 = vunpack.c.l.b16 %v5838
      %v5959 = vunpack.c.h.b16 %v5838
      %v5960 = vunpack.c.l.b16 %v5839
      %v5961 = vunpack.c.h.b16 %v5839
      %v5962 = vunpack.c.l.b16 %v5840
      %v5963 = vunpack.c.h.b16 %v5840
      %v5964 = vunpack.c.l.b16 %v5841
      %v5965 = vunpack.c.h.b16 %v5841
      %v5966 = vunpack.c.l.b16 %v5842
      %v5967 = vunpack.c.h.b16 %v5842
      %v5968 = vunpack.c.l.b16 %v5843
      %v5969 = vunpack.c.h.b16 %v5843
      %v5970 = vunpack.c.l.b16 %v5844
      %v5971 = vunpack.c.h.b16 %v5844
      %v5972 = vunpack.c.l.b16 %v5845
      %v5973 = vunpack.c.h.b16 %v5845
      %v5974 = vunpack.c.l.b16 %v5846
      %v5975 = vunpack.c.h.b16 %v5846
      %v5976 = vunpack.c.l.b16 %v5847
      %v5977 = vunpack.c.h.b16 %v5847
      %v5978 = vunpack.c.l.b16 %v5848
      %v5979 = vunpack.c.h.b16 %v5848
      %v5980 = vunpack.c.l.b16 %v5849
      %v5981 = vunpack.c.h.b16 %v5849
      %v5982 = vunpack.c.l.b16 %v5850
      %v5983 = vunpack.c.h.b16 %v5850
      %v5984 = vunpack.c.l.b16 %v5851
      %v5985 = vunpack.c.h.b16 %v5851
      %v5986 = vunpack.c.l.b16 %v5852
      %v5987 = vunpack.c.h.b16 %v5852
      %v5988 = vunpack.c.l.b16 %v5853
      %v5989 = vunpack.c.h.b16 %v5853
      %v5990 = vunpack.c.l.b16 %v5854
      %v5991 = vunpack.c.h.b16 %v5854
      %v5992 = vunpack.c.l.b16 %v5855
      %v5993 = vunpack.c.h.b16 %v5855
      %v5994 = vunpack.c.l.b16 %v5856
      %v5995 = vunpack.c.h.b16 %v5856
      %v5996 = vunpack.c.l.b16 %v5857
      %v5997 = vunpack.c.h.b16 %v5857
      %v5998 = vunpack.c.l.b16 %v5858
      %v5999 = vunpack.c.h.b16 %v5858
      %v6000 = vunpack.c.l.b16 %v5859
      %v6001 = vunpack.c.h.b16 %v5859
      %v6002 = vunpack.c.l.b16 %v5860
      %v6003 = vunpack.c.h.b16 %v5860
      %v6004 = vunpack.c.l.b16 %v5861
      %v6005 = vunpack.c.h.b16 %v5861
      %v6006 = vunpack.c.l.b16 %v5862
      %v6007 = vunpack.c.h.b16 %v5862
      %v6008 = vunpack.c.l.b16 %v5863
      %v6009 = vunpack.c.h.b16 %v5863
      %v6010 = vunpack.c.l.b16 %v5864
      %v6011 = vunpack.c.h.b16 %v5864
      %v6012 = vunpack.c.l.b16 %v5865
      %v6013 = vunpack.c.h.b16 %v5865
      %v6014 = vunpack.c.l.b16 %v5866
      %v6015 = vunpack.c.h.b16 %v5866
      %v6016 = vunpack.c.l.b16 %v5867
      %v6017 = vunpack.c.h.b16 %v5867
      %v6018 = vunpack.c.l.b16 %v5868
      %v6019 = vunpack.c.h.b16 %v5868
      %v6020 = vunpack.c.l.b16 %v5869
      %v6021 = vunpack.c.h.b16 %v5869
      %v6022 = vunpack.c.l.b16 %v5870
      %v6023 = vunpack.c.h.b16 %v5870
      %v6024 = vunpack.c.l.b16 %v5871
      %v6025 = vunpack.c.h.b16 %v5871
      %v6026 = vunpack.c.l.b16 %v5872
      %v6027 = vunpack.c.h.b16 %v5872
      %v6028 = vunpack.c.l.b16 %v5873
      %v6029 = vunpack.c.h.b16 %v5873
      %v6030 = vunpack.c.l.b16 %v5874
      %v6031 = vunpack.c.h.b16 %v5874
      %v6032 = vunpack.c.l.b16 %v5875
      %v6033 = vunpack.c.h.b16 %v5875
      %v6034 = vunpack.c.l.b16 %v5876
      %v6035 = vunpack.c.h.b16 %v5876
      %v6036 = vunpack.c.l.b16 %v5877
      %v6037 = vunpack.c.h.b16 %v5877
      %v6038 = vunpack.c.l.b16 %v5878
      %v6039 = vunpack.c.h.b16 %v5878
      %v6040 = vunpack.c.l.b16 %v5879
      %v6041 = vunpack.c.h.b16 %v5879
      %v6042 = vunpack.c.l.b16 %v5880
      %v6043 = vunpack.c.h.b16 %v5880
      %v6044 = vunpack.c.l.b16 %v5881
      %v6045 = vunpack.c.h.b16 %v5881
      %v6046 = vunpack.c.l.b16 %v5882
      %v6047 = vunpack.c.h.b16 %v5882
      %v6048 = vunpack.c.l.b16 %v5883
      %v6049 = vunpack.c.h.b16 %v5883
      %v6050 = vunpack.c.l.b16 %v5884
      %v6051 = vunpack.c.h.b16 %v5884
      %v6052 = vunpack.c.l.b16 %v5885
      %v6053 = vunpack.c.h.b16 %v5885
      %v6054 = vunpack.c.l.b16 %v5886
      %v6055 = vunpack.c.h.b16 %v5886
      %v6056 = vunpack.c.l.b16 %v5887
      %v6057 = vunpack.c.h.b16 %v5887
      %v6058 = vunpack.c.l.b16 %v5888
      %v6059 = vunpack.c.h.b16 %v5888
      %v6060 = vunpack.c.l.b16 %v5889
      %v6061 = vunpack.c.h.b16 %v5889
      %v6062 = vunpack.c.l.b16 %v5890
      %v6063 = vunpack.c.h.b16 %v5890
      %v6064 = vunpack.c.l.b16 %v5891
      %v6065 = vunpack.c.h.b16 %v5891
      %v6066 = vunpack.c.l.b16 %v5892
      %v6067 = vunpack.c.h.b16 %v5892
      %v6068 = vunpack.c.l.b16 %v5893
      %v6069 = vunpack.c.h.b16 %v5893
      %v6070 = vunpack.c.l.b16 %v5894
      %v6071 = vunpack.c.h.b16 %v5894
      %v6072 = vunpack.c.l.b16 %v5895
      %v6073 = vunpack.c.h.b16 %v5895
      %v6074 = vunpack.c.l.b16 %v5896
      %v6075 = vunpack.c.h.b16 %v5896
      %v6076 = vunpack.c.l.b16 %v5897
      %v6077 = vunpack.c.h.b16 %v5897
      %v6078 = vpack.c.b16 %v5960, %v5958
      %v6079 = vpack.c.b16 %v5961, %v5959
      %v6080 = vpack.c.b16 %v5964, %v5962
      %v6081 = vpack.c.b16 %v5965, %v5963
      %v6082 = vpack.c.b16 %v5968, %v5966
      %v6083 = vpack.c.b16 %v5969, %v5967
      %v6084 = vpack.c.b16 %v5972, %v5970
      %v6085 = vpack.c.b16 %v5973, %v5971
      %v6086 = vpack.c.b16 %v5976, %v5974
      %v6087 = vpack.c.b16 %v5977, %v5975
      %v6088 = vpack.c.b16 %v5980, %v5978
      %v6089 = vpack.c.b16 %v5981, %v5979
      %v6090 = vpack.c.b16 %v5984, %v5982
      %v6091 = vpack.c.b16 %v5985, %v5983
      %v6092 = vpack.c.b16 %v5988, %v5986
      %v6093 = vpack.c.b16 %v5989, %v5987
      %v6094 = vpack.c.b16 %v5992, %v5990
      %v6095 = vpack.c.b16 %v5993, %v5991
      %v6096 = vpack.c.b16 %v5996, %v5994
      %v6097 = vpack.c.b16 %v5997, %v5995
      %v6098 = vpack.c.b16 %v6000, %v5998
      %v6099 = vpack.c.b16 %v6001, %v5999
      %v6100 = vpack.c.b16 %v6004, %v6002
      %v6101 = vpack.c.b16 %v6005, %v6003
      %v6102 = vpack.c.b16 %v6008, %v6006
      %v6103 = vpack.c.b16 %v6009, %v6007
      %v6104 = vpack.c.b16 %v6012, %v6010
      %v6105 = vpack.c.b16 %v6013, %v6011
      %v6106 = vpack.c.b16 %v6016, %v6014
      %v6107 = vpack.c.b16 %v6017, %v6015
      %v6108 = vpack.c.b16 %v6020, %v6018
      %v6109 = vpack.c.b16 %v6021, %v6019
      %v6110 = vpack.c.b16 %v6024, %v6022
      %v6111 = vpack.c.b16 %v6025, %v6023
      %v6112 = vpack.c.b16 %v6028, %v6026
      %v6113 = vpack.c.b16 %v6029, %v6027
      %v6114 = vpack.c.b16 %v6032, %v6030
      %v6115 = vpack.c.b16 %v6033, %v6031
      %v6116 = vpack.c.b16 %v6036, %v6034
      %v6117 = vpack.c.b16 %v6037, %v6035
      %v6118 = vpack.c.b16 %v6040, %v6038
      %v6119 = vpack.c.b16 %v6041, %v6039
      %v6120 = vpack.c.b16 %v6044, %v6042
      %v6121 = vpack.c.b16 %v6045, %v6043
      %v6122 = vpack.c.b16 %v6048, %v6046
      %v6123 = vpack.c.b16 %v6049, %v6047
      %v6124 = vpack.c.b16 %v6052, %v6050
      %v6125 = vpack.c.b16 %v6053, %v6051
      %v6126 = vpack.c.b16 %v6056, %v6054
      %v6127 = vpack.c.b16 %v6057, %v6055
      %v6128 = vpack.c.b16 %v6060, %v6058
      %v6129 = vpack.c.b16 %v6061, %v6059
      %v6130 = vpack.c.b16 %v6064, %v6062
      %v6131 = vpack.c.b16 %v6065, %v6063
      %v6132 = vpack.c.b16 %v6068, %v6066
      %v6133 = vpack.c.b16 %v6069, %v6067
      %v6134 = vpack.c.b16 %v6072, %v6070
      %v6135 = vpack.c.b16 %v6073, %v6071
      %v6136 = vpack.c.b16 %v6076, %v6074
      %v6137 = vpack.c.b16 %v6077, %v6075
      %6198 = vmatprep.subr.bf16.mxu0 %v6093
      %6199 = vmatpush1.bf16.msra.mxu0 %v6092
      %6200 = vmatprep.subr.bf16.mxu0 %v6091
      %6201 = vmatpush1.bf16.msra.mxu0 %v6090
      %6202 = vmatprep.subr.bf16.mxu0 %v6089
      %6203 = vmatpush1.bf16.msra.mxu0 %v6088
      %6204 = vmatprep.subr.bf16.mxu0 %v6087
      %6205 = vmatpush1.bf16.msra.mxu0 %v6086
      %6206 = vmatprep.subr.bf16.mxu0 %v6085
      %6207 = vmatpush1.bf16.msra.mxu0 %v6084
      %6208 = vmatprep.subr.bf16.mxu0 %v6083
      %6209 = vmatpush1.bf16.msra.mxu0 %v6082
      %6210 = vmatprep.subr.bf16.mxu0 %v6081
      %6211 = vmatpush1.bf16.msra.mxu0 %v6080
      %6212 = vmatprep.subr.bf16.mxu0 %v6079
      %6213 = vmatpush1.bf16.msra.mxu0 %v6078
      %6214 = vmatprep.subr.bf16.mxu0 %v6109
      %6215 = vmatpush2.bf16.msra.mxu0 %v6108
      %6216 = vmatprep.subr.bf16.mxu0 %v6107
      %6217 = vmatpush2.bf16.msra.mxu0 %v6106
      %6218 = vmatprep.subr.bf16.mxu0 %v6105
      %6219 = vmatpush2.bf16.msra.mxu0 %v6104
      %6220 = vmatprep.subr.bf16.mxu0 %v6103
      %6221 = vmatpush2.bf16.msra.mxu0 %v6102
      %6222 = vmatprep.subr.bf16.mxu0 %v6101
      %6223 = vmatpush2.bf16.msra.mxu0 %v6100
      %6224 = vmatprep.subr.bf16.mxu0 %v6099
      %6225 = vmatpush2.bf16.msra.mxu0 %v6098
      %6226 = vmatprep.subr.bf16.mxu0 %v6097
      %6227 = vmatpush2.bf16.msra.mxu0 %v6096
      %6228 = vmatprep.subr.bf16.mxu0 %v6095
      %6229 = vmatpush2.bf16.msra.mxu0 %v6094
      %6230 = vmatprep.mubr.bf16.mxu0 %v4117
      %6231 = vmatmul.mubr.bf16.gmra.mxu0 %v4116
      %v6232 = vpop.f32.mrf.mxu0
      %v6233 = vadd.f32 0.0, %v6232
      %v6234 = vpop.f32.mrf.mxu0
      %v6235 = vadd.f32 0.0, %v6234
      %v6236 = vpop.f32.mrf.mxu0
      %v6237 = vadd.f32 0.0, %v6236
      %v6238 = vpop.f32.mrf.mxu0
      %v6239 = vadd.f32 0.0, %v6238
      %6240 = vmatprep.mubr.bf16.mxu0 %v4121
      %6241 = vmatmul.mubr.bf16.gmra.mxu0 %v4120
      %v6242 = vpop.f32.mrf.mxu0
      %v6243 = vadd.f32 0.0, %v6242
      %v6244 = vpop.f32.mrf.mxu0
      %v6245 = vadd.f32 0.0, %v6244
      %v6246 = vpop.f32.mrf.mxu0
      %v6247 = vadd.f32 0.0, %v6246
      %v6248 = vpop.f32.mrf.mxu0
      %v6249 = vadd.f32 0.0, %v6248
      %6250 = vdwg.mxu0
      %6251 = vmatprep.subr.bf16.mxu0 %v6125
      %6252 = vmatpush1.bf16.msra.mxu0 %v6124
      %6253 = vmatprep.subr.bf16.mxu0 %v6123
      %6254 = vmatpush1.bf16.msra.mxu0 %v6122
      %6255 = vmatprep.subr.bf16.mxu0 %v6121
      %6256 = vmatpush1.bf16.msra.mxu0 %v6120
      %6257 = vmatprep.subr.bf16.mxu0 %v6119
      %6258 = vmatpush1.bf16.msra.mxu0 %v6118
      %6259 = vmatprep.subr.bf16.mxu0 %v6117
      %6260 = vmatpush1.bf16.msra.mxu0 %v6116
      %6261 = vmatprep.subr.bf16.mxu0 %v6115
      %6262 = vmatpush1.bf16.msra.mxu0 %v6114
      %6263 = vmatprep.subr.bf16.mxu0 %v6113
      %6264 = vmatpush1.bf16.msra.mxu0 %v6112
      %6265 = vmatprep.subr.bf16.mxu0 %v6111
      %6266 = vmatpush1.bf16.msra.mxu0 %v6110
      %6267 = vmatprep.subr.bf16.mxu0 0
      %6268 = vmatpush2.bf16.msra.mxu0 0
      %6269 = vmatprep.subr.bf16.mxu0 0
      %6270 = vmatpush2.bf16.msra.mxu0 0
      %6271 = vmatprep.subr.bf16.mxu0 %v6137
      %6272 = vmatpush2.bf16.msra.mxu0 %v6136
      %6273 = vmatprep.subr.bf16.mxu0 %v6135
      %6274 = vmatpush2.bf16.msra.mxu0 %v6134
      %6275 = vmatprep.subr.bf16.mxu0 %v6133
      %6276 = vmatpush2.bf16.msra.mxu0 %v6132
      %6277 = vmatprep.subr.bf16.mxu0 %v6131
      %6278 = vmatpush2.bf16.msra.mxu0 %v6130
      %6279 = vmatprep.subr.bf16.mxu0 %v6129
      %6280 = vmatpush2.bf16.msra.mxu0 %v6128
      %6281 = vmatprep.subr.bf16.mxu0 %v6127
      %6282 = vmatpush2.bf16.msra.mxu0 %v6126
      %6283 = vmatprep.mubr.bf16.mxu0 %v4718
      %6284 = vmatmul.mubr.bf16.gmra.mxu0 %v4118
      %v6285 = vpop.f32.mrf.mxu0
      %v6286 = vadd.f32 %v6233, %v6285
      %v6287 = vpop.f32.mrf.mxu0
      %v6288 = vadd.f32 %v6235, %v6287
      %v6289 = vpop.f32.mrf.mxu0
      %v6290 = vadd.f32 %v6237, %v6289
      %v6291 = vpop.f32.mrf.mxu0
      %v6292 = vadd.f32 %v6239, %v6291
      %6293 = vmatprep.mubr.bf16.mxu0 %v4721
      %6294 = vmatmul.mubr.bf16.gmra.mxu0 %v4122
      %v6295 = vpop.f32.mrf.mxu0
      %v6296 = vadd.f32 %v6243, %v6295
      %v6297 = vpop.f32.mrf.mxu0
      %v6298 = vadd.f32 %v6245, %v6297
      %v6299 = vpop.f32.mrf.mxu0
      %v6300 = vadd.f32 %v6247, %v6299
      %v6301 = vpop.f32.mrf.mxu0
      %v6302 = vadd.f32 %v6249, %v6301
      %6303 = vdwg.mxu0
      %v6364 = vunpack.c.l.b16 %v5777
      %v6365 = vunpack.c.h.b16 %v5777
      %v6366 = vunpack.c.l.b16 %v5778
      %v6367 = vunpack.c.h.b16 %v5778
      %v6368 = vunpack.c.l.b16 %v5779
      %v6369 = vunpack.c.h.b16 %v5779
      %v6370 = vunpack.c.l.b16 %v5780
      %v6371 = vunpack.c.h.b16 %v5780
      %v6372 = vunpack.c.l.b16 %v5781
      %v6373 = vunpack.c.h.b16 %v5781
      %v6374 = vunpack.c.l.b16 %v5782
      %v6375 = vunpack.c.h.b16 %v5782
      %v6376 = vunpack.c.l.b16 %v5783
      %v6377 = vunpack.c.h.b16 %v5783
      %v6378 = vunpack.c.l.b16 %v5784
      %v6379 = vunpack.c.h.b16 %v5784
      %v6380 = vunpack.c.l.b16 %v5785
      %v6381 = vunpack.c.h.b16 %v5785
      %v6382 = vunpack.c.l.b16 %v5786
      %v6383 = vunpack.c.h.b16 %v5786
      %v6384 = vunpack.c.l.b16 %v5787
      %v6385 = vunpack.c.h.b16 %v5787
      %v6386 = vunpack.c.l.b16 %v5788
      %v6387 = vunpack.c.h.b16 %v5788
      %v6388 = vunpack.c.l.b16 %v5789
      %v6389 = vunpack.c.h.b16 %v5789
      %v6390 = vunpack.c.l.b16 %v5790
      %v6391 = vunpack.c.h.b16 %v5790
      %v6392 = vunpack.c.l.b16 %v5791
      %v6393 = vunpack.c.h.b16 %v5791
      %v6394 = vunpack.c.l.b16 %v5792
      %v6395 = vunpack.c.h.b16 %v5792
      %v6396 = vunpack.c.l.b16 %v5793
      %v6397 = vunpack.c.h.b16 %v5793
      %v6398 = vunpack.c.l.b16 %v5794
      %v6399 = vunpack.c.h.b16 %v5794
      %v6400 = vunpack.c.l.b16 %v5795
      %v6401 = vunpack.c.h.b16 %v5795
      %v6402 = vunpack.c.l.b16 %v5796
      %v6403 = vunpack.c.h.b16 %v5796
      %v6404 = vunpack.c.l.b16 %v5797
      %v6405 = vunpack.c.h.b16 %v5797
      %v6406 = vunpack.c.l.b16 %v5798
      %v6407 = vunpack.c.h.b16 %v5798
      %v6408 = vunpack.c.l.b16 %v5799
      %v6409 = vunpack.c.h.b16 %v5799
      %v6410 = vunpack.c.l.b16 %v5800
      %v6411 = vunpack.c.h.b16 %v5800
      %v6412 = vunpack.c.l.b16 %v5801
      %v6413 = vunpack.c.h.b16 %v5801
      %v6414 = vunpack.c.l.b16 %v5802
      %v6415 = vunpack.c.h.b16 %v5802
      %v6416 = vunpack.c.l.b16 %v5803
      %v6417 = vunpack.c.h.b16 %v5803
      %v6418 = vunpack.c.l.b16 %v5804
      %v6419 = vunpack.c.h.b16 %v5804
      %v6420 = vunpack.c.l.b16 %v5805
      %v6421 = vunpack.c.h.b16 %v5805
      %v6422 = vunpack.c.l.b16 %v5806
      %v6423 = vunpack.c.h.b16 %v5806
      %v6424 = vunpack.c.l.b16 %v5807
      %v6425 = vunpack.c.h.b16 %v5807
      %v6426 = vunpack.c.l.b16 %v5808
      %v6427 = vunpack.c.h.b16 %v5808
      %v6428 = vunpack.c.l.b16 %v5809
      %v6429 = vunpack.c.h.b16 %v5809
      %v6430 = vunpack.c.l.b16 %v5810
      %v6431 = vunpack.c.h.b16 %v5810
      %v6432 = vunpack.c.l.b16 %v5811
      %v6433 = vunpack.c.h.b16 %v5811
      %v6434 = vunpack.c.l.b16 %v5812
      %v6435 = vunpack.c.h.b16 %v5812
      %v6436 = vunpack.c.l.b16 %v5813
      %v6437 = vunpack.c.h.b16 %v5813
      %v6438 = vunpack.c.l.b16 %v5814
      %v6439 = vunpack.c.h.b16 %v5814
      %v6440 = vunpack.c.l.b16 %v5815
      %v6441 = vunpack.c.h.b16 %v5815
      %v6442 = vunpack.c.l.b16 %v5816
      %v6443 = vunpack.c.h.b16 %v5816
      %v6444 = vunpack.c.l.b16 %v5817
      %v6445 = vunpack.c.h.b16 %v5817
      %v6446 = vunpack.c.l.b16 %v5818
      %v6447 = vunpack.c.h.b16 %v5818
      %v6448 = vunpack.c.l.b16 %v5819
      %v6449 = vunpack.c.h.b16 %v5819
      %v6450 = vunpack.c.l.b16 %v5820
      %v6451 = vunpack.c.h.b16 %v5820
      %v6452 = vunpack.c.l.b16 %v5821
      %v6453 = vunpack.c.h.b16 %v5821
      %v6454 = vunpack.c.l.b16 %v5822
      %v6455 = vunpack.c.h.b16 %v5822
      %v6456 = vunpack.c.l.b16 %v5823
      %v6457 = vunpack.c.h.b16 %v5823
      %v6458 = vunpack.c.l.b16 %v5824
      %v6459 = vunpack.c.h.b16 %v5824
      %v6460 = vunpack.c.l.b16 %v5825
      %v6461 = vunpack.c.h.b16 %v5825
      %v6462 = vunpack.c.l.b16 %v5826
      %v6463 = vunpack.c.h.b16 %v5826
      %v6464 = vunpack.c.l.b16 %v5827
      %v6465 = vunpack.c.h.b16 %v5827
      %v6466 = vunpack.c.l.b16 %v5828
      %v6467 = vunpack.c.h.b16 %v5828
      %v6468 = vunpack.c.l.b16 %v5829
      %v6469 = vunpack.c.h.b16 %v5829
      %v6470 = vunpack.c.l.b16 %v5830
      %v6471 = vunpack.c.h.b16 %v5830
      %v6472 = vunpack.c.l.b16 %v5831
      %v6473 = vunpack.c.h.b16 %v5831
      %v6474 = vunpack.c.l.b16 %v5832
      %v6475 = vunpack.c.h.b16 %v5832
      %v6476 = vunpack.c.l.b16 %v5833
      %v6477 = vunpack.c.h.b16 %v5833
      %v6478 = vunpack.c.l.b16 %v5834
      %v6479 = vunpack.c.h.b16 %v5834
      %v6480 = vunpack.c.l.b16 %v5835
      %v6481 = vunpack.c.h.b16 %v5835
      %v6482 = vunpack.c.l.b16 %v5836
      %v6483 = vunpack.c.h.b16 %v5836
      %v6484 = vpack.c.b16 %v6366, %v6364
      %v6485 = vpack.c.b16 %v6367, %v6365
      %v6486 = vpack.c.b16 %v6370, %v6368
      %v6487 = vpack.c.b16 %v6371, %v6369
      %v6488 = vpack.c.b16 %v6374, %v6372
      %v6489 = vpack.c.b16 %v6375, %v6373
      %v6490 = vpack.c.b16 %v6378, %v6376
      %v6491 = vpack.c.b16 %v6379, %v6377
      %v6492 = vpack.c.b16 %v6382, %v6380
      %v6493 = vpack.c.b16 %v6383, %v6381
      %v6494 = vpack.c.b16 %v6386, %v6384
      %v6495 = vpack.c.b16 %v6387, %v6385
      %v6496 = vpack.c.b16 %v6390, %v6388
      %v6497 = vpack.c.b16 %v6391, %v6389
      %v6498 = vpack.c.b16 %v6394, %v6392
      %v6499 = vpack.c.b16 %v6395, %v6393
      %v6500 = vpack.c.b16 %v6398, %v6396
      %v6501 = vpack.c.b16 %v6399, %v6397
      %v6502 = vpack.c.b16 %v6402, %v6400
      %v6503 = vpack.c.b16 %v6403, %v6401
      %v6504 = vpack.c.b16 %v6406, %v6404
      %v6505 = vpack.c.b16 %v6407, %v6405
      %v6506 = vpack.c.b16 %v6410, %v6408
      %v6507 = vpack.c.b16 %v6411, %v6409
      %v6508 = vpack.c.b16 %v6414, %v6412
      %v6509 = vpack.c.b16 %v6415, %v6413
      %v6510 = vpack.c.b16 %v6418, %v6416
      %v6511 = vpack.c.b16 %v6419, %v6417
      %v6512 = vpack.c.b16 %v6422, %v6420
      %v6513 = vpack.c.b16 %v6423, %v6421
      %v6514 = vpack.c.b16 %v6426, %v6424
      %v6515 = vpack.c.b16 %v6427, %v6425
      %v6516 = vpack.c.b16 %v6430, %v6428
      %v6517 = vpack.c.b16 %v6431, %v6429
      %v6518 = vpack.c.b16 %v6434, %v6432
      %v6519 = vpack.c.b16 %v6435, %v6433
      %v6520 = vpack.c.b16 %v6438, %v6436
      %v6521 = vpack.c.b16 %v6439, %v6437
      %v6522 = vpack.c.b16 %v6442, %v6440
      %v6523 = vpack.c.b16 %v6443, %v6441
      %v6524 = vpack.c.b16 %v6446, %v6444
      %v6525 = vpack.c.b16 %v6447, %v6445
      %v6526 = vpack.c.b16 %v6450, %v6448
      %v6527 = vpack.c.b16 %v6451, %v6449
      %v6528 = vpack.c.b16 %v6454, %v6452
      %v6529 = vpack.c.b16 %v6455, %v6453
      %v6530 = vpack.c.b16 %v6458, %v6456
      %v6531 = vpack.c.b16 %v6459, %v6457
      %v6532 = vpack.c.b16 %v6462, %v6460
      %v6533 = vpack.c.b16 %v6463, %v6461
      %v6534 = vpack.c.b16 %v6466, %v6464
      %v6535 = vpack.c.b16 %v6467, %v6465
      %v6536 = vpack.c.b16 %v6470, %v6468
      %v6537 = vpack.c.b16 %v6471, %v6469
      %v6538 = vpack.c.b16 %v6474, %v6472
      %v6539 = vpack.c.b16 %v6475, %v6473
      %v6540 = vpack.c.b16 %v6478, %v6476
      %v6541 = vpack.c.b16 %v6479, %v6477
      %v6542 = vpack.c.b16 %v6482, %v6480
      %v6543 = vpack.c.b16 %v6483, %v6481
      %6604 = vmatprep.subr.bf16.mxu0 %v6499
      %6605 = vmatpush1.bf16.msra.mxu0 %v6498
      %6606 = vmatprep.subr.bf16.mxu0 %v6497
      %6607 = vmatpush1.bf16.msra.mxu0 %v6496
      %6608 = vmatprep.subr.bf16.mxu0 %v6495
      %6609 = vmatpush1.bf16.msra.mxu0 %v6494
      %6610 = vmatprep.subr.bf16.mxu0 %v6493
      %6611 = vmatpush1.bf16.msra.mxu0 %v6492
      %6612 = vmatprep.subr.bf16.mxu0 %v6491
      %6613 = vmatpush1.bf16.msra.mxu0 %v6490
      %6614 = vmatprep.subr.bf16.mxu0 %v6489
      %6615 = vmatpush1.bf16.msra.mxu0 %v6488
      %6616 = vmatprep.subr.bf16.mxu0 %v6487
      %6617 = vmatpush1.bf16.msra.mxu0 %v6486
      %6618 = vmatprep.subr.bf16.mxu0 %v6485
      %6619 = vmatpush1.bf16.msra.mxu0 %v6484
      %6620 = vmatprep.subr.bf16.mxu0 %v6515
      %6621 = vmatpush2.bf16.msra.mxu0 %v6514
      %6622 = vmatprep.subr.bf16.mxu0 %v6513
      %6623 = vmatpush2.bf16.msra.mxu0 %v6512
      %6624 = vmatprep.subr.bf16.mxu0 %v6511
      %6625 = vmatpush2.bf16.msra.mxu0 %v6510
      %6626 = vmatprep.subr.bf16.mxu0 %v6509
      %6627 = vmatpush2.bf16.msra.mxu0 %v6508
      %6628 = vmatprep.subr.bf16.mxu0 %v6507
      %6629 = vmatpush2.bf16.msra.mxu0 %v6506
      %6630 = vmatprep.subr.bf16.mxu0 %v6505
      %6631 = vmatpush2.bf16.msra.mxu0 %v6504
      %6632 = vmatprep.subr.bf16.mxu0 %v6503
      %6633 = vmatpush2.bf16.msra.mxu0 %v6502
      %6634 = vmatprep.subr.bf16.mxu0 %v6501
      %6635 = vmatpush2.bf16.msra.mxu0 %v6500
      %6636 = vmatprep.mubr.bf16.mxu0 %v3887
      %6637 = vmatmul.mubr.bf16.gmra.mxu0 %v3886
      %v6638 = vpop.f32.mrf.mxu0
      %v6639 = vadd.f32 %v6286, %v6638
      %v6640 = vpop.f32.mrf.mxu0
      %v6641 = vadd.f32 %v6288, %v6640
      %v6642 = vpop.f32.mrf.mxu0
      %v6643 = vadd.f32 %v6290, %v6642
      %v6644 = vpop.f32.mrf.mxu0
      %v6645 = vadd.f32 %v6292, %v6644
      %6646 = vmatprep.mubr.bf16.mxu0 %v3891
      %6647 = vmatmul.mubr.bf16.gmra.mxu0 %v3890
      %v6648 = vpop.f32.mrf.mxu0
      %v6649 = vadd.f32 %v6296, %v6648
      %v6650 = vpop.f32.mrf.mxu0
      %v6651 = vadd.f32 %v6298, %v6650
      %v6652 = vpop.f32.mrf.mxu0
      %v6653 = vadd.f32 %v6300, %v6652
      %v6654 = vpop.f32.mrf.mxu0
      %v6655 = vadd.f32 %v6302, %v6654
      %6656 = vdwg.mxu0
      %6657 = vmatprep.subr.bf16.mxu0 %v6531
      %6658 = vmatpush1.bf16.msra.mxu0 %v6530
      %6659 = vmatprep.subr.bf16.mxu0 %v6529
      %6660 = vmatpush1.bf16.msra.mxu0 %v6528
      %6661 = vmatprep.subr.bf16.mxu0 %v6527
      %6662 = vmatpush1.bf16.msra.mxu0 %v6526
      %6663 = vmatprep.subr.bf16.mxu0 %v6525
      %6664 = vmatpush1.bf16.msra.mxu0 %v6524
      %6665 = vmatprep.subr.bf16.mxu0 %v6523
      %6666 = vmatpush1.bf16.msra.mxu0 %v6522
      %6667 = vmatprep.subr.bf16.mxu0 %v6521
      %6668 = vmatpush1.bf16.msra.mxu0 %v6520
      %6669 = vmatprep.subr.bf16.mxu0 %v6519
      %6670 = vmatpush1.bf16.msra.mxu0 %v6518
      %6671 = vmatprep.subr.bf16.mxu0 %v6517
      %6672 = vmatpush1.bf16.msra.mxu0 %v6516
      %6673 = vmatprep.subr.bf16.mxu0 0
      %6674 = vmatpush2.bf16.msra.mxu0 0
      %6675 = vmatprep.subr.bf16.mxu0 0
      %6676 = vmatpush2.bf16.msra.mxu0 0
      %6677 = vmatprep.subr.bf16.mxu0 %v6543
      %6678 = vmatpush2.bf16.msra.mxu0 %v6542
      %6679 = vmatprep.subr.bf16.mxu0 %v6541
      %6680 = vmatpush2.bf16.msra.mxu0 %v6540
      %6681 = vmatprep.subr.bf16.mxu0 %v6539
      %6682 = vmatpush2.bf16.msra.mxu0 %v6538
      %6683 = vmatprep.subr.bf16.mxu0 %v6537
      %6684 = vmatpush2.bf16.msra.mxu0 %v6536
      %6685 = vmatprep.subr.bf16.mxu0 %v6535
      %6686 = vmatpush2.bf16.msra.mxu0 %v6534
      %6687 = vmatprep.subr.bf16.mxu0 %v6533
      %6688 = vmatpush2.bf16.msra.mxu0 %v6532
      %6689 = vmatprep.mubr.bf16.mxu0 %v5130
      %6690 = vmatmul.mubr.bf16.gmra.mxu0 %v3888
      %v6691 = vpop.f32.mrf.mxu0
      %v6692 = vadd.f32 %v6639, %v6691
      %v6693 = vpop.f32.mrf.mxu0
      %v6694 = vadd.f32 %v6641, %v6693
      %v6695 = vpop.f32.mrf.mxu0
      %v6696 = vadd.f32 %v6643, %v6695
      %v6697 = vpop.f32.mrf.mxu0
      %v6698 = vadd.f32 %v6645, %v6697
      %6699 = vmatprep.mubr.bf16.mxu0 %v5133
      %6700 = vmatmul.mubr.bf16.gmra.mxu0 %v3892
      %v6701 = vpop.f32.mrf.mxu0
      %v6702 = vadd.f32 %v6649, %v6701
      %v6703 = vpop.f32.mrf.mxu0
      %v6704 = vadd.f32 %v6651, %v6703
      %v6705 = vpop.f32.mrf.mxu0
      %v6706 = vadd.f32 %v6653, %v6705
      %v6707 = vpop.f32.mrf.mxu0
      %v6708 = vadd.f32 %v6655, %v6707
      %6709 = vdwg.mxu0
      %s6710 = scalar_lea.vmem %s2, 2400
      %v6711 = vld [vmem:[%s6710] sm:$0xff]
      %v6712 = vld [vmem:[%s6710 + $0x8] sm:$0xff]
      %v6713 = vld [vmem:[%s6710 + $0x10] sm:$0xff]
      %v6714 = vld [vmem:[%s6710 + $0x18] sm:$0xff]
      %v6715 = vld [vmem:[%s6710 + $0x20] sm:$0xff]
      %v6716 = vld [vmem:[%s6710 + $0x28] sm:$0xff]
      %v6717 = vld [vmem:[%s6710 + $0x30] sm:$0xff]
      %v6718 = vld [vmem:[%s6710 + $0x38] sm:$0xff]
      %v6719 = vld [vmem:[%s6710 + $0x40] sm:$0xff]
      %v6720 = vld [vmem:[%s6710 + $0x48] sm:$0xff]
      %v6721 = vld [vmem:[%s6710 + $0x50] sm:$0xff]
      %v6722 = vld [vmem:[%s6710 + $0x58] sm:$0xff]
      %v6723 = vld [vmem:[%s6710 + $0x60] sm:$0xff]
      %v6724 = vld [vmem:[%s6710 + $0x68] sm:$0xff]
      %v6725 = vld [vmem:[%s6710 + $0x70] sm:$0xff]
      %v6726 = vld [vmem:[%s6710 + $0x78] sm:$0xff]
      %v6727 = vld [vmem:[%s6710 + $0x80] sm:$0xff]
      %v6728 = vld [vmem:[%s6710 + $0x88] sm:$0xff]
      %v6729 = vld [vmem:[%s6710 + $0x90] sm:$0xff]
      %v6730 = vld [vmem:[%s6710 + $0x98] sm:$0xff]
      %v6731 = vld [vmem:[%s6710 + $0xa0] sm:$0xff]
      %v6732 = vld [vmem:[%s6710 + $0xa8] sm:$0xff]
      %v6733 = vld [vmem:[%s6710 + $0xb0] sm:$0xff]
      %v6734 = vld [vmem:[%s6710 + $0xb8] sm:$0xff]
      %v6735 = vld [vmem:[%s6710 + $0xc0] sm:$0xff]
      %v6736 = vld [vmem:[%s6710 + $0xc8] sm:$0xff]
      %v6737 = vld [vmem:[%s6710 + $0xd0] sm:$0xff]
      %v6738 = vld [vmem:[%s6710 + $0xd8] sm:$0xff]
      %v6739 = vld [vmem:[%s6710 + $0xe0] sm:$0xff]
      %v6740 = vld [vmem:[%s6710 + $0xe8] sm:$0xff]
      %v6741 = vld [vmem:[%s6710 + $0xf0] sm:$0xff]
      %v6742 = vld [vmem:[%s6710 + $0xf8] sm:$0xff]
      %v6743 = vld [vmem:[%s6710 + $0x100] sm:$0xff]
      %v6744 = vld [vmem:[%s6710 + $0x108] sm:$0xff]
      %v6745 = vld [vmem:[%s6710 + $0x110] sm:$0xff]
      %v6746 = vld [vmem:[%s6710 + $0x118] sm:$0xff]
      %v6747 = vld [vmem:[%s6710 + $0x120] sm:$0xff]
      %v6748 = vld [vmem:[%s6710 + $0x128] sm:$0xff]
      %v6749 = vld [vmem:[%s6710 + $0x130] sm:$0xff]
      %v6750 = vld [vmem:[%s6710 + $0x138] sm:$0xff]
      %v6751 = vld [vmem:[%s6710 + $0x140] sm:$0xff]
      %v6752 = vld [vmem:[%s6710 + $0x148] sm:$0xff]
      %v6753 = vld [vmem:[%s6710 + $0x150] sm:$0xff]
      %v6754 = vld [vmem:[%s6710 + $0x158] sm:$0xff]
      %v6755 = vld [vmem:[%s6710 + $0x160] sm:$0xff]
      %v6756 = vld [vmem:[%s6710 + $0x168] sm:$0xff]
      %v6757 = vld [vmem:[%s6710 + $0x170] sm:$0xff]
      %v6758 = vld [vmem:[%s6710 + $0x178] sm:$0xff]
      %v6759 = vld [vmem:[%s6710 + $0x180] sm:$0xff]
      %v6760 = vld [vmem:[%s6710 + $0x188] sm:$0xff]
      %v6761 = vld [vmem:[%s6710 + $0x190] sm:$0xff]
      %v6762 = vld [vmem:[%s6710 + $0x198] sm:$0xff]
      %v6763 = vld [vmem:[%s6710 + $0x1a0] sm:$0xff]
      %v6764 = vld [vmem:[%s6710 + $0x1a8] sm:$0xff]
      %v6765 = vld [vmem:[%s6710 + $0x1b0] sm:$0xff]
      %v6766 = vld [vmem:[%s6710 + $0x1b8] sm:$0xff]
      %v6767 = vld [vmem:[%s6710 + $0x1c0] sm:$0xff]
      %v6768 = vld [vmem:[%s6710 + $0x1c8] sm:$0xff]
      %v6769 = vld [vmem:[%s6710 + $0x1d0] sm:$0xff]
      %v6770 = vld [vmem:[%s6710 + $0x1d8] sm:$0xff]
      %v6831 = vunpack.c.l.b16 %v6711
      %v6832 = vunpack.c.h.b16 %v6711
      %v6833 = vunpack.c.l.b16 %v6712
      %v6834 = vunpack.c.h.b16 %v6712
      %v6835 = vunpack.c.l.b16 %v6713
      %v6836 = vunpack.c.h.b16 %v6713
      %v6837 = vunpack.c.l.b16 %v6714
      %v6838 = vunpack.c.h.b16 %v6714
      %v6839 = vunpack.c.l.b16 %v6715
      %v6840 = vunpack.c.h.b16 %v6715
      %v6841 = vunpack.c.l.b16 %v6716
      %v6842 = vunpack.c.h.b16 %v6716
      %v6843 = vunpack.c.l.b16 %v6717
      %v6844 = vunpack.c.h.b16 %v6717
      %v6845 = vunpack.c.l.b16 %v6718
      %v6846 = vunpack.c.h.b16 %v6718
      %v6847 = vunpack.c.l.b16 %v6719
      %v6848 = vunpack.c.h.b16 %v6719
      %v6849 = vunpack.c.l.b16 %v6720
      %v6850 = vunpack.c.h.b16 %v6720
      %v6851 = vunpack.c.l.b16 %v6721
      %v6852 = vunpack.c.h.b16 %v6721
      %v6853 = vunpack.c.l.b16 %v6722
      %v6854 = vunpack.c.h.b16 %v6722
      %v6855 = vunpack.c.l.b16 %v6723
      %v6856 = vunpack.c.h.b16 %v6723
      %v6857 = vunpack.c.l.b16 %v6724
      %v6858 = vunpack.c.h.b16 %v6724
      %v6859 = vunpack.c.l.b16 %v6725
      %v6860 = vunpack.c.h.b16 %v6725
      %v6861 = vunpack.c.l.b16 %v6726
      %v6862 = vunpack.c.h.b16 %v6726
      %v6863 = vunpack.c.l.b16 %v6727
      %v6864 = vunpack.c.h.b16 %v6727
      %v6865 = vunpack.c.l.b16 %v6728
      %v6866 = vunpack.c.h.b16 %v6728
      %v6867 = vunpack.c.l.b16 %v6729
      %v6868 = vunpack.c.h.b16 %v6729
      %v6869 = vunpack.c.l.b16 %v6730
      %v6870 = vunpack.c.h.b16 %v6730
      %v6871 = vunpack.c.l.b16 %v6731
      %v6872 = vunpack.c.h.b16 %v6731
      %v6873 = vunpack.c.l.b16 %v6732
      %v6874 = vunpack.c.h.b16 %v6732
      %v6875 = vunpack.c.l.b16 %v6733
      %v6876 = vunpack.c.h.b16 %v6733
      %v6877 = vunpack.c.l.b16 %v6734
      %v6878 = vunpack.c.h.b16 %v6734
      %v6879 = vunpack.c.l.b16 %v6735
      %v6880 = vunpack.c.h.b16 %v6735
      %v6881 = vunpack.c.l.b16 %v6736
      %v6882 = vunpack.c.h.b16 %v6736
      %v6883 = vunpack.c.l.b16 %v6737
      %v6884 = vunpack.c.h.b16 %v6737
      %v6885 = vunpack.c.l.b16 %v6738
      %v6886 = vunpack.c.h.b16 %v6738
      %v6887 = vunpack.c.l.b16 %v6739
      %v6888 = vunpack.c.h.b16 %v6739
      %v6889 = vunpack.c.l.b16 %v6740
      %v6890 = vunpack.c.h.b16 %v6740
      %v6891 = vunpack.c.l.b16 %v6741
      %v6892 = vunpack.c.h.b16 %v6741
      %v6893 = vunpack.c.l.b16 %v6742
      %v6894 = vunpack.c.h.b16 %v6742
      %v6895 = vunpack.c.l.b16 %v6743
      %v6896 = vunpack.c.h.b16 %v6743
      %v6897 = vunpack.c.l.b16 %v6744
      %v6898 = vunpack.c.h.b16 %v6744
      %v6899 = vunpack.c.l.b16 %v6745
      %v6900 = vunpack.c.h.b16 %v6745
      %v6901 = vunpack.c.l.b16 %v6746
      %v6902 = vunpack.c.h.b16 %v6746
      %v6903 = vunpack.c.l.b16 %v6747
      %v6904 = vunpack.c.h.b16 %v6747
      %v6905 = vunpack.c.l.b16 %v6748
      %v6906 = vunpack.c.h.b16 %v6748
      %v6907 = vunpack.c.l.b16 %v6749
      %v6908 = vunpack.c.h.b16 %v6749
      %v6909 = vunpack.c.l.b16 %v6750
      %v6910 = vunpack.c.h.b16 %v6750
      %v6911 = vunpack.c.l.b16 %v6751
      %v6912 = vunpack.c.h.b16 %v6751
      %v6913 = vunpack.c.l.b16 %v6752
      %v6914 = vunpack.c.h.b16 %v6752
      %v6915 = vunpack.c.l.b16 %v6753
      %v6916 = vunpack.c.h.b16 %v6753
      %v6917 = vunpack.c.l.b16 %v6754
      %v6918 = vunpack.c.h.b16 %v6754
      %v6919 = vunpack.c.l.b16 %v6755
      %v6920 = vunpack.c.h.b16 %v6755
      %v6921 = vunpack.c.l.b16 %v6756
      %v6922 = vunpack.c.h.b16 %v6756
      %v6923 = vunpack.c.l.b16 %v6757
      %v6924 = vunpack.c.h.b16 %v6757
      %v6925 = vunpack.c.l.b16 %v6758
      %v6926 = vunpack.c.h.b16 %v6758
      %v6927 = vunpack.c.l.b16 %v6759
      %v6928 = vunpack.c.h.b16 %v6759
      %v6929 = vunpack.c.l.b16 %v6760
      %v6930 = vunpack.c.h.b16 %v6760
      %v6931 = vunpack.c.l.b16 %v6761
      %v6932 = vunpack.c.h.b16 %v6761
      %v6933 = vunpack.c.l.b16 %v6762
      %v6934 = vunpack.c.h.b16 %v6762
      %v6935 = vunpack.c.l.b16 %v6763
      %v6936 = vunpack.c.h.b16 %v6763
      %v6937 = vunpack.c.l.b16 %v6764
      %v6938 = vunpack.c.h.b16 %v6764
      %v6939 = vunpack.c.l.b16 %v6765
      %v6940 = vunpack.c.h.b16 %v6765
      %v6941 = vunpack.c.l.b16 %v6766
      %v6942 = vunpack.c.h.b16 %v6766
      %v6943 = vunpack.c.l.b16 %v6767
      %v6944 = vunpack.c.h.b16 %v6767
      %v6945 = vunpack.c.l.b16 %v6768
      %v6946 = vunpack.c.h.b16 %v6768
      %v6947 = vunpack.c.l.b16 %v6769
      %v6948 = vunpack.c.h.b16 %v6769
      %v6949 = vunpack.c.l.b16 %v6770
      %v6950 = vunpack.c.h.b16 %v6770
      %v6951 = vpack.c.b16 %v6833, %v6831
      %v6952 = vpack.c.b16 %v6834, %v6832
      %v6953 = vpack.c.b16 %v6837, %v6835
      %v6954 = vpack.c.b16 %v6838, %v6836
      %v6955 = vpack.c.b16 %v6841, %v6839
      %v6956 = vpack.c.b16 %v6842, %v6840
      %v6957 = vpack.c.b16 %v6845, %v6843
      %v6958 = vpack.c.b16 %v6846, %v6844
      %v6959 = vpack.c.b16 %v6849, %v6847
      %v6960 = vpack.c.b16 %v6850, %v6848
      %v6961 = vpack.c.b16 %v6853, %v6851
      %v6962 = vpack.c.b16 %v6854, %v6852
      %v6963 = vpack.c.b16 %v6857, %v6855
      %v6964 = vpack.c.b16 %v6858, %v6856
      %v6965 = vpack.c.b16 %v6861, %v6859
      %v6966 = vpack.c.b16 %v6862, %v6860
      %v6967 = vpack.c.b16 %v6865, %v6863
      %v6968 = vpack.c.b16 %v6866, %v6864
      %v6969 = vpack.c.b16 %v6869, %v6867
      %v6970 = vpack.c.b16 %v6870, %v6868
      %v6971 = vpack.c.b16 %v6873, %v6871
      %v6972 = vpack.c.b16 %v6874, %v6872
      %v6973 = vpack.c.b16 %v6877, %v6875
      %v6974 = vpack.c.b16 %v6878, %v6876
      %v6975 = vpack.c.b16 %v6881, %v6879
      %v6976 = vpack.c.b16 %v6882, %v6880
      %v6977 = vpack.c.b16 %v6885, %v6883
      %v6978 = vpack.c.b16 %v6886, %v6884
      %v6979 = vpack.c.b16 %v6889, %v6887
      %v6980 = vpack.c.b16 %v6890, %v6888
      %v6981 = vpack.c.b16 %v6893, %v6891
      %v6982 = vpack.c.b16 %v6894, %v6892
      %v6983 = vpack.c.b16 %v6897, %v6895
      %v6984 = vpack.c.b16 %v6898, %v6896
      %v6985 = vpack.c.b16 %v6901, %v6899
      %v6986 = vpack.c.b16 %v6902, %v6900
      %v6987 = vpack.c.b16 %v6905, %v6903
      %v6988 = vpack.c.b16 %v6906, %v6904
      %v6989 = vpack.c.b16 %v6909, %v6907
      %v6990 = vpack.c.b16 %v6910, %v6908
      %v6991 = vpack.c.b16 %v6913, %v6911
      %v6992 = vpack.c.b16 %v6914, %v6912
      %v6993 = vpack.c.b16 %v6917, %v6915
      %v6994 = vpack.c.b16 %v6918, %v6916
      %v6995 = vpack.c.b16 %v6921, %v6919
      %v6996 = vpack.c.b16 %v6922, %v6920
      %v6997 = vpack.c.b16 %v6925, %v6923
      %v6998 = vpack.c.b16 %v6926, %v6924
      %v6999 = vpack.c.b16 %v6929, %v6927
      %v7000 = vpack.c.b16 %v6930, %v6928
      %v7001 = vpack.c.b16 %v6933, %v6931
      %v7002 = vpack.c.b16 %v6934, %v6932
      %v7003 = vpack.c.b16 %v6937, %v6935
      %v7004 = vpack.c.b16 %v6938, %v6936
      %v7005 = vpack.c.b16 %v6941, %v6939
      %v7006 = vpack.c.b16 %v6942, %v6940
      %v7007 = vpack.c.b16 %v6945, %v6943
      %v7008 = vpack.c.b16 %v6946, %v6944
      %v7009 = vpack.c.b16 %v6949, %v6947
      %v7010 = vpack.c.b16 %v6950, %v6948
      %7071 = vmatprep.subr.bf16.mxu0 %v6966
      %7072 = vmatpush1.bf16.msra.mxu0 %v6965
      %7073 = vmatprep.subr.bf16.mxu0 %v6964
      %7074 = vmatpush1.bf16.msra.mxu0 %v6963
      %7075 = vmatprep.subr.bf16.mxu0 %v6962
      %7076 = vmatpush1.bf16.msra.mxu0 %v6961
      %7077 = vmatprep.subr.bf16.mxu0 %v6960
      %7078 = vmatpush1.bf16.msra.mxu0 %v6959
      %7079 = vmatprep.subr.bf16.mxu0 %v6958
      %7080 = vmatpush1.bf16.msra.mxu0 %v6957
      %7081 = vmatprep.subr.bf16.mxu0 %v6956
      %7082 = vmatpush1.bf16.msra.mxu0 %v6955
      %7083 = vmatprep.subr.bf16.mxu0 %v6954
      %7084 = vmatpush1.bf16.msra.mxu0 %v6953
      %7085 = vmatprep.subr.bf16.mxu0 %v6952
      %7086 = vmatpush1.bf16.msra.mxu0 %v6951
      %7087 = vmatprep.subr.bf16.mxu0 %v6982
      %7088 = vmatpush2.bf16.msra.mxu0 %v6981
      %7089 = vmatprep.subr.bf16.mxu0 %v6980
      %7090 = vmatpush2.bf16.msra.mxu0 %v6979
      %7091 = vmatprep.subr.bf16.mxu0 %v6978
      %7092 = vmatpush2.bf16.msra.mxu0 %v6977
      %7093 = vmatprep.subr.bf16.mxu0 %v6976
      %7094 = vmatpush2.bf16.msra.mxu0 %v6975
      %7095 = vmatprep.subr.bf16.mxu0 %v6974
      %7096 = vmatpush2.bf16.msra.mxu0 %v6973
      %7097 = vmatprep.subr.bf16.mxu0 %v6972
      %7098 = vmatpush2.bf16.msra.mxu0 %v6971
      %7099 = vmatprep.subr.bf16.mxu0 %v6970
      %7100 = vmatpush2.bf16.msra.mxu0 %v6969
      %7101 = vmatprep.subr.bf16.mxu0 %v6968
      %7102 = vmatpush2.bf16.msra.mxu0 %v6967
      %7103 = vmatprep.mubr.bf16.mxu0 %v4285
      %7104 = vmatmul.mubr.bf16.gmra.mxu0 %v4284
      %v7105 = vpop.f32.mrf.mxu0
      %v7106 = vadd.f32 0.0, %v7105
      %v7107 = vpop.f32.mrf.mxu0
      %v7108 = vadd.f32 0.0, %v7107
      %v7109 = vpop.f32.mrf.mxu0
      %v7110 = vadd.f32 0.0, %v7109
      %v7111 = vpop.f32.mrf.mxu0
      %v7112 = vadd.f32 0.0, %v7111
      %7113 = vmatprep.mubr.bf16.mxu0 %v4289
      %7114 = vmatmul.mubr.bf16.gmra.mxu0 %v4288
      %v7115 = vpop.f32.mrf.mxu0
      %v7116 = vadd.f32 0.0, %v7115
      %v7117 = vpop.f32.mrf.mxu0
      %v7118 = vadd.f32 0.0, %v7117
      %v7119 = vpop.f32.mrf.mxu0
      %v7120 = vadd.f32 0.0, %v7119
      %v7121 = vpop.f32.mrf.mxu0
      %v7122 = vadd.f32 0.0, %v7121
      %7123 = vdwg.mxu0
      %7124 = vmatprep.subr.bf16.mxu0 %v6998
      %7125 = vmatpush1.bf16.msra.mxu0 %v6997
      %7126 = vmatprep.subr.bf16.mxu0 %v6996
      %7127 = vmatpush1.bf16.msra.mxu0 %v6995
      %7128 = vmatprep.subr.bf16.mxu0 %v6994
      %7129 = vmatpush1.bf16.msra.mxu0 %v6993
      %7130 = vmatprep.subr.bf16.mxu0 %v6992
      %7131 = vmatpush1.bf16.msra.mxu0 %v6991
      %7132 = vmatprep.subr.bf16.mxu0 %v6990
      %7133 = vmatpush1.bf16.msra.mxu0 %v6989
      %7134 = vmatprep.subr.bf16.mxu0 %v6988
      %7135 = vmatpush1.bf16.msra.mxu0 %v6987
      %7136 = vmatprep.subr.bf16.mxu0 %v6986
      %7137 = vmatpush1.bf16.msra.mxu0 %v6985
      %7138 = vmatprep.subr.bf16.mxu0 %v6984
      %7139 = vmatpush1.bf16.msra.mxu0 %v6983
      %7140 = vmatprep.subr.bf16.mxu0 0
      %7141 = vmatpush2.bf16.msra.mxu0 0
      %7142 = vmatprep.subr.bf16.mxu0 0
      %7143 = vmatpush2.bf16.msra.mxu0 0
      %7144 = vmatprep.subr.bf16.mxu0 %v7010
      %7145 = vmatpush2.bf16.msra.mxu0 %v7009
      %7146 = vmatprep.subr.bf16.mxu0 %v7008
      %7147 = vmatpush2.bf16.msra.mxu0 %v7007
      %7148 = vmatprep.subr.bf16.mxu0 %v7006
      %7149 = vmatpush2.bf16.msra.mxu0 %v7005
      %7150 = vmatprep.subr.bf16.mxu0 %v7004
      %7151 = vmatpush2.bf16.msra.mxu0 %v7003
      %7152 = vmatprep.subr.bf16.mxu0 %v7002
      %7153 = vmatpush2.bf16.msra.mxu0 %v7001
      %7154 = vmatprep.subr.bf16.mxu0 %v7000
      %7155 = vmatpush2.bf16.msra.mxu0 %v6999
      %7156 = vmatprep.mubr.bf16.mxu0 %v5603
      %7157 = vmatmul.mubr.bf16.gmra.mxu0 %v4286
      %v7158 = vpop.f32.mrf.mxu0
      %v7159 = vadd.f32 %v7106, %v7158
      %v7160 = vpop.f32.mrf.mxu0
      %v7161 = vadd.f32 %v7108, %v7160
      %v7162 = vpop.f32.mrf.mxu0
      %v7163 = vadd.f32 %v7110, %v7162
      %v7164 = vpop.f32.mrf.mxu0
      %v7165 = vadd.f32 %v7112, %v7164
      %7166 = vmatprep.mubr.bf16.mxu0 %v5606
      %7167 = vmatmul.mubr.bf16.gmra.mxu0 %v4290
      %v7168 = vpop.f32.mrf.mxu0
      %v7169 = vadd.f32 %v7116, %v7168
      %v7170 = vpop.f32.mrf.mxu0
      %v7171 = vadd.f32 %v7118, %v7170
      %v7172 = vpop.f32.mrf.mxu0
      %v7173 = vadd.f32 %v7120, %v7172
      %v7174 = vpop.f32.mrf.mxu0
      %v7175 = vadd.f32 %v7122, %v7174
      %7176 = vdwg.mxu0
      %v7177 = vadd.f32 %v6692, %v7159
      %v7178 = vadd.f32 %v6694, %v7161
      %v7179 = vadd.f32 %v6696, %v7163
      %v7180 = vadd.f32 %v6698, %v7165
      %v7181 = vadd.f32 %v6702, %v7169
      %v7182 = vadd.f32 %v6704, %v7171
      %v7183 = vadd.f32 %v6706, %v7173
      %v7184 = vadd.f32 %v6708, %v7175
      %v7185 = vadd.f32 %v7177, %v5726
      %v7186 = vadd.f32 %v7178, %v5730
      %v7187 = vadd.f32 %v7179, %v5726
      %v7188 = vadd.f32 %v7180, %v5730
      %v7189 = vadd.f32 %v7181, %v5726
      %v7190 = vadd.f32 %v7182, %v5730
      %v7191 = vadd.f32 %v7183, %v5726
      %v7192 = vadd.f32 %v7184, %v5730
      %vm7193 = vcmp.gt.f32.partialorder %v7185, 0.0
      %vm7194 = vcmp.gt.f32.partialorder %v7186, 0.0
      %vm7195 = vcmp.gt.f32.partialorder %v7187, 0.0
      %vm7196 = vcmp.gt.f32.partialorder %v7188, 0.0
      %vm7197 = vcmp.gt.f32.partialorder %v7189, 0.0
      %vm7198 = vcmp.gt.f32.partialorder %v7190, 0.0
      %vm7199 = vcmp.gt.f32.partialorder %v7191, 0.0
      %vm7200 = vcmp.gt.f32.partialorder %v7192, 0.0
      %v7201 = vmul.f32 %v5753, %v7185
      %v7202 = vmul.f32 %v5757, %v7186
      %v7203 = vmul.f32 %v5753, %v7187
      %v7204 = vmul.f32 %v5757, %v7188
      %v7205 = vmul.f32 %v5753, %v7189
      %v7206 = vmul.f32 %v5757, %v7190
      %v7207 = vmul.f32 %v5753, %v7191
      %v7208 = vmul.f32 %v5757, %v7192
      %v7209 = vsel %vm7193, %v7185, %v7201
      %v7210 = vsel %vm7194, %v7186, %v7202
      %v7211 = vsel %vm7195, %v7187, %v7203
      %v7212 = vsel %vm7196, %v7188, %v7204
      %v7213 = vsel %vm7197, %v7189, %v7205
      %v7214 = vsel %vm7198, %v7190, %v7206
      %v7215 = vsel %vm7199, %v7191, %v7207
      %v7216 = vsel %vm7200, %v7192, %v7208
      %v7217 = vmax.f32 %v5768, %v7209
      %v7218 = vmax.f32 %v5769, %v7210
      %v7219 = vmax.f32 %v5770, %v7211
      %v7220 = vmax.f32 %v5771, %v7212
      %v7221 = vmax.f32 %v5772, %v7213
      %v7222 = vmax.f32 %v5773, %v7214
      %v7223 = vmax.f32 %v5774, %v7215
      %v7224 = vmax.f32 %v5775, %v7216
      %s7225 = scalar_lea.vmem %s2, 2880
      %v7226 = vld [vmem:[%s7225] sm:$0xff]
      %v7227 = vld [vmem:[%s7225 + $0x8] sm:$0xff]
      %v7228 = vld [vmem:[%s7225 + $0x10] sm:$0xff]
      %v7229 = vld [vmem:[%s7225 + $0x18] sm:$0xff]
      %v7230 = vld [vmem:[%s7225 + $0x20] sm:$0xff]
      %v7231 = vld [vmem:[%s7225 + $0x28] sm:$0xff]
      %v7232 = vld [vmem:[%s7225 + $0x30] sm:$0xff]
      %v7233 = vld [vmem:[%s7225 + $0x38] sm:$0xff]
      %v7234 = vld [vmem:[%s7225 + $0x40] sm:$0xff]
      %v7235 = vld [vmem:[%s7225 + $0x48] sm:$0xff]
      %v7236 = vld [vmem:[%s7225 + $0x50] sm:$0xff]
      %v7237 = vld [vmem:[%s7225 + $0x58] sm:$0xff]
      %v7238 = vld [vmem:[%s7225 + $0x60] sm:$0xff]
      %v7239 = vld [vmem:[%s7225 + $0x68] sm:$0xff]
      %v7240 = vld [vmem:[%s7225 + $0x70] sm:$0xff]
      %v7241 = vld [vmem:[%s7225 + $0x78] sm:$0xff]
      %v7242 = vld [vmem:[%s7225 + $0x80] sm:$0xff]
      %v7243 = vld [vmem:[%s7225 + $0x88] sm:$0xff]
      %v7244 = vld [vmem:[%s7225 + $0x90] sm:$0xff]
      %v7245 = vld [vmem:[%s7225 + $0x98] sm:$0xff]
      %v7246 = vld [vmem:[%s7225 + $0xa0] sm:$0xff]
      %v7247 = vld [vmem:[%s7225 + $0xa8] sm:$0xff]
      %v7248 = vld [vmem:[%s7225 + $0xb0] sm:$0xff]
      %v7249 = vld [vmem:[%s7225 + $0xb8] sm:$0xff]
      %v7250 = vld [vmem:[%s7225 + $0xc0] sm:$0xff]
      %v7251 = vld [vmem:[%s7225 + $0xc8] sm:$0xff]
      %v7252 = vld [vmem:[%s7225 + $0xd0] sm:$0xff]
      %v7253 = vld [vmem:[%s7225 + $0xd8] sm:$0xff]
      %v7254 = vld [vmem:[%s7225 + $0xe0] sm:$0xff]
      %v7255 = vld [vmem:[%s7225 + $0xe8] sm:$0xff]
      %v7256 = vld [vmem:[%s7225 + $0xf0] sm:$0xff]
      %v7257 = vld [vmem:[%s7225 + $0xf8] sm:$0xff]
      %v7258 = vld [vmem:[%s7225 + $0x100] sm:$0xff]
      %v7259 = vld [vmem:[%s7225 + $0x108] sm:$0xff]
      %v7260 = vld [vmem:[%s7225 + $0x110] sm:$0xff]
      %v7261 = vld [vmem:[%s7225 + $0x118] sm:$0xff]
      %v7262 = vld [vmem:[%s7225 + $0x120] sm:$0xff]
      %v7263 = vld [vmem:[%s7225 + $0x128] sm:$0xff]
      %v7264 = vld [vmem:[%s7225 + $0x130] sm:$0xff]
      %v7265 = vld [vmem:[%s7225 + $0x138] sm:$0xff]
      %v7266 = vld [vmem:[%s7225 + $0x140] sm:$0xff]
      %v7267 = vld [vmem:[%s7225 + $0x148] sm:$0xff]
      %v7268 = vld [vmem:[%s7225 + $0x150] sm:$0xff]
      %v7269 = vld [vmem:[%s7225 + $0x158] sm:$0xff]
      %v7270 = vld [vmem:[%s7225 + $0x160] sm:$0xff]
      %v7271 = vld [vmem:[%s7225 + $0x168] sm:$0xff]
      %v7272 = vld [vmem:[%s7225 + $0x170] sm:$0xff]
      %v7273 = vld [vmem:[%s7225 + $0x178] sm:$0xff]
      %v7274 = vld [vmem:[%s7225 + $0x180] sm:$0xff]
      %v7275 = vld [vmem:[%s7225 + $0x188] sm:$0xff]
      %v7276 = vld [vmem:[%s7225 + $0x190] sm:$0xff]
      %v7277 = vld [vmem:[%s7225 + $0x198] sm:$0xff]
      %v7278 = vld [vmem:[%s7225 + $0x1a0] sm:$0xff]
      %v7279 = vld [vmem:[%s7225 + $0x1a8] sm:$0xff]
      %v7280 = vld [vmem:[%s7225 + $0x1b0] sm:$0xff]
      %v7281 = vld [vmem:[%s7225 + $0x1b8] sm:$0xff]
      %v7282 = vld [vmem:[%s7225 + $0x1c0] sm:$0xff]
      %v7283 = vld [vmem:[%s7225 + $0x1c8] sm:$0xff]
      %v7284 = vld [vmem:[%s7225 + $0x1d0] sm:$0xff]
      %v7285 = vld [vmem:[%s7225 + $0x1d8] sm:$0xff]
      %s7286 = scalar_lea.vmem %s2, 3360
      %v7287 = vld [vmem:[%s7286] sm:$0xff]
      %v7288 = vld [vmem:[%s7286 + $0x8] sm:$0xff]
      %v7289 = vld [vmem:[%s7286 + $0x10] sm:$0xff]
      %v7290 = vld [vmem:[%s7286 + $0x18] sm:$0xff]
      %v7291 = vld [vmem:[%s7286 + $0x20] sm:$0xff]
      %v7292 = vld [vmem:[%s7286 + $0x28] sm:$0xff]
      %v7293 = vld [vmem:[%s7286 + $0x30] sm:$0xff]
      %v7294 = vld [vmem:[%s7286 + $0x38] sm:$0xff]
      %v7295 = vld [vmem:[%s7286 + $0x40] sm:$0xff]
      %v7296 = vld [vmem:[%s7286 + $0x48] sm:$0xff]
      %v7297 = vld [vmem:[%s7286 + $0x50] sm:$0xff]
      %v7298 = vld [vmem:[%s7286 + $0x58] sm:$0xff]
      %v7299 = vld [vmem:[%s7286 + $0x60] sm:$0xff]
      %v7300 = vld [vmem:[%s7286 + $0x68] sm:$0xff]
      %v7301 = vld [vmem:[%s7286 + $0x70] sm:$0xff]
      %v7302 = vld [vmem:[%s7286 + $0x78] sm:$0xff]
      %v7303 = vld [vmem:[%s7286 + $0x80] sm:$0xff]
      %v7304 = vld [vmem:[%s7286 + $0x88] sm:$0xff]
      %v7305 = vld [vmem:[%s7286 + $0x90] sm:$0xff]
      %v7306 = vld [vmem:[%s7286 + $0x98] sm:$0xff]
      %v7307 = vld [vmem:[%s7286 + $0xa0] sm:$0xff]
      %v7308 = vld [vmem:[%s7286 + $0xa8] sm:$0xff]
      %v7309 = vld [vmem:[%s7286 + $0xb0] sm:$0xff]
      %v7310 = vld [vmem:[%s7286 + $0xb8] sm:$0xff]
      %v7311 = vld [vmem:[%s7286 + $0xc0] sm:$0xff]
      %v7312 = vld [vmem:[%s7286 + $0xc8] sm:$0xff]
      %v7313 = vld [vmem:[%s7286 + $0xd0] sm:$0xff]
      %v7314 = vld [vmem:[%s7286 + $0xd8] sm:$0xff]
      %v7315 = vld [vmem:[%s7286 + $0xe0] sm:$0xff]
      %v7316 = vld [vmem:[%s7286 + $0xe8] sm:$0xff]
      %v7317 = vld [vmem:[%s7286 + $0xf0] sm:$0xff]
      %v7318 = vld [vmem:[%s7286 + $0xf8] sm:$0xff]
      %v7319 = vld [vmem:[%s7286 + $0x100] sm:$0xff]
      %v7320 = vld [vmem:[%s7286 + $0x108] sm:$0xff]
      %v7321 = vld [vmem:[%s7286 + $0x110] sm:$0xff]
      %v7322 = vld [vmem:[%s7286 + $0x118] sm:$0xff]
      %v7323 = vld [vmem:[%s7286 + $0x120] sm:$0xff]
      %v7324 = vld [vmem:[%s7286 + $0x128] sm:$0xff]
      %v7325 = vld [vmem:[%s7286 + $0x130] sm:$0xff]
      %v7326 = vld [vmem:[%s7286 + $0x138] sm:$0xff]
      %v7327 = vld [vmem:[%s7286 + $0x140] sm:$0xff]
      %v7328 = vld [vmem:[%s7286 + $0x148] sm:$0xff]
      %v7329 = vld [vmem:[%s7286 + $0x150] sm:$0xff]
      %v7330 = vld [vmem:[%s7286 + $0x158] sm:$0xff]
      %v7331 = vld [vmem:[%s7286 + $0x160] sm:$0xff]
      %v7332 = vld [vmem:[%s7286 + $0x168] sm:$0xff]
      %v7333 = vld [vmem:[%s7286 + $0x170] sm:$0xff]
      %v7334 = vld [vmem:[%s7286 + $0x178] sm:$0xff]
      %v7335 = vld [vmem:[%s7286 + $0x180] sm:$0xff]
      %v7336 = vld [vmem:[%s7286 + $0x188] sm:$0xff]
      %v7337 = vld [vmem:[%s7286 + $0x190] sm:$0xff]
      %v7338 = vld [vmem:[%s7286 + $0x198] sm:$0xff]
      %v7339 = vld [vmem:[%s7286 + $0x1a0] sm:$0xff]
      %v7340 = vld [vmem:[%s7286 + $0x1a8] sm:$0xff]
      %v7341 = vld [vmem:[%s7286 + $0x1b0] sm:$0xff]
      %v7342 = vld [vmem:[%s7286 + $0x1b8] sm:$0xff]
      %v7343 = vld [vmem:[%s7286 + $0x1c0] sm:$0xff]
      %v7344 = vld [vmem:[%s7286 + $0x1c8] sm:$0xff]
      %v7345 = vld [vmem:[%s7286 + $0x1d0] sm:$0xff]
      %v7346 = vld [vmem:[%s7286 + $0x1d8] sm:$0xff]
      %v7407 = vunpack.c.l.b16 %v7287
      %v7408 = vunpack.c.h.b16 %v7287
      %v7409 = vunpack.c.l.b16 %v7288
      %v7410 = vunpack.c.h.b16 %v7288
      %v7411 = vunpack.c.l.b16 %v7289
      %v7412 = vunpack.c.h.b16 %v7289
      %v7413 = vunpack.c.l.b16 %v7290
      %v7414 = vunpack.c.h.b16 %v7290
      %v7415 = vunpack.c.l.b16 %v7291
      %v7416 = vunpack.c.h.b16 %v7291
      %v7417 = vunpack.c.l.b16 %v7292
      %v7418 = vunpack.c.h.b16 %v7292
      %v7419 = vunpack.c.l.b16 %v7293
      %v7420 = vunpack.c.h.b16 %v7293
      %v7421 = vunpack.c.l.b16 %v7294
      %v7422 = vunpack.c.h.b16 %v7294
      %v7423 = vunpack.c.l.b16 %v7295
      %v7424 = vunpack.c.h.b16 %v7295
      %v7425 = vunpack.c.l.b16 %v7296
      %v7426 = vunpack.c.h.b16 %v7296
      %v7427 = vunpack.c.l.b16 %v7297
      %v7428 = vunpack.c.h.b16 %v7297
      %v7429 = vunpack.c.l.b16 %v7298
      %v7430 = vunpack.c.h.b16 %v7298
      %v7431 = vunpack.c.l.b16 %v7299
      %v7432 = vunpack.c.h.b16 %v7299
      %v7433 = vunpack.c.l.b16 %v7300
      %v7434 = vunpack.c.h.b16 %v7300
      %v7435 = vunpack.c.l.b16 %v7301
      %v7436 = vunpack.c.h.b16 %v7301
      %v7437 = vunpack.c.l.b16 %v7302
      %v7438 = vunpack.c.h.b16 %v7302
      %v7439 = vunpack.c.l.b16 %v7303
      %v7440 = vunpack.c.h.b16 %v7303
      %v7441 = vunpack.c.l.b16 %v7304
      %v7442 = vunpack.c.h.b16 %v7304
      %v7443 = vunpack.c.l.b16 %v7305
      %v7444 = vunpack.c.h.b16 %v7305
      %v7445 = vunpack.c.l.b16 %v7306
      %v7446 = vunpack.c.h.b16 %v7306
      %v7447 = vunpack.c.l.b16 %v7307
      %v7448 = vunpack.c.h.b16 %v7307
      %v7449 = vunpack.c.l.b16 %v7308
      %v7450 = vunpack.c.h.b16 %v7308
      %v7451 = vunpack.c.l.b16 %v7309
      %v7452 = vunpack.c.h.b16 %v7309
      %v7453 = vunpack.c.l.b16 %v7310
      %v7454 = vunpack.c.h.b16 %v7310
      %v7455 = vunpack.c.l.b16 %v7311
      %v7456 = vunpack.c.h.b16 %v7311
      %v7457 = vunpack.c.l.b16 %v7312
      %v7458 = vunpack.c.h.b16 %v7312
      %v7459 = vunpack.c.l.b16 %v7313
      %v7460 = vunpack.c.h.b16 %v7313
      %v7461 = vunpack.c.l.b16 %v7314
      %v7462 = vunpack.c.h.b16 %v7314
      %v7463 = vunpack.c.l.b16 %v7315
      %v7464 = vunpack.c.h.b16 %v7315
      %v7465 = vunpack.c.l.b16 %v7316
      %v7466 = vunpack.c.h.b16 %v7316
      %v7467 = vunpack.c.l.b16 %v7317
      %v7468 = vunpack.c.h.b16 %v7317
      %v7469 = vunpack.c.l.b16 %v7318
      %v7470 = vunpack.c.h.b16 %v7318
      %v7471 = vunpack.c.l.b16 %v7319
      %v7472 = vunpack.c.h.b16 %v7319
      %v7473 = vunpack.c.l.b16 %v7320
      %v7474 = vunpack.c.h.b16 %v7320
      %v7475 = vunpack.c.l.b16 %v7321
      %v7476 = vunpack.c.h.b16 %v7321
      %v7477 = vunpack.c.l.b16 %v7322
      %v7478 = vunpack.c.h.b16 %v7322
      %v7479 = vunpack.c.l.b16 %v7323
      %v7480 = vunpack.c.h.b16 %v7323
      %v7481 = vunpack.c.l.b16 %v7324
      %v7482 = vunpack.c.h.b16 %v7324
      %v7483 = vunpack.c.l.b16 %v7325
      %v7484 = vunpack.c.h.b16 %v7325
      %v7485 = vunpack.c.l.b16 %v7326
      %v7486 = vunpack.c.h.b16 %v7326
      %v7487 = vunpack.c.l.b16 %v7327
      %v7488 = vunpack.c.h.b16 %v7327
      %v7489 = vunpack.c.l.b16 %v7328
      %v7490 = vunpack.c.h.b16 %v7328
      %v7491 = vunpack.c.l.b16 %v7329
      %v7492 = vunpack.c.h.b16 %v7329
      %v7493 = vunpack.c.l.b16 %v7330
      %v7494 = vunpack.c.h.b16 %v7330
      %v7495 = vunpack.c.l.b16 %v7331
      %v7496 = vunpack.c.h.b16 %v7331
      %v7497 = vunpack.c.l.b16 %v7332
      %v7498 = vunpack.c.h.b16 %v7332
      %v7499 = vunpack.c.l.b16 %v7333
      %v7500 = vunpack.c.h.b16 %v7333
      %v7501 = vunpack.c.l.b16 %v7334
      %v7502 = vunpack.c.h.b16 %v7334
      %v7503 = vunpack.c.l.b16 %v7335
      %v7504 = vunpack.c.h.b16 %v7335
      %v7505 = vunpack.c.l.b16 %v7336
      %v7506 = vunpack.c.h.b16 %v7336
      %v7507 = vunpack.c.l.b16 %v7337
      %v7508 = vunpack.c.h.b16 %v7337
      %v7509 = vunpack.c.l.b16 %v7338
      %v7510 = vunpack.c.h.b16 %v7338
      %v7511 = vunpack.c.l.b16 %v7339
      %v7512 = vunpack.c.h.b16 %v7339
      %v7513 = vunpack.c.l.b16 %v7340
      %v7514 = vunpack.c.h.b16 %v7340
      %v7515 = vunpack.c.l.b16 %v7341
      %v7516 = vunpack.c.h.b16 %v7341
      %v7517 = vunpack.c.l.b16 %v7342
      %v7518 = vunpack.c.h.b16 %v7342
      %v7519 = vunpack.c.l.b16 %v7343
      %v7520 = vunpack.c.h.b16 %v7343
      %v7521 = vunpack.c.l.b16 %v7344
      %v7522 = vunpack.c.h.b16 %v7344
      %v7523 = vunpack.c.l.b16 %v7345
      %v7524 = vunpack.c.h.b16 %v7345
      %v7525 = vunpack.c.l.b16 %v7346
      %v7526 = vunpack.c.h.b16 %v7346
      %v7527 = vpack.c.b16 %v7409, %v7407
      %v7528 = vpack.c.b16 %v7410, %v7408
      %v7529 = vpack.c.b16 %v7413, %v7411
      %v7530 = vpack.c.b16 %v7414, %v7412
      %v7531 = vpack.c.b16 %v7417, %v7415
      %v7532 = vpack.c.b16 %v7418, %v7416
      %v7533 = vpack.c.b16 %v7421, %v7419
      %v7534 = vpack.c.b16 %v7422, %v7420
      %v7535 = vpack.c.b16 %v7425, %v7423
      %v7536 = vpack.c.b16 %v7426, %v7424
      %v7537 = vpack.c.b16 %v7429, %v7427
      %v7538 = vpack.c.b16 %v7430, %v7428
      %v7539 = vpack.c.b16 %v7433, %v7431
      %v7540 = vpack.c.b16 %v7434, %v7432
      %v7541 = vpack.c.b16 %v7437, %v7435
      %v7542 = vpack.c.b16 %v7438, %v7436
      %v7543 = vpack.c.b16 %v7441, %v7439
      %v7544 = vpack.c.b16 %v7442, %v7440
      %v7545 = vpack.c.b16 %v7445, %v7443
      %v7546 = vpack.c.b16 %v7446, %v7444
      %v7547 = vpack.c.b16 %v7449, %v7447
      %v7548 = vpack.c.b16 %v7450, %v7448
      %v7549 = vpack.c.b16 %v7453, %v7451
      %v7550 = vpack.c.b16 %v7454, %v7452
      %v7551 = vpack.c.b16 %v7457, %v7455
      %v7552 = vpack.c.b16 %v7458, %v7456
      %v7553 = vpack.c.b16 %v7461, %v7459
      %v7554 = vpack.c.b16 %v7462, %v7460
      %v7555 = vpack.c.b16 %v7465, %v7463
      %v7556 = vpack.c.b16 %v7466, %v7464
      %v7557 = vpack.c.b16 %v7469, %v7467
      %v7558 = vpack.c.b16 %v7470, %v7468
      %v7559 = vpack.c.b16 %v7473, %v7471
      %v7560 = vpack.c.b16 %v7474, %v7472
      %v7561 = vpack.c.b16 %v7477, %v7475
      %v7562 = vpack.c.b16 %v7478, %v7476
      %v7563 = vpack.c.b16 %v7481, %v7479
      %v7564 = vpack.c.b16 %v7482, %v7480
      %v7565 = vpack.c.b16 %v7485, %v7483
      %v7566 = vpack.c.b16 %v7486, %v7484
      %v7567 = vpack.c.b16 %v7489, %v7487
      %v7568 = vpack.c.b16 %v7490, %v7488
      %v7569 = vpack.c.b16 %v7493, %v7491
      %v7570 = vpack.c.b16 %v7494, %v7492
      %v7571 = vpack.c.b16 %v7497, %v7495
      %v7572 = vpack.c.b16 %v7498, %v7496
      %v7573 = vpack.c.b16 %v7501, %v7499
      %v7574 = vpack.c.b16 %v7502, %v7500
      %v7575 = vpack.c.b16 %v7505, %v7503
      %v7576 = vpack.c.b16 %v7506, %v7504
      %v7577 = vpack.c.b16 %v7509, %v7507
      %v7578 = vpack.c.b16 %v7510, %v7508
      %v7579 = vpack.c.b16 %v7513, %v7511
      %v7580 = vpack.c.b16 %v7514, %v7512
      %v7581 = vpack.c.b16 %v7517, %v7515
      %v7582 = vpack.c.b16 %v7518, %v7516
      %v7583 = vpack.c.b16 %v7521, %v7519
      %v7584 = vpack.c.b16 %v7522, %v7520
      %v7585 = vpack.c.b16 %v7525, %v7523
      %v7586 = vpack.c.b16 %v7526, %v7524
      %7647 = vmatprep.subr.bf16.mxu0 %v7542
      %7648 = vmatpush1.bf16.msra.mxu0 %v7541
      %7649 = vmatprep.subr.bf16.mxu0 %v7540
      %7650 = vmatpush1.bf16.msra.mxu0 %v7539
      %7651 = vmatprep.subr.bf16.mxu0 %v7538
      %7652 = vmatpush1.bf16.msra.mxu0 %v7537
      %7653 = vmatprep.subr.bf16.mxu0 %v7536
      %7654 = vmatpush1.bf16.msra.mxu0 %v7535
      %7655 = vmatprep.subr.bf16.mxu0 %v7534
      %7656 = vmatpush1.bf16.msra.mxu0 %v7533
      %7657 = vmatprep.subr.bf16.mxu0 %v7532
      %7658 = vmatpush1.bf16.msra.mxu0 %v7531
      %7659 = vmatprep.subr.bf16.mxu0 %v7530
      %7660 = vmatpush1.bf16.msra.mxu0 %v7529
      %7661 = vmatprep.subr.bf16.mxu0 %v7528
      %7662 = vmatpush1.bf16.msra.mxu0 %v7527
      %7663 = vmatprep.subr.bf16.mxu0 %v7558
      %7664 = vmatpush2.bf16.msra.mxu0 %v7557
      %7665 = vmatprep.subr.bf16.mxu0 %v7556
      %7666 = vmatpush2.bf16.msra.mxu0 %v7555
      %7667 = vmatprep.subr.bf16.mxu0 %v7554
      %7668 = vmatpush2.bf16.msra.mxu0 %v7553
      %7669 = vmatprep.subr.bf16.mxu0 %v7552
      %7670 = vmatpush2.bf16.msra.mxu0 %v7551
      %7671 = vmatprep.subr.bf16.mxu0 %v7550
      %7672 = vmatpush2.bf16.msra.mxu0 %v7549
      %7673 = vmatprep.subr.bf16.mxu0 %v7548
      %7674 = vmatpush2.bf16.msra.mxu0 %v7547
      %7675 = vmatprep.subr.bf16.mxu0 %v7546
      %7676 = vmatpush2.bf16.msra.mxu0 %v7545
      %7677 = vmatprep.subr.bf16.mxu0 %v7544
      %7678 = vmatpush2.bf16.msra.mxu0 %v7543
      %7679 = vmatprep.mubr.bf16.mxu0 %v4117
      %7680 = vmatmul.mubr.bf16.gmra.mxu0 %v4116
      %v7681 = vpop.f32.mrf.mxu0
      %v7682 = vadd.f32 0.0, %v7681
      %v7683 = vpop.f32.mrf.mxu0
      %v7684 = vadd.f32 0.0, %v7683
      %v7685 = vpop.f32.mrf.mxu0
      %v7686 = vadd.f32 0.0, %v7685
      %v7687 = vpop.f32.mrf.mxu0
      %v7688 = vadd.f32 0.0, %v7687
      %7689 = vmatprep.mubr.bf16.mxu0 %v4121
      %7690 = vmatmul.mubr.bf16.gmra.mxu0 %v4120
      %v7691 = vpop.f32.mrf.mxu0
      %v7692 = vadd.f32 0.0, %v7691
      %v7693 = vpop.f32.mrf.mxu0
      %v7694 = vadd.f32 0.0, %v7693
      %v7695 = vpop.f32.mrf.mxu0
      %v7696 = vadd.f32 0.0, %v7695
      %v7697 = vpop.f32.mrf.mxu0
      %v7698 = vadd.f32 0.0, %v7697
      %7699 = vdwg.mxu0
      %7700 = vmatprep.subr.bf16.mxu0 %v7574
      %7701 = vmatpush1.bf16.msra.mxu0 %v7573
      %7702 = vmatprep.subr.bf16.mxu0 %v7572
      %7703 = vmatpush1.bf16.msra.mxu0 %v7571
      %7704 = vmatprep.subr.bf16.mxu0 %v7570
      %7705 = vmatpush1.bf16.msra.mxu0 %v7569
      %7706 = vmatprep.subr.bf16.mxu0 %v7568
      %7707 = vmatpush1.bf16.msra.mxu0 %v7567
      %7708 = vmatprep.subr.bf16.mxu0 %v7566
      %7709 = vmatpush1.bf16.msra.mxu0 %v7565
      %7710 = vmatprep.subr.bf16.mxu0 %v7564
      %7711 = vmatpush1.bf16.msra.mxu0 %v7563
      %7712 = vmatprep.subr.bf16.mxu0 %v7562
      %7713 = vmatpush1.bf16.msra.mxu0 %v7561
      %7714 = vmatprep.subr.bf16.mxu0 %v7560
      %7715 = vmatpush1.bf16.msra.mxu0 %v7559
      %7716 = vmatprep.subr.bf16.mxu0 0
      %7717 = vmatpush2.bf16.msra.mxu0 0
      %7718 = vmatprep.subr.bf16.mxu0 0
      %7719 = vmatpush2.bf16.msra.mxu0 0
      %7720 = vmatprep.subr.bf16.mxu0 %v7586
      %7721 = vmatpush2.bf16.msra.mxu0 %v7585
      %7722 = vmatprep.subr.bf16.mxu0 %v7584
      %7723 = vmatpush2.bf16.msra.mxu0 %v7583
      %7724 = vmatprep.subr.bf16.mxu0 %v7582
      %7725 = vmatpush2.bf16.msra.mxu0 %v7581
      %7726 = vmatprep.subr.bf16.mxu0 %v7580
      %7727 = vmatpush2.bf16.msra.mxu0 %v7579
      %7728 = vmatprep.subr.bf16.mxu0 %v7578
      %7729 = vmatpush2.bf16.msra.mxu0 %v7577
      %7730 = vmatprep.subr.bf16.mxu0 %v7576
      %7731 = vmatpush2.bf16.msra.mxu0 %v7575
      %7732 = vmatprep.mubr.bf16.mxu0 %v4718
      %7733 = vmatmul.mubr.bf16.gmra.mxu0 %v4118
      %v7734 = vpop.f32.mrf.mxu0
      %v7735 = vadd.f32 %v7682, %v7734
      %v7736 = vpop.f32.mrf.mxu0
      %v7737 = vadd.f32 %v7684, %v7736
      %v7738 = vpop.f32.mrf.mxu0
      %v7739 = vadd.f32 %v7686, %v7738
      %v7740 = vpop.f32.mrf.mxu0
      %v7741 = vadd.f32 %v7688, %v7740
      %7742 = vmatprep.mubr.bf16.mxu0 %v4721
      %7743 = vmatmul.mubr.bf16.gmra.mxu0 %v4122
      %v7744 = vpop.f32.mrf.mxu0
      %v7745 = vadd.f32 %v7692, %v7744
      %v7746 = vpop.f32.mrf.mxu0
      %v7747 = vadd.f32 %v7694, %v7746
      %v7748 = vpop.f32.mrf.mxu0
      %v7749 = vadd.f32 %v7696, %v7748
      %v7750 = vpop.f32.mrf.mxu0
      %v7751 = vadd.f32 %v7698, %v7750
      %7752 = vdwg.mxu0
      %v7813 = vunpack.c.l.b16 %v7226
      %v7814 = vunpack.c.h.b16 %v7226
      %v7815 = vunpack.c.l.b16 %v7227
      %v7816 = vunpack.c.h.b16 %v7227
      %v7817 = vunpack.c.l.b16 %v7228
      %v7818 = vunpack.c.h.b16 %v7228
      %v7819 = vunpack.c.l.b16 %v7229
      %v7820 = vunpack.c.h.b16 %v7229
      %v7821 = vunpack.c.l.b16 %v7230
      %v7822 = vunpack.c.h.b16 %v7230
      %v7823 = vunpack.c.l.b16 %v7231
      %v7824 = vunpack.c.h.b16 %v7231
      %v7825 = vunpack.c.l.b16 %v7232
      %v7826 = vunpack.c.h.b16 %v7232
      %v7827 = vunpack.c.l.b16 %v7233
      %v7828 = vunpack.c.h.b16 %v7233
      %v7829 = vunpack.c.l.b16 %v7234
      %v7830 = vunpack.c.h.b16 %v7234
      %v7831 = vunpack.c.l.b16 %v7235
      %v7832 = vunpack.c.h.b16 %v7235
      %v7833 = vunpack.c.l.b16 %v7236
      %v7834 = vunpack.c.h.b16 %v7236
      %v7835 = vunpack.c.l.b16 %v7237
      %v7836 = vunpack.c.h.b16 %v7237
      %v7837 = vunpack.c.l.b16 %v7238
      %v7838 = vunpack.c.h.b16 %v7238
      %v7839 = vunpack.c.l.b16 %v7239
      %v7840 = vunpack.c.h.b16 %v7239
      %v7841 = vunpack.c.l.b16 %v7240
      %v7842 = vunpack.c.h.b16 %v7240
      %v7843 = vunpack.c.l.b16 %v7241
      %v7844 = vunpack.c.h.b16 %v7241
      %v7845 = vunpack.c.l.b16 %v7242
      %v7846 = vunpack.c.h.b16 %v7242
      %v7847 = vunpack.c.l.b16 %v7243
      %v7848 = vunpack.c.h.b16 %v7243
      %v7849 = vunpack.c.l.b16 %v7244
      %v7850 = vunpack.c.h.b16 %v7244
      %v7851 = vunpack.c.l.b16 %v7245
      %v7852 = vunpack.c.h.b16 %v7245
      %v7853 = vunpack.c.l.b16 %v7246
      %v7854 = vunpack.c.h.b16 %v7246
      %v7855 = vunpack.c.l.b16 %v7247
      %v7856 = vunpack.c.h.b16 %v7247
      %v7857 = vunpack.c.l.b16 %v7248
      %v7858 = vunpack.c.h.b16 %v7248
      %v7859 = vunpack.c.l.b16 %v7249
      %v7860 = vunpack.c.h.b16 %v7249
      %v7861 = vunpack.c.l.b16 %v7250
      %v7862 = vunpack.c.h.b16 %v7250
      %v7863 = vunpack.c.l.b16 %v7251
      %v7864 = vunpack.c.h.b16 %v7251
      %v7865 = vunpack.c.l.b16 %v7252
      %v7866 = vunpack.c.h.b16 %v7252
      %v7867 = vunpack.c.l.b16 %v7253
      %v7868 = vunpack.c.h.b16 %v7253
      %v7869 = vunpack.c.l.b16 %v7254
      %v7870 = vunpack.c.h.b16 %v7254
      %v7871 = vunpack.c.l.b16 %v7255
      %v7872 = vunpack.c.h.b16 %v7255
      %v7873 = vunpack.c.l.b16 %v7256
      %v7874 = vunpack.c.h.b16 %v7256
      %v7875 = vunpack.c.l.b16 %v7257
      %v7876 = vunpack.c.h.b16 %v7257
      %v7877 = vunpack.c.l.b16 %v7258
      %v7878 = vunpack.c.h.b16 %v7258
      %v7879 = vunpack.c.l.b16 %v7259
      %v7880 = vunpack.c.h.b16 %v7259
      %v7881 = vunpack.c.l.b16 %v7260
      %v7882 = vunpack.c.h.b16 %v7260
      %v7883 = vunpack.c.l.b16 %v7261
      %v7884 = vunpack.c.h.b16 %v7261
      %v7885 = vunpack.c.l.b16 %v7262
      %v7886 = vunpack.c.h.b16 %v7262
      %v7887 = vunpack.c.l.b16 %v7263
      %v7888 = vunpack.c.h.b16 %v7263
      %v7889 = vunpack.c.l.b16 %v7264
      %v7890 = vunpack.c.h.b16 %v7264
      %v7891 = vunpack.c.l.b16 %v7265
      %v7892 = vunpack.c.h.b16 %v7265
      %v7893 = vunpack.c.l.b16 %v7266
      %v7894 = vunpack.c.h.b16 %v7266
      %v7895 = vunpack.c.l.b16 %v7267
      %v7896 = vunpack.c.h.b16 %v7267
      %v7897 = vunpack.c.l.b16 %v7268
      %v7898 = vunpack.c.h.b16 %v7268
      %v7899 = vunpack.c.l.b16 %v7269
      %v7900 = vunpack.c.h.b16 %v7269
      %v7901 = vunpack.c.l.b16 %v7270
      %v7902 = vunpack.c.h.b16 %v7270
      %v7903 = vunpack.c.l.b16 %v7271
      %v7904 = vunpack.c.h.b16 %v7271
      %v7905 = vunpack.c.l.b16 %v7272
      %v7906 = vunpack.c.h.b16 %v7272
      %v7907 = vunpack.c.l.b16 %v7273
      %v7908 = vunpack.c.h.b16 %v7273
      %v7909 = vunpack.c.l.b16 %v7274
      %v7910 = vunpack.c.h.b16 %v7274
      %v7911 = vunpack.c.l.b16 %v7275
      %v7912 = vunpack.c.h.b16 %v7275
      %v7913 = vunpack.c.l.b16 %v7276
      %v7914 = vunpack.c.h.b16 %v7276
      %v7915 = vunpack.c.l.b16 %v7277
      %v7916 = vunpack.c.h.b16 %v7277
      %v7917 = vunpack.c.l.b16 %v7278
      %v7918 = vunpack.c.h.b16 %v7278
      %v7919 = vunpack.c.l.b16 %v7279
      %v7920 = vunpack.c.h.b16 %v7279
      %v7921 = vunpack.c.l.b16 %v7280
      %v7922 = vunpack.c.h.b16 %v7280
      %v7923 = vunpack.c.l.b16 %v7281
      %v7924 = vunpack.c.h.b16 %v7281
      %v7925 = vunpack.c.l.b16 %v7282
      %v7926 = vunpack.c.h.b16 %v7282
      %v7927 = vunpack.c.l.b16 %v7283
      %v7928 = vunpack.c.h.b16 %v7283
      %v7929 = vunpack.c.l.b16 %v7284
      %v7930 = vunpack.c.h.b16 %v7284
      %v7931 = vunpack.c.l.b16 %v7285
      %v7932 = vunpack.c.h.b16 %v7285
      %v7933 = vpack.c.b16 %v7815, %v7813
      %v7934 = vpack.c.b16 %v7816, %v7814
      %v7935 = vpack.c.b16 %v7819, %v7817
      %v7936 = vpack.c.b16 %v7820, %v7818
      %v7937 = vpack.c.b16 %v7823, %v7821
      %v7938 = vpack.c.b16 %v7824, %v7822
      %v7939 = vpack.c.b16 %v7827, %v7825
      %v7940 = vpack.c.b16 %v7828, %v7826
      %v7941 = vpack.c.b16 %v7831, %v7829
      %v7942 = vpack.c.b16 %v7832, %v7830
      %v7943 = vpack.c.b16 %v7835, %v7833
      %v7944 = vpack.c.b16 %v7836, %v7834
      %v7945 = vpack.c.b16 %v7839, %v7837
      %v7946 = vpack.c.b16 %v7840, %v7838
      %v7947 = vpack.c.b16 %v7843, %v7841
      %v7948 = vpack.c.b16 %v7844, %v7842
      %v7949 = vpack.c.b16 %v7847, %v7845
      %v7950 = vpack.c.b16 %v7848, %v7846
      %v7951 = vpack.c.b16 %v7851, %v7849
      %v7952 = vpack.c.b16 %v7852, %v7850
      %v7953 = vpack.c.b16 %v7855, %v7853
      %v7954 = vpack.c.b16 %v7856, %v7854
      %v7955 = vpack.c.b16 %v7859, %v7857
      %v7956 = vpack.c.b16 %v7860, %v7858
      %v7957 = vpack.c.b16 %v7863, %v7861
      %v7958 = vpack.c.b16 %v7864, %v7862
      %v7959 = vpack.c.b16 %v7867, %v7865
      %v7960 = vpack.c.b16 %v7868, %v7866
      %v7961 = vpack.c.b16 %v7871, %v7869
      %v7962 = vpack.c.b16 %v7872, %v7870
      %v7963 = vpack.c.b16 %v7875, %v7873
      %v7964 = vpack.c.b16 %v7876, %v7874
      %v7965 = vpack.c.b16 %v7879, %v7877
      %v7966 = vpack.c.b16 %v7880, %v7878
      %v7967 = vpack.c.b16 %v7883, %v7881
      %v7968 = vpack.c.b16 %v7884, %v7882
      %v7969 = vpack.c.b16 %v7887, %v7885
      %v7970 = vpack.c.b16 %v7888, %v7886
      %v7971 = vpack.c.b16 %v7891, %v7889
      %v7972 = vpack.c.b16 %v7892, %v7890
      %v7973 = vpack.c.b16 %v7895, %v7893
      %v7974 = vpack.c.b16 %v7896, %v7894
      %v7975 = vpack.c.b16 %v7899, %v7897
      %v7976 = vpack.c.b16 %v7900, %v7898
      %v7977 = vpack.c.b16 %v7903, %v7901
      %v7978 = vpack.c.b16 %v7904, %v7902
      %v7979 = vpack.c.b16 %v7907, %v7905
      %v7980 = vpack.c.b16 %v7908, %v7906
      %v7981 = vpack.c.b16 %v7911, %v7909
      %v7982 = vpack.c.b16 %v7912, %v7910
      %v7983 = vpack.c.b16 %v7915, %v7913
      %v7984 = vpack.c.b16 %v7916, %v7914
      %v7985 = vpack.c.b16 %v7919, %v7917
      %v7986 = vpack.c.b16 %v7920, %v7918
      %v7987 = vpack.c.b16 %v7923, %v7921
      %v7988 = vpack.c.b16 %v7924, %v7922
      %v7989 = vpack.c.b16 %v7927, %v7925
      %v7990 = vpack.c.b16 %v7928, %v7926
      %v7991 = vpack.c.b16 %v7931, %v7929
      %v7992 = vpack.c.b16 %v7932, %v7930
      %8053 = vmatprep.subr.bf16.mxu0 %v7948
      %8054 = vmatpush1.bf16.msra.mxu0 %v7947
      %8055 = vmatprep.subr.bf16.mxu0 %v7946
      %8056 = vmatpush1.bf16.msra.mxu0 %v7945
      %8057 = vmatprep.subr.bf16.mxu0 %v7944
      %8058 = vmatpush1.bf16.msra.mxu0 %v7943
      %8059 = vmatprep.subr.bf16.mxu0 %v7942
      %8060 = vmatpush1.bf16.msra.mxu0 %v7941
      %8061 = vmatprep.subr.bf16.mxu0 %v7940
      %8062 = vmatpush1.bf16.msra.mxu0 %v7939
      %8063 = vmatprep.subr.bf16.mxu0 %v7938
      %8064 = vmatpush1.bf16.msra.mxu0 %v7937
      %8065 = vmatprep.subr.bf16.mxu0 %v7936
      %8066 = vmatpush1.bf16.msra.mxu0 %v7935
      %8067 = vmatprep.subr.bf16.mxu0 %v7934
      %8068 = vmatpush1.bf16.msra.mxu0 %v7933
      %8069 = vmatprep.subr.bf16.mxu0 %v7964
      %8070 = vmatpush2.bf16.msra.mxu0 %v7963
      %8071 = vmatprep.subr.bf16.mxu0 %v7962
      %8072 = vmatpush2.bf16.msra.mxu0 %v7961
      %8073 = vmatprep.subr.bf16.mxu0 %v7960
      %8074 = vmatpush2.bf16.msra.mxu0 %v7959
      %8075 = vmatprep.subr.bf16.mxu0 %v7958
      %8076 = vmatpush2.bf16.msra.mxu0 %v7957
      %8077 = vmatprep.subr.bf16.mxu0 %v7956
      %8078 = vmatpush2.bf16.msra.mxu0 %v7955
      %8079 = vmatprep.subr.bf16.mxu0 %v7954
      %8080 = vmatpush2.bf16.msra.mxu0 %v7953
      %8081 = vmatprep.subr.bf16.mxu0 %v7952
      %8082 = vmatpush2.bf16.msra.mxu0 %v7951
      %8083 = vmatprep.subr.bf16.mxu0 %v7950
      %8084 = vmatpush2.bf16.msra.mxu0 %v7949
      %8085 = vmatprep.mubr.bf16.mxu0 %v3887
      %8086 = vmatmul.mubr.bf16.gmra.mxu0 %v3886
      %v8087 = vpop.f32.mrf.mxu0
      %v8088 = vadd.f32 %v7735, %v8087
      %v8089 = vpop.f32.mrf.mxu0
      %v8090 = vadd.f32 %v7737, %v8089
      %v8091 = vpop.f32.mrf.mxu0
      %v8092 = vadd.f32 %v7739, %v8091
      %v8093 = vpop.f32.mrf.mxu0
      %v8094 = vadd.f32 %v7741, %v8093
      %8095 = vmatprep.mubr.bf16.mxu0 %v3891
      %8096 = vmatmul.mubr.bf16.gmra.mxu0 %v3890
      %v8097 = vpop.f32.mrf.mxu0
      %v8098 = vadd.f32 %v7745, %v8097
      %v8099 = vpop.f32.mrf.mxu0
      %v8100 = vadd.f32 %v7747, %v8099
      %v8101 = vpop.f32.mrf.mxu0
      %v8102 = vadd.f32 %v7749, %v8101
      %v8103 = vpop.f32.mrf.mxu0
      %v8104 = vadd.f32 %v7751, %v8103
      %8105 = vdwg.mxu0
      %8106 = vmatprep.subr.bf16.mxu0 %v7980
      %8107 = vmatpush1.bf16.msra.mxu0 %v7979
      %8108 = vmatprep.subr.bf16.mxu0 %v7978
      %8109 = vmatpush1.bf16.msra.mxu0 %v7977
      %8110 = vmatprep.subr.bf16.mxu0 %v7976
      %8111 = vmatpush1.bf16.msra.mxu0 %v7975
      %8112 = vmatprep.subr.bf16.mxu0 %v7974
      %8113 = vmatpush1.bf16.msra.mxu0 %v7973
      %8114 = vmatprep.subr.bf16.mxu0 %v7972
      %8115 = vmatpush1.bf16.msra.mxu0 %v7971
      %8116 = vmatprep.subr.bf16.mxu0 %v7970
      %8117 = vmatpush1.bf16.msra.mxu0 %v7969
      %8118 = vmatprep.subr.bf16.mxu0 %v7968
      %8119 = vmatpush1.bf16.msra.mxu0 %v7967
      %8120 = vmatprep.subr.bf16.mxu0 %v7966
      %8121 = vmatpush1.bf16.msra.mxu0 %v7965
      %8122 = vmatprep.subr.bf16.mxu0 0
      %8123 = vmatpush2.bf16.msra.mxu0 0
      %8124 = vmatprep.subr.bf16.mxu0 0
      %8125 = vmatpush2.bf16.msra.mxu0 0
      %8126 = vmatprep.subr.bf16.mxu0 %v7992
      %8127 = vmatpush2.bf16.msra.mxu0 %v7991
      %8128 = vmatprep.subr.bf16.mxu0 %v7990
      %8129 = vmatpush2.bf16.msra.mxu0 %v7989
      %8130 = vmatprep.subr.bf16.mxu0 %v7988
      %8131 = vmatpush2.bf16.msra.mxu0 %v7987
      %8132 = vmatprep.subr.bf16.mxu0 %v7986
      %8133 = vmatpush2.bf16.msra.mxu0 %v7985
      %8134 = vmatprep.subr.bf16.mxu0 %v7984
      %8135 = vmatpush2.bf16.msra.mxu0 %v7983
      %8136 = vmatprep.subr.bf16.mxu0 %v7982
      %8137 = vmatpush2.bf16.msra.mxu0 %v7981
      %8138 = vmatprep.mubr.bf16.mxu0 %v5130
      %8139 = vmatmul.mubr.bf16.gmra.mxu0 %v3888
      %v8140 = vpop.f32.mrf.mxu0
      %v8141 = vadd.f32 %v8088, %v8140
      %v8142 = vpop.f32.mrf.mxu0
      %v8143 = vadd.f32 %v8090, %v8142
      %v8144 = vpop.f32.mrf.mxu0
      %v8145 = vadd.f32 %v8092, %v8144
      %v8146 = vpop.f32.mrf.mxu0
      %v8147 = vadd.f32 %v8094, %v8146
      %8148 = vmatprep.mubr.bf16.mxu0 %v5133
      %8149 = vmatmul.mubr.bf16.gmra.mxu0 %v3892
      %v8150 = vpop.f32.mrf.mxu0
      %v8151 = vadd.f32 %v8098, %v8150
      %v8152 = vpop.f32.mrf.mxu0
      %v8153 = vadd.f32 %v8100, %v8152
      %v8154 = vpop.f32.mrf.mxu0
      %v8155 = vadd.f32 %v8102, %v8154
      %v8156 = vpop.f32.mrf.mxu0
      %v8157 = vadd.f32 %v8104, %v8156
      %8158 = vdwg.mxu0
      %s8159 = scalar_lea.vmem %s2, 3840
      %v8160 = vld [vmem:[%s8159] sm:$0xff]
      %v8161 = vld [vmem:[%s8159 + $0x8] sm:$0xff]
      %v8162 = vld [vmem:[%s8159 + $0x10] sm:$0xff]
      %v8163 = vld [vmem:[%s8159 + $0x18] sm:$0xff]
      %v8164 = vld [vmem:[%s8159 + $0x20] sm:$0xff]
      %v8165 = vld [vmem:[%s8159 + $0x28] sm:$0xff]
      %v8166 = vld [vmem:[%s8159 + $0x30] sm:$0xff]
      %v8167 = vld [vmem:[%s8159 + $0x38] sm:$0xff]
      %v8168 = vld [vmem:[%s8159 + $0x40] sm:$0xff]
      %v8169 = vld [vmem:[%s8159 + $0x48] sm:$0xff]
      %v8170 = vld [vmem:[%s8159 + $0x50] sm:$0xff]
      %v8171 = vld [vmem:[%s8159 + $0x58] sm:$0xff]
      %v8172 = vld [vmem:[%s8159 + $0x60] sm:$0xff]
      %v8173 = vld [vmem:[%s8159 + $0x68] sm:$0xff]
      %v8174 = vld [vmem:[%s8159 + $0x70] sm:$0xff]
      %v8175 = vld [vmem:[%s8159 + $0x78] sm:$0xff]
      %v8176 = vld [vmem:[%s8159 + $0x80] sm:$0xff]
      %v8177 = vld [vmem:[%s8159 + $0x88] sm:$0xff]
      %v8178 = vld [vmem:[%s8159 + $0x90] sm:$0xff]
      %v8179 = vld [vmem:[%s8159 + $0x98] sm:$0xff]
      %v8180 = vld [vmem:[%s8159 + $0xa0] sm:$0xff]
      %v8181 = vld [vmem:[%s8159 + $0xa8] sm:$0xff]
      %v8182 = vld [vmem:[%s8159 + $0xb0] sm:$0xff]
      %v8183 = vld [vmem:[%s8159 + $0xb8] sm:$0xff]
      %v8184 = vld [vmem:[%s8159 + $0xc0] sm:$0xff]
      %v8185 = vld [vmem:[%s8159 + $0xc8] sm:$0xff]
      %v8186 = vld [vmem:[%s8159 + $0xd0] sm:$0xff]
      %v8187 = vld [vmem:[%s8159 + $0xd8] sm:$0xff]
      %v8188 = vld [vmem:[%s8159 + $0xe0] sm:$0xff]
      %v8189 = vld [vmem:[%s8159 + $0xe8] sm:$0xff]
      %v8190 = vld [vmem:[%s8159 + $0xf0] sm:$0xff]
      %v8191 = vld [vmem:[%s8159 + $0xf8] sm:$0xff]
      %v8192 = vld [vmem:[%s8159 + $0x100] sm:$0xff]
      %v8193 = vld [vmem:[%s8159 + $0x108] sm:$0xff]
      %v8194 = vld [vmem:[%s8159 + $0x110] sm:$0xff]
      %v8195 = vld [vmem:[%s8159 + $0x118] sm:$0xff]
      %v8196 = vld [vmem:[%s8159 + $0x120] sm:$0xff]
      %v8197 = vld [vmem:[%s8159 + $0x128] sm:$0xff]
      %v8198 = vld [vmem:[%s8159 + $0x130] sm:$0xff]
      %v8199 = vld [vmem:[%s8159 + $0x138] sm:$0xff]
      %v8200 = vld [vmem:[%s8159 + $0x140] sm:$0xff]
      %v8201 = vld [vmem:[%s8159 + $0x148] sm:$0xff]
      %v8202 = vld [vmem:[%s8159 + $0x150] sm:$0xff]
      %v8203 = vld [vmem:[%s8159 + $0x158] sm:$0xff]
      %v8204 = vld [vmem:[%s8159 + $0x160] sm:$0xff]
      %v8205 = vld [vmem:[%s8159 + $0x168] sm:$0xff]
      %v8206 = vld [vmem:[%s8159 + $0x170] sm:$0xff]
      %v8207 = vld [vmem:[%s8159 + $0x178] sm:$0xff]
      %v8208 = vld [vmem:[%s8159 + $0x180] sm:$0xff]
      %v8209 = vld [vmem:[%s8159 + $0x188] sm:$0xff]
      %v8210 = vld [vmem:[%s8159 + $0x190] sm:$0xff]
      %v8211 = vld [vmem:[%s8159 + $0x198] sm:$0xff]
      %v8212 = vld [vmem:[%s8159 + $0x1a0] sm:$0xff]
      %v8213 = vld [vmem:[%s8159 + $0x1a8] sm:$0xff]
      %v8214 = vld [vmem:[%s8159 + $0x1b0] sm:$0xff]
      %v8215 = vld [vmem:[%s8159 + $0x1b8] sm:$0xff]
      %v8216 = vld [vmem:[%s8159 + $0x1c0] sm:$0xff]
      %v8217 = vld [vmem:[%s8159 + $0x1c8] sm:$0xff]
      %v8218 = vld [vmem:[%s8159 + $0x1d0] sm:$0xff]
      %v8219 = vld [vmem:[%s8159 + $0x1d8] sm:$0xff]
      %v8280 = vunpack.c.l.b16 %v8160
      %v8281 = vunpack.c.h.b16 %v8160
      %v8282 = vunpack.c.l.b16 %v8161
      %v8283 = vunpack.c.h.b16 %v8161
      %v8284 = vunpack.c.l.b16 %v8162
      %v8285 = vunpack.c.h.b16 %v8162
      %v8286 = vunpack.c.l.b16 %v8163
      %v8287 = vunpack.c.h.b16 %v8163
      %v8288 = vunpack.c.l.b16 %v8164
      %v8289 = vunpack.c.h.b16 %v8164
      %v8290 = vunpack.c.l.b16 %v8165
      %v8291 = vunpack.c.h.b16 %v8165
      %v8292 = vunpack.c.l.b16 %v8166
      %v8293 = vunpack.c.h.b16 %v8166
      %v8294 = vunpack.c.l.b16 %v8167
      %v8295 = vunpack.c.h.b16 %v8167
      %v8296 = vunpack.c.l.b16 %v8168
      %v8297 = vunpack.c.h.b16 %v8168
      %v8298 = vunpack.c.l.b16 %v8169
      %v8299 = vunpack.c.h.b16 %v8169
      %v8300 = vunpack.c.l.b16 %v8170
      %v8301 = vunpack.c.h.b16 %v8170
      %v8302 = vunpack.c.l.b16 %v8171
      %v8303 = vunpack.c.h.b16 %v8171
      %v8304 = vunpack.c.l.b16 %v8172
      %v8305 = vunpack.c.h.b16 %v8172
      %v8306 = vunpack.c.l.b16 %v8173
      %v8307 = vunpack.c.h.b16 %v8173
      %v8308 = vunpack.c.l.b16 %v8174
      %v8309 = vunpack.c.h.b16 %v8174
      %v8310 = vunpack.c.l.b16 %v8175
      %v8311 = vunpack.c.h.b16 %v8175
      %v8312 = vunpack.c.l.b16 %v8176
      %v8313 = vunpack.c.h.b16 %v8176
      %v8314 = vunpack.c.l.b16 %v8177
      %v8315 = vunpack.c.h.b16 %v8177
      %v8316 = vunpack.c.l.b16 %v8178
      %v8317 = vunpack.c.h.b16 %v8178
      %v8318 = vunpack.c.l.b16 %v8179
      %v8319 = vunpack.c.h.b16 %v8179
      %v8320 = vunpack.c.l.b16 %v8180
      %v8321 = vunpack.c.h.b16 %v8180
      %v8322 = vunpack.c.l.b16 %v8181
      %v8323 = vunpack.c.h.b16 %v8181
      %v8324 = vunpack.c.l.b16 %v8182
      %v8325 = vunpack.c.h.b16 %v8182
      %v8326 = vunpack.c.l.b16 %v8183
      %v8327 = vunpack.c.h.b16 %v8183
      %v8328 = vunpack.c.l.b16 %v8184
      %v8329 = vunpack.c.h.b16 %v8184
      %v8330 = vunpack.c.l.b16 %v8185
      %v8331 = vunpack.c.h.b16 %v8185
      %v8332 = vunpack.c.l.b16 %v8186
      %v8333 = vunpack.c.h.b16 %v8186
      %v8334 = vunpack.c.l.b16 %v8187
      %v8335 = vunpack.c.h.b16 %v8187
      %v8336 = vunpack.c.l.b16 %v8188
      %v8337 = vunpack.c.h.b16 %v8188
      %v8338 = vunpack.c.l.b16 %v8189
      %v8339 = vunpack.c.h.b16 %v8189
      %v8340 = vunpack.c.l.b16 %v8190
      %v8341 = vunpack.c.h.b16 %v8190
      %v8342 = vunpack.c.l.b16 %v8191
      %v8343 = vunpack.c.h.b16 %v8191
      %v8344 = vunpack.c.l.b16 %v8192
      %v8345 = vunpack.c.h.b16 %v8192
      %v8346 = vunpack.c.l.b16 %v8193
      %v8347 = vunpack.c.h.b16 %v8193
      %v8348 = vunpack.c.l.b16 %v8194
      %v8349 = vunpack.c.h.b16 %v8194
      %v8350 = vunpack.c.l.b16 %v8195
      %v8351 = vunpack.c.h.b16 %v8195
      %v8352 = vunpack.c.l.b16 %v8196
      %v8353 = vunpack.c.h.b16 %v8196
      %v8354 = vunpack.c.l.b16 %v8197
      %v8355 = vunpack.c.h.b16 %v8197
      %v8356 = vunpack.c.l.b16 %v8198
      %v8357 = vunpack.c.h.b16 %v8198
      %v8358 = vunpack.c.l.b16 %v8199
      %v8359 = vunpack.c.h.b16 %v8199
      %v8360 = vunpack.c.l.b16 %v8200
      %v8361 = vunpack.c.h.b16 %v8200
      %v8362 = vunpack.c.l.b16 %v8201
      %v8363 = vunpack.c.h.b16 %v8201
      %v8364 = vunpack.c.l.b16 %v8202
      %v8365 = vunpack.c.h.b16 %v8202
      %v8366 = vunpack.c.l.b16 %v8203
      %v8367 = vunpack.c.h.b16 %v8203
      %v8368 = vunpack.c.l.b16 %v8204
      %v8369 = vunpack.c.h.b16 %v8204
      %v8370 = vunpack.c.l.b16 %v8205
      %v8371 = vunpack.c.h.b16 %v8205
      %v8372 = vunpack.c.l.b16 %v8206
      %v8373 = vunpack.c.h.b16 %v8206
      %v8374 = vunpack.c.l.b16 %v8207
      %v8375 = vunpack.c.h.b16 %v8207
      %v8376 = vunpack.c.l.b16 %v8208
      %v8377 = vunpack.c.h.b16 %v8208
      %v8378 = vunpack.c.l.b16 %v8209
      %v8379 = vunpack.c.h.b16 %v8209
      %v8380 = vunpack.c.l.b16 %v8210
      %v8381 = vunpack.c.h.b16 %v8210
      %v8382 = vunpack.c.l.b16 %v8211
      %v8383 = vunpack.c.h.b16 %v8211
      %v8384 = vunpack.c.l.b16 %v8212
      %v8385 = vunpack.c.h.b16 %v8212
      %v8386 = vunpack.c.l.b16 %v8213
      %v8387 = vunpack.c.h.b16 %v8213
      %v8388 = vunpack.c.l.b16 %v8214
      %v8389 = vunpack.c.h.b16 %v8214
      %v8390 = vunpack.c.l.b16 %v8215
      %v8391 = vunpack.c.h.b16 %v8215
      %v8392 = vunpack.c.l.b16 %v8216
      %v8393 = vunpack.c.h.b16 %v8216
      %v8394 = vunpack.c.l.b16 %v8217
      %v8395 = vunpack.c.h.b16 %v8217
      %v8396 = vunpack.c.l.b16 %v8218
      %v8397 = vunpack.c.h.b16 %v8218
      %v8398 = vunpack.c.l.b16 %v8219
      %v8399 = vunpack.c.h.b16 %v8219
      %v8400 = vpack.c.b16 %v8282, %v8280
      %v8401 = vpack.c.b16 %v8283, %v8281
      %v8402 = vpack.c.b16 %v8286, %v8284
      %v8403 = vpack.c.b16 %v8287, %v8285
      %v8404 = vpack.c.b16 %v8290, %v8288
      %v8405 = vpack.c.b16 %v8291, %v8289
      %v8406 = vpack.c.b16 %v8294, %v8292
      %v8407 = vpack.c.b16 %v8295, %v8293
      %v8408 = vpack.c.b16 %v8298, %v8296
      %v8409 = vpack.c.b16 %v8299, %v8297
      %v8410 = vpack.c.b16 %v8302, %v8300
      %v8411 = vpack.c.b16 %v8303, %v8301
      %v8412 = vpack.c.b16 %v8306, %v8304
      %v8413 = vpack.c.b16 %v8307, %v8305
      %v8414 = vpack.c.b16 %v8310, %v8308
      %v8415 = vpack.c.b16 %v8311, %v8309
      %v8416 = vpack.c.b16 %v8314, %v8312
      %v8417 = vpack.c.b16 %v8315, %v8313
      %v8418 = vpack.c.b16 %v8318, %v8316
      %v8419 = vpack.c.b16 %v8319, %v8317
      %v8420 = vpack.c.b16 %v8322, %v8320
      %v8421 = vpack.c.b16 %v8323, %v8321
      %v8422 = vpack.c.b16 %v8326, %v8324
      %v8423 = vpack.c.b16 %v8327, %v8325
      %v8424 = vpack.c.b16 %v8330, %v8328
      %v8425 = vpack.c.b16 %v8331, %v8329
      %v8426 = vpack.c.b16 %v8334, %v8332
      %v8427 = vpack.c.b16 %v8335, %v8333
      %v8428 = vpack.c.b16 %v8338, %v8336
      %v8429 = vpack.c.b16 %v8339, %v8337
      %v8430 = vpack.c.b16 %v8342, %v8340
      %v8431 = vpack.c.b16 %v8343, %v8341
      %v8432 = vpack.c.b16 %v8346, %v8344
      %v8433 = vpack.c.b16 %v8347, %v8345
      %v8434 = vpack.c.b16 %v8350, %v8348
      %v8435 = vpack.c.b16 %v8351, %v8349
      %v8436 = vpack.c.b16 %v8354, %v8352
      %v8437 = vpack.c.b16 %v8355, %v8353
      %v8438 = vpack.c.b16 %v8358, %v8356
      %v8439 = vpack.c.b16 %v8359, %v8357
      %v8440 = vpack.c.b16 %v8362, %v8360
      %v8441 = vpack.c.b16 %v8363, %v8361
      %v8442 = vpack.c.b16 %v8366, %v8364
      %v8443 = vpack.c.b16 %v8367, %v8365
      %v8444 = vpack.c.b16 %v8370, %v8368
      %v8445 = vpack.c.b16 %v8371, %v8369
      %v8446 = vpack.c.b16 %v8374, %v8372
      %v8447 = vpack.c.b16 %v8375, %v8373
      %v8448 = vpack.c.b16 %v8378, %v8376
      %v8449 = vpack.c.b16 %v8379, %v8377
      %v8450 = vpack.c.b16 %v8382, %v8380
      %v8451 = vpack.c.b16 %v8383, %v8381
      %v8452 = vpack.c.b16 %v8386, %v8384
      %v8453 = vpack.c.b16 %v8387, %v8385
      %v8454 = vpack.c.b16 %v8390, %v8388
      %v8455 = vpack.c.b16 %v8391, %v8389
      %v8456 = vpack.c.b16 %v8394, %v8392
      %v8457 = vpack.c.b16 %v8395, %v8393
      %v8458 = vpack.c.b16 %v8398, %v8396
      %v8459 = vpack.c.b16 %v8399, %v8397
      %8520 = vmatprep.subr.bf16.mxu0 %v8415
      %8521 = vmatpush1.bf16.msra.mxu0 %v8414
      %8522 = vmatprep.subr.bf16.mxu0 %v8413
      %8523 = vmatpush1.bf16.msra.mxu0 %v8412
      %8524 = vmatprep.subr.bf16.mxu0 %v8411
      %8525 = vmatpush1.bf16.msra.mxu0 %v8410
      %8526 = vmatprep.subr.bf16.mxu0 %v8409
      %8527 = vmatpush1.bf16.msra.mxu0 %v8408
      %8528 = vmatprep.subr.bf16.mxu0 %v8407
      %8529 = vmatpush1.bf16.msra.mxu0 %v8406
      %8530 = vmatprep.subr.bf16.mxu0 %v8405
      %8531 = vmatpush1.bf16.msra.mxu0 %v8404
      %8532 = vmatprep.subr.bf16.mxu0 %v8403
      %8533 = vmatpush1.bf16.msra.mxu0 %v8402
      %8534 = vmatprep.subr.bf16.mxu0 %v8401
      %8535 = vmatpush1.bf16.msra.mxu0 %v8400
      %8536 = vmatprep.subr.bf16.mxu0 %v8431
      %8537 = vmatpush2.bf16.msra.mxu0 %v8430
      %8538 = vmatprep.subr.bf16.mxu0 %v8429
      %8539 = vmatpush2.bf16.msra.mxu0 %v8428
      %8540 = vmatprep.subr.bf16.mxu0 %v8427
      %8541 = vmatpush2.bf16.msra.mxu0 %v8426
      %8542 = vmatprep.subr.bf16.mxu0 %v8425
      %8543 = vmatpush2.bf16.msra.mxu0 %v8424
      %8544 = vmatprep.subr.bf16.mxu0 %v8423
      %8545 = vmatpush2.bf16.msra.mxu0 %v8422
      %8546 = vmatprep.subr.bf16.mxu0 %v8421
      %8547 = vmatpush2.bf16.msra.mxu0 %v8420
      %8548 = vmatprep.subr.bf16.mxu0 %v8419
      %8549 = vmatpush2.bf16.msra.mxu0 %v8418
      %8550 = vmatprep.subr.bf16.mxu0 %v8417
      %8551 = vmatpush2.bf16.msra.mxu0 %v8416
      %8552 = vmatprep.mubr.bf16.mxu0 %v4285
      %8553 = vmatmul.mubr.bf16.gmra.mxu0 %v4284
      %v8554 = vpop.f32.mrf.mxu0
      %v8555 = vadd.f32 0.0, %v8554
      %v8556 = vpop.f32.mrf.mxu0
      %v8557 = vadd.f32 0.0, %v8556
      %v8558 = vpop.f32.mrf.mxu0
      %v8559 = vadd.f32 0.0, %v8558
      %v8560 = vpop.f32.mrf.mxu0
      %v8561 = vadd.f32 0.0, %v8560
      %8562 = vmatprep.mubr.bf16.mxu0 %v4289
      %8563 = vmatmul.mubr.bf16.gmra.mxu0 %v4288
      %v8564 = vpop.f32.mrf.mxu0
      %v8565 = vadd.f32 0.0, %v8564
      %v8566 = vpop.f32.mrf.mxu0
      %v8567 = vadd.f32 0.0, %v8566
      %v8568 = vpop.f32.mrf.mxu0
      %v8569 = vadd.f32 0.0, %v8568
      %v8570 = vpop.f32.mrf.mxu0
      %v8571 = vadd.f32 0.0, %v8570
      %8572 = vdwg.mxu0
      %8573 = vmatprep.subr.bf16.mxu0 %v8447
      %8574 = vmatpush1.bf16.msra.mxu0 %v8446
      %8575 = vmatprep.subr.bf16.mxu0 %v8445
      %8576 = vmatpush1.bf16.msra.mxu0 %v8444
      %8577 = vmatprep.subr.bf16.mxu0 %v8443
      %8578 = vmatpush1.bf16.msra.mxu0 %v8442
      %8579 = vmatprep.subr.bf16.mxu0 %v8441
      %8580 = vmatpush1.bf16.msra.mxu0 %v8440
      %8581 = vmatprep.subr.bf16.mxu0 %v8439
      %8582 = vmatpush1.bf16.msra.mxu0 %v8438
      %8583 = vmatprep.subr.bf16.mxu0 %v8437
      %8584 = vmatpush1.bf16.msra.mxu0 %v8436
      %8585 = vmatprep.subr.bf16.mxu0 %v8435
      %8586 = vmatpush1.bf16.msra.mxu0 %v8434
      %8587 = vmatprep.subr.bf16.mxu0 %v8433
      %8588 = vmatpush1.bf16.msra.mxu0 %v8432
      %8589 = vmatprep.subr.bf16.mxu0 0
      %8590 = vmatpush2.bf16.msra.mxu0 0
      %8591 = vmatprep.subr.bf16.mxu0 0
      %8592 = vmatpush2.bf16.msra.mxu0 0
      %8593 = vmatprep.subr.bf16.mxu0 %v8459
      %8594 = vmatpush2.bf16.msra.mxu0 %v8458
      %8595 = vmatprep.subr.bf16.mxu0 %v8457
      %8596 = vmatpush2.bf16.msra.mxu0 %v8456
      %8597 = vmatprep.subr.bf16.mxu0 %v8455
      %8598 = vmatpush2.bf16.msra.mxu0 %v8454
      %8599 = vmatprep.subr.bf16.mxu0 %v8453
      %8600 = vmatpush2.bf16.msra.mxu0 %v8452
      %8601 = vmatprep.subr.bf16.mxu0 %v8451
      %8602 = vmatpush2.bf16.msra.mxu0 %v8450
      %8603 = vmatprep.subr.bf16.mxu0 %v8449
      %8604 = vmatpush2.bf16.msra.mxu0 %v8448
      %8605 = vmatprep.mubr.bf16.mxu0 %v5603
      %8606 = vmatmul.mubr.bf16.gmra.mxu0 %v4286
      %v8607 = vpop.f32.mrf.mxu0
      %v8608 = vadd.f32 %v8555, %v8607
      %v8609 = vpop.f32.mrf.mxu0
      %v8610 = vadd.f32 %v8557, %v8609
      %v8611 = vpop.f32.mrf.mxu0
      %v8612 = vadd.f32 %v8559, %v8611
      %v8613 = vpop.f32.mrf.mxu0
      %v8614 = vadd.f32 %v8561, %v8613
      %8615 = vmatprep.mubr.bf16.mxu0 %v5606
      %8616 = vmatmul.mubr.bf16.gmra.mxu0 %v4290
      %v8617 = vpop.f32.mrf.mxu0
      %v8618 = vadd.f32 %v8565, %v8617
      %v8619 = vpop.f32.mrf.mxu0
      %v8620 = vadd.f32 %v8567, %v8619
      %v8621 = vpop.f32.mrf.mxu0
      %v8622 = vadd.f32 %v8569, %v8621
      %v8623 = vpop.f32.mrf.mxu0
      %v8624 = vadd.f32 %v8571, %v8623
      %8625 = vdwg.mxu0
      %v8626 = vadd.f32 %v8141, %v8608
      %v8627 = vadd.f32 %v8143, %v8610
      %v8628 = vadd.f32 %v8145, %v8612
      %v8629 = vadd.f32 %v8147, %v8614
      %v8630 = vadd.f32 %v8151, %v8618
      %v8631 = vadd.f32 %v8153, %v8620
      %v8632 = vadd.f32 %v8155, %v8622
      %v8633 = vadd.f32 %v8157, %v8624
      %v8634 = vadd.f32 %v8626, %v5726
      %v8635 = vadd.f32 %v8627, %v5730
      %v8636 = vadd.f32 %v8628, %v5726
      %v8637 = vadd.f32 %v8629, %v5730
      %v8638 = vadd.f32 %v8630, %v5726
      %v8639 = vadd.f32 %v8631, %v5730
      %v8640 = vadd.f32 %v8632, %v5726
      %v8641 = vadd.f32 %v8633, %v5730
      %vm8642 = vcmp.gt.f32.partialorder %v8634, 0.0
      %vm8643 = vcmp.gt.f32.partialorder %v8635, 0.0
      %vm8644 = vcmp.gt.f32.partialorder %v8636, 0.0
      %vm8645 = vcmp.gt.f32.partialorder %v8637, 0.0
      %vm8646 = vcmp.gt.f32.partialorder %v8638, 0.0
      %vm8647 = vcmp.gt.f32.partialorder %v8639, 0.0
      %vm8648 = vcmp.gt.f32.partialorder %v8640, 0.0
      %vm8649 = vcmp.gt.f32.partialorder %v8641, 0.0
      %v8650 = vmul.f32 %v5753, %v8634
      %v8651 = vmul.f32 %v5757, %v8635
      %v8652 = vmul.f32 %v5753, %v8636
      %v8653 = vmul.f32 %v5757, %v8637
      %v8654 = vmul.f32 %v5753, %v8638
      %v8655 = vmul.f32 %v5757, %v8639
      %v8656 = vmul.f32 %v5753, %v8640
      %v8657 = vmul.f32 %v5757, %v8641
      %v8658 = vsel %vm8642, %v8634, %v8650
      %v8659 = vsel %vm8643, %v8635, %v8651
      %v8660 = vsel %vm8644, %v8636, %v8652
      %v8661 = vsel %vm8645, %v8637, %v8653
      %v8662 = vsel %vm8646, %v8638, %v8654
      %v8663 = vsel %vm8647, %v8639, %v8655
      %v8664 = vsel %vm8648, %v8640, %v8656
      %v8665 = vsel %vm8649, %v8641, %v8657
      %v8666 = vmax.f32 %v7217, %v8658
      %v8667 = vmax.f32 %v7218, %v8659
      %v8668 = vmax.f32 %v7219, %v8660
      %v8669 = vmax.f32 %v7220, %v8661
      %v8670 = vmax.f32 %v7221, %v8662
      %v8671 = vmax.f32 %v7222, %v8663
      %v8672 = vmax.f32 %v7223, %v8664
      %v8673 = vmax.f32 %v7224, %v8665
      %8674 = vst [vmem:[%s228] sm:$0xff] %v8666
      %vm8675 = vcmask 523264
      %8676 = vst.msk [vmem:[%s228 + $0x8] sm:$0xff] %vm8675, %v8667
      %8677 = vst [vmem:[%s228 + $0x10] sm:$0xff] %v8668
      %8678 = vst.msk [vmem:[%s228 + $0x18] sm:$0xff] %vm8675, %v8669
      %8679 = vst [vmem:[%s228 + $0x20] sm:$0xff] %v8670
      %8680 = vst.msk [vmem:[%s228 + $0x28] sm:$0xff] %vm8675, %v8671
      %8681 = vst [vmem:[%s228 + $0x30] sm:$0xff] %v8672
      %8682 = vst.msk [vmem:[%s228 + $0x38] sm:$0xff] %vm8675, %v8673
      %s8683 = smul.u32 4, %s16
      %p8684 = scmp.lt.s32.totalorder %s8683, 7
      %s8685 = scalar_select %p8684, %s8683, 7
      %s8686 = smul.addr %s8685, 2
      %s8687 = smul.addr %s8686, 8
      %s8688 = scalar_lea.vmem %s5, %s8687
      // Predicated region
      $region41: #{feature_extractor_forward.1} parent=39 // pred_check
        %p8689 = pneg %p144
      $region42: #{feature_extractor_forward.1} parent=39 // pred_check_branch
        %8691 = sbr.rel (%p8689) target = $region44
      $region43: #{feature_extractor_forward.1} parent=39 // pred_region
        %s8692 = smul.u32 4, %s16
      $region44: #{feature_extractor_forward.1} parent=39 // pred_fallthru
        _
    $region40: #{feature_extractor_forward.1} parent=5 // pred_fallthru
      _
    %p8693 = scmp.le.s32.totalorder 2, %s11
    // Predicated region
    $region45: #{feature_extractor_forward.1} parent=5 // pred_check
      %p8694 = pneg %p8693
    $region46: #{feature_extractor_forward.1} parent=5 // pred_check_branch
      %8696 = sbr.rel (%p8694) target = $region48
    $region47: #{feature_extractor_forward.1} parent=5 // pred_region
      %s8697 = ssub.s32 %s11, 2
      // Predicated region
      $region49: #{feature_extractor_forward.1} parent=47 // pred_check
        %p8698 = pneg %p150
      $region50: #{feature_extractor_forward.1} parent=47 // pred_check_branch
        %8700 = sbr.rel (%p8698) target = $region52
      $region51: #{feature_extractor_forward.1} parent=47 // pred_region
        %s8701 = smul.u32 4, %s17
        %p8702 = scmp.lt.s32.totalorder %s8701, 7
        %s8703 = scalar_select %p8702, %s8701, 7
        %s8704 = smul.addr %s8703, 2
        %s8705 = smul.addr %s8704, 8
        %s8706 = scalar_lea.vmem %s5, %s8705
      $region52: #{feature_extractor_forward.1} parent=47 // pred_fallthru
        _
    $region48: #{feature_extractor_forward.1} parent=5 // pred_fallthru
      _
  $region6: #{feature_extractor_forward.1} parent=0 // loop_footer
    %s15 = sadd.s32 1, %s11
  $region7: #{feature_extractor_forward.1} parent=0 // loop_footer_branch
    %10 = sbr.rel target = $region3
  $region8: #{feature_extractor_forward.1} parent=0 // loop_exit
    _

</llo_original>
